<compile_context>
chip_gen: v5e
topology: v5e:2x2
jax: 0.10.0
libtpu: 0.0.40
codegen_flags: <defaults>
</compile_context>

<pallas_src>
import functools

import jax
import jax.numpy as jnp
from jax import lax
from jax.experimental import pallas as pl
from jax.experimental.pallas import tpu as pltpu


def _round_up(v, m):
    return -(-v // m) * m


def _ppeg_kernel(H, W, Wp, x_ref, w_ref, b_ref, out_ref,
                 xpad_ref, slab_ref, in_sem, slab_sem):
    """One (batch, channel-tile) block per grid step.

    x_ref:    (1, N, Ct)       token block (row 0 = cls token), N = 1 + H*W
    w_ref:    (7, 7, Ct)       folded depthwise weights (identity tap included)
    b_ref:    (1, Ct)          folded bias
    out_ref:  (1, N, Ct)       token block out
    xpad_ref: (H+6, Wp, Ct)    zero-haloed feature-map scratch (input dtype)
    slab_ref: (7, H+6, W, Ct)  dx-shifted slabs -> all tap reads are aligned
    in_sem, slab_sem: DMA semaphore arrays of shape (1,)
    """
    Hp = H + 6
    Ct = out_ref.shape[2]
    dt = xpad_ref.dtype

    # 1) Zero ONLY the 3-wide halo border strips (interior fully overwritten
    #    below; re-done every step so it is safe with megacore sharding).
    xpad_ref[0:3, :, :] = jnp.zeros((3, Wp, Ct), dt)
    xpad_ref[H + 3:Hp, :, :] = jnp.zeros((3, Wp, Ct), dt)
    xpad_ref[3:3 + H, 0:3, :] = jnp.zeros((H, 3, Ct), dt)
    xpad_ref[3:3 + H, W + 3:Wp, :] = jnp.zeros((H, Wp - (W + 3), Ct), dt)

    # 2) Interior fill: token rows -> haloed map, one local DMA per image row
    #    (sublane-offset writes handled by the DMA engine, off the vector slots).
    row_copies = []
    for h in range(H):
        cp = pltpu.make_async_copy(
            x_ref.at[pl.ds(0, 1), pl.ds(1 + h * W, W), :],
            xpad_ref.at[pl.ds(3 + h, 1), pl.ds(3, W), :],
            in_sem.at[0])
        cp.start()
        row_copies.append(cp)

    # cls-token passthrough while the row DMAs are in flight.
    out_ref[0, 0:1, :] = x_ref[0, 0:1, :]

    for cp in row_copies:
        cp.wait()

    # 3) Build 7 dx-shifted, row-aligned slabs with the DMA engine so all 49
    #    tap reads below are aligned whole-tile loads (W-shift hoisted out of
    #    the tap loop -> ~7x less misaligned-copy work, and it is off-slot).
    slab_copies = []
    for dx in range(7):
        cp = pltpu.make_async_copy(
            xpad_ref.at[pl.ds(0, Hp), pl.ds(dx, W), :],
            slab_ref.at[dx],
            slab_sem.at[0])
        cp.start()
        slab_copies.append(cp)
    for cp in slab_copies:
        cp.wait()

    # 4) Folded 49-tap depthwise conv, f32 accumulation (pure VPU work; the
    #    dy shift is a slice along the vreg-row axis -> no relayout).
    w = w_ref[...].astype(jnp.float32)                        # (7, 7, Ct)
    bias = b_ref[...].astype(jnp.float32).reshape(1, 1, Ct)   # (1, 1, Ct)
    acc = jnp.broadcast_to(bias, (H, W, Ct))
    for dx in range(7):
        for dy in range(7):
            win = slab_ref[dx, dy:dy + H, :, :].astype(jnp.float32)
            acc = acc + win * w[dy, dx, :]

    # 5) Write token rows: map row h -> tokens [1 + h*W, 1 + (h+1)*W).
    res = acc.astype(out_ref.dtype)
    for h in range(H):
        out_ref[0, 1 + h * W:1 + (h + 1) * W, :] = res[h]


def ppeg_tokens_pallas(x_tok, w_comb, b_comb, H, W):
    """x_tok: (B, 1 + H*W, C) -> (B, 1 + H*W, C); cls row passed through."""
    B, N, C = x_tok.shape
    Ct = 128 if C % 128 == 0 else C       # lane-dense channel tiles when possible
    n_c = C // Ct
    Hp = H + 6
    Wp = _round_up(W + 6, 8)              # sublane-aligned scratch rows

    # TODO(synk): for large H*W add a spatial row-tile grid axis (3-row halo):
    # it bounds the slab scratch (7*Hp*W*Ct) and the (1, N, Ct) blocks under
    # the scoped-VMEM defaults (v5e 16 MiB, v6e/v7x 32 MiB; v7x physical is
    # only 64 MiB) and gives v7x's two TensorCores >= 4 grid steps each so the
    # auto-pipeline can overlap DMA with compute.

    kernel = functools.partial(_ppeg_kernel, H, W, Wp)
    return pl.pallas_call(
        kernel,
        out_shape=jax.ShapeDtypeStruct((B, N, C), x_tok.dtype),
        grid_spec=pltpu.PrefetchScalarGridSpec(
            num_scalar_prefetch=0,
            grid=(B, n_c),
            in_specs=[
                pl.BlockSpec((1, N, Ct), lambda b, c: (b, 0, c)),
                pl.BlockSpec((7, 7, Ct), lambda b, c: (0, 0, c)),
                pl.BlockSpec((1, Ct), lambda b, c: (0, c)),
            ],
            out_specs=pl.BlockSpec((1, N, Ct), lambda b, c: (b, 0, c)),
            scratch_shapes=[
                pltpu.VMEM((Hp, Wp, Ct), x_tok.dtype),
                pltpu.VMEM((7, Hp, W, Ct), x_tok.dtype),
                pltpu.SemaphoreType.DMA((1,)),
                pltpu.SemaphoreType.DMA((1,)),
            ],
        ),
        compiler_params=pltpu.CompilerParams(
            dimension_semantics=("parallel", "parallel")),
    )(x_tok, w_comb, b_comb)


def ppeg_forward(x, H, W, params):
    """x: (B, 1 + H*W, C). Returns (B, 1 + H*W, C), matching PPEG.forward."""
    B, N, C = x.shape
    assert N == 1 + H * W

    # Fold 7x7 + identity + 5x5 + 3x3 (all depthwise) into ONE 7x7 kernel and
    # one bias -- algebraically exact, done once at trace time.
    w_comb = params["w7"].astype(jnp.float32)
    w_comb = w_comb.at[1:6, 1:6, :].add(params["w5"].astype(jnp.float32))
    w_comb = w_comb.at[2:5, 2:5, :].add(params["w3"].astype(jnp.float32))
    w_comb = w_comb.at[3, 3, :].add(1.0)                      # identity branch
    b_comb = (params["b7"] + params["b5"] + params["b3"]).astype(jnp.float32)
    b_comb = b_comb.reshape(1, C)

    # Lane-dense channel blocks: pad C up to a multiple of 128 when C > 128 and
    # not already a multiple (avoids masked vst.msk partial stores in-kernel);
    # small C stays unpadded to avoid blowing up HBM traffic.
    if C % 128 == 0 or C < 128:
        x_in, w_in, b_in = x, w_comb, b_comb
    else:
        Cp = _round_up(C, 128)
        pad3 = ((0, 0), (0, 0), (0, Cp - C))
        x_in = jnp.pad(x, pad3)
        w_in = jnp.pad(w_comb, pad3)
        b_in = jnp.pad(b_comb, ((0, 0), (0, Cp - C)))

    out = ppeg_tokens_pallas(x_in, w_in, b_in, H, W)
    if out.shape[-1] != C:
        out = out[:, :, :C]
    return out


def _ref_depthwise(feat_nhwc, w, b, pad):
    """Pure-JAX reference depthwise conv (NHWC, cross-correlation like nn.Conv2d)."""
    C = feat_nhwc.shape[-1]
    K = w.shape[0]
    kernel = w.reshape(K, K, 1, C)   # HWIO with I = in_channels/groups = 1
    y = lax.conv_general_dilated(
        feat_nhwc, kernel,
        window_strides=(1, 1), padding=((pad, pad), (pad, pad)),
        dimension_numbers=("NHWC", "HWIO", "NHWC"),
        feature_group_count=C)
    return y + b[None, None, None, :]


if __name__ == "__main__":
    B, C, H, W = 2, 128, 14, 14
    N = 1 + H * W

    key = jax.random.PRNGKey(0)
    kx, k7, kb7, k5, kb5, k3, kb3 = jax.random.split(key, 7)

    x = jax.random.normal(kx, (B, N, C), dtype=jnp.float32)

    # Deterministic synthetic depthwise-conv parameters
    # (PyTorch shapes: weight (C,1,K,K), bias (C,); stored here as (K,K,C) / (C,)).
    params = {
        "w7": jax.random.normal(k7, (7, 7, C), dtype=jnp.float32) * 0.05,
        "b7": jax.random.normal(kb7, (C,), dtype=jnp.float32) * 0.05,
        "w5": jax.random.normal(k5, (5, 5, C), dtype=jnp.float32) * 0.05,
        "b5": jax.random.normal(kb5, (C,), dtype=jnp.float32) * 0.05,
        "w3": jax.random.normal(k3, (3, 3, C), dtype=jnp.float32) * 0.05,
        "b3": jax.random.normal(kb3, (C,), dtype=jnp.float32) * 0.05,
    }

    out = ppeg_forward(x, H, W, params)
    out = jax.block_until_ready(out)
    assert out.shape == (B, N, C)

    # Correctness check against a pure-JAX reference of the same semantics.
    feat = x[:, 1:, :].reshape(B, H, W, C)
    ref_map = (feat
               + _ref_depthwise(feat, params["w7"], params["b7"], 3)
               + _ref_depthwise(feat, params["w5"], params["b5"], 2)
               + _ref_depthwise(feat, params["w3"], params["b3"], 1))
    ref = jnp.concatenate([x[:, :1, :], ref_map.reshape(B, H * W, C)], axis=1)
    assert jnp.allclose(out, ref, atol=1e-4, rtol=1e-4), "mismatch vs reference"

    print("KERNEL_OK")
</pallas_src>

<mosaic_0001>
module attributes {stable_mosaic.version = 11 : i64} {
  func.func @_ppeg_kernel(%arg0: i32, %arg1: i32, %arg2: memref<1x197x128xf32, #tpu.memory_space<vmem>>, %arg3: memref<7x7x128xf32, #tpu.memory_space<vmem>>, %arg4: memref<1x128xf32, #tpu.memory_space<vmem>>, %arg5: memref<1x197x128xf32, #tpu.memory_space<vmem>>, %arg6: memref<20x24x128xf32, #tpu.memory_space<vmem>>, %arg7: memref<7x20x14x128xf32, #tpu.memory_space<vmem>>, %arg8: memref<1x!tpu.dma_semaphore, #tpu.memory_space<semaphore_mem>>, %arg9: memref<1x!tpu.dma_semaphore, #tpu.memory_space<semaphore_mem>>) attributes {dimension_semantics = [#tpu.dimension_semantics<parallel>, #tpu.dimension_semantics<parallel>], iteration_bounds = array<i64: 2, 1>, scalar_prefetch = 0 : i64, scratch_operands = 4 : i64, tpu.core_type = #tpu.core_type<tc>, window_params = [{transform_indices = @transform_0, window_bounds = array<i64: 1, 197, 128>}, {transform_indices = @transform_1, window_bounds = array<i64: 7, 7, 128>}, {transform_indices = @transform_2, window_bounds = array<i64: 1, 128>}, {transform_indices = @transform_3, window_bounds = array<i64: 1, 197, 128>}]} {
    %cst = arith.constant 0.000000e+00 : f32
    %0 = vector.broadcast %cst : f32 to vector<3x24x128xf32>
    %c0 = arith.constant 0 : index
    %c0_0 = arith.constant 0 : index
    %c0_1 = arith.constant 0 : index
    %1 = vector.load %arg6[%c0, %c0_0, %c0_1] : memref<20x24x128xf32, #tpu.memory_space<vmem>>, vector<3x24x128xf32>
    tpu.vector_store %arg6[%c0, %c0_0, %c0_1], %0 {strides = array<i32>} : memref<20x24x128xf32, #tpu.memory_space<vmem>>, vector<3x24x128xf32>,
    %cst_2 = arith.constant 0.000000e+00 : f32
    %2 = vector.broadcast %cst_2 : f32 to vector<3x24x128xf32>
    %c17 = arith.constant 17 : index
    %c0_3 = arith.constant 0 : index
    %c0_4 = arith.constant 0 : index
    %3 = vector.load %arg6[%c17, %c0_3, %c0_4] : memref<20x24x128xf32, #tpu.memory_space<vmem>>, vector<3x24x128xf32>
    tpu.vector_store %arg6[%c17, %c0_3, %c0_4], %2 {strides = array<i32>} : memref<20x24x128xf32, #tpu.memory_space<vmem>>, vector<3x24x128xf32>,
    %cst_5 = arith.constant 0.000000e+00 : f32
    %4 = vector.broadcast %cst_5 : f32 to vector<14x3x128xf32>
    %c3 = arith.constant 3 : index
    %c0_6 = arith.constant 0 : index
    %c0_7 = arith.constant 0 : index
    %5 = vector.load %arg6[%c3, %c0_6, %c0_7] : memref<20x24x128xf32, #tpu.memory_space<vmem>>, vector<14x3x128xf32>
    tpu.vector_store %arg6[%c3, %c0_6, %c0_7], %4 {strides = array<i32>} : memref<20x24x128xf32, #tpu.memory_space<vmem>>, vector<14x3x128xf32>,
    %cst_8 = arith.constant 0.000000e+00 : f32
    %6 = vector.broadcast %cst_8 : f32 to vector<14x7x128xf32>
    %c3_9 = arith.constant 3 : index
    %c17_10 = arith.constant 17 : index
    %c0_11 = arith.constant 0 : index
    %7 = vector.load %arg6[%c3_9, %c17_10, %c0_11] : memref<20x24x128xf32, #tpu.memory_space<vmem>>, vector<14x7x128xf32>
    tpu.vector_store %arg6[%c3_9, %c17_10, %c0_11], %6 {strides = array<i32>} : memref<20x24x128xf32, #tpu.memory_space<vmem>>, vector<14x7x128xf32>,
    %c0_i32 = arith.constant 0 : i32
    %c0_i32_12 = arith.constant 0 : i32
    %c1_i32 = arith.constant 1 : i32
    %c0_i32_13 = arith.constant 0 : i32
    %8 = tpu.memref_slice %arg2[%c0_i32_12, %c1_i32, %c0_i32_13] : memref<1x197x128xf32, #tpu.memory_space<vmem>> -> memref<1x14x128xf32, #tpu.memory_space<vmem>>
    %c3_i32 = arith.constant 3 : i32
    %c3_i32_14 = arith.constant 3 : i32
    %c0_i32_15 = arith.constant 0 : i32
    %9 = tpu.memref_slice %arg6[%c3_i32, %c3_i32_14, %c0_i32_15] : memref<20x24x128xf32, #tpu.memory_space<vmem>> -> memref<1x14x128xf32, #tpu.memory_space<vmem>>
    %10 = tpu.memref_slice %arg8[%c0_i32] : memref<1x!tpu.dma_semaphore, #tpu.memory_space<semaphore_mem>> -> memref<1x!tpu.dma_semaphore, #tpu.memory_space<semaphore_mem>>
    %11 = tpu.memref_squeeze %10 : memref<1x!tpu.dma_semaphore, #tpu.memory_space<semaphore_mem>> -> memref<!tpu.dma_semaphore, #tpu.memory_space<semaphore_mem>>
    tpu.enqueue_dma source(%8 : memref<1x14x128xf32, #tpu.memory_space<vmem>>) target(%9 : memref<1x14x128xf32, #tpu.memory_space<vmem>>) target_semaphore(%11 : memref<!tpu.dma_semaphore, #tpu.memory_space<semaphore_mem>>)
    %c0_i32_16 = arith.constant 0 : i32
    %c0_i32_17 = arith.constant 0 : i32
    %c15_i32 = arith.constant 15 : i32
    %c0_i32_18 = arith.constant 0 : i32
    %12 = tpu.memref_slice %arg2[%c0_i32_17, %c15_i32, %c0_i32_18] : memref<1x197x128xf32, #tpu.memory_space<vmem>> -> memref<1x14x128xf32, #tpu.memory_space<vmem>>
    %c4_i32 = arith.constant 4 : i32
    %c3_i32_19 = arith.constant 3 : i32
    %c0_i32_20 = arith.constant 0 : i32
    %13 = tpu.memref_slice %arg6[%c4_i32, %c3_i32_19, %c0_i32_20] : memref<20x24x128xf32, #tpu.memory_space<vmem>> -> memref<1x14x128xf32, #tpu.memory_space<vmem>>
    %14 = tpu.memref_slice %arg8[%c0_i32_16] : memref<1x!tpu.dma_semaphore, #tpu.memory_space<semaphore_mem>> -> memref<1x!tpu.dma_semaphore, #tpu.memory_space<semaphore_mem>>
    %15 = tpu.memref_squeeze %14 : memref<1x!tpu.dma_semaphore, #tpu.memory_space<semaphore_mem>> -> memref<!tpu.dma_semaphore, #tpu.memory_space<semaphore_mem>>
    tpu.enqueue_dma source(%12 : memref<1x14x128xf32, #tpu.memory_space<vmem>>) target(%13 : memref<1x14x128xf32, #tpu.memory_space<vmem>>) target_semaphore(%15 : memref<!tpu.dma_semaphore, #tpu.memory_space<semaphore_mem>>)
    %c0_i32_21 = arith.constant 0 : i32
    %c0_i32_22 = arith.constant 0 : i32
    %c29_i32 = arith.constant 29 : i32
    %c0_i32_23 = arith.constant 0 : i32
    %16 = tpu.memref_slice %arg2[%c0_i32_22, %c29_i32, %c0_i32_23] : memref<1x197x128xf32, #tpu.memory_space<vmem>> -> memref<1x14x128xf32, #tpu.memory_space<vmem>>
    %c5_i32 = arith.constant 5 : i32
    %c3_i32_24 = arith.constant 3 : i32
    %c0_i32_25 = arith.constant 0 : i32
    %17 = tpu.memref_slice %arg6[%c5_i32, %c3_i32_24, %c0_i32_25] : memref<20x24x128xf32, #tpu.memory_space<vmem>> -> memref<1x14x128xf32, #tpu.memory_space<vmem>>
    %18 = tpu.memref_slice %arg8[%c0_i32_21] : memref<1x!tpu.dma_semaphore, #tpu.memory_space<semaphore_mem>> -> memref<1x!tpu.dma_semaphore, #tpu.memory_space<semaphore_mem>>
    %19 = tpu.memref_squeeze %18 : memref<1x!tpu.dma_semaphore, #tpu.memory_space<semaphore_mem>> -> memref<!tpu.dma_semaphore, #tpu.memory_space<semaphore_mem>>
    tpu.enqueue_dma source(%16 : memref<1x14x128xf32, #tpu.memory_space<vmem>>) target(%17 : memref<1x14x128xf32, #tpu.memory_space<vmem>>) target_semaphore(%19 : memref<!tpu.dma_semaphore, #tpu.memory_space<semaphore_mem>>)
    %c0_i32_26 = arith.constant 0 : i32
    %c0_i32_27 = arith.constant 0 : i32
    %c43_i32 = arith.constant 43 : i32
    %c0_i32_28 = arith.constant 0 : i32
    %20 = tpu.memref_slice %arg2[%c0_i32_27, %c43_i32, %c0_i32_28] : memref<1x197x128xf32, #tpu.memory_space<vmem>> -> memref<1x14x128xf32, #tpu.memory_space<vmem>>
    %c6_i32 = arith.constant 6 : i32
    %c3_i32_29 = arith.constant 3 : i32
    %c0_i32_30 = arith.constant 0 : i32
    %21 = tpu.memref_slice %arg6[%c6_i32, %c3_i32_29, %c0_i32_30] : memref<20x24x128xf32, #tpu.memory_space<vmem>> -> memref<1x14x128xf32, #tpu.memory_space<vmem>>
    %22 = tpu.memref_slice %arg8[%c0_i32_26] : memref<1x!tpu.dma_semaphore, #tpu.memory_space<semaphore_mem>> -> memref<1x!tpu.dma_semaphore, #tpu.memory_space<semaphore_mem>>
    %23 = tpu.memref_squeeze %22 : memref<1x!tpu.dma_semaphore, #tpu.memory_space<semaphore_mem>> -> memref<!tpu.dma_semaphore, #tpu.memory_space<semaphore_mem>>
    tpu.enqueue_dma source(%20 : memref<1x14x128xf32, #tpu.memory_space<vmem>>) target(%21 : memref<1x14x128xf32, #tpu.memory_space<vmem>>) target_semaphore(%23 : memref<!tpu.dma_semaphore, #tpu.memory_space<semaphore_mem>>)
    %c0_i32_31 = arith.constant 0 : i32
    %c0_i32_32 = arith.constant 0 : i32
    %c57_i32 = arith.constant 57 : i32
    %c0_i32_33 = arith.constant 0 : i32
    %24 = tpu.memref_slice %arg2[%c0_i32_32, %c57_i32, %c0_i32_33] : memref<1x197x128xf32, #tpu.memory_space<vmem>> -> memref<1x14x128xf32, #tpu.memory_space<vmem>>
    %c7_i32 = arith.constant 7 : i32
    %c3_i32_34 = arith.constant 3 : i32
    %c0_i32_35 = arith.constant 0 : i32
    %25 = tpu.memref_slice %arg6[%c7_i32, %c3_i32_34, %c0_i32_35] : memref<20x24x128xf32, #tpu.memory_space<vmem>> -> memref<1x14x128xf32, #tpu.memory_space<vmem>>
    %26 = tpu.memref_slice %arg8[%c0_i32_31] : memref<1x!tpu.dma_semaphore, #tpu.memory_space<semaphore_mem>> -> memref<1x!tpu.dma_semaphore, #tpu.memory_space<semaphore_mem>>
    %27 = tpu.memref_squeeze %26 : memref<1x!tpu.dma_semaphore, #tpu.memory_space<semaphore_mem>> -> memref<!tpu.dma_semaphore, #tpu.memory_space<semaphore_mem>>
    tpu.enqueue_dma source(%24 : memref<1x14x128xf32, #tpu.memory_space<vmem>>) target(%25 : memref<1x14x128xf32, #tpu.memory_space<vmem>>) target_semaphore(%27 : memref<!tpu.dma_semaphore, #tpu.memory_space<semaphore_mem>>)
    %c0_i32_36 = arith.constant 0 : i32
    %c0_i32_37 = arith.constant 0 : i32
    %c71_i32 = arith.constant 71 : i32
    %c0_i32_38 = arith.constant 0 : i32
    %28 = tpu.memref_slice %arg2[%c0_i32_37, %c71_i32, %c0_i32_38] : memref<1x197x128xf32, #tpu.memory_space<vmem>> -> memref<1x14x128xf32, #tpu.memory_space<vmem>>
    %c8_i32 = arith.constant 8 : i32
    %c3_i32_39 = arith.constant 3 : i32
    %c0_i32_40 = arith.constant 0 : i32
    %29 = tpu.memref_slice %arg6[%c8_i32, %c3_i32_39, %c0_i32_40] : memref<20x24x128xf32, #tpu.memory_space<vmem>> -> memref<1x14x128xf32, #tpu.memory_space<vmem>>
    %30 = tpu.memref_slice %arg8[%c0_i32_36] : memref<1x!tpu.dma_semaphore, #tpu.memory_space<semaphore_mem>> -> memref<1x!tpu.dma_semaphore, #tpu.memory_space<semaphore_mem>>
    %31 = tpu.memref_squeeze %30 : memref<1x!tpu.dma_semaphore, #tpu.memory_space<semaphore_mem>> -> memref<!tpu.dma_semaphore, #tpu.memory_space<semaphore_mem>>
    tpu.enqueue_dma source(%28 : memref<1x14x128xf32, #tpu.memory_space<vmem>>) target(%29 : memref<1x14x128xf32, #tpu.memory_space<vmem>>) target_semaphore(%31 : memref<!tpu.dma_semaphore, #tpu.memory_space<semaphore_mem>>)
    %c0_i32_41 = arith.constant 0 : i32
    %c0_i32_42 = arith.constant 0 : i32
    %c85_i32 = arith.constant 85 : i32
    %c0_i32_43 = arith.constant 0 : i32
    %32 = tpu.memref_slice %arg2[%c0_i32_42, %c85_i32, %c0_i32_43] : memref<1x197x128xf32, #tpu.memory_space<vmem>> -> memref<1x14x128xf32, #tpu.memory_space<vmem>>
    %c9_i32 = arith.constant 9 : i32
    %c3_i32_44 = arith.constant 3 : i32
    %c0_i32_45 = arith.constant 0 : i32
    %33 = tpu.memref_slice %arg6[%c9_i32, %c3_i32_44, %c0_i32_45] : memref<20x24x128xf32, #tpu.memory_space<vmem>> -> memref<1x14x128xf32, #tpu.memory_space<vmem>>
    %34 = tpu.memref_slice %arg8[%c0_i32_41] : memref<1x!tpu.dma_semaphore, #tpu.memory_space<semaphore_mem>> -> memref<1x!tpu.dma_semaphore, #tpu.memory_space<semaphore_mem>>
    %35 = tpu.memref_squeeze %34 : memref<1x!tpu.dma_semaphore, #tpu.memory_space<semaphore_mem>> -> memref<!tpu.dma_semaphore, #tpu.memory_space<semaphore_mem>>
    tpu.enqueue_dma source(%32 : memref<1x14x128xf32, #tpu.memory_space<vmem>>) target(%33 : memref<1x14x128xf32, #tpu.memory_space<vmem>>) target_semaphore(%35 : memref<!tpu.dma_semaphore, #tpu.memory_space<semaphore_mem>>)
    %c0_i32_46 = arith.constant 0 : i32
    %c0_i32_47 = arith.constant 0 : i32
    %c99_i32 = arith.constant 99 : i32
    %c0_i32_48 = arith.constant 0 : i32
    %36 = tpu.memref_slice %arg2[%c0_i32_47, %c99_i32, %c0_i32_48] : memref<1x197x128xf32, #tpu.memory_space<vmem>> -> memref<1x14x128xf32, #tpu.memory_space<vmem>>
    %c10_i32 = arith.constant 10 : i32
    %c3_i32_49 = arith.constant 3 : i32
    %c0_i32_50 = arith.constant 0 : i32
    %37 = tpu.memref_slice %arg6[%c10_i32, %c3_i32_49, %c0_i32_50] : memref<20x24x128xf32, #tpu.memory_space<vmem>> -> memref<1x14x128xf32, #tpu.memory_space<vmem>>
    %38 = tpu.memref_slice %arg8[%c0_i32_46] : memref<1x!tpu.dma_semaphore, #tpu.memory_space<semaphore_mem>> -> memref<1x!tpu.dma_semaphore, #tpu.memory_space<semaphore_mem>>
    %39 = tpu.memref_squeeze %38 : memref<1x!tpu.dma_semaphore, #tpu.memory_space<semaphore_mem>> -> memref<!tpu.dma_semaphore, #tpu.memory_space<semaphore_mem>>
    tpu.enqueue_dma source(%36 : memref<1x14x128xf32, #tpu.memory_space<vmem>>) target(%37 : memref<1x14x128xf32, #tpu.memory_space<vmem>>) target_semaphore(%39 : memref<!tpu.dma_semaphore, #tpu.memory_space<semaphore_mem>>)
    %c0_i32_51 = arith.constant 0 : i32
    %c0_i32_52 = arith.constant 0 : i32
    %c113_i32 = arith.constant 113 : i32
    %c0_i32_53 = arith.constant 0 : i32
    %40 = tpu.memref_slice %arg2[%c0_i32_52, %c113_i32, %c0_i32_53] : memref<1x197x128xf32, #tpu.memory_space<vmem>> -> memref<1x14x128xf32, #tpu.memory_space<vmem>>
    %c11_i32 = arith.constant 11 : i32
    %c3_i32_54 = arith.constant 3 : i32
    %c0_i32_55 = arith.constant 0 : i32
    %41 = tpu.memref_slice %arg6[%c11_i32, %c3_i32_54, %c0_i32_55] : memref<20x24x128xf32, #tpu.memory_space<vmem>> -> memref<1x14x128xf32, #tpu.memory_space<vmem>>
    %42 = tpu.memref_slice %arg8[%c0_i32_51] : memref<1x!tpu.dma_semaphore, #tpu.memory_space<semaphore_mem>> -> memref<1x!tpu.dma_semaphore, #tpu.memory_space<semaphore_mem>>
    %43 = tpu.memref_squeeze %42 : memref<1x!tpu.dma_semaphore, #tpu.memory_space<semaphore_mem>> -> memref<!tpu.dma_semaphore, #tpu.memory_space<semaphore_mem>>
    tpu.enqueue_dma source(%40 : memref<1x14x128xf32, #tpu.memory_space<vmem>>) target(%41 : memref<1x14x128xf32, #tpu.memory_space<vmem>>) target_semaphore(%43 : memref<!tpu.dma_semaphore, #tpu.memory_space<semaphore_mem>>)
    %c0_i32_56 = arith.constant 0 : i32
    %c0_i32_57 = arith.constant 0 : i32
    %c127_i32 = arith.constant 127 : i32
    %c0_i32_58 = arith.constant 0 : i32
    %44 = tpu.memref_slice %arg2[%c0_i32_57, %c127_i32, %c0_i32_58] : memref<1x197x128xf32, #tpu.memory_space<vmem>> -> memref<1x14x128xf32, #tpu.memory_space<vmem>>
    %c12_i32 = arith.constant 12 : i32
    %c3_i32_59 = arith.constant 3 : i32
    %c0_i32_60 = arith.constant 0 : i32
    %45 = tpu.memref_slice %arg6[%c12_i32, %c3_i32_59, %c0_i32_60] : memref<20x24x128xf32, #tpu.memory_space<vmem>> -> memref<1x14x128xf32, #tpu.memory_space<vmem>>
    %46 = tpu.memref_slice %arg8[%c0_i32_56] : memref<1x!tpu.dma_semaphore, #tpu.memory_space<semaphore_mem>> -> memref<1x!tpu.dma_semaphore, #tpu.memory_space<semaphore_mem>>
    %47 = tpu.memref_squeeze %46 : memref<1x!tpu.dma_semaphore, #tpu.memory_space<semaphore_mem>> -> memref<!tpu.dma_semaphore, #tpu.memory_space<semaphore_mem>>
    tpu.enqueue_dma source(%44 : memref<1x14x128xf32, #tpu.memory_space<vmem>>) target(%45 : memref<1x14x128xf32, #tpu.memory_space<vmem>>) target_semaphore(%47 : memref<!tpu.dma_semaphore, #tpu.memory_space<semaphore_mem>>)
    %c0_i32_61 = arith.constant 0 : i32
    %c0_i32_62 = arith.constant 0 : i32
    %c141_i32 = arith.constant 141 : i32
    %c0_i32_63 = arith.constant 0 : i32
    %48 = tpu.memref_slice %arg2[%c0_i32_62, %c141_i32, %c0_i32_63] : memref<1x197x128xf32, #tpu.memory_space<vmem>> -> memref<1x14x128xf32, #tpu.memory_space<vmem>>
    %c13_i32 = arith.constant 13 : i32
    %c3_i32_64 = arith.constant 3 : i32
    %c0_i32_65 = arith.constant 0 : i32
    %49 = tpu.memref_slice %arg6[%c13_i32, %c3_i32_64, %c0_i32_65] : memref<20x24x128xf32, #tpu.memory_space<vmem>> -> memref<1x14x128xf32, #tpu.memory_space<vmem>>
    %50 = tpu.memref_slice %arg8[%c0_i32_61] : memref<1x!tpu.dma_semaphore, #tpu.memory_space<semaphore_mem>> -> memref<1x!tpu.dma_semaphore, #tpu.memory_space<semaphore_mem>>
    %51 = tpu.memref_squeeze %50 : memref<1x!tpu.dma_semaphore, #tpu.memory_space<semaphore_mem>> -> memref<!tpu.dma_semaphore, #tpu.memory_space<semaphore_mem>>
    tpu.enqueue_dma source(%48 : memref<1x14x128xf32, #tpu.memory_space<vmem>>) target(%49 : memref<1x14x128xf32, #tpu.memory_space<vmem>>) target_semaphore(%51 : memref<!tpu.dma_semaphore, #tpu.memory_space<semaphore_mem>>)
    %c0_i32_66 = arith.constant 0 : i32
    %c0_i32_67 = arith.constant 0 : i32
    %c155_i32 = arith.constant 155 : i32
    %c0_i32_68 = arith.constant 0 : i32
    %52 = tpu.memref_slice %arg2[%c0_i32_67, %c155_i32, %c0_i32_68] : memref<1x197x128xf32, #tpu.memory_space<vmem>> -> memref<1x14x128xf32, #tpu.memory_space<vmem>>
    %c14_i32 = arith.constant 14 : i32
    %c3_i32_69 = arith.constant 3 : i32
    %c0_i32_70 = arith.constant 0 : i32
    %53 = tpu.memref_slice %arg6[%c14_i32, %c3_i32_69, %c0_i32_70] : memref<20x24x128xf32, #tpu.memory_space<vmem>> -> memref<1x14x128xf32, #tpu.memory_space<vmem>>
    %54 = tpu.memref_slice %arg8[%c0_i32_66] : memref<1x!tpu.dma_semaphore, #tpu.memory_space<semaphore_mem>> -> memref<1x!tpu.dma_semaphore, #tpu.memory_space<semaphore_mem>>
    %55 = tpu.memref_squeeze %54 : memref<1x!tpu.dma_semaphore, #tpu.memory_space<semaphore_mem>> -> memref<!tpu.dma_semaphore, #tpu.memory_space<semaphore_mem>>
    tpu.enqueue_dma source(%52 : memref<1x14x128xf32, #tpu.memory_space<vmem>>) target(%53 : memref<1x14x128xf32, #tpu.memory_space<vmem>>) target_semaphore(%55 : memref<!tpu.dma_semaphore, #tpu.memory_space<semaphore_mem>>)
    %c0_i32_71 = arith.constant 0 : i32
    %c0_i32_72 = arith.constant 0 : i32
    %c169_i32 = arith.constant 169 : i32
    %c0_i32_73 = arith.constant 0 : i32
    %56 = tpu.memref_slice %arg2[%c0_i32_72, %c169_i32, %c0_i32_73] : memref<1x197x128xf32, #tpu.memory_space<vmem>> -> memref<1x14x128xf32, #tpu.memory_space<vmem>>
    %c15_i32_74 = arith.constant 15 : i32
    %c3_i32_75 = arith.constant 3 : i32
    %c0_i32_76 = arith.constant 0 : i32
    %57 = tpu.memref_slice %arg6[%c15_i32_74, %c3_i32_75, %c0_i32_76] : memref<20x24x128xf32, #tpu.memory_space<vmem>> -> memref<1x14x128xf32, #tpu.memory_space<vmem>>
    %58 = tpu.memref_slice %arg8[%c0_i32_71] : memref<1x!tpu.dma_semaphore, #tpu.memory_space<semaphore_mem>> -> memref<1x!tpu.dma_semaphore, #tpu.memory_space<semaphore_mem>>
    %59 = tpu.memref_squeeze %58 : memref<1x!tpu.dma_semaphore, #tpu.memory_space<semaphore_mem>> -> memref<!tpu.dma_semaphore, #tpu.memory_space<semaphore_mem>>
    tpu.enqueue_dma source(%56 : memref<1x14x128xf32, #tpu.memory_space<vmem>>) target(%57 : memref<1x14x128xf32, #tpu.memory_space<vmem>>) target_semaphore(%59 : memref<!tpu.dma_semaphore, #tpu.memory_space<semaphore_mem>>)
    %c0_i32_77 = arith.constant 0 : i32
    %c0_i32_78 = arith.constant 0 : i32
    %c183_i32 = arith.constant 183 : i32
    %c0_i32_79 = arith.constant 0 : i32
    %60 = tpu.memref_slice %arg2[%c0_i32_78, %c183_i32, %c0_i32_79] : memref<1x197x128xf32, #tpu.memory_space<vmem>> -> memref<1x14x128xf32, #tpu.memory_space<vmem>>
    %c16_i32 = arith.constant 16 : i32
    %c3_i32_80 = arith.constant 3 : i32
    %c0_i32_81 = arith.constant 0 : i32
    %61 = tpu.memref_slice %arg6[%c16_i32, %c3_i32_80, %c0_i32_81] : memref<20x24x128xf32, #tpu.memory_space<vmem>> -> memref<1x14x128xf32, #tpu.memory_space<vmem>>
    %62 = tpu.memref_slice %arg8[%c0_i32_77] : memref<1x!tpu.dma_semaphore, #tpu.memory_space<semaphore_mem>> -> memref<1x!tpu.dma_semaphore, #tpu.memory_space<semaphore_mem>>
    %63 = tpu.memref_squeeze %62 : memref<1x!tpu.dma_semaphore, #tpu.memory_space<semaphore_mem>> -> memref<!tpu.dma_semaphore, #tpu.memory_space<semaphore_mem>>
    tpu.enqueue_dma source(%60 : memref<1x14x128xf32, #tpu.memory_space<vmem>>) target(%61 : memref<1x14x128xf32, #tpu.memory_space<vmem>>) target_semaphore(%63 : memref<!tpu.dma_semaphore, #tpu.memory_space<semaphore_mem>>)
    %c0_82 = arith.constant 0 : index
    %c0_83 = arith.constant 0 : index
    %c0_84 = arith.constant 0 : index
    %64 = vector.load %arg2[%c0_82, %c0_83, %c0_84] : memref<1x197x128xf32, #tpu.memory_space<vmem>>, vector<1x1x128xf32>
    %65 = vector.shape_cast %64 : vector<1x1x128xf32> to vector<1x128xf32>
    %c0_85 = arith.constant 0 : index
    %c0_86 = arith.constant 0 : index
    %c0_87 = arith.constant 0 : index
    %66 = vector.load %arg5[%c0_85, %c0_86, %c0_87] : memref<1x197x128xf32, #tpu.memory_space<vmem>>, vector<1x1x128xf32>
    %67 = vector.shape_cast %66 : vector<1x1x128xf32> to vector<1x128xf32>
    %68 = vector.shape_cast %65 : vector<1x128xf32> to vector<1x1x128xf32>
    tpu.vector_store %arg5[%c0_85, %c0_86, %c0_87], %68 {strides = array<i32>} : memref<1x197x128xf32, #tpu.memory_space<vmem>>, vector<1x1x128xf32>,
    %c0_i32_88 = arith.constant 0 : i32
    %c0_i32_89 = arith.constant 0 : i32
    %c1_i32_90 = arith.constant 1 : i32
    %c0_i32_91 = arith.constant 0 : i32
    %69 = tpu.memref_slice %arg2[%c0_i32_89, %c1_i32_90, %c0_i32_91] : memref<1x197x128xf32, #tpu.memory_space<vmem>> -> memref<1x14x128xf32, #tpu.memory_space<vmem>>
    %c3_i32_92 = arith.constant 3 : i32
    %c3_i32_93 = arith.constant 3 : i32
    %c0_i32_94 = arith.constant 0 : i32
    %70 = tpu.memref_slice %arg6[%c3_i32_92, %c3_i32_93, %c0_i32_94] : memref<20x24x128xf32, #tpu.memory_space<vmem>> -> memref<1x14x128xf32, #tpu.memory_space<vmem>>
    %71 = tpu.memref_slice %arg8[%c0_i32_88] : memref<1x!tpu.dma_semaphore, #tpu.memory_space<semaphore_mem>> -> memref<1x!tpu.dma_semaphore, #tpu.memory_space<semaphore_mem>>
    %72 = tpu.memref_squeeze %71 : memref<1x!tpu.dma_semaphore, #tpu.memory_space<semaphore_mem>> -> memref<!tpu.dma_semaphore, #tpu.memory_space<semaphore_mem>>
    tpu.wait_dma2 semaphore(%72 : memref<!tpu.dma_semaphore, #tpu.memory_space<semaphore_mem>>) src(%69 : memref<1x14x128xf32, #tpu.memory_space<vmem>>) dst(%70 : memref<1x14x128xf32, #tpu.memory_space<vmem>>)
    %c0_i32_95 = arith.constant 0 : i32
    %c0_i32_96 = arith.constant 0 : i32
    %c15_i32_97 = arith.constant 15 : i32
    %c0_i32_98 = arith.constant 0 : i32
    %73 = tpu.memref_slice %arg2[%c0_i32_96, %c15_i32_97, %c0_i32_98] : memref<1x197x128xf32, #tpu.memory_space<vmem>> -> memref<1x14x128xf32, #tpu.memory_space<vmem>>
    %c4_i32_99 = arith.constant 4 : i32
    %c3_i32_100 = arith.constant 3 : i32
    %c0_i32_101 = arith.constant 0 : i32
    %74 = tpu.memref_slice %arg6[%c4_i32_99, %c3_i32_100, %c0_i32_101] : memref<20x24x128xf32, #tpu.memory_space<vmem>> -> memref<1x14x128xf32, #tpu.memory_space<vmem>>
    %75 = tpu.memref_slice %arg8[%c0_i32_95] : memref<1x!tpu.dma_semaphore, #tpu.memory_space<semaphore_mem>> -> memref<1x!tpu.dma_semaphore, #tpu.memory_space<semaphore_mem>>
    %76 = tpu.memref_squeeze %75 : memref<1x!tpu.dma_semaphore, #tpu.memory_space<semaphore_mem>> -> memref<!tpu.dma_semaphore, #tpu.memory_space<semaphore_mem>>
    tpu.wait_dma2 semaphore(%76 : memref<!tpu.dma_semaphore, #tpu.memory_space<semaphore_mem>>) src(%73 : memref<1x14x128xf32, #tpu.memory_space<vmem>>) dst(%74 : memref<1x14x128xf32, #tpu.memory_space<vmem>>)
    %c0_i32_102 = arith.constant 0 : i32
    %c0_i32_103 = arith.constant 0 : i32
    %c29_i32_104 = arith.constant 29 : i32
    %c0_i32_105 = arith.constant 0 : i32
    %77 = tpu.memref_slice %arg2[%c0_i32_103, %c29_i32_104, %c0_i32_105] : memref<1x197x128xf32, #tpu.memory_space<vmem>> -> memref<1x14x128xf32, #tpu.memory_space<vmem>>
    %c5_i32_106 = arith.constant 5 : i32
    %c3_i32_107 = arith.constant 3 : i32
    %c0_i32_108 = arith.constant 0 : i32
    %78 = tpu.memref_slice %arg6[%c5_i32_106, %c3_i32_107, %c0_i32_108] : memref<20x24x128xf32, #tpu.memory_space<vmem>> -> memref<1x14x128xf32, #tpu.memory_space<vmem>>
    %79 = tpu.memref_slice %arg8[%c0_i32_102] : memref<1x!tpu.dma_semaphore, #tpu.memory_space<semaphore_mem>> -> memref<1x!tpu.dma_semaphore, #tpu.memory_space<semaphore_mem>>
    %80 = tpu.memref_squeeze %79 : memref<1x!tpu.dma_semaphore, #tpu.memory_space<semaphore_mem>> -> memref<!tpu.dma_semaphore, #tpu.memory_space<semaphore_mem>>
    tpu.wait_dma2 semaphore(%80 : memref<!tpu.dma_semaphore, #tpu.memory_space<semaphore_mem>>) src(%77 : memref<1x14x128xf32, #tpu.memory_space<vmem>>) dst(%78 : memref<1x14x128xf32, #tpu.memory_space<vmem>>)
    %c0_i32_109 = arith.constant 0 : i32
    %c0_i32_110 = arith.constant 0 : i32
    %c43_i32_111 = arith.constant 43 : i32
    %c0_i32_112 = arith.constant 0 : i32
    %81 = tpu.memref_slice %arg2[%c0_i32_110, %c43_i32_111, %c0_i32_112] : memref<1x197x128xf32, #tpu.memory_space<vmem>> -> memref<1x14x128xf32, #tpu.memory_space<vmem>>
    %c6_i32_113 = arith.constant 6 : i32
    %c3_i32_114 = arith.constant 3 : i32
    %c0_i32_115 = arith.constant 0 : i32
    %82 = tpu.memref_slice %arg6[%c6_i32_113, %c3_i32_114, %c0_i32_115] : memref<20x24x128xf32, #tpu.memory_space<vmem>> -> memref<1x14x128xf32, #tpu.memory_space<vmem>>
    %83 = tpu.memref_slice %arg8[%c0_i32_109] : memref<1x!tpu.dma_semaphore, #tpu.memory_space<semaphore_mem>> -> memref<1x!tpu.dma_semaphore, #tpu.memory_space<semaphore_mem>>
    %84 = tpu.memref_squeeze %83 : memref<1x!tpu.dma_semaphore, #tpu.memory_space<semaphore_mem>> -> memref<!tpu.dma_semaphore, #tpu.memory_space<semaphore_mem>>
    tpu.wait_dma2 semaphore(%84 : memref<!tpu.dma_semaphore, #tpu.memory_space<semaphore_mem>>) src(%81 : memref<1x14x128xf32, #tpu.memory_space<vmem>>) dst(%82 : memref<1x14x128xf32, #tpu.memory_space<vmem>>)
    %c0_i32_116 = arith.constant 0 : i32
    %c0_i32_117 = arith.constant 0 : i32
    %c57_i32_118 = arith.constant 57 : i32
    %c0_i32_119 = arith.constant 0 : i32
    %85 = tpu.memref_slice %arg2[%c0_i32_117, %c57_i32_118, %c0_i32_119] : memref<1x197x128xf32, #tpu.memory_space<vmem>> -> memref<1x14x128xf32, #tpu.memory_space<vmem>>
    %c7_i32_120 = arith.constant 7 : i32
    %c3_i32_121 = arith.constant 3 : i32
    %c0_i32_122 = arith.constant 0 : i32
    %86 = tpu.memref_slice %arg6[%c7_i32_120, %c3_i32_121, %c0_i32_122] : memref<20x24x128xf32, #tpu.memory_space<vmem>> -> memref<1x14x128xf32, #tpu.memory_space<vmem>>
    %87 = tpu.memref_slice %arg8[%c0_i32_116] : memref<1x!tpu.dma_semaphore, #tpu.memory_space<semaphore_mem>> -> memref<1x!tpu.dma_semaphore, #tpu.memory_space<semaphore_mem>>
    %88 = tpu.memref_squeeze %87 : memref<1x!tpu.dma_semaphore, #tpu.memory_space<semaphore_mem>> -> memref<!tpu.dma_semaphore, #tpu.memory_space<semaphore_mem>>
    tpu.wait_dma2 semaphore(%88 : memref<!tpu.dma_semaphore, #tpu.memory_space<semaphore_mem>>) src(%85 : memref<1x14x128xf32, #tpu.memory_space<vmem>>) dst(%86 : memref<1x14x128xf32, #tpu.memory_space<vmem>>)
    %c0_i32_123 = arith.constant 0 : i32
    %c0_i32_124 = arith.constant 0 : i32
    %c71_i32_125 = arith.constant 71 : i32
    %c0_i32_126 = arith.constant 0 : i32
    %89 = tpu.memref_slice %arg2[%c0_i32_124, %c71_i32_125, %c0_i32_126] : memref<1x197x128xf32, #tpu.memory_space<vmem>> -> memref<1x14x128xf32, #tpu.memory_space<vmem>>
    %c8_i32_127 = arith.constant 8 : i32
    %c3_i32_128 = arith.constant 3 : i32
    %c0_i32_129 = arith.constant 0 : i32
    %90 = tpu.memref_slice %arg6[%c8_i32_127, %c3_i32_128, %c0_i32_129] : memref<20x24x128xf32, #tpu.memory_space<vmem>> -> memref<1x14x128xf32, #tpu.memory_space<vmem>>
    %91 = tpu.memref_slice %arg8[%c0_i32_123] : memref<1x!tpu.dma_semaphore, #tpu.memory_space<semaphore_mem>> -> memref<1x!tpu.dma_semaphore, #tpu.memory_space<semaphore_mem>>
    %92 = tpu.memref_squeeze %91 : memref<1x!tpu.dma_semaphore, #tpu.memory_space<semaphore_mem>> -> memref<!tpu.dma_semaphore, #tpu.memory_space<semaphore_mem>>
    tpu.wait_dma2 semaphore(%92 : memref<!tpu.dma_semaphore, #tpu.memory_space<semaphore_mem>>) src(%89 : memref<1x14x128xf32, #tpu.memory_space<vmem>>) dst(%90 : memref<1x14x128xf32, #tpu.memory_space<vmem>>)
    %c0_i32_130 = arith.constant 0 : i32
    %c0_i32_131 = arith.constant 0 : i32
    %c85_i32_132 = arith.constant 85 : i32
    %c0_i32_133 = arith.constant 0 : i32
    %93 = tpu.memref_slice %arg2[%c0_i32_131, %c85_i32_132, %c0_i32_133] : memref<1x197x128xf32, #tpu.memory_space<vmem>> -> memref<1x14x128xf32, #tpu.memory_space<vmem>>
    %c9_i32_134 = arith.constant 9 : i32
    %c3_i32_135 = arith.constant 3 : i32
    %c0_i32_136 = arith.constant 0 : i32
    %94 = tpu.memref_slice %arg6[%c9_i32_134, %c3_i32_135, %c0_i32_136] : memref<20x24x128xf32, #tpu.memory_space<vmem>> -> memref<1x14x128xf32, #tpu.memory_space<vmem>>
    %95 = tpu.memref_slice %arg8[%c0_i32_130] : memref<1x!tpu.dma_semaphore, #tpu.memory_space<semaphore_mem>> -> memref<1x!tpu.dma_semaphore, #tpu.memory_space<semaphore_mem>>
    %96 = tpu.memref_squeeze %95 : memref<1x!tpu.dma_semaphore, #tpu.memory_space<semaphore_mem>> -> memref<!tpu.dma_semaphore, #tpu.memory_space<semaphore_mem>>
    tpu.wait_dma2 semaphore(%96 : memref<!tpu.dma_semaphore, #tpu.memory_space<semaphore_mem>>) src(%93 : memref<1x14x128xf32, #tpu.memory_space<vmem>>) dst(%94 : memref<1x14x128xf32, #tpu.memory_space<vmem>>)
    %c0_i32_137 = arith.constant 0 : i32
    %c0_i32_138 = arith.constant 0 : i32
    %c99_i32_139 = arith.constant 99 : i32
    %c0_i32_140 = arith.constant 0 : i32
    %97 = tpu.memref_slice %arg2[%c0_i32_138, %c99_i32_139, %c0_i32_140] : memref<1x197x128xf32, #tpu.memory_space<vmem>> -> memref<1x14x128xf32, #tpu.memory_space<vmem>>
    %c10_i32_141 = arith.constant 10 : i32
    %c3_i32_142 = arith.constant 3 : i32
    %c0_i32_143 = arith.constant 0 : i32
    %98 = tpu.memref_slice %arg6[%c10_i32_141, %c3_i32_142, %c0_i32_143] : memref<20x24x128xf32, #tpu.memory_space<vmem>> -> memref<1x14x128xf32, #tpu.memory_space<vmem>>
    %99 = tpu.memref_slice %arg8[%c0_i32_137] : memref<1x!tpu.dma_semaphore, #tpu.memory_space<semaphore_mem>> -> memref<1x!tpu.dma_semaphore, #tpu.memory_space<semaphore_mem>>
    %100 = tpu.memref_squeeze %99 : memref<1x!tpu.dma_semaphore, #tpu.memory_space<semaphore_mem>> -> memref<!tpu.dma_semaphore, #tpu.memory_space<semaphore_mem>>
    tpu.wait_dma2 semaphore(%100 : memref<!tpu.dma_semaphore, #tpu.memory_space<semaphore_mem>>) src(%97 : memref<1x14x128xf32, #tpu.memory_space<vmem>>) dst(%98 : memref<1x14x128xf32, #tpu.memory_space<vmem>>)
    %c0_i32_144 = arith.constant 0 : i32
    %c0_i32_145 = arith.constant 0 : i32
    %c113_i32_146 = arith.constant 113 : i32
    %c0_i32_147 = arith.constant 0 : i32
    %101 = tpu.memref_slice %arg2[%c0_i32_145, %c113_i32_146, %c0_i32_147] : memref<1x197x128xf32, #tpu.memory_space<vmem>> -> memref<1x14x128xf32, #tpu.memory_space<vmem>>
    %c11_i32_148 = arith.constant 11 : i32
    %c3_i32_149 = arith.constant 3 : i32
    %c0_i32_150 = arith.constant 0 : i32
    %102 = tpu.memref_slice %arg6[%c11_i32_148, %c3_i32_149, %c0_i32_150] : memref<20x24x128xf32, #tpu.memory_space<vmem>> -> memref<1x14x128xf32, #tpu.memory_space<vmem>>
    %103 = tpu.memref_slice %arg8[%c0_i32_144] : memref<1x!tpu.dma_semaphore, #tpu.memory_space<semaphore_mem>> -> memref<1x!tpu.dma_semaphore, #tpu.memory_space<semaphore_mem>>
    %104 = tpu.memref_squeeze %103 : memref<1x!tpu.dma_semaphore, #tpu.memory_space<semaphore_mem>> -> memref<!tpu.dma_semaphore, #tpu.memory_space<semaphore_mem>>
    tpu.wait_dma2 semaphore(%104 : memref<!tpu.dma_semaphore, #tpu.memory_space<semaphore_mem>>) src(%101 : memref<1x14x128xf32, #tpu.memory_space<vmem>>) dst(%102 : memref<1x14x128xf32, #tpu.memory_space<vmem>>)
    %c0_i32_151 = arith.constant 0 : i32
    %c0_i32_152 = arith.constant 0 : i32
    %c127_i32_153 = arith.constant 127 : i32
    %c0_i32_154 = arith.constant 0 : i32
    %105 = tpu.memref_slice %arg2[%c0_i32_152, %c127_i32_153, %c0_i32_154] : memref<1x197x128xf32, #tpu.memory_space<vmem>> -> memref<1x14x128xf32, #tpu.memory_space<vmem>>
    %c12_i32_155 = arith.constant 12 : i32
    %c3_i32_156 = arith.constant 3 : i32
    %c0_i32_157 = arith.constant 0 : i32
    %106 = tpu.memref_slice %arg6[%c12_i32_155, %c3_i32_156, %c0_i32_157] : memref<20x24x128xf32, #tpu.memory_space<vmem>> -> memref<1x14x128xf32, #tpu.memory_space<vmem>>
    %107 = tpu.memref_slice %arg8[%c0_i32_151] : memref<1x!tpu.dma_semaphore, #tpu.memory_space<semaphore_mem>> -> memref<1x!tpu.dma_semaphore, #tpu.memory_space<semaphore_mem>>
    %108 = tpu.memref_squeeze %107 : memref<1x!tpu.dma_semaphore, #tpu.memory_space<semaphore_mem>> -> memref<!tpu.dma_semaphore, #tpu.memory_space<semaphore_mem>>
    tpu.wait_dma2 semaphore(%108 : memref<!tpu.dma_semaphore, #tpu.memory_space<semaphore_mem>>) src(%105 : memref<1x14x128xf32, #tpu.memory_space<vmem>>) dst(%106 : memref<1x14x128xf32, #tpu.memory_space<vmem>>)
    %c0_i32_158 = arith.constant 0 : i32
    %c0_i32_159 = arith.constant 0 : i32
    %c141_i32_160 = arith.constant 141 : i32
    %c0_i32_161 = arith.constant 0 : i32
    %109 = tpu.memref_slice %arg2[%c0_i32_159, %c141_i32_160, %c0_i32_161] : memref<1x197x128xf32, #tpu.memory_space<vmem>> -> memref<1x14x128xf32, #tpu.memory_space<vmem>>
    %c13_i32_162 = arith.constant 13 : i32
    %c3_i32_163 = arith.constant 3 : i32
    %c0_i32_164 = arith.constant 0 : i32
    %110 = tpu.memref_slice %arg6[%c13_i32_162, %c3_i32_163, %c0_i32_164] : memref<20x24x128xf32, #tpu.memory_space<vmem>> -> memref<1x14x128xf32, #tpu.memory_space<vmem>>
    %111 = tpu.memref_slice %arg8[%c0_i32_158] : memref<1x!tpu.dma_semaphore, #tpu.memory_space<semaphore_mem>> -> memref<1x!tpu.dma_semaphore, #tpu.memory_space<semaphore_mem>>
    %112 = tpu.memref_squeeze %111 : memref<1x!tpu.dma_semaphore, #tpu.memory_space<semaphore_mem>> -> memref<!tpu.dma_semaphore, #tpu.memory_space<semaphore_mem>>
    tpu.wait_dma2 semaphore(%112 : memref<!tpu.dma_semaphore, #tpu.memory_space<semaphore_mem>>) src(%109 : memref<1x14x128xf32, #tpu.memory_space<vmem>>) dst(%110 : memref<1x14x128xf32, #tpu.memory_space<vmem>>)
    %c0_i32_165 = arith.constant 0 : i32
    %c0_i32_166 = arith.constant 0 : i32
    %c155_i32_167 = arith.constant 155 : i32
    %c0_i32_168 = arith.constant 0 : i32
    %113 = tpu.memref_slice %arg2[%c0_i32_166, %c155_i32_167, %c0_i32_168] : memref<1x197x128xf32, #tpu.memory_space<vmem>> -> memref<1x14x128xf32, #tpu.memory_space<vmem>>
    %c14_i32_169 = arith.constant 14 : i32
    %c3_i32_170 = arith.constant 3 : i32
    %c0_i32_171 = arith.constant 0 : i32
    %114 = tpu.memref_slice %arg6[%c14_i32_169, %c3_i32_170, %c0_i32_171] : memref<20x24x128xf32, #tpu.memory_space<vmem>> -> memref<1x14x128xf32, #tpu.memory_space<vmem>>
    %115 = tpu.memref_slice %arg8[%c0_i32_165] : memref<1x!tpu.dma_semaphore, #tpu.memory_space<semaphore_mem>> -> memref<1x!tpu.dma_semaphore, #tpu.memory_space<semaphore_mem>>
    %116 = tpu.memref_squeeze %115 : memref<1x!tpu.dma_semaphore, #tpu.memory_space<semaphore_mem>> -> memref<!tpu.dma_semaphore, #tpu.memory_space<semaphore_mem>>
    tpu.wait_dma2 semaphore(%116 : memref<!tpu.dma_semaphore, #tpu.memory_space<semaphore_mem>>) src(%113 : memref<1x14x128xf32, #tpu.memory_space<vmem>>) dst(%114 : memref<1x14x128xf32, #tpu.memory_space<vmem>>)
    %c0_i32_172 = arith.constant 0 : i32
    %c0_i32_173 = arith.constant 0 : i32
    %c169_i32_174 = arith.constant 169 : i32
    %c0_i32_175 = arith.constant 0 : i32
    %117 = tpu.memref_slice %arg2[%c0_i32_173, %c169_i32_174, %c0_i32_175] : memref<1x197x128xf32, #tpu.memory_space<vmem>> -> memref<1x14x128xf32, #tpu.memory_space<vmem>>
    %c15_i32_176 = arith.constant 15 : i32
    %c3_i32_177 = arith.constant 3 : i32
    %c0_i32_178 = arith.constant 0 : i32
    %118 = tpu.memref_slice %arg6[%c15_i32_176, %c3_i32_177, %c0_i32_178] : memref<20x24x128xf32, #tpu.memory_space<vmem>> -> memref<1x14x128xf32, #tpu.memory_space<vmem>>
    %119 = tpu.memref_slice %arg8[%c0_i32_172] : memref<1x!tpu.dma_semaphore, #tpu.memory_space<semaphore_mem>> -> memref<1x!tpu.dma_semaphore, #tpu.memory_space<semaphore_mem>>
    %120 = tpu.memref_squeeze %119 : memref<1x!tpu.dma_semaphore, #tpu.memory_space<semaphore_mem>> -> memref<!tpu.dma_semaphore, #tpu.memory_space<semaphore_mem>>
    tpu.wait_dma2 semaphore(%120 : memref<!tpu.dma_semaphore, #tpu.memory_space<semaphore_mem>>) src(%117 : memref<1x14x128xf32, #tpu.memory_space<vmem>>) dst(%118 : memref<1x14x128xf32, #tpu.memory_space<vmem>>)
    %c0_i32_179 = arith.constant 0 : i32
    %c0_i32_180 = arith.constant 0 : i32
    %c183_i32_181 = arith.constant 183 : i32
    %c0_i32_182 = arith.constant 0 : i32
    %121 = tpu.memref_slice %arg2[%c0_i32_180, %c183_i32_181, %c0_i32_182] : memref<1x197x128xf32, #tpu.memory_space<vmem>> -> memref<1x14x128xf32, #tpu.memory_space<vmem>>
    %c16_i32_183 = arith.constant 16 : i32
    %c3_i32_184 = arith.constant 3 : i32
    %c0_i32_185 = arith.constant 0 : i32
    %122 = tpu.memref_slice %arg6[%c16_i32_183, %c3_i32_184, %c0_i32_185] : memref<20x24x128xf32, #tpu.memory_space<vmem>> -> memref<1x14x128xf32, #tpu.memory_space<vmem>>
    %123 = tpu.memref_slice %arg8[%c0_i32_179] : memref<1x!tpu.dma_semaphore, #tpu.memory_space<semaphore_mem>> -> memref<1x!tpu.dma_semaphore, #tpu.memory_space<semaphore_mem>>
    %124 = tpu.memref_squeeze %123 : memref<1x!tpu.dma_semaphore, #tpu.memory_space<semaphore_mem>> -> memref<!tpu.dma_semaphore, #tpu.memory_space<semaphore_mem>>
    tpu.wait_dma2 semaphore(%124 : memref<!tpu.dma_semaphore, #tpu.memory_space<semaphore_mem>>) src(%121 : memref<1x14x128xf32, #tpu.memory_space<vmem>>) dst(%122 : memref<1x14x128xf32, #tpu.memory_space<vmem>>)
    %c0_i32_186 = arith.constant 0 : i32
    %c0_i32_187 = arith.constant 0 : i32
    %c0_i32_188 = arith.constant 0 : i32
    %c0_i32_189 = arith.constant 0 : i32
    %c0_i32_190 = arith.constant 0 : i32
    %125 = tpu.memref_slice %arg6[%c0_i32_188, %c0_i32_189, %c0_i32_190] : memref<20x24x128xf32, #tpu.memory_space<vmem>> -> memref<20x14x128xf32, #tpu.memory_space<vmem>>
    %c0_i32_191 = arith.constant 0 : i32
    %c0_i32_192 = arith.constant 0 : i32
    %c0_i32_193 = arith.constant 0 : i32
    %126 = tpu.memref_slice %arg7[%c0_i32_186, %c0_i32_191, %c0_i32_192, %c0_i32_193] : memref<7x20x14x128xf32, #tpu.memory_space<vmem>> -> memref<1x20x14x128xf32, #tpu.memory_space<vmem>>
    %127 = tpu.memref_squeeze %126 : memref<1x20x14x128xf32, #tpu.memory_space<vmem>> -> memref<20x14x128xf32, #tpu.memory_space<vmem>>
    %128 = tpu.memref_slice %arg9[%c0_i32_187] : memref<1x!tpu.dma_semaphore, #tpu.memory_space<semaphore_mem>> -> memref<1x!tpu.dma_semaphore, #tpu.memory_space<semaphore_mem>>
    %129 = tpu.memref_squeeze %128 : memref<1x!tpu.dma_semaphore, #tpu.memory_space<semaphore_mem>> -> memref<!tpu.dma_semaphore, #tpu.memory_space<semaphore_mem>>
    tpu.enqueue_dma source(%125 : memref<20x14x128xf32, #tpu.memory_space<vmem>>) target(%127 : memref<20x14x128xf32, #tpu.memory_space<vmem>>) target_semaphore(%129 : memref<!tpu.dma_semaphore, #tpu.memory_space<semaphore_mem>>)
    %c1_i32_194 = arith.constant 1 : i32
    %c0_i32_195 = arith.constant 0 : i32
    %c0_i32_196 = arith.constant 0 : i32
    %c1_i32_197 = arith.constant 1 : i32
    %c0_i32_198 = arith.constant 0 : i32
    %130 = tpu.memref_slice %arg6[%c0_i32_196, %c1_i32_197, %c0_i32_198] : memref<20x24x128xf32, #tpu.memory_space<vmem>> -> memref<20x14x128xf32, #tpu.memory_space<vmem>>
    %c0_i32_199 = arith.constant 0 : i32
    %c0_i32_200 = arith.constant 0 : i32
    %c0_i32_201 = arith.constant 0 : i32
    %131 = tpu.memref_slice %arg7[%c1_i32_194, %c0_i32_199, %c0_i32_200, %c0_i32_201] : memref<7x20x14x128xf32, #tpu.memory_space<vmem>> -> memref<1x20x14x128xf32, #tpu.memory_space<vmem>>
    %132 = tpu.memref_squeeze %131 : memref<1x20x14x128xf32, #tpu.memory_space<vmem>> -> memref<20x14x128xf32, #tpu.memory_space<vmem>>
    %133 = tpu.memref_slice %arg9[%c0_i32_195] : memref<1x!tpu.dma_semaphore, #tpu.memory_space<semaphore_mem>> -> memref<1x!tpu.dma_semaphore, #tpu.memory_space<semaphore_mem>>
    %134 = tpu.memref_squeeze %133 : memref<1x!tpu.dma_semaphore, #tpu.memory_space<semaphore_mem>> -> memref<!tpu.dma_semaphore, #tpu.memory_space<semaphore_mem>>
    tpu.enqueue_dma source(%130 : memref<20x14x128xf32, #tpu.memory_space<vmem>>) target(%132 : memref<20x14x128xf32, #tpu.memory_space<vmem>>) target_semaphore(%134 : memref<!tpu.dma_semaphore, #tpu.memory_space<semaphore_mem>>)
    %c2_i32 = arith.constant 2 : i32
    %c0_i32_202 = arith.constant 0 : i32
    %c0_i32_203 = arith.constant 0 : i32
    %c2_i32_204 = arith.constant 2 : i32
    %c0_i32_205 = arith.constant 0 : i32
    %135 = tpu.memref_slice %arg6[%c0_i32_203, %c2_i32_204, %c0_i32_205] : memref<20x24x128xf32, #tpu.memory_space<vmem>> -> memref<20x14x128xf32, #tpu.memory_space<vmem>>
    %c0_i32_206 = arith.constant 0 : i32
    %c0_i32_207 = arith.constant 0 : i32
    %c0_i32_208 = arith.constant 0 : i32
    %136 = tpu.memref_slice %arg7[%c2_i32, %c0_i32_206, %c0_i32_207, %c0_i32_208] : memref<7x20x14x128xf32, #tpu.memory_space<vmem>> -> memref<1x20x14x128xf32, #tpu.memory_space<vmem>>
    %137 = tpu.memref_squeeze %136 : memref<1x20x14x128xf32, #tpu.memory_space<vmem>> -> memref<20x14x128xf32, #tpu.memory_space<vmem>>
    %138 = tpu.memref_slice %arg9[%c0_i32_202] : memref<1x!tpu.dma_semaphore, #tpu.memory_space<semaphore_mem>> -> memref<1x!tpu.dma_semaphore, #tpu.memory_space<semaphore_mem>>
    %139 = tpu.memref_squeeze %138 : memref<1x!tpu.dma_semaphore, #tpu.memory_space<semaphore_mem>> -> memref<!tpu.dma_semaphore, #tpu.memory_space<semaphore_mem>>
    tpu.enqueue_dma source(%135 : memref<20x14x128xf32, #tpu.memory_space<vmem>>) target(%137 : memref<20x14x128xf32, #tpu.memory_space<vmem>>) target_semaphore(%139 : memref<!tpu.dma_semaphore, #tpu.memory_space<semaphore_mem>>)
    %c3_i32_209 = arith.constant 3 : i32
    %c0_i32_210 = arith.constant 0 : i32
    %c0_i32_211 = arith.constant 0 : i32
    %c3_i32_212 = arith.constant 3 : i32
    %c0_i32_213 = arith.constant 0 : i32
    %140 = tpu.memref_slice %arg6[%c0_i32_211, %c3_i32_212, %c0_i32_213] : memref<20x24x128xf32, #tpu.memory_space<vmem>> -> memref<20x14x128xf32, #tpu.memory_space<vmem>>
    %c0_i32_214 = arith.constant 0 : i32
    %c0_i32_215 = arith.constant 0 : i32
    %c0_i32_216 = arith.constant 0 : i32
    %141 = tpu.memref_slice %arg7[%c3_i32_209, %c0_i32_214, %c0_i32_215, %c0_i32_216] : memref<7x20x14x128xf32, #tpu.memory_space<vmem>> -> memref<1x20x14x128xf32, #tpu.memory_space<vmem>>
    %142 = tpu.memref_squeeze %141 : memref<1x20x14x128xf32, #tpu.memory_space<vmem>> -> memref<20x14x128xf32, #tpu.memory_space<vmem>>
    %143 = tpu.memref_slice %arg9[%c0_i32_210] : memref<1x!tpu.dma_semaphore, #tpu.memory_space<semaphore_mem>> -> memref<1x!tpu.dma_semaphore, #tpu.memory_space<semaphore_mem>>
    %144 = tpu.memref_squeeze %143 : memref<1x!tpu.dma_semaphore, #tpu.memory_space<semaphore_mem>> -> memref<!tpu.dma_semaphore, #tpu.memory_space<semaphore_mem>>
    tpu.enqueue_dma source(%140 : memref<20x14x128xf32, #tpu.memory_space<vmem>>) target(%142 : memref<20x14x128xf32, #tpu.memory_space<vmem>>) target_semaphore(%144 : memref<!tpu.dma_semaphore, #tpu.memory_space<semaphore_mem>>)
    %c4_i32_217 = arith.constant 4 : i32
    %c0_i32_218 = arith.constant 0 : i32
    %c0_i32_219 = arith.constant 0 : i32
    %c4_i32_220 = arith.constant 4 : i32
    %c0_i32_221 = arith.constant 0 : i32
    %145 = tpu.memref_slice %arg6[%c0_i32_219, %c4_i32_220, %c0_i32_221] : memref<20x24x128xf32, #tpu.memory_space<vmem>> -> memref<20x14x128xf32, #tpu.memory_space<vmem>>
    %c0_i32_222 = arith.constant 0 : i32
    %c0_i32_223 = arith.constant 0 : i32
    %c0_i32_224 = arith.constant 0 : i32
    %146 = tpu.memref_slice %arg7[%c4_i32_217, %c0_i32_222, %c0_i32_223, %c0_i32_224] : memref<7x20x14x128xf32, #tpu.memory_space<vmem>> -> memref<1x20x14x128xf32, #tpu.memory_space<vmem>>
    %147 = tpu.memref_squeeze %146 : memref<1x20x14x128xf32, #tpu.memory_space<vmem>> -> memref<20x14x128xf32, #tpu.memory_space<vmem>>
    %148 = tpu.memref_slice %arg9[%c0_i32_218] : memref<1x!tpu.dma_semaphore, #tpu.memory_space<semaphore_mem>> -> memref<1x!tpu.dma_semaphore, #tpu.memory_space<semaphore_mem>>
    %149 = tpu.memref_squeeze %148 : memref<1x!tpu.dma_semaphore, #tpu.memory_space<semaphore_mem>> -> memref<!tpu.dma_semaphore, #tpu.memory_space<semaphore_mem>>
    tpu.enqueue_dma source(%145 : memref<20x14x128xf32, #tpu.memory_space<vmem>>) target(%147 : memref<20x14x128xf32, #tpu.memory_space<vmem>>) target_semaphore(%149 : memref<!tpu.dma_semaphore, #tpu.memory_space<semaphore_mem>>)
    %c5_i32_225 = arith.constant 5 : i32
    %c0_i32_226 = arith.constant 0 : i32
    %c0_i32_227 = arith.constant 0 : i32
    %c5_i32_228 = arith.constant 5 : i32
    %c0_i32_229 = arith.constant 0 : i32
    %150 = tpu.memref_slice %arg6[%c0_i32_227, %c5_i32_228, %c0_i32_229] : memref<20x24x128xf32, #tpu.memory_space<vmem>> -> memref<20x14x128xf32, #tpu.memory_space<vmem>>
    %c0_i32_230 = arith.constant 0 : i32
    %c0_i32_231 = arith.constant 0 : i32
    %c0_i32_232 = arith.constant 0 : i32
    %151 = tpu.memref_slice %arg7[%c5_i32_225, %c0_i32_230, %c0_i32_231, %c0_i32_232] : memref<7x20x14x128xf32, #tpu.memory_space<vmem>> -> memref<1x20x14x128xf32, #tpu.memory_space<vmem>>
    %152 = tpu.memref_squeeze %151 : memref<1x20x14x128xf32, #tpu.memory_space<vmem>> -> memref<20x14x128xf32, #tpu.memory_space<vmem>>
    %153 = tpu.memref_slice %arg9[%c0_i32_226] : memref<1x!tpu.dma_semaphore, #tpu.memory_space<semaphore_mem>> -> memref<1x!tpu.dma_semaphore, #tpu.memory_space<semaphore_mem>>
    %154 = tpu.memref_squeeze %153 : memref<1x!tpu.dma_semaphore, #tpu.memory_space<semaphore_mem>> -> memref<!tpu.dma_semaphore, #tpu.memory_space<semaphore_mem>>
    tpu.enqueue_dma source(%150 : memref<20x14x128xf32, #tpu.memory_space<vmem>>) target(%152 : memref<20x14x128xf32, #tpu.memory_space<vmem>>) target_semaphore(%154 : memref<!tpu.dma_semaphore, #tpu.memory_space<semaphore_mem>>)
    %c6_i32_233 = arith.constant 6 : i32
    %c0_i32_234 = arith.constant 0 : i32
    %c0_i32_235 = arith.constant 0 : i32
    %c6_i32_236 = arith.constant 6 : i32
    %c0_i32_237 = arith.constant 0 : i32
    %155 = tpu.memref_slice %arg6[%c0_i32_235, %c6_i32_236, %c0_i32_237] : memref<20x24x128xf32, #tpu.memory_space<vmem>> -> memref<20x14x128xf32, #tpu.memory_space<vmem>>
    %c0_i32_238 = arith.constant 0 : i32
    %c0_i32_239 = arith.constant 0 : i32
    %c0_i32_240 = arith.constant 0 : i32
    %156 = tpu.memref_slice %arg7[%c6_i32_233, %c0_i32_238, %c0_i32_239, %c0_i32_240] : memref<7x20x14x128xf32, #tpu.memory_space<vmem>> -> memref<1x20x14x128xf32, #tpu.memory_space<vmem>>
    %157 = tpu.memref_squeeze %156 : memref<1x20x14x128xf32, #tpu.memory_space<vmem>> -> memref<20x14x128xf32, #tpu.memory_space<vmem>>
    %158 = tpu.memref_slice %arg9[%c0_i32_234] : memref<1x!tpu.dma_semaphore, #tpu.memory_space<semaphore_mem>> -> memref<1x!tpu.dma_semaphore, #tpu.memory_space<semaphore_mem>>
    %159 = tpu.memref_squeeze %158 : memref<1x!tpu.dma_semaphore, #tpu.memory_space<semaphore_mem>> -> memref<!tpu.dma_semaphore, #tpu.memory_space<semaphore_mem>>
    tpu.enqueue_dma source(%155 : memref<20x14x128xf32, #tpu.memory_space<vmem>>) target(%157 : memref<20x14x128xf32, #tpu.memory_space<vmem>>) target_semaphore(%159 : memref<!tpu.dma_semaphore, #tpu.memory_space<semaphore_mem>>)
    %c0_i32_241 = arith.constant 0 : i32
    %c0_i32_242 = arith.constant 0 : i32
    %c0_i32_243 = arith.constant 0 : i32
    %c0_i32_244 = arith.constant 0 : i32
    %c0_i32_245 = arith.constant 0 : i32
    %160 = tpu.memref_slice %arg6[%c0_i32_243, %c0_i32_244, %c0_i32_245] : memref<20x24x128xf32, #tpu.memory_space<vmem>> -> memref<20x14x128xf32, #tpu.memory_space<vmem>>
    %c0_i32_246 = arith.constant 0 : i32
    %c0_i32_247 = arith.constant 0 : i32
    %c0_i32_248 = arith.constant 0 : i32
    %161 = tpu.memref_slice %arg7[%c0_i32_241, %c0_i32_246, %c0_i32_247, %c0_i32_248] : memref<7x20x14x128xf32, #tpu.memory_space<vmem>> -> memref<1x20x14x128xf32, #tpu.memory_space<vmem>>
    %162 = tpu.memref_squeeze %161 : memref<1x20x14x128xf32, #tpu.memory_space<vmem>> -> memref<20x14x128xf32, #tpu.memory_space<vmem>>
    %163 = tpu.memref_slice %arg9[%c0_i32_242] : memref<1x!tpu.dma_semaphore, #tpu.memory_space<semaphore_mem>> -> memref<1x!tpu.dma_semaphore, #tpu.memory_space<semaphore_mem>>
    %164 = tpu.memref_squeeze %163 : memref<1x!tpu.dma_semaphore, #tpu.memory_space<semaphore_mem>> -> memref<!tpu.dma_semaphore, #tpu.memory_space<semaphore_mem>>
    tpu.wait_dma2 semaphore(%164 : memref<!tpu.dma_semaphore, #tpu.memory_space<semaphore_mem>>) src(%160 : memref<20x14x128xf32, #tpu.memory_space<vmem>>) dst(%162 : memref<20x14x128xf32, #tpu.memory_space<vmem>>)
    %c1_i32_249 = arith.constant 1 : i32
    %c0_i32_250 = arith.constant 0 : i32
    %c0_i32_251 = arith.constant 0 : i32
    %c1_i32_252 = arith.constant 1 : i32
    %c0_i32_253 = arith.constant 0 : i32
    %165 = tpu.memref_slice %arg6[%c0_i32_251, %c1_i32_252, %c0_i32_253] : memref<20x24x128xf32, #tpu.memory_space<vmem>> -> memref<20x14x128xf32, #tpu.memory_space<vmem>>
    %c0_i32_254 = arith.constant 0 : i32
    %c0_i32_255 = arith.constant 0 : i32
    %c0_i32_256 = arith.constant 0 : i32
    %166 = tpu.memref_slice %arg7[%c1_i32_249, %c0_i32_254, %c0_i32_255, %c0_i32_256] : memref<7x20x14x128xf32, #tpu.memory_space<vmem>> -> memref<1x20x14x128xf32, #tpu.memory_space<vmem>>
    %167 = tpu.memref_squeeze %166 : memref<1x20x14x128xf32, #tpu.memory_space<vmem>> -> memref<20x14x128xf32, #tpu.memory_space<vmem>>
    %168 = tpu.memref_slice %arg9[%c0_i32_250] : memref<1x!tpu.dma_semaphore, #tpu.memory_space<semaphore_mem>> -> memref<1x!tpu.dma_semaphore, #tpu.memory_space<semaphore_mem>>
    %169 = tpu.memref_squeeze %168 : memref<1x!tpu.dma_semaphore, #tpu.memory_space<semaphore_mem>> -> memref<!tpu.dma_semaphore, #tpu.memory_space<semaphore_mem>>
    tpu.wait_dma2 semaphore(%169 : memref<!tpu.dma_semaphore, #tpu.memory_space<semaphore_mem>>) src(%165 : memref<20x14x128xf32, #tpu.memory_space<vmem>>) dst(%167 : memref<20x14x128xf32, #tpu.memory_space<vmem>>)
    %c2_i32_257 = arith.constant 2 : i32
    %c0_i32_258 = arith.constant 0 : i32
    %c0_i32_259 = arith.constant 0 : i32
    %c2_i32_260 = arith.constant 2 : i32
    %c0_i32_261 = arith.constant 0 : i32
    %170 = tpu.memref_slice %arg6[%c0_i32_259, %c2_i32_260, %c0_i32_261] : memref<20x24x128xf32, #tpu.memory_space<vmem>> -> memref<20x14x128xf32, #tpu.memory_space<vmem>>
    %c0_i32_262 = arith.constant 0 : i32
    %c0_i32_263 = arith.constant 0 : i32
    %c0_i32_264 = arith.constant 0 : i32
    %171 = tpu.memref_slice %arg7[%c2_i32_257, %c0_i32_262, %c0_i32_263, %c0_i32_264] : memref<7x20x14x128xf32, #tpu.memory_space<vmem>> -> memref<1x20x14x128xf32, #tpu.memory_space<vmem>>
    %172 = tpu.memref_squeeze %171 : memref<1x20x14x128xf32, #tpu.memory_space<vmem>> -> memref<20x14x128xf32, #tpu.memory_space<vmem>>
    %173 = tpu.memref_slice %arg9[%c0_i32_258] : memref<1x!tpu.dma_semaphore, #tpu.memory_space<semaphore_mem>> -> memref<1x!tpu.dma_semaphore, #tpu.memory_space<semaphore_mem>>
    %174 = tpu.memref_squeeze %173 : memref<1x!tpu.dma_semaphore, #tpu.memory_space<semaphore_mem>> -> memref<!tpu.dma_semaphore, #tpu.memory_space<semaphore_mem>>
    tpu.wait_dma2 semaphore(%174 : memref<!tpu.dma_semaphore, #tpu.memory_space<semaphore_mem>>) src(%170 : memref<20x14x128xf32, #tpu.memory_space<vmem>>) dst(%172 : memref<20x14x128xf32, #tpu.memory_space<vmem>>)
    %c3_i32_265 = arith.constant 3 : i32
    %c0_i32_266 = arith.constant 0 : i32
    %c0_i32_267 = arith.constant 0 : i32
    %c3_i32_268 = arith.constant 3 : i32
    %c0_i32_269 = arith.constant 0 : i32
    %175 = tpu.memref_slice %arg6[%c0_i32_267, %c3_i32_268, %c0_i32_269] : memref<20x24x128xf32, #tpu.memory_space<vmem>> -> memref<20x14x128xf32, #tpu.memory_space<vmem>>
    %c0_i32_270 = arith.constant 0 : i32
    %c0_i32_271 = arith.constant 0 : i32
    %c0_i32_272 = arith.constant 0 : i32
    %176 = tpu.memref_slice %arg7[%c3_i32_265, %c0_i32_270, %c0_i32_271, %c0_i32_272] : memref<7x20x14x128xf32, #tpu.memory_space<vmem>> -> memref<1x20x14x128xf32, #tpu.memory_space<vmem>>
    %177 = tpu.memref_squeeze %176 : memref<1x20x14x128xf32, #tpu.memory_space<vmem>> -> memref<20x14x128xf32, #tpu.memory_space<vmem>>
    %178 = tpu.memref_slice %arg9[%c0_i32_266] : memref<1x!tpu.dma_semaphore, #tpu.memory_space<semaphore_mem>> -> memref<1x!tpu.dma_semaphore, #tpu.memory_space<semaphore_mem>>
    %179 = tpu.memref_squeeze %178 : memref<1x!tpu.dma_semaphore, #tpu.memory_space<semaphore_mem>> -> memref<!tpu.dma_semaphore, #tpu.memory_space<semaphore_mem>>
    tpu.wait_dma2 semaphore(%179 : memref<!tpu.dma_semaphore, #tpu.memory_space<semaphore_mem>>) src(%175 : memref<20x14x128xf32, #tpu.memory_space<vmem>>) dst(%177 : memref<20x14x128xf32, #tpu.memory_space<vmem>>)
    %c4_i32_273 = arith.constant 4 : i32
    %c0_i32_274 = arith.constant 0 : i32
    %c0_i32_275 = arith.constant 0 : i32
    %c4_i32_276 = arith.constant 4 : i32
    %c0_i32_277 = arith.constant 0 : i32
    %180 = tpu.memref_slice %arg6[%c0_i32_275, %c4_i32_276, %c0_i32_277] : memref<20x24x128xf32, #tpu.memory_space<vmem>> -> memref<20x14x128xf32, #tpu.memory_space<vmem>>
    %c0_i32_278 = arith.constant 0 : i32
    %c0_i32_279 = arith.constant 0 : i32
    %c0_i32_280 = arith.constant 0 : i32
    %181 = tpu.memref_slice %arg7[%c4_i32_273, %c0_i32_278, %c0_i32_279, %c0_i32_280] : memref<7x20x14x128xf32, #tpu.memory_space<vmem>> -> memref<1x20x14x128xf32, #tpu.memory_space<vmem>>
    %182 = tpu.memref_squeeze %181 : memref<1x20x14x128xf32, #tpu.memory_space<vmem>> -> memref<20x14x128xf32, #tpu.memory_space<vmem>>
    %183 = tpu.memref_slice %arg9[%c0_i32_274] : memref<1x!tpu.dma_semaphore, #tpu.memory_space<semaphore_mem>> -> memref<1x!tpu.dma_semaphore, #tpu.memory_space<semaphore_mem>>
    %184 = tpu.memref_squeeze %183 : memref<1x!tpu.dma_semaphore, #tpu.memory_space<semaphore_mem>> -> memref<!tpu.dma_semaphore, #tpu.memory_space<semaphore_mem>>
    tpu.wait_dma2 semaphore(%184 : memref<!tpu.dma_semaphore, #tpu.memory_space<semaphore_mem>>) src(%180 : memref<20x14x128xf32, #tpu.memory_space<vmem>>) dst(%182 : memref<20x14x128xf32, #tpu.memory_space<vmem>>)
    %c5_i32_281 = arith.constant 5 : i32
    %c0_i32_282 = arith.constant 0 : i32
    %c0_i32_283 = arith.constant 0 : i32
    %c5_i32_284 = arith.constant 5 : i32
    %c0_i32_285 = arith.constant 0 : i32
    %185 = tpu.memref_slice %arg6[%c0_i32_283, %c5_i32_284, %c0_i32_285] : memref<20x24x128xf32, #tpu.memory_space<vmem>> -> memref<20x14x128xf32, #tpu.memory_space<vmem>>
    %c0_i32_286 = arith.constant 0 : i32
    %c0_i32_287 = arith.constant 0 : i32
    %c0_i32_288 = arith.constant 0 : i32
    %186 = tpu.memref_slice %arg7[%c5_i32_281, %c0_i32_286, %c0_i32_287, %c0_i32_288] : memref<7x20x14x128xf32, #tpu.memory_space<vmem>> -> memref<1x20x14x128xf32, #tpu.memory_space<vmem>>
    %187 = tpu.memref_squeeze %186 : memref<1x20x14x128xf32, #tpu.memory_space<vmem>> -> memref<20x14x128xf32, #tpu.memory_space<vmem>>
    %188 = tpu.memref_slice %arg9[%c0_i32_282] : memref<1x!tpu.dma_semaphore, #tpu.memory_space<semaphore_mem>> -> memref<1x!tpu.dma_semaphore, #tpu.memory_space<semaphore_mem>>
    %189 = tpu.memref_squeeze %188 : memref<1x!tpu.dma_semaphore, #tpu.memory_space<semaphore_mem>> -> memref<!tpu.dma_semaphore, #tpu.memory_space<semaphore_mem>>
    tpu.wait_dma2 semaphore(%189 : memref<!tpu.dma_semaphore, #tpu.memory_space<semaphore_mem>>) src(%185 : memref<20x14x128xf32, #tpu.memory_space<vmem>>) dst(%187 : memref<20x14x128xf32, #tpu.memory_space<vmem>>)
    %c6_i32_289 = arith.constant 6 : i32
    %c0_i32_290 = arith.constant 0 : i32
    %c0_i32_291 = arith.constant 0 : i32
    %c6_i32_292 = arith.constant 6 : i32
    %c0_i32_293 = arith.constant 0 : i32
    %190 = tpu.memref_slice %arg6[%c0_i32_291, %c6_i32_292, %c0_i32_293] : memref<20x24x128xf32, #tpu.memory_space<vmem>> -> memref<20x14x128xf32, #tpu.memory_space<vmem>>
    %c0_i32_294 = arith.constant 0 : i32
    %c0_i32_295 = arith.constant 0 : i32
    %c0_i32_296 = arith.constant 0 : i32
    %191 = tpu.memref_slice %arg7[%c6_i32_289, %c0_i32_294, %c0_i32_295, %c0_i32_296] : memref<7x20x14x128xf32, #tpu.memory_space<vmem>> -> memref<1x20x14x128xf32, #tpu.memory_space<vmem>>
    %192 = tpu.memref_squeeze %191 : memref<1x20x14x128xf32, #tpu.memory_space<vmem>> -> memref<20x14x128xf32, #tpu.memory_space<vmem>>
    %193 = tpu.memref_slice %arg9[%c0_i32_290] : memref<1x!tpu.dma_semaphore, #tpu.memory_space<semaphore_mem>> -> memref<1x!tpu.dma_semaphore, #tpu.memory_space<semaphore_mem>>
    %194 = tpu.memref_squeeze %193 : memref<1x!tpu.dma_semaphore, #tpu.memory_space<semaphore_mem>> -> memref<!tpu.dma_semaphore, #tpu.memory_space<semaphore_mem>>
    tpu.wait_dma2 semaphore(%194 : memref<!tpu.dma_semaphore, #tpu.memory_space<semaphore_mem>>) src(%190 : memref<20x14x128xf32, #tpu.memory_space<vmem>>) dst(%192 : memref<20x14x128xf32, #tpu.memory_space<vmem>>)
    %c0_297 = arith.constant 0 : index
    %c0_298 = arith.constant 0 : index
    %c0_299 = arith.constant 0 : index
    %195 = vector.load %arg3[%c0_297, %c0_298, %c0_299] : memref<7x7x128xf32, #tpu.memory_space<vmem>>, vector<7x7x128xf32>
    %c0_300 = arith.constant 0 : index
    %c0_301 = arith.constant 0 : index
    %196 = vector.load %arg4[%c0_300, %c0_301] : memref<1x128xf32, #tpu.memory_space<vmem>>, vector<1x128xf32>
    %197 = vector.shape_cast %196 : vector<1x128xf32> to vector<1x1x128xf32>
    %198 = vector.shape_cast %197 : vector<1x1x128xf32> to vector<1x1x128xf32>
    %199 = vector.broadcast %198 : vector<1x1x128xf32> to vector<14x14x128xf32>
    %c0_302 = arith.constant 0 : index
    %c0_303 = arith.constant 0 : index
    %c0_304 = arith.constant 0 : index
    %c0_305 = arith.constant 0 : index
    %200 = vector.load %arg7[%c0_302, %c0_303, %c0_304, %c0_305] : memref<7x20x14x128xf32, #tpu.memory_space<vmem>>, vector<1x14x14x128xf32>
    %201 = vector.shape_cast %200 : vector<1x14x14x128xf32> to vector<14x14x128xf32>
    %202 = vector.extract_strided_slice %195 {offsets = [0, 0, 0], sizes = [1, 1, 128], strides = [1, 1, 1]} : vector<7x7x128xf32> to vector<1x1x128xf32>
    %203 = vector.shape_cast %202 : vector<1x1x128xf32> to vector<128xf32>
    %204 = vector.shape_cast %203 : vector<128xf32> to vector<1x1x128xf32>
    %205 = vector.broadcast %204 : vector<1x1x128xf32> to vector<14x14x128xf32>
    %206 = arith.mulf %201, %205 : vector<14x14x128xf32>
    %207 = arith.addf %199, %206 : vector<14x14x128xf32>
    %c0_306 = arith.constant 0 : index
    %c1 = arith.constant 1 : index
    %c0_307 = arith.constant 0 : index
    %c0_308 = arith.constant 0 : index
    %208 = vector.load %arg7[%c0_306, %c1, %c0_307, %c0_308] : memref<7x20x14x128xf32, #tpu.memory_space<vmem>>, vector<1x14x14x128xf32>
    %209 = vector.shape_cast %208 : vector<1x14x14x128xf32> to vector<14x14x128xf32>
    %210 = vector.extract_strided_slice %195 {offsets = [1, 0, 0], sizes = [1, 1, 128], strides = [1, 1, 1]} : vector<7x7x128xf32> to vector<1x1x128xf32>
    %211 = vector.shape_cast %210 : vector<1x1x128xf32> to vector<128xf32>
    %212 = vector.shape_cast %211 : vector<128xf32> to vector<1x1x128xf32>
    %213 = vector.broadcast %212 : vector<1x1x128xf32> to vector<14x14x128xf32>
    %214 = arith.mulf %209, %213 : vector<14x14x128xf32>
    %215 = arith.addf %207, %214 : vector<14x14x128xf32>
    %c0_309 = arith.constant 0 : index
    %c2 = arith.constant 2 : index
    %c0_310 = arith.constant 0 : index
    %c0_311 = arith.constant 0 : index
    %216 = vector.load %arg7[%c0_309, %c2, %c0_310, %c0_311] : memref<7x20x14x128xf32, #tpu.memory_space<vmem>>, vector<1x14x14x128xf32>
    %217 = vector.shape_cast %216 : vector<1x14x14x128xf32> to vector<14x14x128xf32>
    %218 = vector.extract_strided_slice %195 {offsets = [2, 0, 0], sizes = [1, 1, 128], strides = [1, 1, 1]} : vector<7x7x128xf32> to vector<1x1x128xf32>
    %219 = vector.shape_cast %218 : vector<1x1x128xf32> to vector<128xf32>
    %220 = vector.shape_cast %219 : vector<128xf32> to vector<1x1x128xf32>
    %221 = vector.broadcast %220 : vector<1x1x128xf32> to vector<14x14x128xf32>
    %222 = arith.mulf %217, %221 : vector<14x14x128xf32>
    %223 = arith.addf %215, %222 : vector<14x14x128xf32>
    %c0_312 = arith.constant 0 : index
    %c3_313 = arith.constant 3 : index
    %c0_314 = arith.constant 0 : index
    %c0_315 = arith.constant 0 : index
    %224 = vector.load %arg7[%c0_312, %c3_313, %c0_314, %c0_315] : memref<7x20x14x128xf32, #tpu.memory_space<vmem>>, vector<1x14x14x128xf32>
    %225 = vector.shape_cast %224 : vector<1x14x14x128xf32> to vector<14x14x128xf32>
    %226 = vector.extract_strided_slice %195 {offsets = [3, 0, 0], sizes = [1, 1, 128], strides = [1, 1, 1]} : vector<7x7x128xf32> to vector<1x1x128xf32>
    %227 = vector.shape_cast %226 : vector<1x1x128xf32> to vector<128xf32>
    %228 = vector.shape_cast %227 : vector<128xf32> to vector<1x1x128xf32>
    %229 = vector.broadcast %228 : vector<1x1x128xf32> to vector<14x14x128xf32>
    %230 = arith.mulf %225, %229 : vector<14x14x128xf32>
    %231 = arith.addf %223, %230 : vector<14x14x128xf32>
    %c0_316 = arith.constant 0 : index
    %c4 = arith.constant 4 : index
    %c0_317 = arith.constant 0 : index
    %c0_318 = arith.constant 0 : index
    %232 = vector.load %arg7[%c0_316, %c4, %c0_317, %c0_318] : memref<7x20x14x128xf32, #tpu.memory_space<vmem>>, vector<1x14x14x128xf32>
    %233 = vector.shape_cast %232 : vector<1x14x14x128xf32> to vector<14x14x128xf32>
    %234 = vector.extract_strided_slice %195 {offsets = [4, 0, 0], sizes = [1, 1, 128], strides = [1, 1, 1]} : vector<7x7x128xf32> to vector<1x1x128xf32>
    %235 = vector.shape_cast %234 : vector<1x1x128xf32> to vector<128xf32>
    %236 = vector.shape_cast %235 : vector<128xf32> to vector<1x1x128xf32>
    %237 = vector.broadcast %236 : vector<1x1x128xf32> to vector<14x14x128xf32>
    %238 = arith.mulf %233, %237 : vector<14x14x128xf32>
    %239 = arith.addf %231, %238 : vector<14x14x128xf32>
    %c0_319 = arith.constant 0 : index
    %c5 = arith.constant 5 : index
    %c0_320 = arith.constant 0 : index
    %c0_321 = arith.constant 0 : index
    %240 = vector.load %arg7[%c0_319, %c5, %c0_320, %c0_321] : memref<7x20x14x128xf32, #tpu.memory_space<vmem>>, vector<1x14x14x128xf32>
    %241 = vector.shape_cast %240 : vector<1x14x14x128xf32> to vector<14x14x128xf32>
    %242 = vector.extract_strided_slice %195 {offsets = [5, 0, 0], sizes = [1, 1, 128], strides = [1, 1, 1]} : vector<7x7x128xf32> to vector<1x1x128xf32>
    %243 = vector.shape_cast %242 : vector<1x1x128xf32> to vector<128xf32>
    %244 = vector.shape_cast %243 : vector<128xf32> to vector<1x1x128xf32>
    %245 = vector.broadcast %244 : vector<1x1x128xf32> to vector<14x14x128xf32>
    %246 = arith.mulf %241, %245 : vector<14x14x128xf32>
    %247 = arith.addf %239, %246 : vector<14x14x128xf32>
    %c0_322 = arith.constant 0 : index
    %c6 = arith.constant 6 : index
    %c0_323 = arith.constant 0 : index
    %c0_324 = arith.constant 0 : index
    %248 = vector.load %arg7[%c0_322, %c6, %c0_323, %c0_324] : memref<7x20x14x128xf32, #tpu.memory_space<vmem>>, vector<1x14x14x128xf32>
    %249 = vector.shape_cast %248 : vector<1x14x14x128xf32> to vector<14x14x128xf32>
    %250 = vector.extract_strided_slice %195 {offsets = [6, 0, 0], sizes = [1, 1, 128], strides = [1, 1, 1]} : vector<7x7x128xf32> to vector<1x1x128xf32>
    %251 = vector.shape_cast %250 : vector<1x1x128xf32> to vector<128xf32>
    %252 = vector.shape_cast %251 : vector<128xf32> to vector<1x1x128xf32>
    %253 = vector.broadcast %252 : vector<1x1x128xf32> to vector<14x14x128xf32>
    %254 = arith.mulf %249, %253 : vector<14x14x128xf32>
    %255 = arith.addf %247, %254 : vector<14x14x128xf32>
    %c1_325 = arith.constant 1 : index
    %c0_326 = arith.constant 0 : index
    %c0_327 = arith.constant 0 : index
    %c0_328 = arith.constant 0 : index
    %256 = vector.load %arg7[%c1_325, %c0_326, %c0_327, %c0_328] : memref<7x20x14x128xf32, #tpu.memory_space<vmem>>, vector<1x14x14x128xf32>
    %257 = vector.shape_cast %256 : vector<1x14x14x128xf32> to vector<14x14x128xf32>
    %258 = vector.extract_strided_slice %195 {offsets = [0, 1, 0], sizes = [1, 1, 128], strides = [1, 1, 1]} : vector<7x7x128xf32> to vector<1x1x128xf32>
    %259 = vector.shape_cast %258 : vector<1x1x128xf32> to vector<128xf32>
    %260 = vector.shape_cast %259 : vector<128xf32> to vector<1x1x128xf32>
    %261 = vector.broadcast %260 : vector<1x1x128xf32> to vector<14x14x128xf32>
    %262 = arith.mulf %257, %261 : vector<14x14x128xf32>
    %263 = arith.addf %255, %262 : vector<14x14x128xf32>
    %c1_329 = arith.constant 1 : index
    %c1_330 = arith.constant 1 : index
    %c0_331 = arith.constant 0 : index
    %c0_332 = arith.constant 0 : index
    %264 = vector.load %arg7[%c1_329, %c1_330, %c0_331, %c0_332] : memref<7x20x14x128xf32, #tpu.memory_space<vmem>>, vector<1x14x14x128xf32>
    %265 = vector.shape_cast %264 : vector<1x14x14x128xf32> to vector<14x14x128xf32>
    %266 = vector.extract_strided_slice %195 {offsets = [1, 1, 0], sizes = [1, 1, 128], strides = [1, 1, 1]} : vector<7x7x128xf32> to vector<1x1x128xf32>
    %267 = vector.shape_cast %266 : vector<1x1x128xf32> to vector<128xf32>
    %268 = vector.shape_cast %267 : vector<128xf32> to vector<1x1x128xf32>
    %269 = vector.broadcast %268 : vector<1x1x128xf32> to vector<14x14x128xf32>
    %270 = arith.mulf %265, %269 : vector<14x14x128xf32>
    %271 = arith.addf %263, %270 : vector<14x14x128xf32>
    %c1_333 = arith.constant 1 : index
    %c2_334 = arith.constant 2 : index
    %c0_335 = arith.constant 0 : index
    %c0_336 = arith.constant 0 : index
    %272 = vector.load %arg7[%c1_333, %c2_334, %c0_335, %c0_336] : memref<7x20x14x128xf32, #tpu.memory_space<vmem>>, vector<1x14x14x128xf32>
    %273 = vector.shape_cast %272 : vector<1x14x14x128xf32> to vector<14x14x128xf32>
    %274 = vector.extract_strided_slice %195 {offsets = [2, 1, 0], sizes = [1, 1, 128], strides = [1, 1, 1]} : vector<7x7x128xf32> to vector<1x1x128xf32>
    %275 = vector.shape_cast %274 : vector<1x1x128xf32> to vector<128xf32>
    %276 = vector.shape_cast %275 : vector<128xf32> to vector<1x1x128xf32>
    %277 = vector.broadcast %276 : vector<1x1x128xf32> to vector<14x14x128xf32>
    %278 = arith.mulf %273, %277 : vector<14x14x128xf32>
    %279 = arith.addf %271, %278 : vector<14x14x128xf32>
    %c1_337 = arith.constant 1 : index
    %c3_338 = arith.constant 3 : index
    %c0_339 = arith.constant 0 : index
    %c0_340 = arith.constant 0 : index
    %280 = vector.load %arg7[%c1_337, %c3_338, %c0_339, %c0_340] : memref<7x20x14x128xf32, #tpu.memory_space<vmem>>, vector<1x14x14x128xf32>
    %281 = vector.shape_cast %280 : vector<1x14x14x128xf32> to vector<14x14x128xf32>
    %282 = vector.extract_strided_slice %195 {offsets = [3, 1, 0], sizes = [1, 1, 128], strides = [1, 1, 1]} : vector<7x7x128xf32> to vector<1x1x128xf32>
    %283 = vector.shape_cast %282 : vector<1x1x128xf32> to vector<128xf32>
    %284 = vector.shape_cast %283 : vector<128xf32> to vector<1x1x128xf32>
    %285 = vector.broadcast %284 : vector<1x1x128xf32> to vector<14x14x128xf32>
    %286 = arith.mulf %281, %285 : vector<14x14x128xf32>
    %287 = arith.addf %279, %286 : vector<14x14x128xf32>
    %c1_341 = arith.constant 1 : index
    %c4_342 = arith.constant 4 : index
    %c0_343 = arith.constant 0 : index
    %c0_344 = arith.constant 0 : index
    %288 = vector.load %arg7[%c1_341, %c4_342, %c0_343, %c0_344] : memref<7x20x14x128xf32, #tpu.memory_space<vmem>>, vector<1x14x14x128xf32>
    %289 = vector.shape_cast %288 : vector<1x14x14x128xf32> to vector<14x14x128xf32>
    %290 = vector.extract_strided_slice %195 {offsets = [4, 1, 0], sizes = [1, 1, 128], strides = [1, 1, 1]} : vector<7x7x128xf32> to vector<1x1x128xf32>
    %291 = vector.shape_cast %290 : vector<1x1x128xf32> to vector<128xf32>
    %292 = vector.shape_cast %291 : vector<128xf32> to vector<1x1x128xf32>
    %293 = vector.broadcast %292 : vector<1x1x128xf32> to vector<14x14x128xf32>
    %294 = arith.mulf %289, %293 : vector<14x14x128xf32>
    %295 = arith.addf %287, %294 : vector<14x14x128xf32>
    %c1_345 = arith.constant 1 : index
    %c5_346 = arith.constant 5 : index
    %c0_347 = arith.constant 0 : index
    %c0_348 = arith.constant 0 : index
    %296 = vector.load %arg7[%c1_345, %c5_346, %c0_347, %c0_348] : memref<7x20x14x128xf32, #tpu.memory_space<vmem>>, vector<1x14x14x128xf32>
    %297 = vector.shape_cast %296 : vector<1x14x14x128xf32> to vector<14x14x128xf32>
    %298 = vector.extract_strided_slice %195 {offsets = [5, 1, 0], sizes = [1, 1, 128], strides = [1, 1, 1]} : vector<7x7x128xf32> to vector<1x1x128xf32>
    %299 = vector.shape_cast %298 : vector<1x1x128xf32> to vector<128xf32>
    %300 = vector.shape_cast %299 : vector<128xf32> to vector<1x1x128xf32>
    %301 = vector.broadcast %300 : vector<1x1x128xf32> to vector<14x14x128xf32>
    %302 = arith.mulf %297, %301 : vector<14x14x128xf32>
    %303 = arith.addf %295, %302 : vector<14x14x128xf32>
    %c1_349 = arith.constant 1 : index
    %c6_350 = arith.constant 6 : index
    %c0_351 = arith.constant 0 : index
    %c0_352 = arith.constant 0 : index
    %304 = vector.load %arg7[%c1_349, %c6_350, %c0_351, %c0_352] : memref<7x20x14x128xf32, #tpu.memory_space<vmem>>, vector<1x14x14x128xf32>
    %305 = vector.shape_cast %304 : vector<1x14x14x128xf32> to vector<14x14x128xf32>
    %306 = vector.extract_strided_slice %195 {offsets = [6, 1, 0], sizes = [1, 1, 128], strides = [1, 1, 1]} : vector<7x7x128xf32> to vector<1x1x128xf32>
    %307 = vector.shape_cast %306 : vector<1x1x128xf32> to vector<128xf32>
    %308 = vector.shape_cast %307 : vector<128xf32> to vector<1x1x128xf32>
    %309 = vector.broadcast %308 : vector<1x1x128xf32> to vector<14x14x128xf32>
    %310 = arith.mulf %305, %309 : vector<14x14x128xf32>
    %311 = arith.addf %303, %310 : vector<14x14x128xf32>
    %c2_353 = arith.constant 2 : index
    %c0_354 = arith.constant 0 : index
    %c0_355 = arith.constant 0 : index
    %c0_356 = arith.constant 0 : index
    %312 = vector.load %arg7[%c2_353, %c0_354, %c0_355, %c0_356] : memref<7x20x14x128xf32, #tpu.memory_space<vmem>>, vector<1x14x14x128xf32>
    %313 = vector.shape_cast %312 : vector<1x14x14x128xf32> to vector<14x14x128xf32>
    %314 = vector.extract_strided_slice %195 {offsets = [0, 2, 0], sizes = [1, 1, 128], strides = [1, 1, 1]} : vector<7x7x128xf32> to vector<1x1x128xf32>
    %315 = vector.shape_cast %314 : vector<1x1x128xf32> to vector<128xf32>
    %316 = vector.shape_cast %315 : vector<128xf32> to vector<1x1x128xf32>
    %317 = vector.broadcast %316 : vector<1x1x128xf32> to vector<14x14x128xf32>
    %318 = arith.mulf %313, %317 : vector<14x14x128xf32>
    %319 = arith.addf %311, %318 : vector<14x14x128xf32>
    %c2_357 = arith.constant 2 : index
    %c1_358 = arith.constant 1 : index
    %c0_359 = arith.constant 0 : index
    %c0_360 = arith.constant 0 : index
    %320 = vector.load %arg7[%c2_357, %c1_358, %c0_359, %c0_360] : memref<7x20x14x128xf32, #tpu.memory_space<vmem>>, vector<1x14x14x128xf32>
    %321 = vector.shape_cast %320 : vector<1x14x14x128xf32> to vector<14x14x128xf32>
    %322 = vector.extract_strided_slice %195 {offsets = [1, 2, 0], sizes = [1, 1, 128], strides = [1, 1, 1]} : vector<7x7x128xf32> to vector<1x1x128xf32>
    %323 = vector.shape_cast %322 : vector<1x1x128xf32> to vector<128xf32>
    %324 = vector.shape_cast %323 : vector<128xf32> to vector<1x1x128xf32>
    %325 = vector.broadcast %324 : vector<1x1x128xf32> to vector<14x14x128xf32>
    %326 = arith.mulf %321, %325 : vector<14x14x128xf32>
    %327 = arith.addf %319, %326 : vector<14x14x128xf32>
    %c2_361 = arith.constant 2 : index
    %c2_362 = arith.constant 2 : index
    %c0_363 = arith.constant 0 : index
    %c0_364 = arith.constant 0 : index
    %328 = vector.load %arg7[%c2_361, %c2_362, %c0_363, %c0_364] : memref<7x20x14x128xf32, #tpu.memory_space<vmem>>, vector<1x14x14x128xf32>
    %329 = vector.shape_cast %328 : vector<1x14x14x128xf32> to vector<14x14x128xf32>
    %330 = vector.extract_strided_slice %195 {offsets = [2, 2, 0], sizes = [1, 1, 128], strides = [1, 1, 1]} : vector<7x7x128xf32> to vector<1x1x128xf32>
    %331 = vector.shape_cast %330 : vector<1x1x128xf32> to vector<128xf32>
    %332 = vector.shape_cast %331 : vector<128xf32> to vector<1x1x128xf32>
    %333 = vector.broadcast %332 : vector<1x1x128xf32> to vector<14x14x128xf32>
    %334 = arith.mulf %329, %333 : vector<14x14x128xf32>
    %335 = arith.addf %327, %334 : vector<14x14x128xf32>
    %c2_365 = arith.constant 2 : index
    %c3_366 = arith.constant 3 : index
    %c0_367 = arith.constant 0 : index
    %c0_368 = arith.constant 0 : index
    %336 = vector.load %arg7[%c2_365, %c3_366, %c0_367, %c0_368] : memref<7x20x14x128xf32, #tpu.memory_space<vmem>>, vector<1x14x14x128xf32>
    %337 = vector.shape_cast %336 : vector<1x14x14x128xf32> to vector<14x14x128xf32>
    %338 = vector.extract_strided_slice %195 {offsets = [3, 2, 0], sizes = [1, 1, 128], strides = [1, 1, 1]} : vector<7x7x128xf32> to vector<1x1x128xf32>
    %339 = vector.shape_cast %338 : vector<1x1x128xf32> to vector<128xf32>
    %340 = vector.shape_cast %339 : vector<128xf32> to vector<1x1x128xf32>
    %341 = vector.broadcast %340 : vector<1x1x128xf32> to vector<14x14x128xf32>
    %342 = arith.mulf %337, %341 : vector<14x14x128xf32>
    %343 = arith.addf %335, %342 : vector<14x14x128xf32>
    %c2_369 = arith.constant 2 : index
    %c4_370 = arith.constant 4 : index
    %c0_371 = arith.constant 0 : index
    %c0_372 = arith.constant 0 : index
    %344 = vector.load %arg7[%c2_369, %c4_370, %c0_371, %c0_372] : memref<7x20x14x128xf32, #tpu.memory_space<vmem>>, vector<1x14x14x128xf32>
    %345 = vector.shape_cast %344 : vector<1x14x14x128xf32> to vector<14x14x128xf32>
    %346 = vector.extract_strided_slice %195 {offsets = [4, 2, 0], sizes = [1, 1, 128], strides = [1, 1, 1]} : vector<7x7x128xf32> to vector<1x1x128xf32>
    %347 = vector.shape_cast %346 : vector<1x1x128xf32> to vector<128xf32>
    %348 = vector.shape_cast %347 : vector<128xf32> to vector<1x1x128xf32>
    %349 = vector.broadcast %348 : vector<1x1x128xf32> to vector<14x14x128xf32>
    %350 = arith.mulf %345, %349 : vector<14x14x128xf32>
    %351 = arith.addf %343, %350 : vector<14x14x128xf32>
    %c2_373 = arith.constant 2 : index
    %c5_374 = arith.constant 5 : index
    %c0_375 = arith.constant 0 : index
    %c0_376 = arith.constant 0 : index
    %352 = vector.load %arg7[%c2_373, %c5_374, %c0_375, %c0_376] : memref<7x20x14x128xf32, #tpu.memory_space<vmem>>, vector<1x14x14x128xf32>
    %353 = vector.shape_cast %352 : vector<1x14x14x128xf32> to vector<14x14x128xf32>
    %354 = vector.extract_strided_slice %195 {offsets = [5, 2, 0], sizes = [1, 1, 128], strides = [1, 1, 1]} : vector<7x7x128xf32> to vector<1x1x128xf32>
    %355 = vector.shape_cast %354 : vector<1x1x128xf32> to vector<128xf32>
    %356 = vector.shape_cast %355 : vector<128xf32> to vector<1x1x128xf32>
    %357 = vector.broadcast %356 : vector<1x1x128xf32> to vector<14x14x128xf32>
    %358 = arith.mulf %353, %357 : vector<14x14x128xf32>
    %359 = arith.addf %351, %358 : vector<14x14x128xf32>
    %c2_377 = arith.constant 2 : index
    %c6_378 = arith.constant 6 : index
    %c0_379 = arith.constant 0 : index
    %c0_380 = arith.constant 0 : index
    %360 = vector.load %arg7[%c2_377, %c6_378, %c0_379, %c0_380] : memref<7x20x14x128xf32, #tpu.memory_space<vmem>>, vector<1x14x14x128xf32>
    %361 = vector.shape_cast %360 : vector<1x14x14x128xf32> to vector<14x14x128xf32>
    %362 = vector.extract_strided_slice %195 {offsets = [6, 2, 0], sizes = [1, 1, 128], strides = [1, 1, 1]} : vector<7x7x128xf32> to vector<1x1x128xf32>
    %363 = vector.shape_cast %362 : vector<1x1x128xf32> to vector<128xf32>
    %364 = vector.shape_cast %363 : vector<128xf32> to vector<1x1x128xf32>
    %365 = vector.broadcast %364 : vector<1x1x128xf32> to vector<14x14x128xf32>
    %366 = arith.mulf %361, %365 : vector<14x14x128xf32>
    %367 = arith.addf %359, %366 : vector<14x14x128xf32>
    %c3_381 = arith.constant 3 : index
    %c0_382 = arith.constant 0 : index
    %c0_383 = arith.constant 0 : index
    %c0_384 = arith.constant 0 : index
    %368 = vector.load %arg7[%c3_381, %c0_382, %c0_383, %c0_384] : memref<7x20x14x128xf32, #tpu.memory_space<vmem>>, vector<1x14x14x128xf32>
    %369 = vector.shape_cast %368 : vector<1x14x14x128xf32> to vector<14x14x128xf32>
    %370 = vector.extract_strided_slice %195 {offsets = [0, 3, 0], sizes = [1, 1, 128], strides = [1, 1, 1]} : vector<7x7x128xf32> to vector<1x1x128xf32>
    %371 = vector.shape_cast %370 : vector<1x1x128xf32> to vector<128xf32>
    %372 = vector.shape_cast %371 : vector<128xf32> to vector<1x1x128xf32>
    %373 = vector.broadcast %372 : vector<1x1x128xf32> to vector<14x14x128xf32>
    %374 = arith.mulf %369, %373 : vector<14x14x128xf32>
    %375 = arith.addf %367, %374 : vector<14x14x128xf32>
    %c3_385 = arith.constant 3 : index
    %c1_386 = arith.constant 1 : index
    %c0_387 = arith.constant 0 : index
    %c0_388 = arith.constant 0 : index
    %376 = vector.load %arg7[%c3_385, %c1_386, %c0_387, %c0_388] : memref<7x20x14x128xf32, #tpu.memory_space<vmem>>, vector<1x14x14x128xf32>
    %377 = vector.shape_cast %376 : vector<1x14x14x128xf32> to vector<14x14x128xf32>
    %378 = vector.extract_strided_slice %195 {offsets = [1, 3, 0], sizes = [1, 1, 128], strides = [1, 1, 1]} : vector<7x7x128xf32> to vector<1x1x128xf32>
    %379 = vector.shape_cast %378 : vector<1x1x128xf32> to vector<128xf32>
    %380 = vector.shape_cast %379 : vector<128xf32> to vector<1x1x128xf32>
    %381 = vector.broadcast %380 : vector<1x1x128xf32> to vector<14x14x128xf32>
    %382 = arith.mulf %377, %381 : vector<14x14x128xf32>
    %383 = arith.addf %375, %382 : vector<14x14x128xf32>
    %c3_389 = arith.constant 3 : index
    %c2_390 = arith.constant 2 : index
    %c0_391 = arith.constant 0 : index
    %c0_392 = arith.constant 0 : index
    %384 = vector.load %arg7[%c3_389, %c2_390, %c0_391, %c0_392] : memref<7x20x14x128xf32, #tpu.memory_space<vmem>>, vector<1x14x14x128xf32>
    %385 = vector.shape_cast %384 : vector<1x14x14x128xf32> to vector<14x14x128xf32>
    %386 = vector.extract_strided_slice %195 {offsets = [2, 3, 0], sizes = [1, 1, 128], strides = [1, 1, 1]} : vector<7x7x128xf32> to vector<1x1x128xf32>
    %387 = vector.shape_cast %386 : vector<1x1x128xf32> to vector<128xf32>
    %388 = vector.shape_cast %387 : vector<128xf32> to vector<1x1x128xf32>
    %389 = vector.broadcast %388 : vector<1x1x128xf32> to vector<14x14x128xf32>
    %390 = arith.mulf %385, %389 : vector<14x14x128xf32>
    %391 = arith.addf %383, %390 : vector<14x14x128xf32>
    %c3_393 = arith.constant 3 : index
    %c3_394 = arith.constant 3 : index
    %c0_395 = arith.constant 0 : index
    %c0_396 = arith.constant 0 : index
    %392 = vector.load %arg7[%c3_393, %c3_394, %c0_395, %c0_396] : memref<7x20x14x128xf32, #tpu.memory_space<vmem>>, vector<1x14x14x128xf32>
    %393 = vector.shape_cast %392 : vector<1x14x14x128xf32> to vector<14x14x128xf32>
    %394 = vector.extract_strided_slice %195 {offsets = [3, 3, 0], sizes = [1, 1, 128], strides = [1, 1, 1]} : vector<7x7x128xf32> to vector<1x1x128xf32>
    %395 = vector.shape_cast %394 : vector<1x1x128xf32> to vector<128xf32>
    %396 = vector.shape_cast %395 : vector<128xf32> to vector<1x1x128xf32>
    %397 = vector.broadcast %396 : vector<1x1x128xf32> to vector<14x14x128xf32>
    %398 = arith.mulf %393, %397 : vector<14x14x128xf32>
    %399 = arith.addf %391, %398 : vector<14x14x128xf32>
    %c3_397 = arith.constant 3 : index
    %c4_398 = arith.constant 4 : index
    %c0_399 = arith.constant 0 : index
    %c0_400 = arith.constant 0 : index
    %400 = vector.load %arg7[%c3_397, %c4_398, %c0_399, %c0_400] : memref<7x20x14x128xf32, #tpu.memory_space<vmem>>, vector<1x14x14x128xf32>
    %401 = vector.shape_cast %400 : vector<1x14x14x128xf32> to vector<14x14x128xf32>
    %402 = vector.extract_strided_slice %195 {offsets = [4, 3, 0], sizes = [1, 1, 128], strides = [1, 1, 1]} : vector<7x7x128xf32> to vector<1x1x128xf32>
    %403 = vector.shape_cast %402 : vector<1x1x128xf32> to vector<128xf32>
    %404 = vector.shape_cast %403 : vector<128xf32> to vector<1x1x128xf32>
    %405 = vector.broadcast %404 : vector<1x1x128xf32> to vector<14x14x128xf32>
    %406 = arith.mulf %401, %405 : vector<14x14x128xf32>
    %407 = arith.addf %399, %406 : vector<14x14x128xf32>
    %c3_401 = arith.constant 3 : index
    %c5_402 = arith.constant 5 : index
    %c0_403 = arith.constant 0 : index
    %c0_404 = arith.constant 0 : index
    %408 = vector.load %arg7[%c3_401, %c5_402, %c0_403, %c0_404] : memref<7x20x14x128xf32, #tpu.memory_space<vmem>>, vector<1x14x14x128xf32>
    %409 = vector.shape_cast %408 : vector<1x14x14x128xf32> to vector<14x14x128xf32>
    %410 = vector.extract_strided_slice %195 {offsets = [5, 3, 0], sizes = [1, 1, 128], strides = [1, 1, 1]} : vector<7x7x128xf32> to vector<1x1x128xf32>
    %411 = vector.shape_cast %410 : vector<1x1x128xf32> to vector<128xf32>
    %412 = vector.shape_cast %411 : vector<128xf32> to vector<1x1x128xf32>
    %413 = vector.broadcast %412 : vector<1x1x128xf32> to vector<14x14x128xf32>
    %414 = arith.mulf %409, %413 : vector<14x14x128xf32>
    %415 = arith.addf %407, %414 : vector<14x14x128xf32>
    %c3_405 = arith.constant 3 : index
    %c6_406 = arith.constant 6 : index
    %c0_407 = arith.constant 0 : index
    %c0_408 = arith.constant 0 : index
    %416 = vector.load %arg7[%c3_405, %c6_406, %c0_407, %c0_408] : memref<7x20x14x128xf32, #tpu.memory_space<vmem>>, vector<1x14x14x128xf32>
    %417 = vector.shape_cast %416 : vector<1x14x14x128xf32> to vector<14x14x128xf32>
    %418 = vector.extract_strided_slice %195 {offsets = [6, 3, 0], sizes = [1, 1, 128], strides = [1, 1, 1]} : vector<7x7x128xf32> to vector<1x1x128xf32>
    %419 = vector.shape_cast %418 : vector<1x1x128xf32> to vector<128xf32>
    %420 = vector.shape_cast %419 : vector<128xf32> to vector<1x1x128xf32>
    %421 = vector.broadcast %420 : vector<1x1x128xf32> to vector<14x14x128xf32>
    %422 = arith.mulf %417, %421 : vector<14x14x128xf32>
    %423 = arith.addf %415, %422 : vector<14x14x128xf32>
    %c4_409 = arith.constant 4 : index
    %c0_410 = arith.constant 0 : index
    %c0_411 = arith.constant 0 : index
    %c0_412 = arith.constant 0 : index
    %424 = vector.load %arg7[%c4_409, %c0_410, %c0_411, %c0_412] : memref<7x20x14x128xf32, #tpu.memory_space<vmem>>, vector<1x14x14x128xf32>
    %425 = vector.shape_cast %424 : vector<1x14x14x128xf32> to vector<14x14x128xf32>
    %426 = vector.extract_strided_slice %195 {offsets = [0, 4, 0], sizes = [1, 1, 128], strides = [1, 1, 1]} : vector<7x7x128xf32> to vector<1x1x128xf32>
    %427 = vector.shape_cast %426 : vector<1x1x128xf32> to vector<128xf32>
    %428 = vector.shape_cast %427 : vector<128xf32> to vector<1x1x128xf32>
    %429 = vector.broadcast %428 : vector<1x1x128xf32> to vector<14x14x128xf32>
    %430 = arith.mulf %425, %429 : vector<14x14x128xf32>
    %431 = arith.addf %423, %430 : vector<14x14x128xf32>
    %c4_413 = arith.constant 4 : index
    %c1_414 = arith.constant 1 : index
    %c0_415 = arith.constant 0 : index
    %c0_416 = arith.constant 0 : index
    %432 = vector.load %arg7[%c4_413, %c1_414, %c0_415, %c0_416] : memref<7x20x14x128xf32, #tpu.memory_space<vmem>>, vector<1x14x14x128xf32>
    %433 = vector.shape_cast %432 : vector<1x14x14x128xf32> to vector<14x14x128xf32>
    %434 = vector.extract_strided_slice %195 {offsets = [1, 4, 0], sizes = [1, 1, 128], strides = [1, 1, 1]} : vector<7x7x128xf32> to vector<1x1x128xf32>
    %435 = vector.shape_cast %434 : vector<1x1x128xf32> to vector<128xf32>
    %436 = vector.shape_cast %435 : vector<128xf32> to vector<1x1x128xf32>
    %437 = vector.broadcast %436 : vector<1x1x128xf32> to vector<14x14x128xf32>
    %438 = arith.mulf %433, %437 : vector<14x14x128xf32>
    %439 = arith.addf %431, %438 : vector<14x14x128xf32>
    %c4_417 = arith.constant 4 : index
    %c2_418 = arith.constant 2 : index
    %c0_419 = arith.constant 0 : index
    %c0_420 = arith.constant 0 : index
    %440 = vector.load %arg7[%c4_417, %c2_418, %c0_419, %c0_420] : memref<7x20x14x128xf32, #tpu.memory_space<vmem>>, vector<1x14x14x128xf32>
    %441 = vector.shape_cast %440 : vector<1x14x14x128xf32> to vector<14x14x128xf32>
    %442 = vector.extract_strided_slice %195 {offsets = [2, 4, 0], sizes = [1, 1, 128], strides = [1, 1, 1]} : vector<7x7x128xf32> to vector<1x1x128xf32>
    %443 = vector.shape_cast %442 : vector<1x1x128xf32> to vector<128xf32>
    %444 = vector.shape_cast %443 : vector<128xf32> to vector<1x1x128xf32>
    %445 = vector.broadcast %444 : vector<1x1x128xf32> to vector<14x14x128xf32>
    %446 = arith.mulf %441, %445 : vector<14x14x128xf32>
    %447 = arith.addf %439, %446 : vector<14x14x128xf32>
    %c4_421 = arith.constant 4 : index
    %c3_422 = arith.constant 3 : index
    %c0_423 = arith.constant 0 : index
    %c0_424 = arith.constant 0 : index
    %448 = vector.load %arg7[%c4_421, %c3_422, %c0_423, %c0_424] : memref<7x20x14x128xf32, #tpu.memory_space<vmem>>, vector<1x14x14x128xf32>
    %449 = vector.shape_cast %448 : vector<1x14x14x128xf32> to vector<14x14x128xf32>
    %450 = vector.extract_strided_slice %195 {offsets = [3, 4, 0], sizes = [1, 1, 128], strides = [1, 1, 1]} : vector<7x7x128xf32> to vector<1x1x128xf32>
    %451 = vector.shape_cast %450 : vector<1x1x128xf32> to vector<128xf32>
    %452 = vector.shape_cast %451 : vector<128xf32> to vector<1x1x128xf32>
    %453 = vector.broadcast %452 : vector<1x1x128xf32> to vector<14x14x128xf32>
    %454 = arith.mulf %449, %453 : vector<14x14x128xf32>
    %455 = arith.addf %447, %454 : vector<14x14x128xf32>
    %c4_425 = arith.constant 4 : index
    %c4_426 = arith.constant 4 : index
    %c0_427 = arith.constant 0 : index
    %c0_428 = arith.constant 0 : index
    %456 = vector.load %arg7[%c4_425, %c4_426, %c0_427, %c0_428] : memref<7x20x14x128xf32, #tpu.memory_space<vmem>>, vector<1x14x14x128xf32>
    %457 = vector.shape_cast %456 : vector<1x14x14x128xf32> to vector<14x14x128xf32>
    %458 = vector.extract_strided_slice %195 {offsets = [4, 4, 0], sizes = [1, 1, 128], strides = [1, 1, 1]} : vector<7x7x128xf32> to vector<1x1x128xf32>
    %459 = vector.shape_cast %458 : vector<1x1x128xf32> to vector<128xf32>
    %460 = vector.shape_cast %459 : vector<128xf32> to vector<1x1x128xf32>
    %461 = vector.broadcast %460 : vector<1x1x128xf32> to vector<14x14x128xf32>
    %462 = arith.mulf %457, %461 : vector<14x14x128xf32>
    %463 = arith.addf %455, %462 : vector<14x14x128xf32>
    %c4_429 = arith.constant 4 : index
    %c5_430 = arith.constant 5 : index
    %c0_431 = arith.constant 0 : index
    %c0_432 = arith.constant 0 : index
    %464 = vector.load %arg7[%c4_429, %c5_430, %c0_431, %c0_432] : memref<7x20x14x128xf32, #tpu.memory_space<vmem>>, vector<1x14x14x128xf32>
    %465 = vector.shape_cast %464 : vector<1x14x14x128xf32> to vector<14x14x128xf32>
    %466 = vector.extract_strided_slice %195 {offsets = [5, 4, 0], sizes = [1, 1, 128], strides = [1, 1, 1]} : vector<7x7x128xf32> to vector<1x1x128xf32>
    %467 = vector.shape_cast %466 : vector<1x1x128xf32> to vector<128xf32>
    %468 = vector.shape_cast %467 : vector<128xf32> to vector<1x1x128xf32>
    %469 = vector.broadcast %468 : vector<1x1x128xf32> to vector<14x14x128xf32>
    %470 = arith.mulf %465, %469 : vector<14x14x128xf32>
    %471 = arith.addf %463, %470 : vector<14x14x128xf32>
    %c4_433 = arith.constant 4 : index
    %c6_434 = arith.constant 6 : index
    %c0_435 = arith.constant 0 : index
    %c0_436 = arith.constant 0 : index
    %472 = vector.load %arg7[%c4_433, %c6_434, %c0_435, %c0_436] : memref<7x20x14x128xf32, #tpu.memory_space<vmem>>, vector<1x14x14x128xf32>
    %473 = vector.shape_cast %472 : vector<1x14x14x128xf32> to vector<14x14x128xf32>
    %474 = vector.extract_strided_slice %195 {offsets = [6, 4, 0], sizes = [1, 1, 128], strides = [1, 1, 1]} : vector<7x7x128xf32> to vector<1x1x128xf32>
    %475 = vector.shape_cast %474 : vector<1x1x128xf32> to vector<128xf32>
    %476 = vector.shape_cast %475 : vector<128xf32> to vector<1x1x128xf32>
    %477 = vector.broadcast %476 : vector<1x1x128xf32> to vector<14x14x128xf32>
    %478 = arith.mulf %473, %477 : vector<14x14x128xf32>
    %479 = arith.addf %471, %478 : vector<14x14x128xf32>
    %c5_437 = arith.constant 5 : index
    %c0_438 = arith.constant 0 : index
    %c0_439 = arith.constant 0 : index
    %c0_440 = arith.constant 0 : index
    %480 = vector.load %arg7[%c5_437, %c0_438, %c0_439, %c0_440] : memref<7x20x14x128xf32, #tpu.memory_space<vmem>>, vector<1x14x14x128xf32>
    %481 = vector.shape_cast %480 : vector<1x14x14x128xf32> to vector<14x14x128xf32>
    %482 = vector.extract_strided_slice %195 {offsets = [0, 5, 0], sizes = [1, 1, 128], strides = [1, 1, 1]} : vector<7x7x128xf32> to vector<1x1x128xf32>
    %483 = vector.shape_cast %482 : vector<1x1x128xf32> to vector<128xf32>
    %484 = vector.shape_cast %483 : vector<128xf32> to vector<1x1x128xf32>
    %485 = vector.broadcast %484 : vector<1x1x128xf32> to vector<14x14x128xf32>
    %486 = arith.mulf %481, %485 : vector<14x14x128xf32>
    %487 = arith.addf %479, %486 : vector<14x14x128xf32>
    %c5_441 = arith.constant 5 : index
    %c1_442 = arith.constant 1 : index
    %c0_443 = arith.constant 0 : index
    %c0_444 = arith.constant 0 : index
    %488 = vector.load %arg7[%c5_441, %c1_442, %c0_443, %c0_444] : memref<7x20x14x128xf32, #tpu.memory_space<vmem>>, vector<1x14x14x128xf32>
    %489 = vector.shape_cast %488 : vector<1x14x14x128xf32> to vector<14x14x128xf32>
    %490 = vector.extract_strided_slice %195 {offsets = [1, 5, 0], sizes = [1, 1, 128], strides = [1, 1, 1]} : vector<7x7x128xf32> to vector<1x1x128xf32>
    %491 = vector.shape_cast %490 : vector<1x1x128xf32> to vector<128xf32>
    %492 = vector.shape_cast %491 : vector<128xf32> to vector<1x1x128xf32>
    %493 = vector.broadcast %492 : vector<1x1x128xf32> to vector<14x14x128xf32>
    %494 = arith.mulf %489, %493 : vector<14x14x128xf32>
    %495 = arith.addf %487, %494 : vector<14x14x128xf32>
    %c5_445 = arith.constant 5 : index
    %c2_446 = arith.constant 2 : index
    %c0_447 = arith.constant 0 : index
    %c0_448 = arith.constant 0 : index
    %496 = vector.load %arg7[%c5_445, %c2_446, %c0_447, %c0_448] : memref<7x20x14x128xf32, #tpu.memory_space<vmem>>, vector<1x14x14x128xf32>
    %497 = vector.shape_cast %496 : vector<1x14x14x128xf32> to vector<14x14x128xf32>
    %498 = vector.extract_strided_slice %195 {offsets = [2, 5, 0], sizes = [1, 1, 128], strides = [1, 1, 1]} : vector<7x7x128xf32> to vector<1x1x128xf32>
    %499 = vector.shape_cast %498 : vector<1x1x128xf32> to vector<128xf32>
    %500 = vector.shape_cast %499 : vector<128xf32> to vector<1x1x128xf32>
    %501 = vector.broadcast %500 : vector<1x1x128xf32> to vector<14x14x128xf32>
    %502 = arith.mulf %497, %501 : vector<14x14x128xf32>
    %503 = arith.addf %495, %502 : vector<14x14x128xf32>
    %c5_449 = arith.constant 5 : index
    %c3_450 = arith.constant 3 : index
    %c0_451 = arith.constant 0 : index
    %c0_452 = arith.constant 0 : index
    %504 = vector.load %arg7[%c5_449, %c3_450, %c0_451, %c0_452] : memref<7x20x14x128xf32, #tpu.memory_space<vmem>>, vector<1x14x14x128xf32>
    %505 = vector.shape_cast %504 : vector<1x14x14x128xf32> to vector<14x14x128xf32>
    %506 = vector.extract_strided_slice %195 {offsets = [3, 5, 0], sizes = [1, 1, 128], strides = [1, 1, 1]} : vector<7x7x128xf32> to vector<1x1x128xf32>
    %507 = vector.shape_cast %506 : vector<1x1x128xf32> to vector<128xf32>
    %508 = vector.shape_cast %507 : vector<128xf32> to vector<1x1x128xf32>
    %509 = vector.broadcast %508 : vector<1x1x128xf32> to vector<14x14x128xf32>
    %510 = arith.mulf %505, %509 : vector<14x14x128xf32>
    %511 = arith.addf %503, %510 : vector<14x14x128xf32>
    %c5_453 = arith.constant 5 : index
    %c4_454 = arith.constant 4 : index
    %c0_455 = arith.constant 0 : index
    %c0_456 = arith.constant 0 : index
    %512 = vector.load %arg7[%c5_453, %c4_454, %c0_455, %c0_456] : memref<7x20x14x128xf32, #tpu.memory_space<vmem>>, vector<1x14x14x128xf32>
    %513 = vector.shape_cast %512 : vector<1x14x14x128xf32> to vector<14x14x128xf32>
    %514 = vector.extract_strided_slice %195 {offsets = [4, 5, 0], sizes = [1, 1, 128], strides = [1, 1, 1]} : vector<7x7x128xf32> to vector<1x1x128xf32>
    %515 = vector.shape_cast %514 : vector<1x1x128xf32> to vector<128xf32>
    %516 = vector.shape_cast %515 : vector<128xf32> to vector<1x1x128xf32>
    %517 = vector.broadcast %516 : vector<1x1x128xf32> to vector<14x14x128xf32>
    %518 = arith.mulf %513, %517 : vector<14x14x128xf32>
    %519 = arith.addf %511, %518 : vector<14x14x128xf32>
    %c5_457 = arith.constant 5 : index
    %c5_458 = arith.constant 5 : index
    %c0_459 = arith.constant 0 : index
    %c0_460 = arith.constant 0 : index
    %520 = vector.load %arg7[%c5_457, %c5_458, %c0_459, %c0_460] : memref<7x20x14x128xf32, #tpu.memory_space<vmem>>, vector<1x14x14x128xf32>
    %521 = vector.shape_cast %520 : vector<1x14x14x128xf32> to vector<14x14x128xf32>
    %522 = vector.extract_strided_slice %195 {offsets = [5, 5, 0], sizes = [1, 1, 128], strides = [1, 1, 1]} : vector<7x7x128xf32> to vector<1x1x128xf32>
    %523 = vector.shape_cast %522 : vector<1x1x128xf32> to vector<128xf32>
    %524 = vector.shape_cast %523 : vector<128xf32> to vector<1x1x128xf32>
    %525 = vector.broadcast %524 : vector<1x1x128xf32> to vector<14x14x128xf32>
    %526 = arith.mulf %521, %525 : vector<14x14x128xf32>
    %527 = arith.addf %519, %526 : vector<14x14x128xf32>
    %c5_461 = arith.constant 5 : index
    %c6_462 = arith.constant 6 : index
    %c0_463 = arith.constant 0 : index
    %c0_464 = arith.constant 0 : index
    %528 = vector.load %arg7[%c5_461, %c6_462, %c0_463, %c0_464] : memref<7x20x14x128xf32, #tpu.memory_space<vmem>>, vector<1x14x14x128xf32>
    %529 = vector.shape_cast %528 : vector<1x14x14x128xf32> to vector<14x14x128xf32>
    %530 = vector.extract_strided_slice %195 {offsets = [6, 5, 0], sizes = [1, 1, 128], strides = [1, 1, 1]} : vector<7x7x128xf32> to vector<1x1x128xf32>
    %531 = vector.shape_cast %530 : vector<1x1x128xf32> to vector<128xf32>
    %532 = vector.shape_cast %531 : vector<128xf32> to vector<1x1x128xf32>
    %533 = vector.broadcast %532 : vector<1x1x128xf32> to vector<14x14x128xf32>
    %534 = arith.mulf %529, %533 : vector<14x14x128xf32>
    %535 = arith.addf %527, %534 : vector<14x14x128xf32>
    %c6_465 = arith.constant 6 : index
    %c0_466 = arith.constant 0 : index
    %c0_467 = arith.constant 0 : index
    %c0_468 = arith.constant 0 : index
    %536 = vector.load %arg7[%c6_465, %c0_466, %c0_467, %c0_468] : memref<7x20x14x128xf32, #tpu.memory_space<vmem>>, vector<1x14x14x128xf32>
    %537 = vector.shape_cast %536 : vector<1x14x14x128xf32> to vector<14x14x128xf32>
    %538 = vector.extract_strided_slice %195 {offsets = [0, 6, 0], sizes = [1, 1, 128], strides = [1, 1, 1]} : vector<7x7x128xf32> to vector<1x1x128xf32>
    %539 = vector.shape_cast %538 : vector<1x1x128xf32> to vector<128xf32>
    %540 = vector.shape_cast %539 : vector<128xf32> to vector<1x1x128xf32>
    %541 = vector.broadcast %540 : vector<1x1x128xf32> to vector<14x14x128xf32>
    %542 = arith.mulf %537, %541 : vector<14x14x128xf32>
    %543 = arith.addf %535, %542 : vector<14x14x128xf32>
    %c6_469 = arith.constant 6 : index
    %c1_470 = arith.constant 1 : index
    %c0_471 = arith.constant 0 : index
    %c0_472 = arith.constant 0 : index
    %544 = vector.load %arg7[%c6_469, %c1_470, %c0_471, %c0_472] : memref<7x20x14x128xf32, #tpu.memory_space<vmem>>, vector<1x14x14x128xf32>
    %545 = vector.shape_cast %544 : vector<1x14x14x128xf32> to vector<14x14x128xf32>
    %546 = vector.extract_strided_slice %195 {offsets = [1, 6, 0], sizes = [1, 1, 128], strides = [1, 1, 1]} : vector<7x7x128xf32> to vector<1x1x128xf32>
    %547 = vector.shape_cast %546 : vector<1x1x128xf32> to vector<128xf32>
    %548 = vector.shape_cast %547 : vector<128xf32> to vector<1x1x128xf32>
    %549 = vector.broadcast %548 : vector<1x1x128xf32> to vector<14x14x128xf32>
    %550 = arith.mulf %545, %549 : vector<14x14x128xf32>
    %551 = arith.addf %543, %550 : vector<14x14x128xf32>
    %c6_473 = arith.constant 6 : index
    %c2_474 = arith.constant 2 : index
    %c0_475 = arith.constant 0 : index
    %c0_476 = arith.constant 0 : index
    %552 = vector.load %arg7[%c6_473, %c2_474, %c0_475, %c0_476] : memref<7x20x14x128xf32, #tpu.memory_space<vmem>>, vector<1x14x14x128xf32>
    %553 = vector.shape_cast %552 : vector<1x14x14x128xf32> to vector<14x14x128xf32>
    %554 = vector.extract_strided_slice %195 {offsets = [2, 6, 0], sizes = [1, 1, 128], strides = [1, 1, 1]} : vector<7x7x128xf32> to vector<1x1x128xf32>
    %555 = vector.shape_cast %554 : vector<1x1x128xf32> to vector<128xf32>
    %556 = vector.shape_cast %555 : vector<128xf32> to vector<1x1x128xf32>
    %557 = vector.broadcast %556 : vector<1x1x128xf32> to vector<14x14x128xf32>
    %558 = arith.mulf %553, %557 : vector<14x14x128xf32>
    %559 = arith.addf %551, %558 : vector<14x14x128xf32>
    %c6_477 = arith.constant 6 : index
    %c3_478 = arith.constant 3 : index
    %c0_479 = arith.constant 0 : index
    %c0_480 = arith.constant 0 : index
    %560 = vector.load %arg7[%c6_477, %c3_478, %c0_479, %c0_480] : memref<7x20x14x128xf32, #tpu.memory_space<vmem>>, vector<1x14x14x128xf32>
    %561 = vector.shape_cast %560 : vector<1x14x14x128xf32> to vector<14x14x128xf32>
    %562 = vector.extract_strided_slice %195 {offsets = [3, 6, 0], sizes = [1, 1, 128], strides = [1, 1, 1]} : vector<7x7x128xf32> to vector<1x1x128xf32>
    %563 = vector.shape_cast %562 : vector<1x1x128xf32> to vector<128xf32>
    %564 = vector.shape_cast %563 : vector<128xf32> to vector<1x1x128xf32>
    %565 = vector.broadcast %564 : vector<1x1x128xf32> to vector<14x14x128xf32>
    %566 = arith.mulf %561, %565 : vector<14x14x128xf32>
    %567 = arith.addf %559, %566 : vector<14x14x128xf32>
    %c6_481 = arith.constant 6 : index
    %c4_482 = arith.constant 4 : index
    %c0_483 = arith.constant 0 : index
    %c0_484 = arith.constant 0 : index
    %568 = vector.load %arg7[%c6_481, %c4_482, %c0_483, %c0_484] : memref<7x20x14x128xf32, #tpu.memory_space<vmem>>, vector<1x14x14x128xf32>
    %569 = vector.shape_cast %568 : vector<1x14x14x128xf32> to vector<14x14x128xf32>
    %570 = vector.extract_strided_slice %195 {offsets = [4, 6, 0], sizes = [1, 1, 128], strides = [1, 1, 1]} : vector<7x7x128xf32> to vector<1x1x128xf32>
    %571 = vector.shape_cast %570 : vector<1x1x128xf32> to vector<128xf32>
    %572 = vector.shape_cast %571 : vector<128xf32> to vector<1x1x128xf32>
    %573 = vector.broadcast %572 : vector<1x1x128xf32> to vector<14x14x128xf32>
    %574 = arith.mulf %569, %573 : vector<14x14x128xf32>
    %575 = arith.addf %567, %574 : vector<14x14x128xf32>
    %c6_485 = arith.constant 6 : index
    %c5_486 = arith.constant 5 : index
    %c0_487 = arith.constant 0 : index
    %c0_488 = arith.constant 0 : index
    %576 = vector.load %arg7[%c6_485, %c5_486, %c0_487, %c0_488] : memref<7x20x14x128xf32, #tpu.memory_space<vmem>>, vector<1x14x14x128xf32>
    %577 = vector.shape_cast %576 : vector<1x14x14x128xf32> to vector<14x14x128xf32>
    %578 = vector.extract_strided_slice %195 {offsets = [5, 6, 0], sizes = [1, 1, 128], strides = [1, 1, 1]} : vector<7x7x128xf32> to vector<1x1x128xf32>
    %579 = vector.shape_cast %578 : vector<1x1x128xf32> to vector<128xf32>
    %580 = vector.shape_cast %579 : vector<128xf32> to vector<1x1x128xf32>
    %581 = vector.broadcast %580 : vector<1x1x128xf32> to vector<14x14x128xf32>
    %582 = arith.mulf %577, %581 : vector<14x14x128xf32>
    %583 = arith.addf %575, %582 : vector<14x14x128xf32>
    %c6_489 = arith.constant 6 : index
    %c6_490 = arith.constant 6 : index
    %c0_491 = arith.constant 0 : index
    %c0_492 = arith.constant 0 : index
    %584 = vector.load %arg7[%c6_489, %c6_490, %c0_491, %c0_492] : memref<7x20x14x128xf32, #tpu.memory_space<vmem>>, vector<1x14x14x128xf32>
    %585 = vector.shape_cast %584 : vector<1x14x14x128xf32> to vector<14x14x128xf32>
    %586 = vector.extract_strided_slice %195 {offsets = [6, 6, 0], sizes = [1, 1, 128], strides = [1, 1, 1]} : vector<7x7x128xf32> to vector<1x1x128xf32>
    %587 = vector.shape_cast %586 : vector<1x1x128xf32> to vector<128xf32>
    %588 = vector.shape_cast %587 : vector<128xf32> to vector<1x1x128xf32>
    %589 = vector.broadcast %588 : vector<1x1x128xf32> to vector<14x14x128xf32>
    %590 = arith.mulf %585, %589 : vector<14x14x128xf32>
    %591 = arith.addf %583, %590 : vector<14x14x128xf32>
    %592 = vector.extract_strided_slice %591 {offsets = [0, 0, 0], sizes = [1, 14, 128], strides = [1, 1, 1]} : vector<14x14x128xf32> to vector<1x14x128xf32>
    %593 = vector.shape_cast %592 : vector<1x14x128xf32> to vector<14x128xf32>
    %c0_493 = arith.constant 0 : index
    %c1_494 = arith.constant 1 : index
    %c0_495 = arith.constant 0 : index
    %594 = vector.load %arg5[%c0_493, %c1_494, %c0_495] : memref<1x197x128xf32, #tpu.memory_space<vmem>>, vector<1x14x128xf32>
    %595 = vector.shape_cast %594 : vector<1x14x128xf32> to vector<14x128xf32>
    %596 = vector.shape_cast %593 : vector<14x128xf32> to vector<1x14x128xf32>
    tpu.vector_store %arg5[%c0_493, %c1_494, %c0_495], %596 {strides = array<i32>} : memref<1x197x128xf32, #tpu.memory_space<vmem>>, vector<1x14x128xf32>,
    %597 = vector.extract_strided_slice %591 {offsets = [1, 0, 0], sizes = [1, 14, 128], strides = [1, 1, 1]} : vector<14x14x128xf32> to vector<1x14x128xf32>
    %598 = vector.shape_cast %597 : vector<1x14x128xf32> to vector<14x128xf32>
    %c0_496 = arith.constant 0 : index
    %c15 = arith.constant 15 : index
    %c0_497 = arith.constant 0 : index
    %599 = vector.load %arg5[%c0_496, %c15, %c0_497] : memref<1x197x128xf32, #tpu.memory_space<vmem>>, vector<1x14x128xf32>
    %600 = vector.shape_cast %599 : vector<1x14x128xf32> to vector<14x128xf32>
    %601 = vector.shape_cast %598 : vector<14x128xf32> to vector<1x14x128xf32>
    tpu.vector_store %arg5[%c0_496, %c15, %c0_497], %601 {strides = array<i32>} : memref<1x197x128xf32, #tpu.memory_space<vmem>>, vector<1x14x128xf32>,
    %602 = vector.extract_strided_slice %591 {offsets = [2, 0, 0], sizes = [1, 14, 128], strides = [1, 1, 1]} : vector<14x14x128xf32> to vector<1x14x128xf32>
    %603 = vector.shape_cast %602 : vector<1x14x128xf32> to vector<14x128xf32>
    %c0_498 = arith.constant 0 : index
    %c29 = arith.constant 29 : index
    %c0_499 = arith.constant 0 : index
    %604 = vector.load %arg5[%c0_498, %c29, %c0_499] : memref<1x197x128xf32, #tpu.memory_space<vmem>>, vector<1x14x128xf32>
    %605 = vector.shape_cast %604 : vector<1x14x128xf32> to vector<14x128xf32>
    %606 = vector.shape_cast %603 : vector<14x128xf32> to vector<1x14x128xf32>
    tpu.vector_store %arg5[%c0_498, %c29, %c0_499], %606 {strides = array<i32>} : memref<1x197x128xf32, #tpu.memory_space<vmem>>, vector<1x14x128xf32>,
    %607 = vector.extract_strided_slice %591 {offsets = [3, 0, 0], sizes = [1, 14, 128], strides = [1, 1, 1]} : vector<14x14x128xf32> to vector<1x14x128xf32>
    %608 = vector.shape_cast %607 : vector<1x14x128xf32> to vector<14x128xf32>
    %c0_500 = arith.constant 0 : index
    %c43 = arith.constant 43 : index
    %c0_501 = arith.constant 0 : index
    %609 = vector.load %arg5[%c0_500, %c43, %c0_501] : memref<1x197x128xf32, #tpu.memory_space<vmem>>, vector<1x14x128xf32>
    %610 = vector.shape_cast %609 : vector<1x14x128xf32> to vector<14x128xf32>
    %611 = vector.shape_cast %608 : vector<14x128xf32> to vector<1x14x128xf32>
    tpu.vector_store %arg5[%c0_500, %c43, %c0_501], %611 {strides = array<i32>} : memref<1x197x128xf32, #tpu.memory_space<vmem>>, vector<1x14x128xf32>,
    %612 = vector.extract_strided_slice %591 {offsets = [4, 0, 0], sizes = [1, 14, 128], strides = [1, 1, 1]} : vector<14x14x128xf32> to vector<1x14x128xf32>
    %613 = vector.shape_cast %612 : vector<1x14x128xf32> to vector<14x128xf32>
    %c0_502 = arith.constant 0 : index
    %c57 = arith.constant 57 : index
    %c0_503 = arith.constant 0 : index
    %614 = vector.load %arg5[%c0_502, %c57, %c0_503] : memref<1x197x128xf32, #tpu.memory_space<vmem>>, vector<1x14x128xf32>
    %615 = vector.shape_cast %614 : vector<1x14x128xf32> to vector<14x128xf32>
    %616 = vector.shape_cast %613 : vector<14x128xf32> to vector<1x14x128xf32>
    tpu.vector_store %arg5[%c0_502, %c57, %c0_503], %616 {strides = array<i32>} : memref<1x197x128xf32, #tpu.memory_space<vmem>>, vector<1x14x128xf32>,
    %617 = vector.extract_strided_slice %591 {offsets = [5, 0, 0], sizes = [1, 14, 128], strides = [1, 1, 1]} : vector<14x14x128xf32> to vector<1x14x128xf32>
    %618 = vector.shape_cast %617 : vector<1x14x128xf32> to vector<14x128xf32>
    %c0_504 = arith.constant 0 : index
    %c71 = arith.constant 71 : index
    %c0_505 = arith.constant 0 : index
    %619 = vector.load %arg5[%c0_504, %c71, %c0_505] : memref<1x197x128xf32, #tpu.memory_space<vmem>>, vector<1x14x128xf32>
    %620 = vector.shape_cast %619 : vector<1x14x128xf32> to vector<14x128xf32>
    %621 = vector.shape_cast %618 : vector<14x128xf32> to vector<1x14x128xf32>
    tpu.vector_store %arg5[%c0_504, %c71, %c0_505], %621 {strides = array<i32>} : memref<1x197x128xf32, #tpu.memory_space<vmem>>, vector<1x14x128xf32>,
    %622 = vector.extract_strided_slice %591 {offsets = [6, 0, 0], sizes = [1, 14, 128], strides = [1, 1, 1]} : vector<14x14x128xf32> to vector<1x14x128xf32>
    %623 = vector.shape_cast %622 : vector<1x14x128xf32> to vector<14x128xf32>
    %c0_506 = arith.constant 0 : index
    %c85 = arith.constant 85 : index
    %c0_507 = arith.constant 0 : index
    %624 = vector.load %arg5[%c0_506, %c85, %c0_507] : memref<1x197x128xf32, #tpu.memory_space<vmem>>, vector<1x14x128xf32>
    %625 = vector.shape_cast %624 : vector<1x14x128xf32> to vector<14x128xf32>
    %626 = vector.shape_cast %623 : vector<14x128xf32> to vector<1x14x128xf32>
    tpu.vector_store %arg5[%c0_506, %c85, %c0_507], %626 {strides = array<i32>} : memref<1x197x128xf32, #tpu.memory_space<vmem>>, vector<1x14x128xf32>,
    %627 = vector.extract_strided_slice %591 {offsets = [7, 0, 0], sizes = [1, 14, 128], strides = [1, 1, 1]} : vector<14x14x128xf32> to vector<1x14x128xf32>
    %628 = vector.shape_cast %627 : vector<1x14x128xf32> to vector<14x128xf32>
    %c0_508 = arith.constant 0 : index
    %c99 = arith.constant 99 : index
    %c0_509 = arith.constant 0 : index
    %629 = vector.load %arg5[%c0_508, %c99, %c0_509] : memref<1x197x128xf32, #tpu.memory_space<vmem>>, vector<1x14x128xf32>
    %630 = vector.shape_cast %629 : vector<1x14x128xf32> to vector<14x128xf32>
    %631 = vector.shape_cast %628 : vector<14x128xf32> to vector<1x14x128xf32>
    tpu.vector_store %arg5[%c0_508, %c99, %c0_509], %631 {strides = array<i32>} : memref<1x197x128xf32, #tpu.memory_space<vmem>>, vector<1x14x128xf32>,
    %632 = vector.extract_strided_slice %591 {offsets = [8, 0, 0], sizes = [1, 14, 128], strides = [1, 1, 1]} : vector<14x14x128xf32> to vector<1x14x128xf32>
    %633 = vector.shape_cast %632 : vector<1x14x128xf32> to vector<14x128xf32>
    %c0_510 = arith.constant 0 : index
    %c113 = arith.constant 113 : index
    %c0_511 = arith.constant 0 : index
    %634 = vector.load %arg5[%c0_510, %c113, %c0_511] : memref<1x197x128xf32, #tpu.memory_space<vmem>>, vector<1x14x128xf32>
    %635 = vector.shape_cast %634 : vector<1x14x128xf32> to vector<14x128xf32>
    %636 = vector.shape_cast %633 : vector<14x128xf32> to vector<1x14x128xf32>
    tpu.vector_store %arg5[%c0_510, %c113, %c0_511], %636 {strides = array<i32>} : memref<1x197x128xf32, #tpu.memory_space<vmem>>, vector<1x14x128xf32>,
    %637 = vector.extract_strided_slice %591 {offsets = [9, 0, 0], sizes = [1, 14, 128], strides = [1, 1, 1]} : vector<14x14x128xf32> to vector<1x14x128xf32>
    %638 = vector.shape_cast %637 : vector<1x14x128xf32> to vector<14x128xf32>
    %c0_512 = arith.constant 0 : index
    %c127 = arith.constant 127 : index
    %c0_513 = arith.constant 0 : index
    %639 = vector.load %arg5[%c0_512, %c127, %c0_513] : memref<1x197x128xf32, #tpu.memory_space<vmem>>, vector<1x14x128xf32>
    %640 = vector.shape_cast %639 : vector<1x14x128xf32> to vector<14x128xf32>
    %641 = vector.shape_cast %638 : vector<14x128xf32> to vector<1x14x128xf32>
    tpu.vector_store %arg5[%c0_512, %c127, %c0_513], %641 {strides = array<i32>} : memref<1x197x128xf32, #tpu.memory_space<vmem>>, vector<1x14x128xf32>,
    %642 = vector.extract_strided_slice %591 {offsets = [10, 0, 0], sizes = [1, 14, 128], strides = [1, 1, 1]} : vector<14x14x128xf32> to vector<1x14x128xf32>
    %643 = vector.shape_cast %642 : vector<1x14x128xf32> to vector<14x128xf32>
    %c0_514 = arith.constant 0 : index
    %c141 = arith.constant 141 : index
    %c0_515 = arith.constant 0 : index
    %644 = vector.load %arg5[%c0_514, %c141, %c0_515] : memref<1x197x128xf32, #tpu.memory_space<vmem>>, vector<1x14x128xf32>
    %645 = vector.shape_cast %644 : vector<1x14x128xf32> to vector<14x128xf32>
    %646 = vector.shape_cast %643 : vector<14x128xf32> to vector<1x14x128xf32>
    tpu.vector_store %arg5[%c0_514, %c141, %c0_515], %646 {strides = array<i32>} : memref<1x197x128xf32, #tpu.memory_space<vmem>>, vector<1x14x128xf32>,
    %647 = vector.extract_strided_slice %591 {offsets = [11, 0, 0], sizes = [1, 14, 128], strides = [1, 1, 1]} : vector<14x14x128xf32> to vector<1x14x128xf32>
    %648 = vector.shape_cast %647 : vector<1x14x128xf32> to vector<14x128xf32>
    %c0_516 = arith.constant 0 : index
    %c155 = arith.constant 155 : index
    %c0_517 = arith.constant 0 : index
    %649 = vector.load %arg5[%c0_516, %c155, %c0_517] : memref<1x197x128xf32, #tpu.memory_space<vmem>>, vector<1x14x128xf32>
    %650 = vector.shape_cast %649 : vector<1x14x128xf32> to vector<14x128xf32>
    %651 = vector.shape_cast %648 : vector<14x128xf32> to vector<1x14x128xf32>
    tpu.vector_store %arg5[%c0_516, %c155, %c0_517], %651 {strides = array<i32>} : memref<1x197x128xf32, #tpu.memory_space<vmem>>, vector<1x14x128xf32>,
    %652 = vector.extract_strided_slice %591 {offsets = [12, 0, 0], sizes = [1, 14, 128], strides = [1, 1, 1]} : vector<14x14x128xf32> to vector<1x14x128xf32>
    %653 = vector.shape_cast %652 : vector<1x14x128xf32> to vector<14x128xf32>
    %c0_518 = arith.constant 0 : index
    %c169 = arith.constant 169 : index
    %c0_519 = arith.constant 0 : index
    %654 = vector.load %arg5[%c0_518, %c169, %c0_519] : memref<1x197x128xf32, #tpu.memory_space<vmem>>, vector<1x14x128xf32>
    %655 = vector.shape_cast %654 : vector<1x14x128xf32> to vector<14x128xf32>
    %656 = vector.shape_cast %653 : vector<14x128xf32> to vector<1x14x128xf32>
    tpu.vector_store %arg5[%c0_518, %c169, %c0_519], %656 {strides = array<i32>} : memref<1x197x128xf32, #tpu.memory_space<vmem>>, vector<1x14x128xf32>,
    %657 = vector.extract_strided_slice %591 {offsets = [13, 0, 0], sizes = [1, 14, 128], strides = [1, 1, 1]} : vector<14x14x128xf32> to vector<1x14x128xf32>
    %658 = vector.shape_cast %657 : vector<1x14x128xf32> to vector<14x128xf32>
    %c0_520 = arith.constant 0 : index
    %c183 = arith.constant 183 : index
    %c0_521 = arith.constant 0 : index
    %659 = vector.load %arg5[%c0_520, %c183, %c0_521] : memref<1x197x128xf32, #tpu.memory_space<vmem>>, vector<1x14x128xf32>
    %660 = vector.shape_cast %659 : vector<1x14x128xf32> to vector<14x128xf32>
    %661 = vector.shape_cast %658 : vector<14x128xf32> to vector<1x14x128xf32>
    tpu.vector_store %arg5[%c0_520, %c183, %c0_521], %661 {strides = array<i32>} : memref<1x197x128xf32, #tpu.memory_space<vmem>>, vector<1x14x128xf32>,
    return
  }
  func.func @transform_0(%arg0: i32, %arg1: i32) -> (i32, i32, i32) {
    %c0_i32 = arith.constant 0 : i32
    %c0_i32_0 = arith.constant 0 : i32
    return %arg0, %c0_i32, %arg1 : i32, i32, i32
  }
  func.func @transform_1(%arg0: i32, %arg1: i32) -> (i32, i32, i32) {
    %c0_i32 = arith.constant 0 : i32
    %c0_i32_0 = arith.constant 0 : i32
    %c0_i32_1 = arith.constant 0 : i32
    return %c0_i32, %c0_i32_0, %arg1 : i32, i32, i32
  }
  func.func @transform_2(%arg0: i32, %arg1: i32) -> (i32, i32) {
    %c0_i32 = arith.constant 0 : i32
    %c0_i32_0 = arith.constant 0 : i32
    return %c0_i32, %arg1 : i32, i32
  }
  func.func @transform_3(%arg0: i32, %arg1: i32) -> (i32, i32, i32) {
    %c0_i32 = arith.constant 0 : i32
    %c0_i32_0 = arith.constant 0 : i32
    return %arg0, %c0_i32, %arg1 : i32, i32, i32
  }
}

</mosaic_0001>

<llo_original>
// kernel: tpu_custom_call.1
$region0: #{tpu_custom_call.1}
  #allocation0 [shape = 'u32[]', space=smem, size = 0x4, offset = 0x4, fixed_abs, tag = 'smem constant byte address 0x4 - core index']
  #allocation1 [shape = 'u32[72,128]{1,0:T(1,128)}', space=vmem, size = 0x9000, scoped, tag = 'internal scratch']
  #allocation2 [shape = 'f32[20,24,128]{2,1,0:T(8,128)}', space=vmem, size = 0x3c000, scoped, tag = 'scratch operand']
  #allocation3 [shape = 'f32[7,20,14,128]{3,2,1,0:T(8,128)}', space=vmem, size = 0x118000, scoped, tag = 'scratch operand']
  #allocation4 [shape = 's32[1]{0}', space=sflag, size = 0x4, scoped, tag = 'scratch operand']
  #allocation5 [shape = 's32[1]{0}', space=sflag, size = 0x4, scoped, tag = 'scratch operand']
  #allocation6 [shape = 's32[]', space=sflag, size = 0x4, offset = 0, fixed_abs, tag = 'sflag constant byte address 0x0 - dummy sync flag']
  #allocation7 [shape = 's32[]', space=sflag, size = 0x4, offset = 0, fixed_abs, tag = 'sflag constant byte address 0x0 - dummy sync flag']
  #allocation8 [shape = 's32[]', space=sflag, size = 0x4, offset = 0, fixed_abs, tag = 'sflag constant byte address 0x0 - dummy sync flag']
  #allocation9 [shape = 's32[]', space=sflag, size = 0x4, offset = 0, fixed_abs, tag = 'sflag constant byte address 0x0 - dummy sync flag']
  #allocation10 [shape = 's32[]', space=sflag, size = 0x4, offset = 0, fixed_abs, tag = 'sflag constant byte address 0x0 - dummy sync flag']
  #allocation11 [shape = 's32[]', space=sflag, size = 0x4, offset = 0, fixed_abs, tag = 'sflag constant byte address 0x0 - dummy sync flag']
  #allocation12 [shape = 's32[]', space=sflag, size = 0x4, offset = 0, fixed_abs, tag = 'sflag constant byte address 0x0 - dummy sync flag']
  #allocation13 [shape = 's32[]', space=sflag, size = 0x4, offset = 0, fixed_abs, tag = 'sflag constant byte address 0x0 - dummy sync flag']
  #allocation14 [shape = 's32[]', space=sflag, size = 0x4, offset = 0, fixed_abs, tag = 'sflag constant byte address 0x0 - dummy sync flag']
  #allocation15 [shape = 's32[]', space=sflag, size = 0x4, offset = 0, fixed_abs, tag = 'sflag constant byte address 0x0 - dummy sync flag']
  #allocation16 [shape = 's32[]', space=sflag, size = 0x4, offset = 0, fixed_abs, tag = 'sflag constant byte address 0x0 - dummy sync flag']
  #allocation17 [shape = 's32[]', space=sflag, size = 0x4, offset = 0, fixed_abs, tag = 'sflag constant byte address 0x0 - dummy sync flag']
  #allocation18 [shape = 's32[]', space=sflag, size = 0x4, offset = 0, fixed_abs, tag = 'sflag constant byte address 0x0 - dummy sync flag']
  #allocation19 [shape = 's32[]', space=sflag, size = 0x4, offset = 0, fixed_abs, tag = 'sflag constant byte address 0x0 - dummy sync flag']
  #allocation20 [shape = 's32[]', space=sflag, size = 0x4, offset = 0, fixed_abs, tag = 'sflag constant byte address 0x0 - dummy sync flag']
  #allocation21 [shape = 's32[]', space=sflag, size = 0x4, offset = 0, fixed_abs, tag = 'sflag constant byte address 0x0 - dummy sync flag']
  #allocation22 [shape = 's32[]', space=sflag, size = 0x4, offset = 0, fixed_abs, tag = 'sflag constant byte address 0x0 - dummy sync flag']
  #allocation23 [shape = 's32[]', space=sflag, size = 0x4, offset = 0, fixed_abs, tag = 'sflag constant byte address 0x0 - dummy sync flag']
  #allocation24 [shape = 's32[]', space=sflag, size = 0x4, offset = 0, fixed_abs, tag = 'sflag constant byte address 0x0 - dummy sync flag']
  #allocation25 [shape = 's32[]', space=sflag, size = 0x4, offset = 0, fixed_abs, tag = 'sflag constant byte address 0x0 - dummy sync flag']
  #allocation26 [shape = 's32[]', space=sflag, size = 0x4, offset = 0, fixed_abs, tag = 'sflag constant byte address 0x0 - dummy sync flag']
  %s0 = inlined_call_operand.vmem [shape: f32[2,197,128], index: 0, kind: input, shape index: {}]
  %s1 = inlined_call_operand.vmem [shape: f32[7,7,128], index: 1, kind: input, shape index: {}]
  %s2 = inlined_call_operand.vmem [shape: f32[1,128], index: 2, kind: input, shape index: {}]
  %s3 = inlined_call_operand.vmem [shape: f32[2,197,128], index: 3, kind: output, shape index: {}]
  %s4 = sld [smem:[#allocation0]]
  $region507: #{tpu_custom_call.1} parent=0
    _
  %s6 = ssub.s32 1, %s4
  %s7 = scalar_select 0, %s6, %s4
  loop: start=0, step=1, limit=4
  $region2: #{tpu_custom_call.1} parent=0 // loop_pre_header
    _
  $region3: #{tpu_custom_call.1} parent=0 // loop_header
    %s9 = sphi 0, %s13
    %p10 = scmp.ge.s32.totalorder %s9, 4
    %s16 = sphi 0, %s28
    %s17 = sphi 0, %s24
    %s18 = sphi 0, %s16
    %s19 = sphi 0, %s17
    %s20 = sphi 0, %s18
    %s21 = sphi 0, %s19
    %s33 = sphi 0, %s35
    %s36 = sphi 0, %s33
    %s37 = sphi 0, %s36
    %s53 = sphi 0, %s37
    %s59 = sphi 0, %s61
    %s62 = sphi 0, %s59
    %s63 = sphi 0, %s62
    %s79 = sphi 0, %s63
    %s85 = sphi 0, %s87
    %s88 = sphi 0, %s85
    %s89 = sphi 0, %s88
    %s105 = sphi 0, %s89
    %s113 = sphi 0, %s115
    %s116 = sphi 0, %s113
    %s117 = sphi 0, %s116
    %s133 = sphi 0, %s117
  $region4: #{tpu_custom_call.1} parent=0 // loop_header_branch
    %12 = sbr.rel (%p10) target = $region8
  $region5: #{tpu_custom_call.1} parent=0 // loop_body
    %s14 = ssub.s32 %s9, 1
    %s15 = ssub.s32 %s9, 2
    %s22 = sadd.s32 1, %s17
    %p23 = scmp.ge.s32.totalorder %s22, 1
    %s24 = scalar_select %p23, 0, %s22
    %s25 = sadd.s32 1, %s16
    %s26 = scalar_select %p23, %s25, %s16
    %p27 = scmp.ge.s32.totalorder %s26, 2
    %s28 = scalar_select %p27, 0, %s26
    %s29 = ssub.s32 %s16, %s28
    %s30 = ssub.s32 %s17, %s24
    %s31 = sor.u32 %s29, %s30
    %p32 = scmp.eq.s32.totalorder %s31, 0
    %s34 = sadd.s32 %s33, 1
    %s35 = scalar_select %p32, %s33, %s34
    %p38 = pneg %p32
    %p39 = scmp.eq.s32.totalorder %s9, 1
    %p40 = por %p38, %p39
    %p41 = scmp.ne.s32.totalorder %s33, %s36
    %p42 = scmp.eq.s32.totalorder %s9, 0
    %p43 = por %p41, %p42
    %p44 = scmp.ne.s32.totalorder %s33, %s36
    %p45 = scmp.eq.s32.totalorder %s14, 1
    %p46 = por %p44, %p45
    %p47 = scmp.ne.s32.totalorder %s36, %s37
    %p48 = scmp.eq.s32.totalorder %s14, 0
    %p49 = por %p47, %p48
    %p50 = scmp.ne.s32.totalorder %s36, %s37
    %p51 = scmp.eq.s32.totalorder %s15, 1
    %p52 = por %p50, %p51
    %p54 = scmp.ne.s32.totalorder %s37, %s53
    %p55 = scmp.eq.s32.totalorder %s15, 0
    %p56 = por %p54, %p55
    %s57 = ssub.s32 %s17, %s24
    %p58 = scmp.eq.s32.totalorder %s57, 0
    %s60 = sadd.s32 %s59, 1
    %s61 = scalar_select %p58, %s59, %s60
    %p64 = pneg %p58
    %p65 = scmp.eq.s32.totalorder %s9, 1
    %p66 = por %p64, %p65
    %p67 = scmp.ne.s32.totalorder %s59, %s62
    %p68 = scmp.eq.s32.totalorder %s9, 0
    %p69 = por %p67, %p68
    %p70 = scmp.ne.s32.totalorder %s59, %s62
    %p71 = scmp.eq.s32.totalorder %s14, 1
    %p72 = por %p70, %p71
    %p73 = scmp.ne.s32.totalorder %s62, %s63
    %p74 = scmp.eq.s32.totalorder %s14, 0
    %p75 = por %p73, %p74
    %p76 = scmp.ne.s32.totalorder %s62, %s63
    %p77 = scmp.eq.s32.totalorder %s15, 1
    %p78 = por %p76, %p77
    %p80 = scmp.ne.s32.totalorder %s63, %s79
    %p81 = scmp.eq.s32.totalorder %s15, 0
    %p82 = por %p80, %p81
    %s83 = ssub.s32 %s17, %s24
    %p84 = scmp.eq.s32.totalorder %s83, 0
    %s86 = sadd.s32 %s85, 1
    %s87 = scalar_select %p84, %s85, %s86
    %p90 = pneg %p84
    %p91 = scmp.eq.s32.totalorder %s9, 1
    %p92 = por %p90, %p91
    %p93 = scmp.ne.s32.totalorder %s85, %s88
    %p94 = scmp.eq.s32.totalorder %s9, 0
    %p95 = por %p93, %p94
    %p96 = scmp.ne.s32.totalorder %s85, %s88
    %p97 = scmp.eq.s32.totalorder %s14, 1
    %p98 = por %p96, %p97
    %p99 = scmp.ne.s32.totalorder %s88, %s89
    %p100 = scmp.eq.s32.totalorder %s14, 0
    %p101 = por %p99, %p100
    %p102 = scmp.ne.s32.totalorder %s88, %s89
    %p103 = scmp.eq.s32.totalorder %s15, 1
    %p104 = por %p102, %p103
    %p106 = scmp.ne.s32.totalorder %s89, %s105
    %p107 = scmp.eq.s32.totalorder %s15, 0
    %p108 = por %p106, %p107
    %s109 = ssub.s32 %s16, %s28
    %s110 = ssub.s32 %s17, %s24
    %s111 = sor.u32 %s109, %s110
    %p112 = scmp.eq.s32.totalorder %s111, 0
    %s114 = sadd.s32 %s113, 1
    %s115 = scalar_select %p112, %s113, %s114
    %p118 = pneg %p112
    %p119 = scmp.eq.s32.totalorder %s9, 1
    %p120 = por %p118, %p119
    %p121 = scmp.ne.s32.totalorder %s113, %s116
    %p122 = scmp.eq.s32.totalorder %s9, 0
    %p123 = por %p121, %p122
    %p124 = scmp.ne.s32.totalorder %s113, %s116
    %p125 = scmp.eq.s32.totalorder %s14, 1
    %p126 = por %p124, %p125
    %p127 = scmp.ne.s32.totalorder %s116, %s117
    %p128 = scmp.eq.s32.totalorder %s14, 0
    %p129 = por %p127, %p128
    %p130 = scmp.ne.s32.totalorder %s116, %s117
    %p131 = scmp.eq.s32.totalorder %s15, 1
    %p132 = por %p130, %p131
    %p134 = scmp.ne.s32.totalorder %s117, %s133
    %p135 = scmp.eq.s32.totalorder %s15, 0
    %p136 = por %p134, %p135
    %p137 = scmp.le.s32.totalorder 1, %s9
    %p138 = scmp.lt.s32.totalorder %s9, 3
    %p139 = pnand %p137, %p138
    %p140 = pneg %p139
    // Predicated region
    $region9: #{tpu_custom_call.1} parent=5 // pred_check
      _
    $region10: #{tpu_custom_call.1} parent=5 // pred_check_branch
      %142 = sbr.rel (%p139) target = $region12
    $region11: #{tpu_custom_call.1} parent=5 // pred_region
      %s143 = ssub.s32 %s9, 1
      // Predicated region
      $region13: #{tpu_custom_call.1} parent=11 // pred_check
        %p144 = pneg %p75
      $region14: #{tpu_custom_call.1} parent=11 // pred_check_branch
        %146 = sbr.rel (%p144) target = $region16
      $region15: #{tpu_custom_call.1} parent=11 // pred_region
        %p147 = scmp.lt.s32.totalorder %s19, 0
        %s148 = scalar_select %p147, %s19, 0
        %s149 = smul.addr %s148, 8
        %s150 = scalar_lea.vmem %s1, %s149
      $region16: #{tpu_custom_call.1} parent=11 // pred_fallthru
        _
      // Predicated region
      $region17: #{tpu_custom_call.1} parent=11 // pred_check
        %p151 = pneg %p101
      $region18: #{tpu_custom_call.1} parent=11 // pred_check_branch
        %153 = sbr.rel (%p151) target = $region20
      $region19: #{tpu_custom_call.1} parent=11 // pred_region
        %p154 = scmp.lt.s32.totalorder %s19, 0
        %s155 = scalar_select %p154, %s19, 0
        %s156 = scalar_lea.vmem %s2, %s155
      $region20: #{tpu_custom_call.1} parent=11 // pred_fallthru
        _
    $region12: #{tpu_custom_call.1} parent=5 // pred_fallthru
      _
    %p157 = scmp.lt.s32.totalorder %s9, 2
    // Predicated region
    $region21: #{tpu_custom_call.1} parent=5 // pred_check
      %p158 = pneg %p157
    $region22: #{tpu_custom_call.1} parent=5 // pred_check_branch
      %160 = sbr.rel (%p158) target = $region24
    $region23: #{tpu_custom_call.1} parent=5 // pred_region
      // Predicated region
      $region25: #{tpu_custom_call.1} parent=23 // pred_check
        %p161 = pneg %p43
      $region26: #{tpu_custom_call.1} parent=23 // pred_check_branch
        %163 = sbr.rel (%p161) target = $region28
      $region27: #{tpu_custom_call.1} parent=23 // pred_region
        %p164 = scmp.lt.s32.totalorder %s16, 1
        %s165 = scalar_select %p164, %s16, 1
        %p166 = scmp.lt.s32.totalorder %s17, 0
        %s167 = scalar_select %p166, %s17, 0
        %s168 = smul.addr %s165, 25
        %s169 = sadd.s32 %s167, %s168
        %s170 = smul.addr %s169, 8
        %s171 = scalar_lea.vmem %s0, %s170
      $region28: #{tpu_custom_call.1} parent=23 // pred_fallthru
        _
    $region24: #{tpu_custom_call.1} parent=5 // pred_fallthru
      _
    %p172 = scmp.le.s32.totalorder 1, %s9
    %p173 = scmp.lt.s32.totalorder %s9, 3
    %p174 = pnand %p172, %p173
    %p175 = pneg %p174
    // Predicated region
    $region29: #{tpu_custom_call.1} parent=5 // pred_check
      _
    $region30: #{tpu_custom_call.1} parent=5 // pred_check_branch
      %177 = sbr.rel (%p174) target = $region32
    $region31: #{tpu_custom_call.1} parent=5 // pred_region
      %s178 = ssub.s32 %s9, 1
      %p179 = scmp.lt.s32.totalorder %s18, 1
      %s180 = scalar_select %p179, %s18, 1
      %p181 = scmp.lt.s32.totalorder %s19, 0
      %s182 = scalar_select %p181, %s19, 0
      %s183 = smul.addr %s180, 25
      %s184 = sadd.s32 %s182, %s183
      %s185 = smul.addr %s184, 8
      %s186 = scalar_lea.vmem %s0, %s185
      %p187 = pneg %p49
      %p188 = pneg %p46
      %p189 = scmp.lt.s32.totalorder %s19, 0
      %s190 = scalar_select %p189, %s19, 0
      %s191 = smul.addr %s190, 8
      %s192 = scalar_lea.vmem %s1, %s191
      %p193 = pneg %p75
      %p194 = pneg %p72
      %p195 = scmp.lt.s32.totalorder %s19, 0
      %s196 = scalar_select %p195, %s19, 0
      %s197 = scalar_lea.vmem %s2, %s196
      %p198 = pneg %p101
      %p199 = pneg %p98
      %p200 = pneg %p129
      %p201 = pneg %p126
      %p202 = scmp.lt.s32.totalorder %s18, 1
      %s203 = scalar_select %p202, %s18, 1
      %p204 = scmp.lt.s32.totalorder %s19, 0
      %s205 = scalar_select %p204, %s19, 0
      %s206 = smul.addr %s203, 25
      %s207 = sadd.s32 %s205, %s206
      %s208 = smul.addr %s207, 8
      %s209 = scalar_lea.vmem %s3, %s208
      %p210 = scmp.lt.s32.totalorder %s18, 1
      %s211 = scalar_select %p210, %s18, 1
      %p212 = scmp.lt.s32.totalorder %s19, 0
      %s213 = scalar_select %p212, %s19, 0
      %s214 = smul.addr %s211, 25
      %s215 = sadd.s32 %s213, %s214
      %s216 = smul.addr %s215, 8
      %s217 = scalar_lea.vmem %s0, %s216
      %p218 = scmp.lt.s32.totalorder %s19, 0
      %s219 = scalar_select %p218, %s19, 0
      %s220 = smul.addr %s219, 8
      %s221 = scalar_lea.vmem %s1, %s220
      %p222 = scmp.lt.s32.totalorder %s19, 0
      %s223 = scalar_select %p222, %s19, 0
      %s224 = scalar_lea.vmem %s2, %s223
      %p225 = scmp.lt.s32.totalorder %s18, 1
      %s226 = scalar_select %p225, %s18, 1
      %p227 = scmp.lt.s32.totalorder %s19, 0
      %s228 = scalar_select %p227, %s19, 0
      %s229 = smul.addr %s226, 25
      %s230 = sadd.s32 %s228, %s229
      %s231 = smul.addr %s230, 8
      %s232 = scalar_lea.vmem %s3, %s231
      %233 = vst [vmem:[#allocation2] sm:$0xff] 0.0
      %234 = vst [vmem:[#allocation2 + $0x8] sm:$0xff] 0.0
      %235 = vst [vmem:[#allocation2 + $0x10] sm:$0xff] 0.0
      %236 = vst [vmem:[#allocation2 + $0x18] sm:$0xff] 0.0
      %237 = vst [vmem:[#allocation2 + $0x20] sm:$0xff] 0.0
      %238 = vst [vmem:[#allocation2 + $0x28] sm:$0xff] 0.0
      %239 = vst [vmem:[#allocation2 + $0x30] sm:$0xff] 0.0
      %240 = vst [vmem:[#allocation2 + $0x38] sm:$0xff] 0.0
      %241 = vst [vmem:[#allocation2 + $0x40] sm:$0xff] 0.0
      %s242 = scalar_lea.vmem [#allocation2], 408
      %243 = vst [vmem:[%s242] sm:$0xff] 0.0
      %244 = vst [vmem:[%s242 + $0x8] sm:$0xff] 0.0
      %245 = vst [vmem:[%s242 + $0x10] sm:$0xff] 0.0
      %246 = vst [vmem:[%s242 + $0x18] sm:$0xff] 0.0
      %247 = vst [vmem:[%s242 + $0x20] sm:$0xff] 0.0
      %248 = vst [vmem:[%s242 + $0x28] sm:$0xff] 0.0
      %249 = vst [vmem:[%s242 + $0x30] sm:$0xff] 0.0
      %250 = vst [vmem:[%s242 + $0x38] sm:$0xff] 0.0
      %251 = vst [vmem:[%s242 + $0x40] sm:$0xff] 0.0
      %s252 = scalar_lea.vmem [#allocation2], 72
      %253 = vst [vmem:[%s252] sm:$0x7] 0.0
      %254 = vst [vmem:[%s252 + $0x18] sm:$0x7] 0.0
      %255 = vst [vmem:[%s252 + $0x30] sm:$0x7] 0.0
      %256 = vst [vmem:[%s252 + $0x48] sm:$0x7] 0.0
      %257 = vst [vmem:[%s252 + $0x60] sm:$0x7] 0.0
      %258 = vst [vmem:[%s252 + $0x78] sm:$0x7] 0.0
      %259 = vst [vmem:[%s252 + $0x90] sm:$0x7] 0.0
      %260 = vst [vmem:[%s252 + $0xa8] sm:$0x7] 0.0
      %261 = vst [vmem:[%s252 + $0xc0] sm:$0x7] 0.0
      %262 = vst [vmem:[%s252 + $0xd8] sm:$0x7] 0.0
      %263 = vst [vmem:[%s252 + $0xf0] sm:$0x7] 0.0
      %264 = vst [vmem:[%s252 + $0x108] sm:$0x7] 0.0
      %265 = vst [vmem:[%s252 + $0x120] sm:$0x7] 0.0
      %266 = vst [vmem:[%s252 + $0x138] sm:$0x7] 0.0
      %267 = vst [vmem:[%s252 + $0x11] sm:$0x7f] 0.0
      %268 = vst [vmem:[%s252 + $0x29] sm:$0x7f] 0.0
      %269 = vst [vmem:[%s252 + $0x41] sm:$0x7f] 0.0
      %270 = vst [vmem:[%s252 + $0x59] sm:$0x7f] 0.0
      %271 = vst [vmem:[%s252 + $0x71] sm:$0x7f] 0.0
      %272 = vst [vmem:[%s252 + $0x89] sm:$0x7f] 0.0
      %273 = vst [vmem:[%s252 + $0xa1] sm:$0x7f] 0.0
      %274 = vst [vmem:[%s252 + $0xb9] sm:$0x7f] 0.0
      %275 = vst [vmem:[%s252 + $0xd1] sm:$0x7f] 0.0
      %276 = vst [vmem:[%s252 + $0xe9] sm:$0x7f] 0.0
      %277 = vst [vmem:[%s252 + $0x101] sm:$0x7f] 0.0
      %278 = vst [vmem:[%s252 + $0x119] sm:$0x7f] 0.0
      %279 = vst [vmem:[%s252 + $0x131] sm:$0x7f] 0.0
      %280 = vst [vmem:[%s252 + $0x149] sm:$0x7f] 0.0
      %s281 = scalar_lea.vmem %s217, 1
      %s282 = scalar_lea.vmem [#allocation2], 75
      // Predicated region
      $region33: #{tpu_custom_call.1} parent=31 // pred_check
        _
      $region34: #{tpu_custom_call.1} parent=31 // pred_check_branch
        %284 = sbr.rel (0) target = $region36
      $region35: #{tpu_custom_call.1} parent=31 // pred_region
        %s285 = scalar_lea.vmem %s281, 8
        %s286 = scalar_lea.vmem %s282, 8 [#allocation2]
        loop: start=0, step=1, limit=1
        $region37: #{tpu_custom_call.1} parent=35 // loop_pre_header
          _
        $region38: #{tpu_custom_call.1} parent=35 // loop_header
          %s288 = sphi 0, %s292
          %p289 = scmp.ge.s32.totalorder %s288, 1
          %s293 = sphi %s281, %s281
          %s294 = sphi %s282, %s282
        $region39: #{tpu_custom_call.1} parent=35 // loop_header_branch
          %291 = sbr.rel (%p289) target = $region43
        $region40: #{tpu_custom_call.1} parent=35 // loop_body
          %v295 = vld [vmem:[%s293] sm:$0xff]
          %296 = vst [vmem:[%s294] sm:$0xff] %v295
        $region41: #{tpu_custom_call.1} parent=35 // loop_footer
          %s292 = sadd.s32 1, %s288
        $region42: #{tpu_custom_call.1} parent=35 // loop_footer_branch
          %287 = sbr.rel target = $region38
        $region43: #{tpu_custom_call.1} parent=35 // loop_exit
          _
        %s298 = ssub.s32 64, 1
        loop: start=0, step=1, limit=1
        $region44: #{tpu_custom_call.1} parent=35 // loop_pre_header
          _
        $region45: #{tpu_custom_call.1} parent=35 // loop_header
          %s300 = sphi 0, %s304
          %p301 = scmp.ge.s32.totalorder %s300, 1
          %s305 = sphi %s285, %s285
          %s306 = sphi %s286, %s286
        $region46: #{tpu_custom_call.1} parent=35 // loop_header_branch
          %303 = sbr.rel (%p301) target = $region50
        $region47: #{tpu_custom_call.1} parent=35 // loop_body
          %v307 = vld [vmem:[%s305] sm:%s298]
          %308 = vst [vmem:[%s306] sm:%s298] %v307
        $region48: #{tpu_custom_call.1} parent=35 // loop_footer
          %s304 = sadd.s32 1, %s300
        $region49: #{tpu_custom_call.1} parent=35 // loop_footer_branch
          %299 = sbr.rel target = $region45
        $region50: #{tpu_custom_call.1} parent=35 // loop_exit
          _
      $region36: #{tpu_custom_call.1} parent=31 // pred_fallthru
        _
      // Predicated region
      $region51: #{tpu_custom_call.1} parent=31 // pred_check
        _
      $region52: #{tpu_custom_call.1} parent=31 // pred_check_branch
        %311 = sbr.rel (0) target = $region54
      $region53: #{tpu_custom_call.1} parent=31 // pred_region
        %312 = vsyncadd [#allocation4], 224
      $region54: #{tpu_custom_call.1} parent=31 // pred_fallthru
        _
      %s313 = scalar_lea.vmem %s217, 15
      %s314 = scalar_lea.vmem [#allocation2], 99
      // Predicated region
      $region55: #{tpu_custom_call.1} parent=31 // pred_check
        _
      $region56: #{tpu_custom_call.1} parent=31 // pred_check_branch
        %316 = sbr.rel (0) target = $region58
      $region57: #{tpu_custom_call.1} parent=31 // pred_region
        %s317 = scalar_lea.vmem %s313, 8
        %s318 = scalar_lea.vmem %s314, 8 [#allocation2]
        loop: start=0, step=1, limit=1
        $region59: #{tpu_custom_call.1} parent=57 // loop_pre_header
          _
        $region60: #{tpu_custom_call.1} parent=57 // loop_header
          %s320 = sphi 0, %s324
          %p321 = scmp.ge.s32.totalorder %s320, 1
          %s325 = sphi %s313, %s313
          %s326 = sphi %s314, %s314
        $region61: #{tpu_custom_call.1} parent=57 // loop_header_branch
          %323 = sbr.rel (%p321) target = $region65
        $region62: #{tpu_custom_call.1} parent=57 // loop_body
          %v327 = vld [vmem:[%s325] sm:$0xff]
          %328 = vst [vmem:[%s326] sm:$0xff] %v327
        $region63: #{tpu_custom_call.1} parent=57 // loop_footer
          %s324 = sadd.s32 1, %s320
        $region64: #{tpu_custom_call.1} parent=57 // loop_footer_branch
          %319 = sbr.rel target = $region60
        $region65: #{tpu_custom_call.1} parent=57 // loop_exit
          _
        %s330 = ssub.s32 64, 1
        loop: start=0, step=1, limit=1
        $region66: #{tpu_custom_call.1} parent=57 // loop_pre_header
          _
        $region67: #{tpu_custom_call.1} parent=57 // loop_header
          %s332 = sphi 0, %s336
          %p333 = scmp.ge.s32.totalorder %s332, 1
          %s337 = sphi %s317, %s317
          %s338 = sphi %s318, %s318
        $region68: #{tpu_custom_call.1} parent=57 // loop_header_branch
          %335 = sbr.rel (%p333) target = $region72
        $region69: #{tpu_custom_call.1} parent=57 // loop_body
          %v339 = vld [vmem:[%s337] sm:%s330]
          %340 = vst [vmem:[%s338] sm:%s330] %v339
        $region70: #{tpu_custom_call.1} parent=57 // loop_footer
          %s336 = sadd.s32 1, %s332
        $region71: #{tpu_custom_call.1} parent=57 // loop_footer_branch
          %331 = sbr.rel target = $region67
        $region72: #{tpu_custom_call.1} parent=57 // loop_exit
          _
      $region58: #{tpu_custom_call.1} parent=31 // pred_fallthru
        _
      // Predicated region
      $region73: #{tpu_custom_call.1} parent=31 // pred_check
        _
      $region74: #{tpu_custom_call.1} parent=31 // pred_check_branch
        %343 = sbr.rel (0) target = $region76
      $region75: #{tpu_custom_call.1} parent=31 // pred_region
        %344 = vsyncadd [#allocation4], 224
      $region76: #{tpu_custom_call.1} parent=31 // pred_fallthru
        _
      %s345 = scalar_lea.vmem %s217, 29
      %s346 = scalar_lea.vmem [#allocation2], 123
      // Predicated region
      $region77: #{tpu_custom_call.1} parent=31 // pred_check
        _
      $region78: #{tpu_custom_call.1} parent=31 // pred_check_branch
        %348 = sbr.rel (0) target = $region80
      $region79: #{tpu_custom_call.1} parent=31 // pred_region
        %s349 = scalar_lea.vmem %s345, 8
        %s350 = scalar_lea.vmem %s346, 8 [#allocation2]
        loop: start=0, step=1, limit=1
        $region81: #{tpu_custom_call.1} parent=79 // loop_pre_header
          _
        $region82: #{tpu_custom_call.1} parent=79 // loop_header
          %s352 = sphi 0, %s356
          %p353 = scmp.ge.s32.totalorder %s352, 1
          %s357 = sphi %s345, %s345
          %s358 = sphi %s346, %s346
        $region83: #{tpu_custom_call.1} parent=79 // loop_header_branch
          %355 = sbr.rel (%p353) target = $region87
        $region84: #{tpu_custom_call.1} parent=79 // loop_body
          %v359 = vld [vmem:[%s357] sm:$0xff]
          %360 = vst [vmem:[%s358] sm:$0xff] %v359
        $region85: #{tpu_custom_call.1} parent=79 // loop_footer
          %s356 = sadd.s32 1, %s352
        $region86: #{tpu_custom_call.1} parent=79 // loop_footer_branch
          %351 = sbr.rel target = $region82
        $region87: #{tpu_custom_call.1} parent=79 // loop_exit
          _
        %s362 = ssub.s32 64, 1
        loop: start=0, step=1, limit=1
        $region88: #{tpu_custom_call.1} parent=79 // loop_pre_header
          _
        $region89: #{tpu_custom_call.1} parent=79 // loop_header
          %s364 = sphi 0, %s368
          %p365 = scmp.ge.s32.totalorder %s364, 1
          %s369 = sphi %s349, %s349
          %s370 = sphi %s350, %s350
        $region90: #{tpu_custom_call.1} parent=79 // loop_header_branch
          %367 = sbr.rel (%p365) target = $region94
        $region91: #{tpu_custom_call.1} parent=79 // loop_body
          %v371 = vld [vmem:[%s369] sm:%s362]
          %372 = vst [vmem:[%s370] sm:%s362] %v371
        $region92: #{tpu_custom_call.1} parent=79 // loop_footer
          %s368 = sadd.s32 1, %s364
        $region93: #{tpu_custom_call.1} parent=79 // loop_footer_branch
          %363 = sbr.rel target = $region89
        $region94: #{tpu_custom_call.1} parent=79 // loop_exit
          _
      $region80: #{tpu_custom_call.1} parent=31 // pred_fallthru
        _
      // Predicated region
      $region95: #{tpu_custom_call.1} parent=31 // pred_check
        _
      $region96: #{tpu_custom_call.1} parent=31 // pred_check_branch
        %375 = sbr.rel (0) target = $region98
      $region97: #{tpu_custom_call.1} parent=31 // pred_region
        %376 = vsyncadd [#allocation4], 224
      $region98: #{tpu_custom_call.1} parent=31 // pred_fallthru
        _
      %s377 = scalar_lea.vmem %s217, 43
      %s378 = scalar_lea.vmem [#allocation2], 147
      // Predicated region
      $region99: #{tpu_custom_call.1} parent=31 // pred_check
        _
      $region100: #{tpu_custom_call.1} parent=31 // pred_check_branch
        %380 = sbr.rel (0) target = $region102
      $region101: #{tpu_custom_call.1} parent=31 // pred_region
        %s381 = scalar_lea.vmem %s377, 8
        %s382 = scalar_lea.vmem %s378, 8 [#allocation2]
        loop: start=0, step=1, limit=1
        $region103: #{tpu_custom_call.1} parent=101 // loop_pre_header
          _
        $region104: #{tpu_custom_call.1} parent=101 // loop_header
          %s384 = sphi 0, %s388
          %p385 = scmp.ge.s32.totalorder %s384, 1
          %s389 = sphi %s377, %s377
          %s390 = sphi %s378, %s378
        $region105: #{tpu_custom_call.1} parent=101 // loop_header_branch
          %387 = sbr.rel (%p385) target = $region109
        $region106: #{tpu_custom_call.1} parent=101 // loop_body
          %v391 = vld [vmem:[%s389] sm:$0xff]
          %392 = vst [vmem:[%s390] sm:$0xff] %v391
        $region107: #{tpu_custom_call.1} parent=101 // loop_footer
          %s388 = sadd.s32 1, %s384
        $region108: #{tpu_custom_call.1} parent=101 // loop_footer_branch
          %383 = sbr.rel target = $region104
        $region109: #{tpu_custom_call.1} parent=101 // loop_exit
          _
        %s394 = ssub.s32 64, 1
        loop: start=0, step=1, limit=1
        $region110: #{tpu_custom_call.1} parent=101 // loop_pre_header
          _
        $region111: #{tpu_custom_call.1} parent=101 // loop_header
          %s396 = sphi 0, %s400
          %p397 = scmp.ge.s32.totalorder %s396, 1
          %s401 = sphi %s381, %s381
          %s402 = sphi %s382, %s382
        $region112: #{tpu_custom_call.1} parent=101 // loop_header_branch
          %399 = sbr.rel (%p397) target = $region116
        $region113: #{tpu_custom_call.1} parent=101 // loop_body
          %v403 = vld [vmem:[%s401] sm:%s394]
          %404 = vst [vmem:[%s402] sm:%s394] %v403
        $region114: #{tpu_custom_call.1} parent=101 // loop_footer
          %s400 = sadd.s32 1, %s396
        $region115: #{tpu_custom_call.1} parent=101 // loop_footer_branch
          %395 = sbr.rel target = $region111
        $region116: #{tpu_custom_call.1} parent=101 // loop_exit
          _
      $region102: #{tpu_custom_call.1} parent=31 // pred_fallthru
        _
      // Predicated region
      $region117: #{tpu_custom_call.1} parent=31 // pred_check
        _
      $region118: #{tpu_custom_call.1} parent=31 // pred_check_branch
        %407 = sbr.rel (0) target = $region120
      $region119: #{tpu_custom_call.1} parent=31 // pred_region
        %408 = vsyncadd [#allocation4], 224
      $region120: #{tpu_custom_call.1} parent=31 // pred_fallthru
        _
      %s409 = scalar_lea.vmem %s217, 57
      %s410 = scalar_lea.vmem [#allocation2], 171
      // Predicated region
      $region121: #{tpu_custom_call.1} parent=31 // pred_check
        _
      $region122: #{tpu_custom_call.1} parent=31 // pred_check_branch
        %412 = sbr.rel (0) target = $region124
      $region123: #{tpu_custom_call.1} parent=31 // pred_region
        %s413 = scalar_lea.vmem %s409, 8
        %s414 = scalar_lea.vmem %s410, 8 [#allocation2]
        loop: start=0, step=1, limit=1
        $region125: #{tpu_custom_call.1} parent=123 // loop_pre_header
          _
        $region126: #{tpu_custom_call.1} parent=123 // loop_header
          %s416 = sphi 0, %s420
          %p417 = scmp.ge.s32.totalorder %s416, 1
          %s421 = sphi %s409, %s409
          %s422 = sphi %s410, %s410
        $region127: #{tpu_custom_call.1} parent=123 // loop_header_branch
          %419 = sbr.rel (%p417) target = $region131
        $region128: #{tpu_custom_call.1} parent=123 // loop_body
          %v423 = vld [vmem:[%s421] sm:$0xff]
          %424 = vst [vmem:[%s422] sm:$0xff] %v423
        $region129: #{tpu_custom_call.1} parent=123 // loop_footer
          %s420 = sadd.s32 1, %s416
        $region130: #{tpu_custom_call.1} parent=123 // loop_footer_branch
          %415 = sbr.rel target = $region126
        $region131: #{tpu_custom_call.1} parent=123 // loop_exit
          _
        %s426 = ssub.s32 64, 1
        loop: start=0, step=1, limit=1
        $region132: #{tpu_custom_call.1} parent=123 // loop_pre_header
          _
        $region133: #{tpu_custom_call.1} parent=123 // loop_header
          %s428 = sphi 0, %s432
          %p429 = scmp.ge.s32.totalorder %s428, 1
          %s433 = sphi %s413, %s413
          %s434 = sphi %s414, %s414
        $region134: #{tpu_custom_call.1} parent=123 // loop_header_branch
          %431 = sbr.rel (%p429) target = $region138
        $region135: #{tpu_custom_call.1} parent=123 // loop_body
          %v435 = vld [vmem:[%s433] sm:%s426]
          %436 = vst [vmem:[%s434] sm:%s426] %v435
        $region136: #{tpu_custom_call.1} parent=123 // loop_footer
          %s432 = sadd.s32 1, %s428
        $region137: #{tpu_custom_call.1} parent=123 // loop_footer_branch
          %427 = sbr.rel target = $region133
        $region138: #{tpu_custom_call.1} parent=123 // loop_exit
          _
      $region124: #{tpu_custom_call.1} parent=31 // pred_fallthru
        _
      // Predicated region
      $region139: #{tpu_custom_call.1} parent=31 // pred_check
        _
      $region140: #{tpu_custom_call.1} parent=31 // pred_check_branch
        %439 = sbr.rel (0) target = $region142
      $region141: #{tpu_custom_call.1} parent=31 // pred_region
        %440 = vsyncadd [#allocation4], 224
      $region142: #{tpu_custom_call.1} parent=31 // pred_fallthru
        _
      %s441 = scalar_lea.vmem %s217, 71
      %s442 = scalar_lea.vmem [#allocation2], 195
      // Predicated region
      $region143: #{tpu_custom_call.1} parent=31 // pred_check
        _
      $region144: #{tpu_custom_call.1} parent=31 // pred_check_branch
        %444 = sbr.rel (0) target = $region146
      $region145: #{tpu_custom_call.1} parent=31 // pred_region
        %s445 = scalar_lea.vmem %s441, 8
        %s446 = scalar_lea.vmem %s442, 8 [#allocation2]
        loop: start=0, step=1, limit=1
        $region147: #{tpu_custom_call.1} parent=145 // loop_pre_header
          _
        $region148: #{tpu_custom_call.1} parent=145 // loop_header
          %s448 = sphi 0, %s452
          %p449 = scmp.ge.s32.totalorder %s448, 1
          %s453 = sphi %s441, %s441
          %s454 = sphi %s442, %s442
        $region149: #{tpu_custom_call.1} parent=145 // loop_header_branch
          %451 = sbr.rel (%p449) target = $region153
        $region150: #{tpu_custom_call.1} parent=145 // loop_body
          %v455 = vld [vmem:[%s453] sm:$0xff]
          %456 = vst [vmem:[%s454] sm:$0xff] %v455
        $region151: #{tpu_custom_call.1} parent=145 // loop_footer
          %s452 = sadd.s32 1, %s448
        $region152: #{tpu_custom_call.1} parent=145 // loop_footer_branch
          %447 = sbr.rel target = $region148
        $region153: #{tpu_custom_call.1} parent=145 // loop_exit
          _
        %s458 = ssub.s32 64, 1
        loop: start=0, step=1, limit=1
        $region154: #{tpu_custom_call.1} parent=145 // loop_pre_header
          _
        $region155: #{tpu_custom_call.1} parent=145 // loop_header
          %s460 = sphi 0, %s464
          %p461 = scmp.ge.s32.totalorder %s460, 1
          %s465 = sphi %s445, %s445
          %s466 = sphi %s446, %s446
        $region156: #{tpu_custom_call.1} parent=145 // loop_header_branch
          %463 = sbr.rel (%p461) target = $region160
        $region157: #{tpu_custom_call.1} parent=145 // loop_body
          %v467 = vld [vmem:[%s465] sm:%s458]
          %468 = vst [vmem:[%s466] sm:%s458] %v467
        $region158: #{tpu_custom_call.1} parent=145 // loop_footer
          %s464 = sadd.s32 1, %s460
        $region159: #{tpu_custom_call.1} parent=145 // loop_footer_branch
          %459 = sbr.rel target = $region155
        $region160: #{tpu_custom_call.1} parent=145 // loop_exit
          _
      $region146: #{tpu_custom_call.1} parent=31 // pred_fallthru
        _
      // Predicated region
      $region161: #{tpu_custom_call.1} parent=31 // pred_check
        _
      $region162: #{tpu_custom_call.1} parent=31 // pred_check_branch
        %471 = sbr.rel (0) target = $region164
      $region163: #{tpu_custom_call.1} parent=31 // pred_region
        %472 = vsyncadd [#allocation4], 224
      $region164: #{tpu_custom_call.1} parent=31 // pred_fallthru
        _
      %s473 = scalar_lea.vmem %s217, 85
      %s474 = scalar_lea.vmem [#allocation2], 219
      // Predicated region
      $region165: #{tpu_custom_call.1} parent=31 // pred_check
        _
      $region166: #{tpu_custom_call.1} parent=31 // pred_check_branch
        %476 = sbr.rel (0) target = $region168
      $region167: #{tpu_custom_call.1} parent=31 // pred_region
        %s477 = scalar_lea.vmem %s473, 8
        %s478 = scalar_lea.vmem %s474, 8 [#allocation2]
        loop: start=0, step=1, limit=1
        $region169: #{tpu_custom_call.1} parent=167 // loop_pre_header
          _
        $region170: #{tpu_custom_call.1} parent=167 // loop_header
          %s480 = sphi 0, %s484
          %p481 = scmp.ge.s32.totalorder %s480, 1
          %s485 = sphi %s473, %s473
          %s486 = sphi %s474, %s474
        $region171: #{tpu_custom_call.1} parent=167 // loop_header_branch
          %483 = sbr.rel (%p481) target = $region175
        $region172: #{tpu_custom_call.1} parent=167 // loop_body
          %v487 = vld [vmem:[%s485] sm:$0xff]
          %488 = vst [vmem:[%s486] sm:$0xff] %v487
        $region173: #{tpu_custom_call.1} parent=167 // loop_footer
          %s484 = sadd.s32 1, %s480
        $region174: #{tpu_custom_call.1} parent=167 // loop_footer_branch
          %479 = sbr.rel target = $region170
        $region175: #{tpu_custom_call.1} parent=167 // loop_exit
          _
        %s490 = ssub.s32 64, 1
        loop: start=0, step=1, limit=1
        $region176: #{tpu_custom_call.1} parent=167 // loop_pre_header
          _
        $region177: #{tpu_custom_call.1} parent=167 // loop_header
          %s492 = sphi 0, %s496
          %p493 = scmp.ge.s32.totalorder %s492, 1
          %s497 = sphi %s477, %s477
          %s498 = sphi %s478, %s478
        $region178: #{tpu_custom_call.1} parent=167 // loop_header_branch
          %495 = sbr.rel (%p493) target = $region182
        $region179: #{tpu_custom_call.1} parent=167 // loop_body
          %v499 = vld [vmem:[%s497] sm:%s490]
          %500 = vst [vmem:[%s498] sm:%s490] %v499
        $region180: #{tpu_custom_call.1} parent=167 // loop_footer
          %s496 = sadd.s32 1, %s492
        $region181: #{tpu_custom_call.1} parent=167 // loop_footer_branch
          %491 = sbr.rel target = $region177
        $region182: #{tpu_custom_call.1} parent=167 // loop_exit
          _
      $region168: #{tpu_custom_call.1} parent=31 // pred_fallthru
        _
      // Predicated region
      $region183: #{tpu_custom_call.1} parent=31 // pred_check
        _
      $region184: #{tpu_custom_call.1} parent=31 // pred_check_branch
        %503 = sbr.rel (0) target = $region186
      $region185: #{tpu_custom_call.1} parent=31 // pred_region
        %504 = vsyncadd [#allocation4], 224
      $region186: #{tpu_custom_call.1} parent=31 // pred_fallthru
        _
      %s505 = scalar_lea.vmem %s217, 99
      %s506 = scalar_lea.vmem [#allocation2], 243
      // Predicated region
      $region187: #{tpu_custom_call.1} parent=31 // pred_check
        _
      $region188: #{tpu_custom_call.1} parent=31 // pred_check_branch
        %508 = sbr.rel (0) target = $region190
      $region189: #{tpu_custom_call.1} parent=31 // pred_region
        %s509 = scalar_lea.vmem %s505, 8
        %s510 = scalar_lea.vmem %s506, 8 [#allocation2]
        loop: start=0, step=1, limit=1
        $region191: #{tpu_custom_call.1} parent=189 // loop_pre_header
          _
        $region192: #{tpu_custom_call.1} parent=189 // loop_header
          %s512 = sphi 0, %s516
          %p513 = scmp.ge.s32.totalorder %s512, 1
          %s517 = sphi %s505, %s505
          %s518 = sphi %s506, %s506
        $region193: #{tpu_custom_call.1} parent=189 // loop_header_branch
          %515 = sbr.rel (%p513) target = $region197
        $region194: #{tpu_custom_call.1} parent=189 // loop_body
          %v519 = vld [vmem:[%s517] sm:$0xff]
          %520 = vst [vmem:[%s518] sm:$0xff] %v519
        $region195: #{tpu_custom_call.1} parent=189 // loop_footer
          %s516 = sadd.s32 1, %s512
        $region196: #{tpu_custom_call.1} parent=189 // loop_footer_branch
          %511 = sbr.rel target = $region192
        $region197: #{tpu_custom_call.1} parent=189 // loop_exit
          _
        %s522 = ssub.s32 64, 1
        loop: start=0, step=1, limit=1
        $region198: #{tpu_custom_call.1} parent=189 // loop_pre_header
          _
        $region199: #{tpu_custom_call.1} parent=189 // loop_header
          %s524 = sphi 0, %s528
          %p525 = scmp.ge.s32.totalorder %s524, 1
          %s529 = sphi %s509, %s509
          %s530 = sphi %s510, %s510
        $region200: #{tpu_custom_call.1} parent=189 // loop_header_branch
          %527 = sbr.rel (%p525) target = $region204
        $region201: #{tpu_custom_call.1} parent=189 // loop_body
          %v531 = vld [vmem:[%s529] sm:%s522]
          %532 = vst [vmem:[%s530] sm:%s522] %v531
        $region202: #{tpu_custom_call.1} parent=189 // loop_footer
          %s528 = sadd.s32 1, %s524
        $region203: #{tpu_custom_call.1} parent=189 // loop_footer_branch
          %523 = sbr.rel target = $region199
        $region204: #{tpu_custom_call.1} parent=189 // loop_exit
          _
      $region190: #{tpu_custom_call.1} parent=31 // pred_fallthru
        _
      // Predicated region
      $region205: #{tpu_custom_call.1} parent=31 // pred_check
        _
      $region206: #{tpu_custom_call.1} parent=31 // pred_check_branch
        %535 = sbr.rel (0) target = $region208
      $region207: #{tpu_custom_call.1} parent=31 // pred_region
        %536 = vsyncadd [#allocation4], 224
      $region208: #{tpu_custom_call.1} parent=31 // pred_fallthru
        _
      %s537 = scalar_lea.vmem %s217, 113
      %s538 = scalar_lea.vmem [#allocation2], 267
      // Predicated region
      $region209: #{tpu_custom_call.1} parent=31 // pred_check
        _
      $region210: #{tpu_custom_call.1} parent=31 // pred_check_branch
        %540 = sbr.rel (0) target = $region212
      $region211: #{tpu_custom_call.1} parent=31 // pred_region
        %s541 = scalar_lea.vmem %s537, 8
        %s542 = scalar_lea.vmem %s538, 8 [#allocation2]
        loop: start=0, step=1, limit=1
        $region213: #{tpu_custom_call.1} parent=211 // loop_pre_header
          _
        $region214: #{tpu_custom_call.1} parent=211 // loop_header
          %s544 = sphi 0, %s548
          %p545 = scmp.ge.s32.totalorder %s544, 1
          %s549 = sphi %s537, %s537
          %s550 = sphi %s538, %s538
        $region215: #{tpu_custom_call.1} parent=211 // loop_header_branch
          %547 = sbr.rel (%p545) target = $region219
        $region216: #{tpu_custom_call.1} parent=211 // loop_body
          %v551 = vld [vmem:[%s549] sm:$0xff]
          %552 = vst [vmem:[%s550] sm:$0xff] %v551
        $region217: #{tpu_custom_call.1} parent=211 // loop_footer
          %s548 = sadd.s32 1, %s544
        $region218: #{tpu_custom_call.1} parent=211 // loop_footer_branch
          %543 = sbr.rel target = $region214
        $region219: #{tpu_custom_call.1} parent=211 // loop_exit
          _
        %s554 = ssub.s32 64, 1
        loop: start=0, step=1, limit=1
        $region220: #{tpu_custom_call.1} parent=211 // loop_pre_header
          _
        $region221: #{tpu_custom_call.1} parent=211 // loop_header
          %s556 = sphi 0, %s560
          %p557 = scmp.ge.s32.totalorder %s556, 1
          %s561 = sphi %s541, %s541
          %s562 = sphi %s542, %s542
        $region222: #{tpu_custom_call.1} parent=211 // loop_header_branch
          %559 = sbr.rel (%p557) target = $region226
        $region223: #{tpu_custom_call.1} parent=211 // loop_body
          %v563 = vld [vmem:[%s561] sm:%s554]
          %564 = vst [vmem:[%s562] sm:%s554] %v563
        $region224: #{tpu_custom_call.1} parent=211 // loop_footer
          %s560 = sadd.s32 1, %s556
        $region225: #{tpu_custom_call.1} parent=211 // loop_footer_branch
          %555 = sbr.rel target = $region221
        $region226: #{tpu_custom_call.1} parent=211 // loop_exit
          _
      $region212: #{tpu_custom_call.1} parent=31 // pred_fallthru
        _
      // Predicated region
      $region227: #{tpu_custom_call.1} parent=31 // pred_check
        _
      $region228: #{tpu_custom_call.1} parent=31 // pred_check_branch
        %567 = sbr.rel (0) target = $region230
      $region229: #{tpu_custom_call.1} parent=31 // pred_region
        %568 = vsyncadd [#allocation4], 224
      $region230: #{tpu_custom_call.1} parent=31 // pred_fallthru
        _
      %s569 = scalar_lea.vmem %s217, 127
      %s570 = scalar_lea.vmem [#allocation2], 291
      // Predicated region
      $region231: #{tpu_custom_call.1} parent=31 // pred_check
        _
      $region232: #{tpu_custom_call.1} parent=31 // pred_check_branch
        %572 = sbr.rel (0) target = $region234
      $region233: #{tpu_custom_call.1} parent=31 // pred_region
        %s573 = scalar_lea.vmem %s569, 8
        %s574 = scalar_lea.vmem %s570, 8 [#allocation2]
        loop: start=0, step=1, limit=1
        $region235: #{tpu_custom_call.1} parent=233 // loop_pre_header
          _
        $region236: #{tpu_custom_call.1} parent=233 // loop_header
          %s576 = sphi 0, %s580
          %p577 = scmp.ge.s32.totalorder %s576, 1
          %s581 = sphi %s569, %s569
          %s582 = sphi %s570, %s570
        $region237: #{tpu_custom_call.1} parent=233 // loop_header_branch
          %579 = sbr.rel (%p577) target = $region241
        $region238: #{tpu_custom_call.1} parent=233 // loop_body
          %v583 = vld [vmem:[%s581] sm:$0xff]
          %584 = vst [vmem:[%s582] sm:$0xff] %v583
        $region239: #{tpu_custom_call.1} parent=233 // loop_footer
          %s580 = sadd.s32 1, %s576
        $region240: #{tpu_custom_call.1} parent=233 // loop_footer_branch
          %575 = sbr.rel target = $region236
        $region241: #{tpu_custom_call.1} parent=233 // loop_exit
          _
        %s586 = ssub.s32 64, 1
        loop: start=0, step=1, limit=1
        $region242: #{tpu_custom_call.1} parent=233 // loop_pre_header
          _
        $region243: #{tpu_custom_call.1} parent=233 // loop_header
          %s588 = sphi 0, %s592
          %p589 = scmp.ge.s32.totalorder %s588, 1
          %s593 = sphi %s573, %s573
          %s594 = sphi %s574, %s574
        $region244: #{tpu_custom_call.1} parent=233 // loop_header_branch
          %591 = sbr.rel (%p589) target = $region248
        $region245: #{tpu_custom_call.1} parent=233 // loop_body
          %v595 = vld [vmem:[%s593] sm:%s586]
          %596 = vst [vmem:[%s594] sm:%s586] %v595
        $region246: #{tpu_custom_call.1} parent=233 // loop_footer
          %s592 = sadd.s32 1, %s588
        $region247: #{tpu_custom_call.1} parent=233 // loop_footer_branch
          %587 = sbr.rel target = $region243
        $region248: #{tpu_custom_call.1} parent=233 // loop_exit
          _
      $region234: #{tpu_custom_call.1} parent=31 // pred_fallthru
        _
      // Predicated region
      $region249: #{tpu_custom_call.1} parent=31 // pred_check
        _
      $region250: #{tpu_custom_call.1} parent=31 // pred_check_branch
        %599 = sbr.rel (0) target = $region252
      $region251: #{tpu_custom_call.1} parent=31 // pred_region
        %600 = vsyncadd [#allocation4], 224
      $region252: #{tpu_custom_call.1} parent=31 // pred_fallthru
        _
      %s601 = scalar_lea.vmem %s217, 141
      %s602 = scalar_lea.vmem [#allocation2], 315
      // Predicated region
      $region253: #{tpu_custom_call.1} parent=31 // pred_check
        _
      $region254: #{tpu_custom_call.1} parent=31 // pred_check_branch
        %604 = sbr.rel (0) target = $region256
      $region255: #{tpu_custom_call.1} parent=31 // pred_region
        %s605 = scalar_lea.vmem %s601, 8
        %s606 = scalar_lea.vmem %s602, 8 [#allocation2]
        loop: start=0, step=1, limit=1
        $region257: #{tpu_custom_call.1} parent=255 // loop_pre_header
          _
        $region258: #{tpu_custom_call.1} parent=255 // loop_header
          %s608 = sphi 0, %s612
          %p609 = scmp.ge.s32.totalorder %s608, 1
          %s613 = sphi %s601, %s601
          %s614 = sphi %s602, %s602
        $region259: #{tpu_custom_call.1} parent=255 // loop_header_branch
          %611 = sbr.rel (%p609) target = $region263
        $region260: #{tpu_custom_call.1} parent=255 // loop_body
          %v615 = vld [vmem:[%s613] sm:$0xff]
          %616 = vst [vmem:[%s614] sm:$0xff] %v615
        $region261: #{tpu_custom_call.1} parent=255 // loop_footer
          %s612 = sadd.s32 1, %s608
        $region262: #{tpu_custom_call.1} parent=255 // loop_footer_branch
          %607 = sbr.rel target = $region258
        $region263: #{tpu_custom_call.1} parent=255 // loop_exit
          _
        %s618 = ssub.s32 64, 1
        loop: start=0, step=1, limit=1
        $region264: #{tpu_custom_call.1} parent=255 // loop_pre_header
          _
        $region265: #{tpu_custom_call.1} parent=255 // loop_header
          %s620 = sphi 0, %s624
          %p621 = scmp.ge.s32.totalorder %s620, 1
          %s625 = sphi %s605, %s605
          %s626 = sphi %s606, %s606
        $region266: #{tpu_custom_call.1} parent=255 // loop_header_branch
          %623 = sbr.rel (%p621) target = $region270
        $region267: #{tpu_custom_call.1} parent=255 // loop_body
          %v627 = vld [vmem:[%s625] sm:%s618]
          %628 = vst [vmem:[%s626] sm:%s618] %v627
        $region268: #{tpu_custom_call.1} parent=255 // loop_footer
          %s624 = sadd.s32 1, %s620
        $region269: #{tpu_custom_call.1} parent=255 // loop_footer_branch
          %619 = sbr.rel target = $region265
        $region270: #{tpu_custom_call.1} parent=255 // loop_exit
          _
      $region256: #{tpu_custom_call.1} parent=31 // pred_fallthru
        _
      // Predicated region
      $region271: #{tpu_custom_call.1} parent=31 // pred_check
        _
      $region272: #{tpu_custom_call.1} parent=31 // pred_check_branch
        %631 = sbr.rel (0) target = $region274
      $region273: #{tpu_custom_call.1} parent=31 // pred_region
        %632 = vsyncadd [#allocation4], 224
      $region274: #{tpu_custom_call.1} parent=31 // pred_fallthru
        _
      %s633 = scalar_lea.vmem %s217, 155
      %s634 = scalar_lea.vmem [#allocation2], 339
      // Predicated region
      $region275: #{tpu_custom_call.1} parent=31 // pred_check
        _
      $region276: #{tpu_custom_call.1} parent=31 // pred_check_branch
        %636 = sbr.rel (0) target = $region278
      $region277: #{tpu_custom_call.1} parent=31 // pred_region
        %s637 = scalar_lea.vmem %s633, 8
        %s638 = scalar_lea.vmem %s634, 8 [#allocation2]
        loop: start=0, step=1, limit=1
        $region279: #{tpu_custom_call.1} parent=277 // loop_pre_header
          _
        $region280: #{tpu_custom_call.1} parent=277 // loop_header
          %s640 = sphi 0, %s644
          %p641 = scmp.ge.s32.totalorder %s640, 1
          %s645 = sphi %s633, %s633
          %s646 = sphi %s634, %s634
        $region281: #{tpu_custom_call.1} parent=277 // loop_header_branch
          %643 = sbr.rel (%p641) target = $region285
        $region282: #{tpu_custom_call.1} parent=277 // loop_body
          %v647 = vld [vmem:[%s645] sm:$0xff]
          %648 = vst [vmem:[%s646] sm:$0xff] %v647
        $region283: #{tpu_custom_call.1} parent=277 // loop_footer
          %s644 = sadd.s32 1, %s640
        $region284: #{tpu_custom_call.1} parent=277 // loop_footer_branch
          %639 = sbr.rel target = $region280
        $region285: #{tpu_custom_call.1} parent=277 // loop_exit
          _
        %s650 = ssub.s32 64, 1
        loop: start=0, step=1, limit=1
        $region286: #{tpu_custom_call.1} parent=277 // loop_pre_header
          _
        $region287: #{tpu_custom_call.1} parent=277 // loop_header
          %s652 = sphi 0, %s656
          %p653 = scmp.ge.s32.totalorder %s652, 1
          %s657 = sphi %s637, %s637
          %s658 = sphi %s638, %s638
        $region288: #{tpu_custom_call.1} parent=277 // loop_header_branch
          %655 = sbr.rel (%p653) target = $region292
        $region289: #{tpu_custom_call.1} parent=277 // loop_body
          %v659 = vld [vmem:[%s657] sm:%s650]
          %660 = vst [vmem:[%s658] sm:%s650] %v659
        $region290: #{tpu_custom_call.1} parent=277 // loop_footer
          %s656 = sadd.s32 1, %s652
        $region291: #{tpu_custom_call.1} parent=277 // loop_footer_branch
          %651 = sbr.rel target = $region287
        $region292: #{tpu_custom_call.1} parent=277 // loop_exit
          _
      $region278: #{tpu_custom_call.1} parent=31 // pred_fallthru
        _
      // Predicated region
      $region293: #{tpu_custom_call.1} parent=31 // pred_check
        _
      $region294: #{tpu_custom_call.1} parent=31 // pred_check_branch
        %663 = sbr.rel (0) target = $region296
      $region295: #{tpu_custom_call.1} parent=31 // pred_region
        %664 = vsyncadd [#allocation4], 224
      $region296: #{tpu_custom_call.1} parent=31 // pred_fallthru
        _
      %s665 = scalar_lea.vmem %s217, 169
      %s666 = scalar_lea.vmem [#allocation2], 363
      // Predicated region
      $region297: #{tpu_custom_call.1} parent=31 // pred_check
        _
      $region298: #{tpu_custom_call.1} parent=31 // pred_check_branch
        %668 = sbr.rel (0) target = $region300
      $region299: #{tpu_custom_call.1} parent=31 // pred_region
        %s669 = scalar_lea.vmem %s665, 8
        %s670 = scalar_lea.vmem %s666, 8 [#allocation2]
        loop: start=0, step=1, limit=1
        $region301: #{tpu_custom_call.1} parent=299 // loop_pre_header
          _
        $region302: #{tpu_custom_call.1} parent=299 // loop_header
          %s672 = sphi 0, %s676
          %p673 = scmp.ge.s32.totalorder %s672, 1
          %s677 = sphi %s665, %s665
          %s678 = sphi %s666, %s666
        $region303: #{tpu_custom_call.1} parent=299 // loop_header_branch
          %675 = sbr.rel (%p673) target = $region307
        $region304: #{tpu_custom_call.1} parent=299 // loop_body
          %v679 = vld [vmem:[%s677] sm:$0xff]
          %680 = vst [vmem:[%s678] sm:$0xff] %v679
        $region305: #{tpu_custom_call.1} parent=299 // loop_footer
          %s676 = sadd.s32 1, %s672
        $region306: #{tpu_custom_call.1} parent=299 // loop_footer_branch
          %671 = sbr.rel target = $region302
        $region307: #{tpu_custom_call.1} parent=299 // loop_exit
          _
        %s682 = ssub.s32 64, 1
        loop: start=0, step=1, limit=1
        $region308: #{tpu_custom_call.1} parent=299 // loop_pre_header
          _
        $region309: #{tpu_custom_call.1} parent=299 // loop_header
          %s684 = sphi 0, %s688
          %p685 = scmp.ge.s32.totalorder %s684, 1
          %s689 = sphi %s669, %s669
          %s690 = sphi %s670, %s670
        $region310: #{tpu_custom_call.1} parent=299 // loop_header_branch
          %687 = sbr.rel (%p685) target = $region314
        $region311: #{tpu_custom_call.1} parent=299 // loop_body
          %v691 = vld [vmem:[%s689] sm:%s682]
          %692 = vst [vmem:[%s690] sm:%s682] %v691
        $region312: #{tpu_custom_call.1} parent=299 // loop_footer
          %s688 = sadd.s32 1, %s684
        $region313: #{tpu_custom_call.1} parent=299 // loop_footer_branch
          %683 = sbr.rel target = $region309
        $region314: #{tpu_custom_call.1} parent=299 // loop_exit
          _
      $region300: #{tpu_custom_call.1} parent=31 // pred_fallthru
        _
      // Predicated region
      $region315: #{tpu_custom_call.1} parent=31 // pred_check
        _
      $region316: #{tpu_custom_call.1} parent=31 // pred_check_branch
        %695 = sbr.rel (0) target = $region318
      $region317: #{tpu_custom_call.1} parent=31 // pred_region
        %696 = vsyncadd [#allocation4], 224
      $region318: #{tpu_custom_call.1} parent=31 // pred_fallthru
        _
      %s697 = scalar_lea.vmem %s217, 183
      %s698 = scalar_lea.vmem [#allocation2], 387
      // Predicated region
      $region319: #{tpu_custom_call.1} parent=31 // pred_check
        _
      $region320: #{tpu_custom_call.1} parent=31 // pred_check_branch
        %700 = sbr.rel (0) target = $region322
      $region321: #{tpu_custom_call.1} parent=31 // pred_region
        %s701 = scalar_lea.vmem %s697, 8
        %s702 = scalar_lea.vmem %s698, 8 [#allocation2]
        loop: start=0, step=1, limit=1
        $region323: #{tpu_custom_call.1} parent=321 // loop_pre_header
          _
        $region324: #{tpu_custom_call.1} parent=321 // loop_header
          %s704 = sphi 0, %s708
          %p705 = scmp.ge.s32.totalorder %s704, 1
          %s709 = sphi %s697, %s697
          %s710 = sphi %s698, %s698
        $region325: #{tpu_custom_call.1} parent=321 // loop_header_branch
          %707 = sbr.rel (%p705) target = $region329
        $region326: #{tpu_custom_call.1} parent=321 // loop_body
          %v711 = vld [vmem:[%s709] sm:$0xff]
          %712 = vst [vmem:[%s710] sm:$0xff] %v711
        $region327: #{tpu_custom_call.1} parent=321 // loop_footer
          %s708 = sadd.s32 1, %s704
        $region328: #{tpu_custom_call.1} parent=321 // loop_footer_branch
          %703 = sbr.rel target = $region324
        $region329: #{tpu_custom_call.1} parent=321 // loop_exit
          _
        %s714 = ssub.s32 64, 1
        loop: start=0, step=1, limit=1
        $region330: #{tpu_custom_call.1} parent=321 // loop_pre_header
          _
        $region331: #{tpu_custom_call.1} parent=321 // loop_header
          %s716 = sphi 0, %s720
          %p717 = scmp.ge.s32.totalorder %s716, 1
          %s721 = sphi %s701, %s701
          %s722 = sphi %s702, %s702
        $region332: #{tpu_custom_call.1} parent=321 // loop_header_branch
          %719 = sbr.rel (%p717) target = $region336
        $region333: #{tpu_custom_call.1} parent=321 // loop_body
          %v723 = vld [vmem:[%s721] sm:%s714]
          %724 = vst [vmem:[%s722] sm:%s714] %v723
        $region334: #{tpu_custom_call.1} parent=321 // loop_footer
          %s720 = sadd.s32 1, %s716
        $region335: #{tpu_custom_call.1} parent=321 // loop_footer_branch
          %715 = sbr.rel target = $region331
        $region336: #{tpu_custom_call.1} parent=321 // loop_exit
          _
      $region322: #{tpu_custom_call.1} parent=31 // pred_fallthru
        _
      // Predicated region
      $region337: #{tpu_custom_call.1} parent=31 // pred_check
        _
      $region338: #{tpu_custom_call.1} parent=31 // pred_check_branch
        %727 = sbr.rel (0) target = $region340
      $region339: #{tpu_custom_call.1} parent=31 // pred_region
        %728 = vsyncadd [#allocation4], 224
      $region340: #{tpu_custom_call.1} parent=31 // pred_fallthru
        _
      %v729 = vld [vmem:[%s217] sm:$0x1]
      %730 = vst [vmem:[%s232] sm:$0x1] %v729
      %s731 = smul.u32 1, 14
      %s732 = smul.u32 %s731, 1
      %s733 = sshll.u32 %s732, 4
      %734 = dma.done [#allocation4], %s733
      %s735 = sshll.u32 %s732, 4
      %736 = dma.done [#allocation4], %s735
      %s737 = sshll.u32 %s732, 4
      %738 = dma.done [#allocation4], %s737
      %s739 = sshll.u32 %s732, 4
      %740 = dma.done [#allocation4], %s739
      %s741 = sshll.u32 %s732, 4
      %742 = dma.done [#allocation4], %s741
      %s743 = sshll.u32 %s732, 4
      %744 = dma.done [#allocation4], %s743
      %s745 = sshll.u32 %s732, 4
      %746 = dma.done [#allocation4], %s745
      %s747 = sshll.u32 %s732, 4
      %748 = dma.done [#allocation4], %s747
      %s749 = sshll.u32 %s732, 4
      %750 = dma.done [#allocation4], %s749
      %s751 = sshll.u32 %s732, 4
      %752 = dma.done [#allocation4], %s751
      %s753 = sshll.u32 %s732, 4
      %754 = dma.done [#allocation4], %s753
      %s755 = sshll.u32 %s732, 4
      %756 = dma.done [#allocation4], %s755
      %s757 = sshll.u32 %s732, 4
      %758 = dma.done [#allocation4], %s757
      %s759 = sshll.u32 %s732, 4
      %760 = dma.done [#allocation4], %s759
      // Predicated region
      $region341: #{tpu_custom_call.1} parent=31 // pred_check
        _
      $region342: #{tpu_custom_call.1} parent=31 // pred_check_branch
        %762 = sbr.rel (0) target = $region344
      $region343: #{tpu_custom_call.1} parent=31 // pred_region
        %s763 = scalar_lea.vmem [#allocation2], 8
        %s764 = scalar_lea.vmem [#allocation3], 8
        loop: start=0, step=1, limit=1
        $region345: #{tpu_custom_call.1} parent=343 // loop_pre_header
          _
        $region346: #{tpu_custom_call.1} parent=343 // loop_header
          %s766 = sphi 0, %s770
          %p767 = scmp.ge.s32.totalorder %s766, 1
          %s771 = sphi [#allocation2], [#allocation2]
          %s772 = sphi [#allocation3], [#allocation3]
        $region347: #{tpu_custom_call.1} parent=343 // loop_header_branch
          %769 = sbr.rel (%p767) target = $region351
        $region348: #{tpu_custom_call.1} parent=343 // loop_body
          %v773 = vld [vmem:[%s771] sm:$0xff]
          %774 = vst [vmem:[%s772] sm:$0xff] %v773
          %v775 = vld [vmem:[%s771 + $0x18] sm:$0xff]
          %776 = vst [vmem:[%s772 + $0x10] sm:$0xff] %v775
          %v777 = vld [vmem:[%s771 + $0x30] sm:$0xff]
          %778 = vst [vmem:[%s772 + $0x20] sm:$0xff] %v777
          %v779 = vld [vmem:[%s771 + $0x48] sm:$0xff]
          %780 = vst [vmem:[%s772 + $0x30] sm:$0xff] %v779
          %v781 = vld [vmem:[%s771 + $0x60] sm:$0xff]
          %782 = vst [vmem:[%s772 + $0x40] sm:$0xff] %v781
          %v783 = vld [vmem:[%s771 + $0x78] sm:$0xff]
          %784 = vst [vmem:[%s772 + $0x50] sm:$0xff] %v783
          %v785 = vld [vmem:[%s771 + $0x90] sm:$0xff]
          %786 = vst [vmem:[%s772 + $0x60] sm:$0xff] %v785
          %v787 = vld [vmem:[%s771 + $0xa8] sm:$0xff]
          %788 = vst [vmem:[%s772 + $0x70] sm:$0xff] %v787
          %v789 = vld [vmem:[%s771 + $0xc0] sm:$0xff]
          %790 = vst [vmem:[%s772 + $0x80] sm:$0xff] %v789
          %v791 = vld [vmem:[%s771 + $0xd8] sm:$0xff]
          %792 = vst [vmem:[%s772 + $0x90] sm:$0xff] %v791
          %v793 = vld [vmem:[%s771 + $0xf0] sm:$0xff]
          %794 = vst [vmem:[%s772 + $0xa0] sm:$0xff] %v793
          %v795 = vld [vmem:[%s771 + $0x108] sm:$0xff]
          %796 = vst [vmem:[%s772 + $0xb0] sm:$0xff] %v795
          %v797 = vld [vmem:[%s771 + $0x120] sm:$0xff]
          %798 = vst [vmem:[%s772 + $0xc0] sm:$0xff] %v797
          %v799 = vld [vmem:[%s771 + $0x138] sm:$0xff]
          %800 = vst [vmem:[%s772 + $0xd0] sm:$0xff] %v799
          %v801 = vld [vmem:[%s771 + $0x150] sm:$0xff]
          %802 = vst [vmem:[%s772 + $0xe0] sm:$0xff] %v801
          %v803 = vld [vmem:[%s771 + $0x168] sm:$0xff]
          %804 = vst [vmem:[%s772 + $0xf0] sm:$0xff] %v803
          %v805 = vld [vmem:[%s771 + $0x180] sm:$0xff]
          %806 = vst [vmem:[%s772 + $0x100] sm:$0xff] %v805
          %v807 = vld [vmem:[%s771 + $0x198] sm:$0xff]
          %808 = vst [vmem:[%s772 + $0x110] sm:$0xff] %v807
          %v809 = vld [vmem:[%s771 + $0x1b0] sm:$0xff]
          %810 = vst [vmem:[%s772 + $0x120] sm:$0xff] %v809
          %v811 = vld [vmem:[%s771 + $0x1c8] sm:$0xff]
          %812 = vst [vmem:[%s772 + $0x130] sm:$0xff] %v811
        $region349: #{tpu_custom_call.1} parent=343 // loop_footer
          %s770 = sadd.s32 1, %s766
        $region350: #{tpu_custom_call.1} parent=343 // loop_footer_branch
          %765 = sbr.rel target = $region346
        $region351: #{tpu_custom_call.1} parent=343 // loop_exit
          _
        %s814 = ssub.s32 64, 1
        loop: start=0, step=1, limit=1
        $region352: #{tpu_custom_call.1} parent=343 // loop_pre_header
          _
        $region353: #{tpu_custom_call.1} parent=343 // loop_header
          %s816 = sphi 0, %s820
          %p817 = scmp.ge.s32.totalorder %s816, 1
          %s821 = sphi %s763, %s763
          %s822 = sphi %s764, %s764
        $region354: #{tpu_custom_call.1} parent=343 // loop_header_branch
          %819 = sbr.rel (%p817) target = $region358
        $region355: #{tpu_custom_call.1} parent=343 // loop_body
          %v823 = vld [vmem:[%s821] sm:%s814]
          %824 = vst [vmem:[%s822] sm:%s814] %v823
          %v825 = vld [vmem:[%s821 + $0x18] sm:%s814]
          %826 = vst [vmem:[%s822 + $0x10] sm:%s814] %v825
          %v827 = vld [vmem:[%s821 + $0x30] sm:%s814]
          %828 = vst [vmem:[%s822 + $0x20] sm:%s814] %v827
          %v829 = vld [vmem:[%s821 + $0x48] sm:%s814]
          %830 = vst [vmem:[%s822 + $0x30] sm:%s814] %v829
          %v831 = vld [vmem:[%s821 + $0x60] sm:%s814]
          %832 = vst [vmem:[%s822 + $0x40] sm:%s814] %v831
          %v833 = vld [vmem:[%s821 + $0x78] sm:%s814]
          %834 = vst [vmem:[%s822 + $0x50] sm:%s814] %v833
          %v835 = vld [vmem:[%s821 + $0x90] sm:%s814]
          %836 = vst [vmem:[%s822 + $0x60] sm:%s814] %v835
          %v837 = vld [vmem:[%s821 + $0xa8] sm:%s814]
          %838 = vst [vmem:[%s822 + $0x70] sm:%s814] %v837
          %v839 = vld [vmem:[%s821 + $0xc0] sm:%s814]
          %840 = vst [vmem:[%s822 + $0x80] sm:%s814] %v839
          %v841 = vld [vmem:[%s821 + $0xd8] sm:%s814]
          %842 = vst [vmem:[%s822 + $0x90] sm:%s814] %v841
          %v843 = vld [vmem:[%s821 + $0xf0] sm:%s814]
          %844 = vst [vmem:[%s822 + $0xa0] sm:%s814] %v843
          %v845 = vld [vmem:[%s821 + $0x108] sm:%s814]
          %846 = vst [vmem:[%s822 + $0xb0] sm:%s814] %v845
          %v847 = vld [vmem:[%s821 + $0x120] sm:%s814]
          %848 = vst [vmem:[%s822 + $0xc0] sm:%s814] %v847
          %v849 = vld [vmem:[%s821 + $0x138] sm:%s814]
          %850 = vst [vmem:[%s822 + $0xd0] sm:%s814] %v849
          %v851 = vld [vmem:[%s821 + $0x150] sm:%s814]
          %852 = vst [vmem:[%s822 + $0xe0] sm:%s814] %v851
          %v853 = vld [vmem:[%s821 + $0x168] sm:%s814]
          %854 = vst [vmem:[%s822 + $0xf0] sm:%s814] %v853
          %v855 = vld [vmem:[%s821 + $0x180] sm:%s814]
          %856 = vst [vmem:[%s822 + $0x100] sm:%s814] %v855
          %v857 = vld [vmem:[%s821 + $0x198] sm:%s814]
          %858 = vst [vmem:[%s822 + $0x110] sm:%s814] %v857
          %v859 = vld [vmem:[%s821 + $0x1b0] sm:%s814]
          %860 = vst [vmem:[%s822 + $0x120] sm:%s814] %v859
          %v861 = vld [vmem:[%s821 + $0x1c8] sm:%s814]
          %862 = vst [vmem:[%s822 + $0x130] sm:%s814] %v861
        $region356: #{tpu_custom_call.1} parent=343 // loop_footer
          %s820 = sadd.s32 1, %s816
        $region357: #{tpu_custom_call.1} parent=343 // loop_footer_branch
          %815 = sbr.rel target = $region353
        $region358: #{tpu_custom_call.1} parent=343 // loop_exit
          _
      $region344: #{tpu_custom_call.1} parent=31 // pred_fallthru
        _
      // Predicated region
      $region359: #{tpu_custom_call.1} parent=31 // pred_check
        _
      $region360: #{tpu_custom_call.1} parent=31 // pred_check_branch
        %865 = sbr.rel (0) target = $region362
      $region361: #{tpu_custom_call.1} parent=31 // pred_region
        %866 = vsyncadd [#allocation5], 4480
      $region362: #{tpu_custom_call.1} parent=31 // pred_fallthru
        _
      %s867 = scalar_lea.vmem [#allocation2], 1
      %s868 = scalar_lea.vmem [#allocation3], 320
      // Predicated region
      $region363: #{tpu_custom_call.1} parent=31 // pred_check
        _
      $region364: #{tpu_custom_call.1} parent=31 // pred_check_branch
        %870 = sbr.rel (0) target = $region366
      $region365: #{tpu_custom_call.1} parent=31 // pred_region
        %s871 = scalar_lea.vmem %s867, 8 [#allocation2]
        %s872 = scalar_lea.vmem %s868, 8 [#allocation3]
        loop: start=0, step=1, limit=1
        $region367: #{tpu_custom_call.1} parent=365 // loop_pre_header
          _
        $region368: #{tpu_custom_call.1} parent=365 // loop_header
          %s874 = sphi 0, %s878
          %p875 = scmp.ge.s32.totalorder %s874, 1
          %s879 = sphi %s867, %s867
          %s880 = sphi %s868, %s868
        $region369: #{tpu_custom_call.1} parent=365 // loop_header_branch
          %877 = sbr.rel (%p875) target = $region373
        $region370: #{tpu_custom_call.1} parent=365 // loop_body
          %v881 = vld [vmem:[%s879] sm:$0xff]
          %882 = vst [vmem:[%s880] sm:$0xff] %v881
          %v883 = vld [vmem:[%s879 + $0x18] sm:$0xff]
          %884 = vst [vmem:[%s880 + $0x10] sm:$0xff] %v883
          %v885 = vld [vmem:[%s879 + $0x30] sm:$0xff]
          %886 = vst [vmem:[%s880 + $0x20] sm:$0xff] %v885
          %v887 = vld [vmem:[%s879 + $0x48] sm:$0xff]
          %888 = vst [vmem:[%s880 + $0x30] sm:$0xff] %v887
          %v889 = vld [vmem:[%s879 + $0x60] sm:$0xff]
          %890 = vst [vmem:[%s880 + $0x40] sm:$0xff] %v889
          %v891 = vld [vmem:[%s879 + $0x78] sm:$0xff]
          %892 = vst [vmem:[%s880 + $0x50] sm:$0xff] %v891
          %v893 = vld [vmem:[%s879 + $0x90] sm:$0xff]
          %894 = vst [vmem:[%s880 + $0x60] sm:$0xff] %v893
          %v895 = vld [vmem:[%s879 + $0xa8] sm:$0xff]
          %896 = vst [vmem:[%s880 + $0x70] sm:$0xff] %v895
          %v897 = vld [vmem:[%s879 + $0xc0] sm:$0xff]
          %898 = vst [vmem:[%s880 + $0x80] sm:$0xff] %v897
          %v899 = vld [vmem:[%s879 + $0xd8] sm:$0xff]
          %900 = vst [vmem:[%s880 + $0x90] sm:$0xff] %v899
          %v901 = vld [vmem:[%s879 + $0xf0] sm:$0xff]
          %902 = vst [vmem:[%s880 + $0xa0] sm:$0xff] %v901
          %v903 = vld [vmem:[%s879 + $0x108] sm:$0xff]
          %904 = vst [vmem:[%s880 + $0xb0] sm:$0xff] %v903
          %v905 = vld [vmem:[%s879 + $0x120] sm:$0xff]
          %906 = vst [vmem:[%s880 + $0xc0] sm:$0xff] %v905
          %v907 = vld [vmem:[%s879 + $0x138] sm:$0xff]
          %908 = vst [vmem:[%s880 + $0xd0] sm:$0xff] %v907
          %v909 = vld [vmem:[%s879 + $0x150] sm:$0xff]
          %910 = vst [vmem:[%s880 + $0xe0] sm:$0xff] %v909
          %v911 = vld [vmem:[%s879 + $0x168] sm:$0xff]
          %912 = vst [vmem:[%s880 + $0xf0] sm:$0xff] %v911
          %v913 = vld [vmem:[%s879 + $0x180] sm:$0xff]
          %914 = vst [vmem:[%s880 + $0x100] sm:$0xff] %v913
          %v915 = vld [vmem:[%s879 + $0x198] sm:$0xff]
          %916 = vst [vmem:[%s880 + $0x110] sm:$0xff] %v915
          %v917 = vld [vmem:[%s879 + $0x1b0] sm:$0xff]
          %918 = vst [vmem:[%s880 + $0x120] sm:$0xff] %v917
          %v919 = vld [vmem:[%s879 + $0x1c8] sm:$0xff]
          %920 = vst [vmem:[%s880 + $0x130] sm:$0xff] %v919
        $region371: #{tpu_custom_call.1} parent=365 // loop_footer
          %s878 = sadd.s32 1, %s874
        $region372: #{tpu_custom_call.1} parent=365 // loop_footer_branch
          %873 = sbr.rel target = $region368
        $region373: #{tpu_custom_call.1} parent=365 // loop_exit
          _
        %s922 = ssub.s32 64, 1
        loop: start=0, step=1, limit=1
        $region374: #{tpu_custom_call.1} parent=365 // loop_pre_header
          _
        $region375: #{tpu_custom_call.1} parent=365 // loop_header
          %s924 = sphi 0, %s928
          %p925 = scmp.ge.s32.totalorder %s924, 1
          %s929 = sphi %s871, %s871
          %s930 = sphi %s872, %s872
        $region376: #{tpu_custom_call.1} parent=365 // loop_header_branch
          %927 = sbr.rel (%p925) target = $region380
        $region377: #{tpu_custom_call.1} parent=365 // loop_body
          %v931 = vld [vmem:[%s929] sm:%s922]
          %932 = vst [vmem:[%s930] sm:%s922] %v931
          %v933 = vld [vmem:[%s929 + $0x18] sm:%s922]
          %934 = vst [vmem:[%s930 + $0x10] sm:%s922] %v933
          %v935 = vld [vmem:[%s929 + $0x30] sm:%s922]
          %936 = vst [vmem:[%s930 + $0x20] sm:%s922] %v935
          %v937 = vld [vmem:[%s929 + $0x48] sm:%s922]
          %938 = vst [vmem:[%s930 + $0x30] sm:%s922] %v937
          %v939 = vld [vmem:[%s929 + $0x60] sm:%s922]
          %940 = vst [vmem:[%s930 + $0x40] sm:%s922] %v939
          %v941 = vld [vmem:[%s929 + $0x78] sm:%s922]
          %942 = vst [vmem:[%s930 + $0x50] sm:%s922] %v941
          %v943 = vld [vmem:[%s929 + $0x90] sm:%s922]
          %944 = vst [vmem:[%s930 + $0x60] sm:%s922] %v943
          %v945 = vld [vmem:[%s929 + $0xa8] sm:%s922]
          %946 = vst [vmem:[%s930 + $0x70] sm:%s922] %v945
          %v947 = vld [vmem:[%s929 + $0xc0] sm:%s922]
          %948 = vst [vmem:[%s930 + $0x80] sm:%s922] %v947
          %v949 = vld [vmem:[%s929 + $0xd8] sm:%s922]
          %950 = vst [vmem:[%s930 + $0x90] sm:%s922] %v949
          %v951 = vld [vmem:[%s929 + $0xf0] sm:%s922]
          %952 = vst [vmem:[%s930 + $0xa0] sm:%s922] %v951
          %v953 = vld [vmem:[%s929 + $0x108] sm:%s922]
          %954 = vst [vmem:[%s930 + $0xb0] sm:%s922] %v953
          %v955 = vld [vmem:[%s929 + $0x120] sm:%s922]
          %956 = vst [vmem:[%s930 + $0xc0] sm:%s922] %v955
          %v957 = vld [vmem:[%s929 + $0x138] sm:%s922]
          %958 = vst [vmem:[%s930 + $0xd0] sm:%s922] %v957
          %v959 = vld [vmem:[%s929 + $0x150] sm:%s922]
          %960 = vst [vmem:[%s930 + $0xe0] sm:%s922] %v959
          %v961 = vld [vmem:[%s929 + $0x168] sm:%s922]
          %962 = vst [vmem:[%s930 + $0xf0] sm:%s922] %v961
          %v963 = vld [vmem:[%s929 + $0x180] sm:%s922]
          %964 = vst [vmem:[%s930 + $0x100] sm:%s922] %v963
          %v965 = vld [vmem:[%s929 + $0x198] sm:%s922]
          %966 = vst [vmem:[%s930 + $0x110] sm:%s922] %v965
          %v967 = vld [vmem:[%s929 + $0x1b0] sm:%s922]
          %968 = vst [vmem:[%s930 + $0x120] sm:%s922] %v967
          %v969 = vld [vmem:[%s929 + $0x1c8] sm:%s922]
          %970 = vst [vmem:[%s930 + $0x130] sm:%s922] %v969
        $region378: #{tpu_custom_call.1} parent=365 // loop_footer
          %s928 = sadd.s32 1, %s924
        $region379: #{tpu_custom_call.1} parent=365 // loop_footer_branch
          %923 = sbr.rel target = $region375
        $region380: #{tpu_custom_call.1} parent=365 // loop_exit
          _
      $region366: #{tpu_custom_call.1} parent=31 // pred_fallthru
        _
      // Predicated region
      $region381: #{tpu_custom_call.1} parent=31 // pred_check
        _
      $region382: #{tpu_custom_call.1} parent=31 // pred_check_branch
        %973 = sbr.rel (0) target = $region384
      $region383: #{tpu_custom_call.1} parent=31 // pred_region
        %974 = vsyncadd [#allocation5], 4480
      $region384: #{tpu_custom_call.1} parent=31 // pred_fallthru
        _
      %s975 = scalar_lea.vmem [#allocation2], 2
      %s976 = scalar_lea.vmem [#allocation3], 640
      // Predicated region
      $region385: #{tpu_custom_call.1} parent=31 // pred_check
        _
      $region386: #{tpu_custom_call.1} parent=31 // pred_check_branch
        %978 = sbr.rel (0) target = $region388
      $region387: #{tpu_custom_call.1} parent=31 // pred_region
        %s979 = scalar_lea.vmem %s975, 8 [#allocation2]
        %s980 = scalar_lea.vmem %s976, 8 [#allocation3]
        loop: start=0, step=1, limit=1
        $region389: #{tpu_custom_call.1} parent=387 // loop_pre_header
          _
        $region390: #{tpu_custom_call.1} parent=387 // loop_header
          %s982 = sphi 0, %s986
          %p983 = scmp.ge.s32.totalorder %s982, 1
          %s987 = sphi %s975, %s975
          %s988 = sphi %s976, %s976
        $region391: #{tpu_custom_call.1} parent=387 // loop_header_branch
          %985 = sbr.rel (%p983) target = $region395
        $region392: #{tpu_custom_call.1} parent=387 // loop_body
          %v989 = vld [vmem:[%s987] sm:$0xff]
          %990 = vst [vmem:[%s988] sm:$0xff] %v989
          %v991 = vld [vmem:[%s987 + $0x18] sm:$0xff]
          %992 = vst [vmem:[%s988 + $0x10] sm:$0xff] %v991
          %v993 = vld [vmem:[%s987 + $0x30] sm:$0xff]
          %994 = vst [vmem:[%s988 + $0x20] sm:$0xff] %v993
          %v995 = vld [vmem:[%s987 + $0x48] sm:$0xff]
          %996 = vst [vmem:[%s988 + $0x30] sm:$0xff] %v995
          %v997 = vld [vmem:[%s987 + $0x60] sm:$0xff]
          %998 = vst [vmem:[%s988 + $0x40] sm:$0xff] %v997
          %v999 = vld [vmem:[%s987 + $0x78] sm:$0xff]
          %1000 = vst [vmem:[%s988 + $0x50] sm:$0xff] %v999
          %v1001 = vld [vmem:[%s987 + $0x90] sm:$0xff]
          %1002 = vst [vmem:[%s988 + $0x60] sm:$0xff] %v1001
          %v1003 = vld [vmem:[%s987 + $0xa8] sm:$0xff]
          %1004 = vst [vmem:[%s988 + $0x70] sm:$0xff] %v1003
          %v1005 = vld [vmem:[%s987 + $0xc0] sm:$0xff]
          %1006 = vst [vmem:[%s988 + $0x80] sm:$0xff] %v1005
          %v1007 = vld [vmem:[%s987 + $0xd8] sm:$0xff]
          %1008 = vst [vmem:[%s988 + $0x90] sm:$0xff] %v1007
          %v1009 = vld [vmem:[%s987 + $0xf0] sm:$0xff]
          %1010 = vst [vmem:[%s988 + $0xa0] sm:$0xff] %v1009
          %v1011 = vld [vmem:[%s987 + $0x108] sm:$0xff]
          %1012 = vst [vmem:[%s988 + $0xb0] sm:$0xff] %v1011
          %v1013 = vld [vmem:[%s987 + $0x120] sm:$0xff]
          %1014 = vst [vmem:[%s988 + $0xc0] sm:$0xff] %v1013
          %v1015 = vld [vmem:[%s987 + $0x138] sm:$0xff]
          %1016 = vst [vmem:[%s988 + $0xd0] sm:$0xff] %v1015
          %v1017 = vld [vmem:[%s987 + $0x150] sm:$0xff]
          %1018 = vst [vmem:[%s988 + $0xe0] sm:$0xff] %v1017
          %v1019 = vld [vmem:[%s987 + $0x168] sm:$0xff]
          %1020 = vst [vmem:[%s988 + $0xf0] sm:$0xff] %v1019
          %v1021 = vld [vmem:[%s987 + $0x180] sm:$0xff]
          %1022 = vst [vmem:[%s988 + $0x100] sm:$0xff] %v1021
          %v1023 = vld [vmem:[%s987 + $0x198] sm:$0xff]
          %1024 = vst [vmem:[%s988 + $0x110] sm:$0xff] %v1023
          %v1025 = vld [vmem:[%s987 + $0x1b0] sm:$0xff]
          %1026 = vst [vmem:[%s988 + $0x120] sm:$0xff] %v1025
          %v1027 = vld [vmem:[%s987 + $0x1c8] sm:$0xff]
          %1028 = vst [vmem:[%s988 + $0x130] sm:$0xff] %v1027
        $region393: #{tpu_custom_call.1} parent=387 // loop_footer
          %s986 = sadd.s32 1, %s982
        $region394: #{tpu_custom_call.1} parent=387 // loop_footer_branch
          %981 = sbr.rel target = $region390
        $region395: #{tpu_custom_call.1} parent=387 // loop_exit
          _
        %s1030 = ssub.s32 64, 1
        loop: start=0, step=1, limit=1
        $region396: #{tpu_custom_call.1} parent=387 // loop_pre_header
          _
        $region397: #{tpu_custom_call.1} parent=387 // loop_header
          %s1032 = sphi 0, %s1036
          %p1033 = scmp.ge.s32.totalorder %s1032, 1
          %s1037 = sphi %s979, %s979
          %s1038 = sphi %s980, %s980
        $region398: #{tpu_custom_call.1} parent=387 // loop_header_branch
          %1035 = sbr.rel (%p1033) target = $region402
        $region399: #{tpu_custom_call.1} parent=387 // loop_body
          %v1039 = vld [vmem:[%s1037] sm:%s1030]
          %1040 = vst [vmem:[%s1038] sm:%s1030] %v1039
          %v1041 = vld [vmem:[%s1037 + $0x18] sm:%s1030]
          %1042 = vst [vmem:[%s1038 + $0x10] sm:%s1030] %v1041
          %v1043 = vld [vmem:[%s1037 + $0x30] sm:%s1030]
          %1044 = vst [vmem:[%s1038 + $0x20] sm:%s1030] %v1043
          %v1045 = vld [vmem:[%s1037 + $0x48] sm:%s1030]
          %1046 = vst [vmem:[%s1038 + $0x30] sm:%s1030] %v1045
          %v1047 = vld [vmem:[%s1037 + $0x60] sm:%s1030]
          %1048 = vst [vmem:[%s1038 + $0x40] sm:%s1030] %v1047
          %v1049 = vld [vmem:[%s1037 + $0x78] sm:%s1030]
          %1050 = vst [vmem:[%s1038 + $0x50] sm:%s1030] %v1049
          %v1051 = vld [vmem:[%s1037 + $0x90] sm:%s1030]
          %1052 = vst [vmem:[%s1038 + $0x60] sm:%s1030] %v1051
          %v1053 = vld [vmem:[%s1037 + $0xa8] sm:%s1030]
          %1054 = vst [vmem:[%s1038 + $0x70] sm:%s1030] %v1053
          %v1055 = vld [vmem:[%s1037 + $0xc0] sm:%s1030]
          %1056 = vst [vmem:[%s1038 + $0x80] sm:%s1030] %v1055
          %v1057 = vld [vmem:[%s1037 + $0xd8] sm:%s1030]
          %1058 = vst [vmem:[%s1038 + $0x90] sm:%s1030] %v1057
          %v1059 = vld [vmem:[%s1037 + $0xf0] sm:%s1030]
          %1060 = vst [vmem:[%s1038 + $0xa0] sm:%s1030] %v1059
          %v1061 = vld [vmem:[%s1037 + $0x108] sm:%s1030]
          %1062 = vst [vmem:[%s1038 + $0xb0] sm:%s1030] %v1061
          %v1063 = vld [vmem:[%s1037 + $0x120] sm:%s1030]
          %1064 = vst [vmem:[%s1038 + $0xc0] sm:%s1030] %v1063
          %v1065 = vld [vmem:[%s1037 + $0x138] sm:%s1030]
          %1066 = vst [vmem:[%s1038 + $0xd0] sm:%s1030] %v1065
          %v1067 = vld [vmem:[%s1037 + $0x150] sm:%s1030]
          %1068 = vst [vmem:[%s1038 + $0xe0] sm:%s1030] %v1067
          %v1069 = vld [vmem:[%s1037 + $0x168] sm:%s1030]
          %1070 = vst [vmem:[%s1038 + $0xf0] sm:%s1030] %v1069
          %v1071 = vld [vmem:[%s1037 + $0x180] sm:%s1030]
          %1072 = vst [vmem:[%s1038 + $0x100] sm:%s1030] %v1071
          %v1073 = vld [vmem:[%s1037 + $0x198] sm:%s1030]
          %1074 = vst [vmem:[%s1038 + $0x110] sm:%s1030] %v1073
          %v1075 = vld [vmem:[%s1037 + $0x1b0] sm:%s1030]
          %1076 = vst [vmem:[%s1038 + $0x120] sm:%s1030] %v1075
          %v1077 = vld [vmem:[%s1037 + $0x1c8] sm:%s1030]
          %1078 = vst [vmem:[%s1038 + $0x130] sm:%s1030] %v1077
        $region400: #{tpu_custom_call.1} parent=387 // loop_footer
          %s1036 = sadd.s32 1, %s1032
        $region401: #{tpu_custom_call.1} parent=387 // loop_footer_branch
          %1031 = sbr.rel target = $region397
        $region402: #{tpu_custom_call.1} parent=387 // loop_exit
          _
      $region388: #{tpu_custom_call.1} parent=31 // pred_fallthru
        _
      // Predicated region
      $region403: #{tpu_custom_call.1} parent=31 // pred_check
        _
      $region404: #{tpu_custom_call.1} parent=31 // pred_check_branch
        %1081 = sbr.rel (0) target = $region406
      $region405: #{tpu_custom_call.1} parent=31 // pred_region
        %1082 = vsyncadd [#allocation5], 4480
      $region406: #{tpu_custom_call.1} parent=31 // pred_fallthru
        _
      %s1083 = scalar_lea.vmem [#allocation2], 3
      %s1084 = scalar_lea.vmem [#allocation3], 960
      // Predicated region
      $region407: #{tpu_custom_call.1} parent=31 // pred_check
        _
      $region408: #{tpu_custom_call.1} parent=31 // pred_check_branch
        %1086 = sbr.rel (0) target = $region410
      $region409: #{tpu_custom_call.1} parent=31 // pred_region
        %s1087 = scalar_lea.vmem %s1083, 8 [#allocation2]
        %s1088 = scalar_lea.vmem %s1084, 8 [#allocation3]
        loop: start=0, step=1, limit=1
        $region411: #{tpu_custom_call.1} parent=409 // loop_pre_header
          _
        $region412: #{tpu_custom_call.1} parent=409 // loop_header
          %s1090 = sphi 0, %s1094
          %p1091 = scmp.ge.s32.totalorder %s1090, 1
          %s1095 = sphi %s1083, %s1083
          %s1096 = sphi %s1084, %s1084
        $region413: #{tpu_custom_call.1} parent=409 // loop_header_branch
          %1093 = sbr.rel (%p1091) target = $region417
        $region414: #{tpu_custom_call.1} parent=409 // loop_body
          %v1097 = vld [vmem:[%s1095] sm:$0xff]
          %1098 = vst [vmem:[%s1096] sm:$0xff] %v1097
          %v1099 = vld [vmem:[%s1095 + $0x18] sm:$0xff]
          %1100 = vst [vmem:[%s1096 + $0x10] sm:$0xff] %v1099
          %v1101 = vld [vmem:[%s1095 + $0x30] sm:$0xff]
          %1102 = vst [vmem:[%s1096 + $0x20] sm:$0xff] %v1101
          %v1103 = vld [vmem:[%s1095 + $0x48] sm:$0xff]
          %1104 = vst [vmem:[%s1096 + $0x30] sm:$0xff] %v1103
          %v1105 = vld [vmem:[%s1095 + $0x60] sm:$0xff]
          %1106 = vst [vmem:[%s1096 + $0x40] sm:$0xff] %v1105
          %v1107 = vld [vmem:[%s1095 + $0x78] sm:$0xff]
          %1108 = vst [vmem:[%s1096 + $0x50] sm:$0xff] %v1107
          %v1109 = vld [vmem:[%s1095 + $0x90] sm:$0xff]
          %1110 = vst [vmem:[%s1096 + $0x60] sm:$0xff] %v1109
          %v1111 = vld [vmem:[%s1095 + $0xa8] sm:$0xff]
          %1112 = vst [vmem:[%s1096 + $0x70] sm:$0xff] %v1111
          %v1113 = vld [vmem:[%s1095 + $0xc0] sm:$0xff]
          %1114 = vst [vmem:[%s1096 + $0x80] sm:$0xff] %v1113
          %v1115 = vld [vmem:[%s1095 + $0xd8] sm:$0xff]
          %1116 = vst [vmem:[%s1096 + $0x90] sm:$0xff] %v1115
          %v1117 = vld [vmem:[%s1095 + $0xf0] sm:$0xff]
          %1118 = vst [vmem:[%s1096 + $0xa0] sm:$0xff] %v1117
          %v1119 = vld [vmem:[%s1095 + $0x108] sm:$0xff]
          %1120 = vst [vmem:[%s1096 + $0xb0] sm:$0xff] %v1119
          %v1121 = vld [vmem:[%s1095 + $0x120] sm:$0xff]
          %1122 = vst [vmem:[%s1096 + $0xc0] sm:$0xff] %v1121
          %v1123 = vld [vmem:[%s1095 + $0x138] sm:$0xff]
          %1124 = vst [vmem:[%s1096 + $0xd0] sm:$0xff] %v1123
          %v1125 = vld [vmem:[%s1095 + $0x150] sm:$0xff]
          %1126 = vst [vmem:[%s1096 + $0xe0] sm:$0xff] %v1125
          %v1127 = vld [vmem:[%s1095 + $0x168] sm:$0xff]
          %1128 = vst [vmem:[%s1096 + $0xf0] sm:$0xff] %v1127
          %v1129 = vld [vmem:[%s1095 + $0x180] sm:$0xff]
          %1130 = vst [vmem:[%s1096 + $0x100] sm:$0xff] %v1129
          %v1131 = vld [vmem:[%s1095 + $0x198] sm:$0xff]
          %1132 = vst [vmem:[%s1096 + $0x110] sm:$0xff] %v1131
          %v1133 = vld [vmem:[%s1095 + $0x1b0] sm:$0xff]
          %1134 = vst [vmem:[%s1096 + $0x120] sm:$0xff] %v1133
          %v1135 = vld [vmem:[%s1095 + $0x1c8] sm:$0xff]
          %1136 = vst [vmem:[%s1096 + $0x130] sm:$0xff] %v1135
        $region415: #{tpu_custom_call.1} parent=409 // loop_footer
          %s1094 = sadd.s32 1, %s1090
        $region416: #{tpu_custom_call.1} parent=409 // loop_footer_branch
          %1089 = sbr.rel target = $region412
        $region417: #{tpu_custom_call.1} parent=409 // loop_exit
          _
        %s1138 = ssub.s32 64, 1
        loop: start=0, step=1, limit=1
        $region418: #{tpu_custom_call.1} parent=409 // loop_pre_header
          _
        $region419: #{tpu_custom_call.1} parent=409 // loop_header
          %s1140 = sphi 0, %s1144
          %p1141 = scmp.ge.s32.totalorder %s1140, 1
          %s1145 = sphi %s1087, %s1087
          %s1146 = sphi %s1088, %s1088
        $region420: #{tpu_custom_call.1} parent=409 // loop_header_branch
          %1143 = sbr.rel (%p1141) target = $region424
        $region421: #{tpu_custom_call.1} parent=409 // loop_body
          %v1147 = vld [vmem:[%s1145] sm:%s1138]
          %1148 = vst [vmem:[%s1146] sm:%s1138] %v1147
          %v1149 = vld [vmem:[%s1145 + $0x18] sm:%s1138]
          %1150 = vst [vmem:[%s1146 + $0x10] sm:%s1138] %v1149
          %v1151 = vld [vmem:[%s1145 + $0x30] sm:%s1138]
          %1152 = vst [vmem:[%s1146 + $0x20] sm:%s1138] %v1151
          %v1153 = vld [vmem:[%s1145 + $0x48] sm:%s1138]
          %1154 = vst [vmem:[%s1146 + $0x30] sm:%s1138] %v1153
          %v1155 = vld [vmem:[%s1145 + $0x60] sm:%s1138]
          %1156 = vst [vmem:[%s1146 + $0x40] sm:%s1138] %v1155
          %v1157 = vld [vmem:[%s1145 + $0x78] sm:%s1138]
          %1158 = vst [vmem:[%s1146 + $0x50] sm:%s1138] %v1157
          %v1159 = vld [vmem:[%s1145 + $0x90] sm:%s1138]
          %1160 = vst [vmem:[%s1146 + $0x60] sm:%s1138] %v1159
          %v1161 = vld [vmem:[%s1145 + $0xa8] sm:%s1138]
          %1162 = vst [vmem:[%s1146 + $0x70] sm:%s1138] %v1161
          %v1163 = vld [vmem:[%s1145 + $0xc0] sm:%s1138]
          %1164 = vst [vmem:[%s1146 + $0x80] sm:%s1138] %v1163
          %v1165 = vld [vmem:[%s1145 + $0xd8] sm:%s1138]
          %1166 = vst [vmem:[%s1146 + $0x90] sm:%s1138] %v1165
          %v1167 = vld [vmem:[%s1145 + $0xf0] sm:%s1138]
          %1168 = vst [vmem:[%s1146 + $0xa0] sm:%s1138] %v1167
          %v1169 = vld [vmem:[%s1145 + $0x108] sm:%s1138]
          %1170 = vst [vmem:[%s1146 + $0xb0] sm:%s1138] %v1169
          %v1171 = vld [vmem:[%s1145 + $0x120] sm:%s1138]
          %1172 = vst [vmem:[%s1146 + $0xc0] sm:%s1138] %v1171
          %v1173 = vld [vmem:[%s1145 + $0x138] sm:%s1138]
          %1174 = vst [vmem:[%s1146 + $0xd0] sm:%s1138] %v1173
          %v1175 = vld [vmem:[%s1145 + $0x150] sm:%s1138]
          %1176 = vst [vmem:[%s1146 + $0xe0] sm:%s1138] %v1175
          %v1177 = vld [vmem:[%s1145 + $0x168] sm:%s1138]
          %1178 = vst [vmem:[%s1146 + $0xf0] sm:%s1138] %v1177
          %v1179 = vld [vmem:[%s1145 + $0x180] sm:%s1138]
          %1180 = vst [vmem:[%s1146 + $0x100] sm:%s1138] %v1179
          %v1181 = vld [vmem:[%s1145 + $0x198] sm:%s1138]
          %1182 = vst [vmem:[%s1146 + $0x110] sm:%s1138] %v1181
          %v1183 = vld [vmem:[%s1145 + $0x1b0] sm:%s1138]
          %1184 = vst [vmem:[%s1146 + $0x120] sm:%s1138] %v1183
          %v1185 = vld [vmem:[%s1145 + $0x1c8] sm:%s1138]
          %1186 = vst [vmem:[%s1146 + $0x130] sm:%s1138] %v1185
        $region422: #{tpu_custom_call.1} parent=409 // loop_footer
          %s1144 = sadd.s32 1, %s1140
        $region423: #{tpu_custom_call.1} parent=409 // loop_footer_branch
          %1139 = sbr.rel target = $region419
        $region424: #{tpu_custom_call.1} parent=409 // loop_exit
          _
      $region410: #{tpu_custom_call.1} parent=31 // pred_fallthru
        _
      // Predicated region
      $region425: #{tpu_custom_call.1} parent=31 // pred_check
        _
      $region426: #{tpu_custom_call.1} parent=31 // pred_check_branch
        %1189 = sbr.rel (0) target = $region428
      $region427: #{tpu_custom_call.1} parent=31 // pred_region
        %1190 = vsyncadd [#allocation5], 4480
      $region428: #{tpu_custom_call.1} parent=31 // pred_fallthru
        _
      %s1191 = scalar_lea.vmem [#allocation2], 4
      %s1192 = scalar_lea.vmem [#allocation3], 1280
      // Predicated region
      $region429: #{tpu_custom_call.1} parent=31 // pred_check
        _
      $region430: #{tpu_custom_call.1} parent=31 // pred_check_branch
        %1194 = sbr.rel (0) target = $region432
      $region431: #{tpu_custom_call.1} parent=31 // pred_region
        %s1195 = scalar_lea.vmem %s1191, 8 [#allocation2]
        %s1196 = scalar_lea.vmem %s1192, 8 [#allocation3]
        loop: start=0, step=1, limit=1
        $region433: #{tpu_custom_call.1} parent=431 // loop_pre_header
          _
        $region434: #{tpu_custom_call.1} parent=431 // loop_header
          %s1198 = sphi 0, %s1202
          %p1199 = scmp.ge.s32.totalorder %s1198, 1
          %s1203 = sphi %s1191, %s1191
          %s1204 = sphi %s1192, %s1192
        $region435: #{tpu_custom_call.1} parent=431 // loop_header_branch
          %1201 = sbr.rel (%p1199) target = $region439
        $region436: #{tpu_custom_call.1} parent=431 // loop_body
          %v1205 = vld [vmem:[%s1203] sm:$0xff]
          %1206 = vst [vmem:[%s1204] sm:$0xff] %v1205
          %v1207 = vld [vmem:[%s1203 + $0x18] sm:$0xff]
          %1208 = vst [vmem:[%s1204 + $0x10] sm:$0xff] %v1207
          %v1209 = vld [vmem:[%s1203 + $0x30] sm:$0xff]
          %1210 = vst [vmem:[%s1204 + $0x20] sm:$0xff] %v1209
          %v1211 = vld [vmem:[%s1203 + $0x48] sm:$0xff]
          %1212 = vst [vmem:[%s1204 + $0x30] sm:$0xff] %v1211
          %v1213 = vld [vmem:[%s1203 + $0x60] sm:$0xff]
          %1214 = vst [vmem:[%s1204 + $0x40] sm:$0xff] %v1213
          %v1215 = vld [vmem:[%s1203 + $0x78] sm:$0xff]
          %1216 = vst [vmem:[%s1204 + $0x50] sm:$0xff] %v1215
          %v1217 = vld [vmem:[%s1203 + $0x90] sm:$0xff]
          %1218 = vst [vmem:[%s1204 + $0x60] sm:$0xff] %v1217
          %v1219 = vld [vmem:[%s1203 + $0xa8] sm:$0xff]
          %1220 = vst [vmem:[%s1204 + $0x70] sm:$0xff] %v1219
          %v1221 = vld [vmem:[%s1203 + $0xc0] sm:$0xff]
          %1222 = vst [vmem:[%s1204 + $0x80] sm:$0xff] %v1221
          %v1223 = vld [vmem:[%s1203 + $0xd8] sm:$0xff]
          %1224 = vst [vmem:[%s1204 + $0x90] sm:$0xff] %v1223
          %v1225 = vld [vmem:[%s1203 + $0xf0] sm:$0xff]
          %1226 = vst [vmem:[%s1204 + $0xa0] sm:$0xff] %v1225
          %v1227 = vld [vmem:[%s1203 + $0x108] sm:$0xff]
          %1228 = vst [vmem:[%s1204 + $0xb0] sm:$0xff] %v1227
          %v1229 = vld [vmem:[%s1203 + $0x120] sm:$0xff]
          %1230 = vst [vmem:[%s1204 + $0xc0] sm:$0xff] %v1229
          %v1231 = vld [vmem:[%s1203 + $0x138] sm:$0xff]
          %1232 = vst [vmem:[%s1204 + $0xd0] sm:$0xff] %v1231
          %v1233 = vld [vmem:[%s1203 + $0x150] sm:$0xff]
          %1234 = vst [vmem:[%s1204 + $0xe0] sm:$0xff] %v1233
          %v1235 = vld [vmem:[%s1203 + $0x168] sm:$0xff]
          %1236 = vst [vmem:[%s1204 + $0xf0] sm:$0xff] %v1235
          %v1237 = vld [vmem:[%s1203 + $0x180] sm:$0xff]
          %1238 = vst [vmem:[%s1204 + $0x100] sm:$0xff] %v1237
          %v1239 = vld [vmem:[%s1203 + $0x198] sm:$0xff]
          %1240 = vst [vmem:[%s1204 + $0x110] sm:$0xff] %v1239
          %v1241 = vld [vmem:[%s1203 + $0x1b0] sm:$0xff]
          %1242 = vst [vmem:[%s1204 + $0x120] sm:$0xff] %v1241
          %v1243 = vld [vmem:[%s1203 + $0x1c8] sm:$0xff]
          %1244 = vst [vmem:[%s1204 + $0x130] sm:$0xff] %v1243
        $region437: #{tpu_custom_call.1} parent=431 // loop_footer
          %s1202 = sadd.s32 1, %s1198
        $region438: #{tpu_custom_call.1} parent=431 // loop_footer_branch
          %1197 = sbr.rel target = $region434
        $region439: #{tpu_custom_call.1} parent=431 // loop_exit
          _
        %s1246 = ssub.s32 64, 1
        loop: start=0, step=1, limit=1
        $region440: #{tpu_custom_call.1} parent=431 // loop_pre_header
          _
        $region441: #{tpu_custom_call.1} parent=431 // loop_header
          %s1248 = sphi 0, %s1252
          %p1249 = scmp.ge.s32.totalorder %s1248, 1
          %s1253 = sphi %s1195, %s1195
          %s1254 = sphi %s1196, %s1196
        $region442: #{tpu_custom_call.1} parent=431 // loop_header_branch
          %1251 = sbr.rel (%p1249) target = $region446
        $region443: #{tpu_custom_call.1} parent=431 // loop_body
          %v1255 = vld [vmem:[%s1253] sm:%s1246]
          %1256 = vst [vmem:[%s1254] sm:%s1246] %v1255
          %v1257 = vld [vmem:[%s1253 + $0x18] sm:%s1246]
          %1258 = vst [vmem:[%s1254 + $0x10] sm:%s1246] %v1257
          %v1259 = vld [vmem:[%s1253 + $0x30] sm:%s1246]
          %1260 = vst [vmem:[%s1254 + $0x20] sm:%s1246] %v1259
          %v1261 = vld [vmem:[%s1253 + $0x48] sm:%s1246]
          %1262 = vst [vmem:[%s1254 + $0x30] sm:%s1246] %v1261
          %v1263 = vld [vmem:[%s1253 + $0x60] sm:%s1246]
          %1264 = vst [vmem:[%s1254 + $0x40] sm:%s1246] %v1263
          %v1265 = vld [vmem:[%s1253 + $0x78] sm:%s1246]
          %1266 = vst [vmem:[%s1254 + $0x50] sm:%s1246] %v1265
          %v1267 = vld [vmem:[%s1253 + $0x90] sm:%s1246]
          %1268 = vst [vmem:[%s1254 + $0x60] sm:%s1246] %v1267
          %v1269 = vld [vmem:[%s1253 + $0xa8] sm:%s1246]
          %1270 = vst [vmem:[%s1254 + $0x70] sm:%s1246] %v1269
          %v1271 = vld [vmem:[%s1253 + $0xc0] sm:%s1246]
          %1272 = vst [vmem:[%s1254 + $0x80] sm:%s1246] %v1271
          %v1273 = vld [vmem:[%s1253 + $0xd8] sm:%s1246]
          %1274 = vst [vmem:[%s1254 + $0x90] sm:%s1246] %v1273
          %v1275 = vld [vmem:[%s1253 + $0xf0] sm:%s1246]
          %1276 = vst [vmem:[%s1254 + $0xa0] sm:%s1246] %v1275
          %v1277 = vld [vmem:[%s1253 + $0x108] sm:%s1246]
          %1278 = vst [vmem:[%s1254 + $0xb0] sm:%s1246] %v1277
          %v1279 = vld [vmem:[%s1253 + $0x120] sm:%s1246]
          %1280 = vst [vmem:[%s1254 + $0xc0] sm:%s1246] %v1279
          %v1281 = vld [vmem:[%s1253 + $0x138] sm:%s1246]
          %1282 = vst [vmem:[%s1254 + $0xd0] sm:%s1246] %v1281
          %v1283 = vld [vmem:[%s1253 + $0x150] sm:%s1246]
          %1284 = vst [vmem:[%s1254 + $0xe0] sm:%s1246] %v1283
          %v1285 = vld [vmem:[%s1253 + $0x168] sm:%s1246]
          %1286 = vst [vmem:[%s1254 + $0xf0] sm:%s1246] %v1285
          %v1287 = vld [vmem:[%s1253 + $0x180] sm:%s1246]
          %1288 = vst [vmem:[%s1254 + $0x100] sm:%s1246] %v1287
          %v1289 = vld [vmem:[%s1253 + $0x198] sm:%s1246]
          %1290 = vst [vmem:[%s1254 + $0x110] sm:%s1246] %v1289
          %v1291 = vld [vmem:[%s1253 + $0x1b0] sm:%s1246]
          %1292 = vst [vmem:[%s1254 + $0x120] sm:%s1246] %v1291
          %v1293 = vld [vmem:[%s1253 + $0x1c8] sm:%s1246]
          %1294 = vst [vmem:[%s1254 + $0x130] sm:%s1246] %v1293
        $region444: #{tpu_custom_call.1} parent=431 // loop_footer
          %s1252 = sadd.s32 1, %s1248
        $region445: #{tpu_custom_call.1} parent=431 // loop_footer_branch
          %1247 = sbr.rel target = $region441
        $region446: #{tpu_custom_call.1} parent=431 // loop_exit
          _
      $region432: #{tpu_custom_call.1} parent=31 // pred_fallthru
        _
      // Predicated region
      $region447: #{tpu_custom_call.1} parent=31 // pred_check
        _
      $region448: #{tpu_custom_call.1} parent=31 // pred_check_branch
        %1297 = sbr.rel (0) target = $region450
      $region449: #{tpu_custom_call.1} parent=31 // pred_region
        %1298 = vsyncadd [#allocation5], 4480
      $region450: #{tpu_custom_call.1} parent=31 // pred_fallthru
        _
      %s1299 = scalar_lea.vmem [#allocation2], 5
      %s1300 = scalar_lea.vmem [#allocation3], 1600
      // Predicated region
      $region451: #{tpu_custom_call.1} parent=31 // pred_check
        _
      $region452: #{tpu_custom_call.1} parent=31 // pred_check_branch
        %1302 = sbr.rel (0) target = $region454
      $region453: #{tpu_custom_call.1} parent=31 // pred_region
        %s1303 = scalar_lea.vmem %s1299, 8 [#allocation2]
        %s1304 = scalar_lea.vmem %s1300, 8 [#allocation3]
        loop: start=0, step=1, limit=1
        $region455: #{tpu_custom_call.1} parent=453 // loop_pre_header
          _
        $region456: #{tpu_custom_call.1} parent=453 // loop_header
          %s1306 = sphi 0, %s1310
          %p1307 = scmp.ge.s32.totalorder %s1306, 1
          %s1311 = sphi %s1299, %s1299
          %s1312 = sphi %s1300, %s1300
        $region457: #{tpu_custom_call.1} parent=453 // loop_header_branch
          %1309 = sbr.rel (%p1307) target = $region461
        $region458: #{tpu_custom_call.1} parent=453 // loop_body
          %v1313 = vld [vmem:[%s1311] sm:$0xff]
          %1314 = vst [vmem:[%s1312] sm:$0xff] %v1313
          %v1315 = vld [vmem:[%s1311 + $0x18] sm:$0xff]
          %1316 = vst [vmem:[%s1312 + $0x10] sm:$0xff] %v1315
          %v1317 = vld [vmem:[%s1311 + $0x30] sm:$0xff]
          %1318 = vst [vmem:[%s1312 + $0x20] sm:$0xff] %v1317
          %v1319 = vld [vmem:[%s1311 + $0x48] sm:$0xff]
          %1320 = vst [vmem:[%s1312 + $0x30] sm:$0xff] %v1319
          %v1321 = vld [vmem:[%s1311 + $0x60] sm:$0xff]
          %1322 = vst [vmem:[%s1312 + $0x40] sm:$0xff] %v1321
          %v1323 = vld [vmem:[%s1311 + $0x78] sm:$0xff]
          %1324 = vst [vmem:[%s1312 + $0x50] sm:$0xff] %v1323
          %v1325 = vld [vmem:[%s1311 + $0x90] sm:$0xff]
          %1326 = vst [vmem:[%s1312 + $0x60] sm:$0xff] %v1325
          %v1327 = vld [vmem:[%s1311 + $0xa8] sm:$0xff]
          %1328 = vst [vmem:[%s1312 + $0x70] sm:$0xff] %v1327
          %v1329 = vld [vmem:[%s1311 + $0xc0] sm:$0xff]
          %1330 = vst [vmem:[%s1312 + $0x80] sm:$0xff] %v1329
          %v1331 = vld [vmem:[%s1311 + $0xd8] sm:$0xff]
          %1332 = vst [vmem:[%s1312 + $0x90] sm:$0xff] %v1331
          %v1333 = vld [vmem:[%s1311 + $0xf0] sm:$0xff]
          %1334 = vst [vmem:[%s1312 + $0xa0] sm:$0xff] %v1333
          %v1335 = vld [vmem:[%s1311 + $0x108] sm:$0xff]
          %1336 = vst [vmem:[%s1312 + $0xb0] sm:$0xff] %v1335
          %v1337 = vld [vmem:[%s1311 + $0x120] sm:$0xff]
          %1338 = vst [vmem:[%s1312 + $0xc0] sm:$0xff] %v1337
          %v1339 = vld [vmem:[%s1311 + $0x138] sm:$0xff]
          %1340 = vst [vmem:[%s1312 + $0xd0] sm:$0xff] %v1339
          %v1341 = vld [vmem:[%s1311 + $0x150] sm:$0xff]
          %1342 = vst [vmem:[%s1312 + $0xe0] sm:$0xff] %v1341
          %v1343 = vld [vmem:[%s1311 + $0x168] sm:$0xff]
          %1344 = vst [vmem:[%s1312 + $0xf0] sm:$0xff] %v1343
          %v1345 = vld [vmem:[%s1311 + $0x180] sm:$0xff]
          %1346 = vst [vmem:[%s1312 + $0x100] sm:$0xff] %v1345
          %v1347 = vld [vmem:[%s1311 + $0x198] sm:$0xff]
          %1348 = vst [vmem:[%s1312 + $0x110] sm:$0xff] %v1347
          %v1349 = vld [vmem:[%s1311 + $0x1b0] sm:$0xff]
          %1350 = vst [vmem:[%s1312 + $0x120] sm:$0xff] %v1349
          %v1351 = vld [vmem:[%s1311 + $0x1c8] sm:$0xff]
          %1352 = vst [vmem:[%s1312 + $0x130] sm:$0xff] %v1351
        $region459: #{tpu_custom_call.1} parent=453 // loop_footer
          %s1310 = sadd.s32 1, %s1306
        $region460: #{tpu_custom_call.1} parent=453 // loop_footer_branch
          %1305 = sbr.rel target = $region456
        $region461: #{tpu_custom_call.1} parent=453 // loop_exit
          _
        %s1354 = ssub.s32 64, 1
        loop: start=0, step=1, limit=1
        $region462: #{tpu_custom_call.1} parent=453 // loop_pre_header
          _
        $region463: #{tpu_custom_call.1} parent=453 // loop_header
          %s1356 = sphi 0, %s1360
          %p1357 = scmp.ge.s32.totalorder %s1356, 1
          %s1361 = sphi %s1303, %s1303
          %s1362 = sphi %s1304, %s1304
        $region464: #{tpu_custom_call.1} parent=453 // loop_header_branch
          %1359 = sbr.rel (%p1357) target = $region468
        $region465: #{tpu_custom_call.1} parent=453 // loop_body
          %v1363 = vld [vmem:[%s1361] sm:%s1354]
          %1364 = vst [vmem:[%s1362] sm:%s1354] %v1363
          %v1365 = vld [vmem:[%s1361 + $0x18] sm:%s1354]
          %1366 = vst [vmem:[%s1362 + $0x10] sm:%s1354] %v1365
          %v1367 = vld [vmem:[%s1361 + $0x30] sm:%s1354]
          %1368 = vst [vmem:[%s1362 + $0x20] sm:%s1354] %v1367
          %v1369 = vld [vmem:[%s1361 + $0x48] sm:%s1354]
          %1370 = vst [vmem:[%s1362 + $0x30] sm:%s1354] %v1369
          %v1371 = vld [vmem:[%s1361 + $0x60] sm:%s1354]
          %1372 = vst [vmem:[%s1362 + $0x40] sm:%s1354] %v1371
          %v1373 = vld [vmem:[%s1361 + $0x78] sm:%s1354]
          %1374 = vst [vmem:[%s1362 + $0x50] sm:%s1354] %v1373
          %v1375 = vld [vmem:[%s1361 + $0x90] sm:%s1354]
          %1376 = vst [vmem:[%s1362 + $0x60] sm:%s1354] %v1375
          %v1377 = vld [vmem:[%s1361 + $0xa8] sm:%s1354]
          %1378 = vst [vmem:[%s1362 + $0x70] sm:%s1354] %v1377
          %v1379 = vld [vmem:[%s1361 + $0xc0] sm:%s1354]
          %1380 = vst [vmem:[%s1362 + $0x80] sm:%s1354] %v1379
          %v1381 = vld [vmem:[%s1361 + $0xd8] sm:%s1354]
          %1382 = vst [vmem:[%s1362 + $0x90] sm:%s1354] %v1381
          %v1383 = vld [vmem:[%s1361 + $0xf0] sm:%s1354]
          %1384 = vst [vmem:[%s1362 + $0xa0] sm:%s1354] %v1383
          %v1385 = vld [vmem:[%s1361 + $0x108] sm:%s1354]
          %1386 = vst [vmem:[%s1362 + $0xb0] sm:%s1354] %v1385
          %v1387 = vld [vmem:[%s1361 + $0x120] sm:%s1354]
          %1388 = vst [vmem:[%s1362 + $0xc0] sm:%s1354] %v1387
          %v1389 = vld [vmem:[%s1361 + $0x138] sm:%s1354]
          %1390 = vst [vmem:[%s1362 + $0xd0] sm:%s1354] %v1389
          %v1391 = vld [vmem:[%s1361 + $0x150] sm:%s1354]
          %1392 = vst [vmem:[%s1362 + $0xe0] sm:%s1354] %v1391
          %v1393 = vld [vmem:[%s1361 + $0x168] sm:%s1354]
          %1394 = vst [vmem:[%s1362 + $0xf0] sm:%s1354] %v1393
          %v1395 = vld [vmem:[%s1361 + $0x180] sm:%s1354]
          %1396 = vst [vmem:[%s1362 + $0x100] sm:%s1354] %v1395
          %v1397 = vld [vmem:[%s1361 + $0x198] sm:%s1354]
          %1398 = vst [vmem:[%s1362 + $0x110] sm:%s1354] %v1397
          %v1399 = vld [vmem:[%s1361 + $0x1b0] sm:%s1354]
          %1400 = vst [vmem:[%s1362 + $0x120] sm:%s1354] %v1399
          %v1401 = vld [vmem:[%s1361 + $0x1c8] sm:%s1354]
          %1402 = vst [vmem:[%s1362 + $0x130] sm:%s1354] %v1401
        $region466: #{tpu_custom_call.1} parent=453 // loop_footer
          %s1360 = sadd.s32 1, %s1356
        $region467: #{tpu_custom_call.1} parent=453 // loop_footer_branch
          %1355 = sbr.rel target = $region463
        $region468: #{tpu_custom_call.1} parent=453 // loop_exit
          _
      $region454: #{tpu_custom_call.1} parent=31 // pred_fallthru
        _
      // Predicated region
      $region469: #{tpu_custom_call.1} parent=31 // pred_check
        _
      $region470: #{tpu_custom_call.1} parent=31 // pred_check_branch
        %1405 = sbr.rel (0) target = $region472
      $region471: #{tpu_custom_call.1} parent=31 // pred_region
        %1406 = vsyncadd [#allocation5], 4480
      $region472: #{tpu_custom_call.1} parent=31 // pred_fallthru
        _
      %s1407 = scalar_lea.vmem [#allocation2], 6
      %s1408 = scalar_lea.vmem [#allocation3], 1920
      // Predicated region
      $region473: #{tpu_custom_call.1} parent=31 // pred_check
        _
      $region474: #{tpu_custom_call.1} parent=31 // pred_check_branch
        %1410 = sbr.rel (0) target = $region476
      $region475: #{tpu_custom_call.1} parent=31 // pred_region
        %s1411 = scalar_lea.vmem %s1407, 8 [#allocation2]
        %s1412 = scalar_lea.vmem %s1408, 8 [#allocation3]
        loop: start=0, step=1, limit=1
        $region477: #{tpu_custom_call.1} parent=475 // loop_pre_header
          _
        $region478: #{tpu_custom_call.1} parent=475 // loop_header
          %s1414 = sphi 0, %s1418
          %p1415 = scmp.ge.s32.totalorder %s1414, 1
          %s1419 = sphi %s1407, %s1407
          %s1420 = sphi %s1408, %s1408
        $region479: #{tpu_custom_call.1} parent=475 // loop_header_branch
          %1417 = sbr.rel (%p1415) target = $region483
        $region480: #{tpu_custom_call.1} parent=475 // loop_body
          %v1421 = vld [vmem:[%s1419] sm:$0xff]
          %1422 = vst [vmem:[%s1420] sm:$0xff] %v1421
          %v1423 = vld [vmem:[%s1419 + $0x18] sm:$0xff]
          %1424 = vst [vmem:[%s1420 + $0x10] sm:$0xff] %v1423
          %v1425 = vld [vmem:[%s1419 + $0x30] sm:$0xff]
          %1426 = vst [vmem:[%s1420 + $0x20] sm:$0xff] %v1425
          %v1427 = vld [vmem:[%s1419 + $0x48] sm:$0xff]
          %1428 = vst [vmem:[%s1420 + $0x30] sm:$0xff] %v1427
          %v1429 = vld [vmem:[%s1419 + $0x60] sm:$0xff]
          %1430 = vst [vmem:[%s1420 + $0x40] sm:$0xff] %v1429
          %v1431 = vld [vmem:[%s1419 + $0x78] sm:$0xff]
          %1432 = vst [vmem:[%s1420 + $0x50] sm:$0xff] %v1431
          %v1433 = vld [vmem:[%s1419 + $0x90] sm:$0xff]
          %1434 = vst [vmem:[%s1420 + $0x60] sm:$0xff] %v1433
          %v1435 = vld [vmem:[%s1419 + $0xa8] sm:$0xff]
          %1436 = vst [vmem:[%s1420 + $0x70] sm:$0xff] %v1435
          %v1437 = vld [vmem:[%s1419 + $0xc0] sm:$0xff]
          %1438 = vst [vmem:[%s1420 + $0x80] sm:$0xff] %v1437
          %v1439 = vld [vmem:[%s1419 + $0xd8] sm:$0xff]
          %1440 = vst [vmem:[%s1420 + $0x90] sm:$0xff] %v1439
          %v1441 = vld [vmem:[%s1419 + $0xf0] sm:$0xff]
          %1442 = vst [vmem:[%s1420 + $0xa0] sm:$0xff] %v1441
          %v1443 = vld [vmem:[%s1419 + $0x108] sm:$0xff]
          %1444 = vst [vmem:[%s1420 + $0xb0] sm:$0xff] %v1443
          %v1445 = vld [vmem:[%s1419 + $0x120] sm:$0xff]
          %1446 = vst [vmem:[%s1420 + $0xc0] sm:$0xff] %v1445
          %v1447 = vld [vmem:[%s1419 + $0x138] sm:$0xff]
          %1448 = vst [vmem:[%s1420 + $0xd0] sm:$0xff] %v1447
          %v1449 = vld [vmem:[%s1419 + $0x150] sm:$0xff]
          %1450 = vst [vmem:[%s1420 + $0xe0] sm:$0xff] %v1449
          %v1451 = vld [vmem:[%s1419 + $0x168] sm:$0xff]
          %1452 = vst [vmem:[%s1420 + $0xf0] sm:$0xff] %v1451
          %v1453 = vld [vmem:[%s1419 + $0x180] sm:$0xff]
          %1454 = vst [vmem:[%s1420 + $0x100] sm:$0xff] %v1453
          %v1455 = vld [vmem:[%s1419 + $0x198] sm:$0xff]
          %1456 = vst [vmem:[%s1420 + $0x110] sm:$0xff] %v1455
          %v1457 = vld [vmem:[%s1419 + $0x1b0] sm:$0xff]
          %1458 = vst [vmem:[%s1420 + $0x120] sm:$0xff] %v1457
          %v1459 = vld [vmem:[%s1419 + $0x1c8] sm:$0xff]
          %1460 = vst [vmem:[%s1420 + $0x130] sm:$0xff] %v1459
        $region481: #{tpu_custom_call.1} parent=475 // loop_footer
          %s1418 = sadd.s32 1, %s1414
        $region482: #{tpu_custom_call.1} parent=475 // loop_footer_branch
          %1413 = sbr.rel target = $region478
        $region483: #{tpu_custom_call.1} parent=475 // loop_exit
          _
        %s1462 = ssub.s32 64, 1
        loop: start=0, step=1, limit=1
        $region484: #{tpu_custom_call.1} parent=475 // loop_pre_header
          _
        $region485: #{tpu_custom_call.1} parent=475 // loop_header
          %s1464 = sphi 0, %s1468
          %p1465 = scmp.ge.s32.totalorder %s1464, 1
          %s1469 = sphi %s1411, %s1411
          %s1470 = sphi %s1412, %s1412
        $region486: #{tpu_custom_call.1} parent=475 // loop_header_branch
          %1467 = sbr.rel (%p1465) target = $region490
        $region487: #{tpu_custom_call.1} parent=475 // loop_body
          %v1471 = vld [vmem:[%s1469] sm:%s1462]
          %1472 = vst [vmem:[%s1470] sm:%s1462] %v1471
          %v1473 = vld [vmem:[%s1469 + $0x18] sm:%s1462]
          %1474 = vst [vmem:[%s1470 + $0x10] sm:%s1462] %v1473
          %v1475 = vld [vmem:[%s1469 + $0x30] sm:%s1462]
          %1476 = vst [vmem:[%s1470 + $0x20] sm:%s1462] %v1475
          %v1477 = vld [vmem:[%s1469 + $0x48] sm:%s1462]
          %1478 = vst [vmem:[%s1470 + $0x30] sm:%s1462] %v1477
          %v1479 = vld [vmem:[%s1469 + $0x60] sm:%s1462]
          %1480 = vst [vmem:[%s1470 + $0x40] sm:%s1462] %v1479
          %v1481 = vld [vmem:[%s1469 + $0x78] sm:%s1462]
          %1482 = vst [vmem:[%s1470 + $0x50] sm:%s1462] %v1481
          %v1483 = vld [vmem:[%s1469 + $0x90] sm:%s1462]
          %1484 = vst [vmem:[%s1470 + $0x60] sm:%s1462] %v1483
          %v1485 = vld [vmem:[%s1469 + $0xa8] sm:%s1462]
          %1486 = vst [vmem:[%s1470 + $0x70] sm:%s1462] %v1485
          %v1487 = vld [vmem:[%s1469 + $0xc0] sm:%s1462]
          %1488 = vst [vmem:[%s1470 + $0x80] sm:%s1462] %v1487
          %v1489 = vld [vmem:[%s1469 + $0xd8] sm:%s1462]
          %1490 = vst [vmem:[%s1470 + $0x90] sm:%s1462] %v1489
          %v1491 = vld [vmem:[%s1469 + $0xf0] sm:%s1462]
          %1492 = vst [vmem:[%s1470 + $0xa0] sm:%s1462] %v1491
          %v1493 = vld [vmem:[%s1469 + $0x108] sm:%s1462]
          %1494 = vst [vmem:[%s1470 + $0xb0] sm:%s1462] %v1493
          %v1495 = vld [vmem:[%s1469 + $0x120] sm:%s1462]
          %1496 = vst [vmem:[%s1470 + $0xc0] sm:%s1462] %v1495
          %v1497 = vld [vmem:[%s1469 + $0x138] sm:%s1462]
          %1498 = vst [vmem:[%s1470 + $0xd0] sm:%s1462] %v1497
          %v1499 = vld [vmem:[%s1469 + $0x150] sm:%s1462]
          %1500 = vst [vmem:[%s1470 + $0xe0] sm:%s1462] %v1499
          %v1501 = vld [vmem:[%s1469 + $0x168] sm:%s1462]
          %1502 = vst [vmem:[%s1470 + $0xf0] sm:%s1462] %v1501
          %v1503 = vld [vmem:[%s1469 + $0x180] sm:%s1462]
          %1504 = vst [vmem:[%s1470 + $0x100] sm:%s1462] %v1503
          %v1505 = vld [vmem:[%s1469 + $0x198] sm:%s1462]
          %1506 = vst [vmem:[%s1470 + $0x110] sm:%s1462] %v1505
          %v1507 = vld [vmem:[%s1469 + $0x1b0] sm:%s1462]
          %1508 = vst [vmem:[%s1470 + $0x120] sm:%s1462] %v1507
          %v1509 = vld [vmem:[%s1469 + $0x1c8] sm:%s1462]
          %1510 = vst [vmem:[%s1470 + $0x130] sm:%s1462] %v1509
        $region488: #{tpu_custom_call.1} parent=475 // loop_footer
          %s1468 = sadd.s32 1, %s1464
        $region489: #{tpu_custom_call.1} parent=475 // loop_footer_branch
          %1463 = sbr.rel target = $region485
        $region490: #{tpu_custom_call.1} parent=475 // loop_exit
          _
      $region476: #{tpu_custom_call.1} parent=31 // pred_fallthru
        _
      // Predicated region
      $region491: #{tpu_custom_call.1} parent=31 // pred_check
        _
      $region492: #{tpu_custom_call.1} parent=31 // pred_check_branch
        %1513 = sbr.rel (0) target = $region494
      $region493: #{tpu_custom_call.1} parent=31 // pred_region
        %1514 = vsyncadd [#allocation5], 4480
      $region494: #{tpu_custom_call.1} parent=31 // pred_fallthru
        _
      %s1515 = smul.u32 20, 14
      %s1516 = smul.u32 %s1515, 1
      %s1517 = sshll.u32 %s1516, 4
      %1518 = dma.done [#allocation5], %s1517
      %s1519 = sshll.u32 %s1516, 4
      %1520 = dma.done [#allocation5], %s1519
      %s1521 = sshll.u32 %s1516, 4
      %1522 = dma.done [#allocation5], %s1521
      %s1523 = sshll.u32 %s1516, 4
      %1524 = dma.done [#allocation5], %s1523
      %s1525 = sshll.u32 %s1516, 4
      %1526 = dma.done [#allocation5], %s1525
      %s1527 = sshll.u32 %s1516, 4
      %1528 = dma.done [#allocation5], %s1527
      %s1529 = sshll.u32 %s1516, 4
      %1530 = dma.done [#allocation5], %s1529
      %v1531 = vld [vmem:[%s221] sm:$0x7f]
      %v1532 = vld [vmem:[%s221 + $0x8] sm:$0x7f]
      %v1533 = vld [vmem:[%s221 + $0x10] sm:$0x7f]
      %v1534 = vld [vmem:[%s221 + $0x18] sm:$0x7f]
      %v1535 = vld [vmem:[%s221 + $0x20] sm:$0x7f]
      %v1536 = vld [vmem:[%s221 + $0x28] sm:$0x7f]
      %v1537 = vld [vmem:[%s221 + $0x30] sm:$0x7f]
      %v1538 = vld [vmem:[%s224] sm:$0x1]
      %v1540 = vperm.slane %v1538, 0
      %v1542 = vld [vmem:[#allocation3] sm:$0xff]
      %v1543 = vld [vmem:[#allocation3 + $0x8] sm:$0x3f]
      %v1544 = vld [vmem:[#allocation3 + $0x10] sm:$0xff]
      %v1545 = vld [vmem:[#allocation3 + $0x18] sm:$0x3f]
      %v1546 = vld [vmem:[#allocation3 + $0x20] sm:$0xff]
      %v1547 = vld [vmem:[#allocation3 + $0x28] sm:$0x3f]
      %v1548 = vld [vmem:[#allocation3 + $0x30] sm:$0xff]
      %v1549 = vld [vmem:[#allocation3 + $0x38] sm:$0x3f]
      %v1550 = vld [vmem:[#allocation3 + $0x40] sm:$0xff]
      %v1551 = vld [vmem:[#allocation3 + $0x48] sm:$0x3f]
      %v1552 = vld [vmem:[#allocation3 + $0x50] sm:$0xff]
      %v1553 = vld [vmem:[#allocation3 + $0x58] sm:$0x3f]
      %v1554 = vld [vmem:[#allocation3 + $0x60] sm:$0xff]
      %v1555 = vld [vmem:[#allocation3 + $0x68] sm:$0x3f]
      %v1556 = vld [vmem:[#allocation3 + $0x70] sm:$0xff]
      %v1557 = vld [vmem:[#allocation3 + $0x78] sm:$0x3f]
      %v1558 = vld [vmem:[#allocation3 + $0x80] sm:$0xff]
      %v1559 = vld [vmem:[#allocation3 + $0x88] sm:$0x3f]
      %v1560 = vld [vmem:[#allocation3 + $0x90] sm:$0xff]
      %v1561 = vld [vmem:[#allocation3 + $0x98] sm:$0x3f]
      %v1562 = vld [vmem:[#allocation3 + $0xa0] sm:$0xff]
      %v1563 = vld [vmem:[#allocation3 + $0xa8] sm:$0x3f]
      %v1564 = vld [vmem:[#allocation3 + $0xb0] sm:$0xff]
      %v1565 = vld [vmem:[#allocation3 + $0xb8] sm:$0x3f]
      %v1566 = vld [vmem:[#allocation3 + $0xc0] sm:$0xff]
      %v1567 = vld [vmem:[#allocation3 + $0xc8] sm:$0x3f]
      %v1568 = vld [vmem:[#allocation3 + $0xd0] sm:$0xff]
      %v1569 = vld [vmem:[#allocation3 + $0xd8] sm:$0x3f]
      %v1570 = vperm.slane %v1531, 0
      %v1571 = vmul.f32 %v1542, %v1570
      %v1572 = vmul.f32 %v1543, %v1570
      %v1573 = vmul.f32 %v1544, %v1570
      %v1574 = vmul.f32 %v1545, %v1570
      %v1575 = vmul.f32 %v1546, %v1570
      %v1576 = vmul.f32 %v1547, %v1570
      %v1577 = vmul.f32 %v1548, %v1570
      %v1578 = vmul.f32 %v1549, %v1570
      %v1579 = vmul.f32 %v1550, %v1570
      %v1580 = vmul.f32 %v1551, %v1570
      %v1581 = vmul.f32 %v1552, %v1570
      %v1582 = vmul.f32 %v1553, %v1570
      %v1583 = vmul.f32 %v1554, %v1570
      %v1584 = vmul.f32 %v1555, %v1570
      %v1585 = vmul.f32 %v1556, %v1570
      %v1586 = vmul.f32 %v1557, %v1570
      %v1587 = vmul.f32 %v1558, %v1570
      %v1588 = vmul.f32 %v1559, %v1570
      %v1589 = vmul.f32 %v1560, %v1570
      %v1590 = vmul.f32 %v1561, %v1570
      %v1591 = vmul.f32 %v1562, %v1570
      %v1592 = vmul.f32 %v1563, %v1570
      %v1593 = vmul.f32 %v1564, %v1570
      %v1594 = vmul.f32 %v1565, %v1570
      %v1595 = vmul.f32 %v1566, %v1570
      %v1596 = vmul.f32 %v1567, %v1570
      %v1597 = vmul.f32 %v1568, %v1570
      %v1598 = vmul.f32 %v1569, %v1570
      %v1599 = vadd.f32 %v1540, %v1571
      %v1600 = vadd.f32 %v1540, %v1572
      %v1601 = vadd.f32 %v1540, %v1573
      %v1602 = vadd.f32 %v1540, %v1574
      %v1603 = vadd.f32 %v1540, %v1575
      %v1604 = vadd.f32 %v1540, %v1576
      %v1605 = vadd.f32 %v1540, %v1577
      %v1606 = vadd.f32 %v1540, %v1578
      %v1607 = vadd.f32 %v1540, %v1579
      %v1608 = vadd.f32 %v1540, %v1580
      %v1609 = vadd.f32 %v1540, %v1581
      %v1610 = vadd.f32 %v1540, %v1582
      %v1611 = vadd.f32 %v1540, %v1583
      %v1612 = vadd.f32 %v1540, %v1584
      %v1613 = vadd.f32 %v1540, %v1585
      %v1614 = vadd.f32 %v1540, %v1586
      %v1615 = vadd.f32 %v1540, %v1587
      %v1616 = vadd.f32 %v1540, %v1588
      %v1617 = vadd.f32 %v1540, %v1589
      %v1618 = vadd.f32 %v1540, %v1590
      %v1619 = vadd.f32 %v1540, %v1591
      %v1620 = vadd.f32 %v1540, %v1592
      %v1621 = vadd.f32 %v1540, %v1593
      %v1622 = vadd.f32 %v1540, %v1594
      %v1623 = vadd.f32 %v1540, %v1595
      %v1624 = vadd.f32 %v1540, %v1596
      %v1625 = vadd.f32 %v1540, %v1597
      %v1626 = vadd.f32 %v1540, %v1598
      %s1627 = scalar_lea.vmem [#allocation3], 16
      %v1628 = vld [vmem:[%s1627] sm:$0xff]
      %v1629 = vld [vmem:[%s1627 + $0x8] sm:$0x3f]
      %v1630 = vld [vmem:[%s1627 + $0x10] sm:$0xff]
      %v1631 = vld [vmem:[%s1627 + $0x18] sm:$0x3f]
      %v1632 = vld [vmem:[%s1627 + $0x20] sm:$0xff]
      %v1633 = vld [vmem:[%s1627 + $0x28] sm:$0x3f]
      %v1634 = vld [vmem:[%s1627 + $0x30] sm:$0xff]
      %v1635 = vld [vmem:[%s1627 + $0x38] sm:$0x3f]
      %v1636 = vld [vmem:[%s1627 + $0x40] sm:$0xff]
      %v1637 = vld [vmem:[%s1627 + $0x48] sm:$0x3f]
      %v1638 = vld [vmem:[%s1627 + $0x50] sm:$0xff]
      %v1639 = vld [vmem:[%s1627 + $0x58] sm:$0x3f]
      %v1640 = vld [vmem:[%s1627 + $0x60] sm:$0xff]
      %v1641 = vld [vmem:[%s1627 + $0x68] sm:$0x3f]
      %v1642 = vld [vmem:[%s1627 + $0x70] sm:$0xff]
      %v1643 = vld [vmem:[%s1627 + $0x78] sm:$0x3f]
      %v1644 = vld [vmem:[%s1627 + $0x80] sm:$0xff]
      %v1645 = vld [vmem:[%s1627 + $0x88] sm:$0x3f]
      %v1646 = vld [vmem:[%s1627 + $0x90] sm:$0xff]
      %v1647 = vld [vmem:[%s1627 + $0x98] sm:$0x3f]
      %v1648 = vld [vmem:[%s1627 + $0xa0] sm:$0xff]
      %v1649 = vld [vmem:[%s1627 + $0xa8] sm:$0x3f]
      %v1650 = vld [vmem:[%s1627 + $0xb0] sm:$0xff]
      %v1651 = vld [vmem:[%s1627 + $0xb8] sm:$0x3f]
      %v1652 = vld [vmem:[%s1627 + $0xc0] sm:$0xff]
      %v1653 = vld [vmem:[%s1627 + $0xc8] sm:$0x3f]
      %v1654 = vld [vmem:[%s1627 + $0xd0] sm:$0xff]
      %v1655 = vld [vmem:[%s1627 + $0xd8] sm:$0x3f]
      %v1656 = vperm.slane %v1532, 0
      %v1657 = vmul.f32 %v1628, %v1656
      %v1658 = vmul.f32 %v1629, %v1656
      %v1659 = vmul.f32 %v1630, %v1656
      %v1660 = vmul.f32 %v1631, %v1656
      %v1661 = vmul.f32 %v1632, %v1656
      %v1662 = vmul.f32 %v1633, %v1656
      %v1663 = vmul.f32 %v1634, %v1656
      %v1664 = vmul.f32 %v1635, %v1656
      %v1665 = vmul.f32 %v1636, %v1656
      %v1666 = vmul.f32 %v1637, %v1656
      %v1667 = vmul.f32 %v1638, %v1656
      %v1668 = vmul.f32 %v1639, %v1656
      %v1669 = vmul.f32 %v1640, %v1656
      %v1670 = vmul.f32 %v1641, %v1656
      %v1671 = vmul.f32 %v1642, %v1656
      %v1672 = vmul.f32 %v1643, %v1656
      %v1673 = vmul.f32 %v1644, %v1656
      %v1674 = vmul.f32 %v1645, %v1656
      %v1675 = vmul.f32 %v1646, %v1656
      %v1676 = vmul.f32 %v1647, %v1656
      %v1677 = vmul.f32 %v1648, %v1656
      %v1678 = vmul.f32 %v1649, %v1656
      %v1679 = vmul.f32 %v1650, %v1656
      %v1680 = vmul.f32 %v1651, %v1656
      %v1681 = vmul.f32 %v1652, %v1656
      %v1682 = vmul.f32 %v1653, %v1656
      %v1683 = vmul.f32 %v1654, %v1656
      %v1684 = vmul.f32 %v1655, %v1656
      %v1685 = vadd.f32 %v1599, %v1657
      %v1686 = vadd.f32 %v1600, %v1658
      %v1687 = vadd.f32 %v1601, %v1659
      %v1688 = vadd.f32 %v1602, %v1660
      %v1689 = vadd.f32 %v1603, %v1661
      %v1690 = vadd.f32 %v1604, %v1662
      %v1691 = vadd.f32 %v1605, %v1663
      %v1692 = vadd.f32 %v1606, %v1664
      %v1693 = vadd.f32 %v1607, %v1665
      %v1694 = vadd.f32 %v1608, %v1666
      %v1695 = vadd.f32 %v1609, %v1667
      %v1696 = vadd.f32 %v1610, %v1668
      %v1697 = vadd.f32 %v1611, %v1669
      %v1698 = vadd.f32 %v1612, %v1670
      %v1699 = vadd.f32 %v1613, %v1671
      %v1700 = vadd.f32 %v1614, %v1672
      %v1701 = vadd.f32 %v1615, %v1673
      %v1702 = vadd.f32 %v1616, %v1674
      %v1703 = vadd.f32 %v1617, %v1675
      %v1704 = vadd.f32 %v1618, %v1676
      %v1705 = vadd.f32 %v1619, %v1677
      %v1706 = vadd.f32 %v1620, %v1678
      %v1707 = vadd.f32 %v1621, %v1679
      %v1708 = vadd.f32 %v1622, %v1680
      %v1709 = vadd.f32 %v1623, %v1681
      %v1710 = vadd.f32 %v1624, %v1682
      %v1711 = vadd.f32 %v1625, %v1683
      %v1712 = vadd.f32 %v1626, %v1684
      %s1713 = scalar_lea.vmem [#allocation3], 32
      %v1714 = vld [vmem:[%s1713] sm:$0xff]
      %v1715 = vld [vmem:[%s1713 + $0x8] sm:$0x3f]
      %v1716 = vld [vmem:[%s1713 + $0x10] sm:$0xff]
      %v1717 = vld [vmem:[%s1713 + $0x18] sm:$0x3f]
      %v1718 = vld [vmem:[%s1713 + $0x20] sm:$0xff]
      %v1719 = vld [vmem:[%s1713 + $0x28] sm:$0x3f]
      %v1720 = vld [vmem:[%s1713 + $0x30] sm:$0xff]
      %v1721 = vld [vmem:[%s1713 + $0x38] sm:$0x3f]
      %v1722 = vld [vmem:[%s1713 + $0x40] sm:$0xff]
      %v1723 = vld [vmem:[%s1713 + $0x48] sm:$0x3f]
      %v1724 = vld [vmem:[%s1713 + $0x50] sm:$0xff]
      %v1725 = vld [vmem:[%s1713 + $0x58] sm:$0x3f]
      %v1726 = vld [vmem:[%s1713 + $0x60] sm:$0xff]
      %v1727 = vld [vmem:[%s1713 + $0x68] sm:$0x3f]
      %v1728 = vld [vmem:[%s1713 + $0x70] sm:$0xff]
      %v1729 = vld [vmem:[%s1713 + $0x78] sm:$0x3f]
      %v1730 = vld [vmem:[%s1713 + $0x80] sm:$0xff]
      %v1731 = vld [vmem:[%s1713 + $0x88] sm:$0x3f]
      %v1732 = vld [vmem:[%s1713 + $0x90] sm:$0xff]
      %v1733 = vld [vmem:[%s1713 + $0x98] sm:$0x3f]
      %v1734 = vld [vmem:[%s1713 + $0xa0] sm:$0xff]
      %v1735 = vld [vmem:[%s1713 + $0xa8] sm:$0x3f]
      %v1736 = vld [vmem:[%s1713 + $0xb0] sm:$0xff]
      %v1737 = vld [vmem:[%s1713 + $0xb8] sm:$0x3f]
      %v1738 = vld [vmem:[%s1713 + $0xc0] sm:$0xff]
      %v1739 = vld [vmem:[%s1713 + $0xc8] sm:$0x3f]
      %v1740 = vld [vmem:[%s1713 + $0xd0] sm:$0xff]
      %v1741 = vld [vmem:[%s1713 + $0xd8] sm:$0x3f]
      %v1742 = vperm.slane %v1533, 0
      %v1743 = vmul.f32 %v1714, %v1742
      %v1744 = vmul.f32 %v1715, %v1742
      %v1745 = vmul.f32 %v1716, %v1742
      %v1746 = vmul.f32 %v1717, %v1742
      %v1747 = vmul.f32 %v1718, %v1742
      %v1748 = vmul.f32 %v1719, %v1742
      %v1749 = vmul.f32 %v1720, %v1742
      %v1750 = vmul.f32 %v1721, %v1742
      %v1751 = vmul.f32 %v1722, %v1742
      %v1752 = vmul.f32 %v1723, %v1742
      %v1753 = vmul.f32 %v1724, %v1742
      %v1754 = vmul.f32 %v1725, %v1742
      %v1755 = vmul.f32 %v1726, %v1742
      %v1756 = vmul.f32 %v1727, %v1742
      %v1757 = vmul.f32 %v1728, %v1742
      %v1758 = vmul.f32 %v1729, %v1742
      %v1759 = vmul.f32 %v1730, %v1742
      %v1760 = vmul.f32 %v1731, %v1742
      %v1761 = vmul.f32 %v1732, %v1742
      %v1762 = vmul.f32 %v1733, %v1742
      %v1763 = vmul.f32 %v1734, %v1742
      %v1764 = vmul.f32 %v1735, %v1742
      %v1765 = vmul.f32 %v1736, %v1742
      %v1766 = vmul.f32 %v1737, %v1742
      %v1767 = vmul.f32 %v1738, %v1742
      %v1768 = vmul.f32 %v1739, %v1742
      %v1769 = vmul.f32 %v1740, %v1742
      %v1770 = vmul.f32 %v1741, %v1742
      %v1771 = vadd.f32 %v1685, %v1743
      %v1772 = vadd.f32 %v1686, %v1744
      %v1773 = vadd.f32 %v1687, %v1745
      %v1774 = vadd.f32 %v1688, %v1746
      %v1775 = vadd.f32 %v1689, %v1747
      %v1776 = vadd.f32 %v1690, %v1748
      %v1777 = vadd.f32 %v1691, %v1749
      %v1778 = vadd.f32 %v1692, %v1750
      %v1779 = vadd.f32 %v1693, %v1751
      %v1780 = vadd.f32 %v1694, %v1752
      %v1781 = vadd.f32 %v1695, %v1753
      %v1782 = vadd.f32 %v1696, %v1754
      %v1783 = vadd.f32 %v1697, %v1755
      %v1784 = vadd.f32 %v1698, %v1756
      %v1785 = vadd.f32 %v1699, %v1757
      %v1786 = vadd.f32 %v1700, %v1758
      %v1787 = vadd.f32 %v1701, %v1759
      %v1788 = vadd.f32 %v1702, %v1760
      %v1789 = vadd.f32 %v1703, %v1761
      %v1790 = vadd.f32 %v1704, %v1762
      %v1791 = vadd.f32 %v1705, %v1763
      %v1792 = vadd.f32 %v1706, %v1764
      %v1793 = vadd.f32 %v1707, %v1765
      %v1794 = vadd.f32 %v1708, %v1766
      %v1795 = vadd.f32 %v1709, %v1767
      %v1796 = vadd.f32 %v1710, %v1768
      %v1797 = vadd.f32 %v1711, %v1769
      %v1798 = vadd.f32 %v1712, %v1770
      %s1799 = scalar_lea.vmem [#allocation3], 48
      %v1800 = vld [vmem:[%s1799] sm:$0xff]
      %v1801 = vld [vmem:[%s1799 + $0x8] sm:$0x3f]
      %v1802 = vld [vmem:[%s1799 + $0x10] sm:$0xff]
      %v1803 = vld [vmem:[%s1799 + $0x18] sm:$0x3f]
      %v1804 = vld [vmem:[%s1799 + $0x20] sm:$0xff]
      %v1805 = vld [vmem:[%s1799 + $0x28] sm:$0x3f]
      %v1806 = vld [vmem:[%s1799 + $0x30] sm:$0xff]
      %v1807 = vld [vmem:[%s1799 + $0x38] sm:$0x3f]
      %v1808 = vld [vmem:[%s1799 + $0x40] sm:$0xff]
      %v1809 = vld [vmem:[%s1799 + $0x48] sm:$0x3f]
      %v1810 = vld [vmem:[%s1799 + $0x50] sm:$0xff]
      %v1811 = vld [vmem:[%s1799 + $0x58] sm:$0x3f]
      %v1812 = vld [vmem:[%s1799 + $0x60] sm:$0xff]
      %v1813 = vld [vmem:[%s1799 + $0x68] sm:$0x3f]
      %v1814 = vld [vmem:[%s1799 + $0x70] sm:$0xff]
      %v1815 = vld [vmem:[%s1799 + $0x78] sm:$0x3f]
      %v1816 = vld [vmem:[%s1799 + $0x80] sm:$0xff]
      %v1817 = vld [vmem:[%s1799 + $0x88] sm:$0x3f]
      %v1818 = vld [vmem:[%s1799 + $0x90] sm:$0xff]
      %v1819 = vld [vmem:[%s1799 + $0x98] sm:$0x3f]
      %v1820 = vld [vmem:[%s1799 + $0xa0] sm:$0xff]
      %v1821 = vld [vmem:[%s1799 + $0xa8] sm:$0x3f]
      %v1822 = vld [vmem:[%s1799 + $0xb0] sm:$0xff]
      %v1823 = vld [vmem:[%s1799 + $0xb8] sm:$0x3f]
      %v1824 = vld [vmem:[%s1799 + $0xc0] sm:$0xff]
      %v1825 = vld [vmem:[%s1799 + $0xc8] sm:$0x3f]
      %v1826 = vld [vmem:[%s1799 + $0xd0] sm:$0xff]
      %v1827 = vld [vmem:[%s1799 + $0xd8] sm:$0x3f]
      %v1828 = vperm.slane %v1534, 0
      %v1829 = vmul.f32 %v1800, %v1828
      %v1830 = vmul.f32 %v1801, %v1828
      %v1831 = vmul.f32 %v1802, %v1828
      %v1832 = vmul.f32 %v1803, %v1828
      %v1833 = vmul.f32 %v1804, %v1828
      %v1834 = vmul.f32 %v1805, %v1828
      %v1835 = vmul.f32 %v1806, %v1828
      %v1836 = vmul.f32 %v1807, %v1828
      %v1837 = vmul.f32 %v1808, %v1828
      %v1838 = vmul.f32 %v1809, %v1828
      %v1839 = vmul.f32 %v1810, %v1828
      %v1840 = vmul.f32 %v1811, %v1828
      %v1841 = vmul.f32 %v1812, %v1828
      %v1842 = vmul.f32 %v1813, %v1828
      %v1843 = vmul.f32 %v1814, %v1828
      %v1844 = vmul.f32 %v1815, %v1828
      %v1845 = vmul.f32 %v1816, %v1828
      %v1846 = vmul.f32 %v1817, %v1828
      %v1847 = vmul.f32 %v1818, %v1828
      %v1848 = vmul.f32 %v1819, %v1828
      %v1849 = vmul.f32 %v1820, %v1828
      %v1850 = vmul.f32 %v1821, %v1828
      %v1851 = vmul.f32 %v1822, %v1828
      %v1852 = vmul.f32 %v1823, %v1828
      %v1853 = vmul.f32 %v1824, %v1828
      %v1854 = vmul.f32 %v1825, %v1828
      %v1855 = vmul.f32 %v1826, %v1828
      %v1856 = vmul.f32 %v1827, %v1828
      %v1857 = vadd.f32 %v1771, %v1829
      %v1858 = vadd.f32 %v1772, %v1830
      %v1859 = vadd.f32 %v1773, %v1831
      %v1860 = vadd.f32 %v1774, %v1832
      %v1861 = vadd.f32 %v1775, %v1833
      %v1862 = vadd.f32 %v1776, %v1834
      %v1863 = vadd.f32 %v1777, %v1835
      %v1864 = vadd.f32 %v1778, %v1836
      %v1865 = vadd.f32 %v1779, %v1837
      %v1866 = vadd.f32 %v1780, %v1838
      %v1867 = vadd.f32 %v1781, %v1839
      %v1868 = vadd.f32 %v1782, %v1840
      %v1869 = vadd.f32 %v1783, %v1841
      %v1870 = vadd.f32 %v1784, %v1842
      %v1871 = vadd.f32 %v1785, %v1843
      %v1872 = vadd.f32 %v1786, %v1844
      %v1873 = vadd.f32 %v1787, %v1845
      %v1874 = vadd.f32 %v1788, %v1846
      %v1875 = vadd.f32 %v1789, %v1847
      %v1876 = vadd.f32 %v1790, %v1848
      %v1877 = vadd.f32 %v1791, %v1849
      %v1878 = vadd.f32 %v1792, %v1850
      %v1879 = vadd.f32 %v1793, %v1851
      %v1880 = vadd.f32 %v1794, %v1852
      %v1881 = vadd.f32 %v1795, %v1853
      %v1882 = vadd.f32 %v1796, %v1854
      %v1883 = vadd.f32 %v1797, %v1855
      %v1884 = vadd.f32 %v1798, %v1856
      %s1885 = scalar_lea.vmem [#allocation3], 64
      %v1886 = vld [vmem:[%s1885] sm:$0xff]
      %v1887 = vld [vmem:[%s1885 + $0x8] sm:$0x3f]
      %v1888 = vld [vmem:[%s1885 + $0x10] sm:$0xff]
      %v1889 = vld [vmem:[%s1885 + $0x18] sm:$0x3f]
      %v1890 = vld [vmem:[%s1885 + $0x20] sm:$0xff]
      %v1891 = vld [vmem:[%s1885 + $0x28] sm:$0x3f]
      %v1892 = vld [vmem:[%s1885 + $0x30] sm:$0xff]
      %v1893 = vld [vmem:[%s1885 + $0x38] sm:$0x3f]
      %v1894 = vld [vmem:[%s1885 + $0x40] sm:$0xff]
      %v1895 = vld [vmem:[%s1885 + $0x48] sm:$0x3f]
      %v1896 = vld [vmem:[%s1885 + $0x50] sm:$0xff]
      %v1897 = vld [vmem:[%s1885 + $0x58] sm:$0x3f]
      %v1898 = vld [vmem:[%s1885 + $0x60] sm:$0xff]
      %v1899 = vld [vmem:[%s1885 + $0x68] sm:$0x3f]
      %v1900 = vld [vmem:[%s1885 + $0x70] sm:$0xff]
      %v1901 = vld [vmem:[%s1885 + $0x78] sm:$0x3f]
      %v1902 = vld [vmem:[%s1885 + $0x80] sm:$0xff]
      %v1903 = vld [vmem:[%s1885 + $0x88] sm:$0x3f]
      %v1904 = vld [vmem:[%s1885 + $0x90] sm:$0xff]
      %v1905 = vld [vmem:[%s1885 + $0x98] sm:$0x3f]
      %v1906 = vld [vmem:[%s1885 + $0xa0] sm:$0xff]
      %v1907 = vld [vmem:[%s1885 + $0xa8] sm:$0x3f]
      %v1908 = vld [vmem:[%s1885 + $0xb0] sm:$0xff]
      %v1909 = vld [vmem:[%s1885 + $0xb8] sm:$0x3f]
      %v1910 = vld [vmem:[%s1885 + $0xc0] sm:$0xff]
      %v1911 = vld [vmem:[%s1885 + $0xc8] sm:$0x3f]
      %v1912 = vld [vmem:[%s1885 + $0xd0] sm:$0xff]
      %v1913 = vld [vmem:[%s1885 + $0xd8] sm:$0x3f]
      %v1914 = vperm.slane %v1535, 0
      %v1915 = vmul.f32 %v1886, %v1914
      %v1916 = vmul.f32 %v1887, %v1914
      %v1917 = vmul.f32 %v1888, %v1914
      %v1918 = vmul.f32 %v1889, %v1914
      %v1919 = vmul.f32 %v1890, %v1914
      %v1920 = vmul.f32 %v1891, %v1914
      %v1921 = vmul.f32 %v1892, %v1914
      %v1922 = vmul.f32 %v1893, %v1914
      %v1923 = vmul.f32 %v1894, %v1914
      %v1924 = vmul.f32 %v1895, %v1914
      %v1925 = vmul.f32 %v1896, %v1914
      %v1926 = vmul.f32 %v1897, %v1914
      %v1927 = vmul.f32 %v1898, %v1914
      %v1928 = vmul.f32 %v1899, %v1914
      %v1929 = vmul.f32 %v1900, %v1914
      %v1930 = vmul.f32 %v1901, %v1914
      %v1931 = vmul.f32 %v1902, %v1914
      %v1932 = vmul.f32 %v1903, %v1914
      %v1933 = vmul.f32 %v1904, %v1914
      %v1934 = vmul.f32 %v1905, %v1914
      %v1935 = vmul.f32 %v1906, %v1914
      %v1936 = vmul.f32 %v1907, %v1914
      %v1937 = vmul.f32 %v1908, %v1914
      %v1938 = vmul.f32 %v1909, %v1914
      %v1939 = vmul.f32 %v1910, %v1914
      %v1940 = vmul.f32 %v1911, %v1914
      %v1941 = vmul.f32 %v1912, %v1914
      %v1942 = vmul.f32 %v1913, %v1914
      %v1943 = vadd.f32 %v1857, %v1915
      %v1944 = vadd.f32 %v1858, %v1916
      %v1945 = vadd.f32 %v1859, %v1917
      %v1946 = vadd.f32 %v1860, %v1918
      %v1947 = vadd.f32 %v1861, %v1919
      %v1948 = vadd.f32 %v1862, %v1920
      %v1949 = vadd.f32 %v1863, %v1921
      %v1950 = vadd.f32 %v1864, %v1922
      %v1951 = vadd.f32 %v1865, %v1923
      %v1952 = vadd.f32 %v1866, %v1924
      %v1953 = vadd.f32 %v1867, %v1925
      %v1954 = vadd.f32 %v1868, %v1926
      %v1955 = vadd.f32 %v1869, %v1927
      %v1956 = vadd.f32 %v1870, %v1928
      %v1957 = vadd.f32 %v1871, %v1929
      %v1958 = vadd.f32 %v1872, %v1930
      %v1959 = vadd.f32 %v1873, %v1931
      %v1960 = vadd.f32 %v1874, %v1932
      %v1961 = vadd.f32 %v1875, %v1933
      %v1962 = vadd.f32 %v1876, %v1934
      %v1963 = vadd.f32 %v1877, %v1935
      %v1964 = vadd.f32 %v1878, %v1936
      %v1965 = vadd.f32 %v1879, %v1937
      %v1966 = vadd.f32 %v1880, %v1938
      %v1967 = vadd.f32 %v1881, %v1939
      %v1968 = vadd.f32 %v1882, %v1940
      %v1969 = vadd.f32 %v1883, %v1941
      %v1970 = vadd.f32 %v1884, %v1942
      %s1971 = scalar_lea.vmem [#allocation3], 80
      %v1972 = vld [vmem:[%s1971] sm:$0xff]
      %v1973 = vld [vmem:[%s1971 + $0x8] sm:$0x3f]
      %v1974 = vld [vmem:[%s1971 + $0x10] sm:$0xff]
      %v1975 = vld [vmem:[%s1971 + $0x18] sm:$0x3f]
      %v1976 = vld [vmem:[%s1971 + $0x20] sm:$0xff]
      %v1977 = vld [vmem:[%s1971 + $0x28] sm:$0x3f]
      %v1978 = vld [vmem:[%s1971 + $0x30] sm:$0xff]
      %v1979 = vld [vmem:[%s1971 + $0x38] sm:$0x3f]
      %v1980 = vld [vmem:[%s1971 + $0x40] sm:$0xff]
      %v1981 = vld [vmem:[%s1971 + $0x48] sm:$0x3f]
      %v1982 = vld [vmem:[%s1971 + $0x50] sm:$0xff]
      %v1983 = vld [vmem:[%s1971 + $0x58] sm:$0x3f]
      %v1984 = vld [vmem:[%s1971 + $0x60] sm:$0xff]
      %v1985 = vld [vmem:[%s1971 + $0x68] sm:$0x3f]
      %v1986 = vld [vmem:[%s1971 + $0x70] sm:$0xff]
      %v1987 = vld [vmem:[%s1971 + $0x78] sm:$0x3f]
      %v1988 = vld [vmem:[%s1971 + $0x80] sm:$0xff]
      %v1989 = vld [vmem:[%s1971 + $0x88] sm:$0x3f]
      %v1990 = vld [vmem:[%s1971 + $0x90] sm:$0xff]
      %v1991 = vld [vmem:[%s1971 + $0x98] sm:$0x3f]
      %v1992 = vld [vmem:[%s1971 + $0xa0] sm:$0xff]
      %v1993 = vld [vmem:[%s1971 + $0xa8] sm:$0x3f]
      %v1994 = vld [vmem:[%s1971 + $0xb0] sm:$0xff]
      %v1995 = vld [vmem:[%s1971 + $0xb8] sm:$0x3f]
      %v1996 = vld [vmem:[%s1971 + $0xc0] sm:$0xff]
      %v1997 = vld [vmem:[%s1971 + $0xc8] sm:$0x3f]
      %v1998 = vld [vmem:[%s1971 + $0xd0] sm:$0xff]
      %v1999 = vld [vmem:[%s1971 + $0xd8] sm:$0x3f]
      %v2000 = vperm.slane %v1536, 0
      %v2001 = vmul.f32 %v1972, %v2000
      %v2002 = vmul.f32 %v1973, %v2000
      %v2003 = vmul.f32 %v1974, %v2000
      %v2004 = vmul.f32 %v1975, %v2000
      %v2005 = vmul.f32 %v1976, %v2000
      %v2006 = vmul.f32 %v1977, %v2000
      %v2007 = vmul.f32 %v1978, %v2000
      %v2008 = vmul.f32 %v1979, %v2000
      %v2009 = vmul.f32 %v1980, %v2000
      %v2010 = vmul.f32 %v1981, %v2000
      %v2011 = vmul.f32 %v1982, %v2000
      %v2012 = vmul.f32 %v1983, %v2000
      %v2013 = vmul.f32 %v1984, %v2000
      %v2014 = vmul.f32 %v1985, %v2000
      %v2015 = vmul.f32 %v1986, %v2000
      %v2016 = vmul.f32 %v1987, %v2000
      %v2017 = vmul.f32 %v1988, %v2000
      %v2018 = vmul.f32 %v1989, %v2000
      %v2019 = vmul.f32 %v1990, %v2000
      %v2020 = vmul.f32 %v1991, %v2000
      %v2021 = vmul.f32 %v1992, %v2000
      %v2022 = vmul.f32 %v1993, %v2000
      %v2023 = vmul.f32 %v1994, %v2000
      %v2024 = vmul.f32 %v1995, %v2000
      %v2025 = vmul.f32 %v1996, %v2000
      %v2026 = vmul.f32 %v1997, %v2000
      %v2027 = vmul.f32 %v1998, %v2000
      %v2028 = vmul.f32 %v1999, %v2000
      %v2029 = vadd.f32 %v1943, %v2001
      %v2030 = vadd.f32 %v1944, %v2002
      %v2031 = vadd.f32 %v1945, %v2003
      %v2032 = vadd.f32 %v1946, %v2004
      %v2033 = vadd.f32 %v1947, %v2005
      %v2034 = vadd.f32 %v1948, %v2006
      %v2035 = vadd.f32 %v1949, %v2007
      %v2036 = vadd.f32 %v1950, %v2008
      %v2037 = vadd.f32 %v1951, %v2009
      %v2038 = vadd.f32 %v1952, %v2010
      %v2039 = vadd.f32 %v1953, %v2011
      %v2040 = vadd.f32 %v1954, %v2012
      %v2041 = vadd.f32 %v1955, %v2013
      %v2042 = vadd.f32 %v1956, %v2014
      %v2043 = vadd.f32 %v1957, %v2015
      %v2044 = vadd.f32 %v1958, %v2016
      %v2045 = vadd.f32 %v1959, %v2017
      %v2046 = vadd.f32 %v1960, %v2018
      %v2047 = vadd.f32 %v1961, %v2019
      %v2048 = vadd.f32 %v1962, %v2020
      %v2049 = vadd.f32 %v1963, %v2021
      %v2050 = vadd.f32 %v1964, %v2022
      %v2051 = vadd.f32 %v1965, %v2023
      %v2052 = vadd.f32 %v1966, %v2024
      %v2053 = vadd.f32 %v1967, %v2025
      %v2054 = vadd.f32 %v1968, %v2026
      %v2055 = vadd.f32 %v1969, %v2027
      %v2056 = vadd.f32 %v1970, %v2028
      %s2057 = scalar_lea.vmem [#allocation3], 96
      %v2058 = vld [vmem:[%s2057] sm:$0xff]
      %v2059 = vld [vmem:[%s2057 + $0x8] sm:$0x3f]
      %v2060 = vld [vmem:[%s2057 + $0x10] sm:$0xff]
      %v2061 = vld [vmem:[%s2057 + $0x18] sm:$0x3f]
      %v2062 = vld [vmem:[%s2057 + $0x20] sm:$0xff]
      %v2063 = vld [vmem:[%s2057 + $0x28] sm:$0x3f]
      %v2064 = vld [vmem:[%s2057 + $0x30] sm:$0xff]
      %v2065 = vld [vmem:[%s2057 + $0x38] sm:$0x3f]
      %v2066 = vld [vmem:[%s2057 + $0x40] sm:$0xff]
      %v2067 = vld [vmem:[%s2057 + $0x48] sm:$0x3f]
      %v2068 = vld [vmem:[%s2057 + $0x50] sm:$0xff]
      %v2069 = vld [vmem:[%s2057 + $0x58] sm:$0x3f]
      %v2070 = vld [vmem:[%s2057 + $0x60] sm:$0xff]
      %v2071 = vld [vmem:[%s2057 + $0x68] sm:$0x3f]
      %v2072 = vld [vmem:[%s2057 + $0x70] sm:$0xff]
      %v2073 = vld [vmem:[%s2057 + $0x78] sm:$0x3f]
      %v2074 = vld [vmem:[%s2057 + $0x80] sm:$0xff]
      %v2075 = vld [vmem:[%s2057 + $0x88] sm:$0x3f]
      %v2076 = vld [vmem:[%s2057 + $0x90] sm:$0xff]
      %v2077 = vld [vmem:[%s2057 + $0x98] sm:$0x3f]
      %v2078 = vld [vmem:[%s2057 + $0xa0] sm:$0xff]
      %v2079 = vld [vmem:[%s2057 + $0xa8] sm:$0x3f]
      %v2080 = vld [vmem:[%s2057 + $0xb0] sm:$0xff]
      %v2081 = vld [vmem:[%s2057 + $0xb8] sm:$0x3f]
      %v2082 = vld [vmem:[%s2057 + $0xc0] sm:$0xff]
      %v2083 = vld [vmem:[%s2057 + $0xc8] sm:$0x3f]
      %v2084 = vld [vmem:[%s2057 + $0xd0] sm:$0xff]
      %v2085 = vld [vmem:[%s2057 + $0xd8] sm:$0x3f]
      %v2086 = vperm.slane %v1537, 0
      %v2087 = vmul.f32 %v2058, %v2086
      %v2088 = vmul.f32 %v2059, %v2086
      %v2089 = vmul.f32 %v2060, %v2086
      %v2090 = vmul.f32 %v2061, %v2086
      %v2091 = vmul.f32 %v2062, %v2086
      %v2092 = vmul.f32 %v2063, %v2086
      %v2093 = vmul.f32 %v2064, %v2086
      %v2094 = vmul.f32 %v2065, %v2086
      %v2095 = vmul.f32 %v2066, %v2086
      %v2096 = vmul.f32 %v2067, %v2086
      %v2097 = vmul.f32 %v2068, %v2086
      %v2098 = vmul.f32 %v2069, %v2086
      %v2099 = vmul.f32 %v2070, %v2086
      %v2100 = vmul.f32 %v2071, %v2086
      %v2101 = vmul.f32 %v2072, %v2086
      %v2102 = vmul.f32 %v2073, %v2086
      %v2103 = vmul.f32 %v2074, %v2086
      %v2104 = vmul.f32 %v2075, %v2086
      %v2105 = vmul.f32 %v2076, %v2086
      %v2106 = vmul.f32 %v2077, %v2086
      %v2107 = vmul.f32 %v2078, %v2086
      %v2108 = vmul.f32 %v2079, %v2086
      %v2109 = vmul.f32 %v2080, %v2086
      %v2110 = vmul.f32 %v2081, %v2086
      %v2111 = vmul.f32 %v2082, %v2086
      %v2112 = vmul.f32 %v2083, %v2086
      %v2113 = vmul.f32 %v2084, %v2086
      %v2114 = vmul.f32 %v2085, %v2086
      %v2115 = vadd.f32 %v2029, %v2087
      %v2116 = vadd.f32 %v2030, %v2088
      %v2117 = vadd.f32 %v2031, %v2089
      %v2118 = vadd.f32 %v2032, %v2090
      %v2119 = vadd.f32 %v2033, %v2091
      %v2120 = vadd.f32 %v2034, %v2092
      %v2121 = vadd.f32 %v2035, %v2093
      %v2122 = vadd.f32 %v2036, %v2094
      %v2123 = vadd.f32 %v2037, %v2095
      %v2124 = vadd.f32 %v2038, %v2096
      %v2125 = vadd.f32 %v2039, %v2097
      %v2126 = vadd.f32 %v2040, %v2098
      %v2127 = vadd.f32 %v2041, %v2099
      %v2128 = vadd.f32 %v2042, %v2100
      %v2129 = vadd.f32 %v2043, %v2101
      %v2130 = vadd.f32 %v2044, %v2102
      %v2131 = vadd.f32 %v2045, %v2103
      %v2132 = vadd.f32 %v2046, %v2104
      %v2133 = vadd.f32 %v2047, %v2105
      %v2134 = vadd.f32 %v2048, %v2106
      %v2135 = vadd.f32 %v2049, %v2107
      %v2136 = vadd.f32 %v2050, %v2108
      %v2137 = vadd.f32 %v2051, %v2109
      %v2138 = vadd.f32 %v2052, %v2110
      %v2139 = vadd.f32 %v2053, %v2111
      %v2140 = vadd.f32 %v2054, %v2112
      %v2141 = vadd.f32 %v2055, %v2113
      %v2142 = vadd.f32 %v2056, %v2114
      %v2143 = vld [vmem:[%s868] sm:$0xff]
      %v2144 = vld [vmem:[%s868 + $0x8] sm:$0x3f]
      %v2145 = vld [vmem:[%s868 + $0x10] sm:$0xff]
      %v2146 = vld [vmem:[%s868 + $0x18] sm:$0x3f]
      %v2147 = vld [vmem:[%s868 + $0x20] sm:$0xff]
      %v2148 = vld [vmem:[%s868 + $0x28] sm:$0x3f]
      %v2149 = vld [vmem:[%s868 + $0x30] sm:$0xff]
      %v2150 = vld [vmem:[%s868 + $0x38] sm:$0x3f]
      %v2151 = vld [vmem:[%s868 + $0x40] sm:$0xff]
      %v2152 = vld [vmem:[%s868 + $0x48] sm:$0x3f]
      %v2153 = vld [vmem:[%s868 + $0x50] sm:$0xff]
      %v2154 = vld [vmem:[%s868 + $0x58] sm:$0x3f]
      %v2155 = vld [vmem:[%s868 + $0x60] sm:$0xff]
      %v2156 = vld [vmem:[%s868 + $0x68] sm:$0x3f]
      %v2157 = vld [vmem:[%s868 + $0x70] sm:$0xff]
      %v2158 = vld [vmem:[%s868 + $0x78] sm:$0x3f]
      %v2159 = vld [vmem:[%s868 + $0x80] sm:$0xff]
      %v2160 = vld [vmem:[%s868 + $0x88] sm:$0x3f]
      %v2161 = vld [vmem:[%s868 + $0x90] sm:$0xff]
      %v2162 = vld [vmem:[%s868 + $0x98] sm:$0x3f]
      %v2163 = vld [vmem:[%s868 + $0xa0] sm:$0xff]
      %v2164 = vld [vmem:[%s868 + $0xa8] sm:$0x3f]
      %v2165 = vld [vmem:[%s868 + $0xb0] sm:$0xff]
      %v2166 = vld [vmem:[%s868 + $0xb8] sm:$0x3f]
      %v2167 = vld [vmem:[%s868 + $0xc0] sm:$0xff]
      %v2168 = vld [vmem:[%s868 + $0xc8] sm:$0x3f]
      %v2169 = vld [vmem:[%s868 + $0xd0] sm:$0xff]
      %v2170 = vld [vmem:[%s868 + $0xd8] sm:$0x3f]
      %v2171 = vperm.slane %v1531, 1
      %v2172 = vmul.f32 %v2143, %v2171
      %v2173 = vmul.f32 %v2144, %v2171
      %v2174 = vmul.f32 %v2145, %v2171
      %v2175 = vmul.f32 %v2146, %v2171
      %v2176 = vmul.f32 %v2147, %v2171
      %v2177 = vmul.f32 %v2148, %v2171
      %v2178 = vmul.f32 %v2149, %v2171
      %v2179 = vmul.f32 %v2150, %v2171
      %v2180 = vmul.f32 %v2151, %v2171
      %v2181 = vmul.f32 %v2152, %v2171
      %v2182 = vmul.f32 %v2153, %v2171
      %v2183 = vmul.f32 %v2154, %v2171
      %v2184 = vmul.f32 %v2155, %v2171
      %v2185 = vmul.f32 %v2156, %v2171
      %v2186 = vmul.f32 %v2157, %v2171
      %v2187 = vmul.f32 %v2158, %v2171
      %v2188 = vmul.f32 %v2159, %v2171
      %v2189 = vmul.f32 %v2160, %v2171
      %v2190 = vmul.f32 %v2161, %v2171
      %v2191 = vmul.f32 %v2162, %v2171
      %v2192 = vmul.f32 %v2163, %v2171
      %v2193 = vmul.f32 %v2164, %v2171
      %v2194 = vmul.f32 %v2165, %v2171
      %v2195 = vmul.f32 %v2166, %v2171
      %v2196 = vmul.f32 %v2167, %v2171
      %v2197 = vmul.f32 %v2168, %v2171
      %v2198 = vmul.f32 %v2169, %v2171
      %v2199 = vmul.f32 %v2170, %v2171
      %v2200 = vadd.f32 %v2115, %v2172
      %v2201 = vadd.f32 %v2116, %v2173
      %v2202 = vadd.f32 %v2117, %v2174
      %v2203 = vadd.f32 %v2118, %v2175
      %v2204 = vadd.f32 %v2119, %v2176
      %v2205 = vadd.f32 %v2120, %v2177
      %v2206 = vadd.f32 %v2121, %v2178
      %v2207 = vadd.f32 %v2122, %v2179
      %v2208 = vadd.f32 %v2123, %v2180
      %v2209 = vadd.f32 %v2124, %v2181
      %v2210 = vadd.f32 %v2125, %v2182
      %v2211 = vadd.f32 %v2126, %v2183
      %v2212 = vadd.f32 %v2127, %v2184
      %v2213 = vadd.f32 %v2128, %v2185
      %v2214 = vadd.f32 %v2129, %v2186
      %v2215 = vadd.f32 %v2130, %v2187
      %v2216 = vadd.f32 %v2131, %v2188
      %v2217 = vadd.f32 %v2132, %v2189
      %v2218 = vadd.f32 %v2133, %v2190
      %v2219 = vadd.f32 %v2134, %v2191
      %v2220 = vadd.f32 %v2135, %v2192
      %v2221 = vadd.f32 %v2136, %v2193
      %v2222 = vadd.f32 %v2137, %v2194
      %v2223 = vadd.f32 %v2138, %v2195
      %v2224 = vadd.f32 %v2139, %v2196
      %v2225 = vadd.f32 %v2140, %v2197
      %v2226 = vadd.f32 %v2141, %v2198
      %v2227 = vadd.f32 %v2142, %v2199
      %s2228 = scalar_lea.vmem [#allocation3], 336
      %v2229 = vld [vmem:[%s2228] sm:$0xff]
      %v2230 = vld [vmem:[%s2228 + $0x8] sm:$0x3f]
      %v2231 = vld [vmem:[%s2228 + $0x10] sm:$0xff]
      %v2232 = vld [vmem:[%s2228 + $0x18] sm:$0x3f]
      %v2233 = vld [vmem:[%s2228 + $0x20] sm:$0xff]
      %v2234 = vld [vmem:[%s2228 + $0x28] sm:$0x3f]
      %v2235 = vld [vmem:[%s2228 + $0x30] sm:$0xff]
      %v2236 = vld [vmem:[%s2228 + $0x38] sm:$0x3f]
      %v2237 = vld [vmem:[%s2228 + $0x40] sm:$0xff]
      %v2238 = vld [vmem:[%s2228 + $0x48] sm:$0x3f]
      %v2239 = vld [vmem:[%s2228 + $0x50] sm:$0xff]
      %v2240 = vld [vmem:[%s2228 + $0x58] sm:$0x3f]
      %v2241 = vld [vmem:[%s2228 + $0x60] sm:$0xff]
      %v2242 = vld [vmem:[%s2228 + $0x68] sm:$0x3f]
      %v2243 = vld [vmem:[%s2228 + $0x70] sm:$0xff]
      %v2244 = vld [vmem:[%s2228 + $0x78] sm:$0x3f]
      %v2245 = vld [vmem:[%s2228 + $0x80] sm:$0xff]
      %v2246 = vld [vmem:[%s2228 + $0x88] sm:$0x3f]
      %v2247 = vld [vmem:[%s2228 + $0x90] sm:$0xff]
      %v2248 = vld [vmem:[%s2228 + $0x98] sm:$0x3f]
      %v2249 = vld [vmem:[%s2228 + $0xa0] sm:$0xff]
      %v2250 = vld [vmem:[%s2228 + $0xa8] sm:$0x3f]
      %v2251 = vld [vmem:[%s2228 + $0xb0] sm:$0xff]
      %v2252 = vld [vmem:[%s2228 + $0xb8] sm:$0x3f]
      %v2253 = vld [vmem:[%s2228 + $0xc0] sm:$0xff]
      %v2254 = vld [vmem:[%s2228 + $0xc8] sm:$0x3f]
      %v2255 = vld [vmem:[%s2228 + $0xd0] sm:$0xff]
      %v2256 = vld [vmem:[%s2228 + $0xd8] sm:$0x3f]
      %v2257 = vperm.slane %v1532, 1
      %v2258 = vmul.f32 %v2229, %v2257
      %v2259 = vmul.f32 %v2230, %v2257
      %v2260 = vmul.f32 %v2231, %v2257
      %v2261 = vmul.f32 %v2232, %v2257
      %v2262 = vmul.f32 %v2233, %v2257
      %v2263 = vmul.f32 %v2234, %v2257
      %v2264 = vmul.f32 %v2235, %v2257
      %v2265 = vmul.f32 %v2236, %v2257
      %v2266 = vmul.f32 %v2237, %v2257
      %v2267 = vmul.f32 %v2238, %v2257
      %v2268 = vmul.f32 %v2239, %v2257
      %v2269 = vmul.f32 %v2240, %v2257
      %v2270 = vmul.f32 %v2241, %v2257
      %v2271 = vmul.f32 %v2242, %v2257
      %v2272 = vmul.f32 %v2243, %v2257
      %v2273 = vmul.f32 %v2244, %v2257
      %v2274 = vmul.f32 %v2245, %v2257
      %v2275 = vmul.f32 %v2246, %v2257
      %v2276 = vmul.f32 %v2247, %v2257
      %v2277 = vmul.f32 %v2248, %v2257
      %v2278 = vmul.f32 %v2249, %v2257
      %v2279 = vmul.f32 %v2250, %v2257
      %v2280 = vmul.f32 %v2251, %v2257
      %v2281 = vmul.f32 %v2252, %v2257
      %v2282 = vmul.f32 %v2253, %v2257
      %v2283 = vmul.f32 %v2254, %v2257
      %v2284 = vmul.f32 %v2255, %v2257
      %v2285 = vmul.f32 %v2256, %v2257
      %v2286 = vadd.f32 %v2200, %v2258
      %v2287 = vadd.f32 %v2201, %v2259
      %v2288 = vadd.f32 %v2202, %v2260
      %v2289 = vadd.f32 %v2203, %v2261
      %v2290 = vadd.f32 %v2204, %v2262
      %v2291 = vadd.f32 %v2205, %v2263
      %v2292 = vadd.f32 %v2206, %v2264
      %v2293 = vadd.f32 %v2207, %v2265
      %v2294 = vadd.f32 %v2208, %v2266
      %v2295 = vadd.f32 %v2209, %v2267
      %v2296 = vadd.f32 %v2210, %v2268
      %v2297 = vadd.f32 %v2211, %v2269
      %v2298 = vadd.f32 %v2212, %v2270
      %v2299 = vadd.f32 %v2213, %v2271
      %v2300 = vadd.f32 %v2214, %v2272
      %v2301 = vadd.f32 %v2215, %v2273
      %v2302 = vadd.f32 %v2216, %v2274
      %v2303 = vadd.f32 %v2217, %v2275
      %v2304 = vadd.f32 %v2218, %v2276
      %v2305 = vadd.f32 %v2219, %v2277
      %v2306 = vadd.f32 %v2220, %v2278
      %v2307 = vadd.f32 %v2221, %v2279
      %v2308 = vadd.f32 %v2222, %v2280
      %v2309 = vadd.f32 %v2223, %v2281
      %v2310 = vadd.f32 %v2224, %v2282
      %v2311 = vadd.f32 %v2225, %v2283
      %v2312 = vadd.f32 %v2226, %v2284
      %v2313 = vadd.f32 %v2227, %v2285
      %s2314 = scalar_lea.vmem [#allocation3], 352
      %v2315 = vld [vmem:[%s2314] sm:$0xff]
      %v2316 = vld [vmem:[%s2314 + $0x8] sm:$0x3f]
      %v2317 = vld [vmem:[%s2314 + $0x10] sm:$0xff]
      %v2318 = vld [vmem:[%s2314 + $0x18] sm:$0x3f]
      %v2319 = vld [vmem:[%s2314 + $0x20] sm:$0xff]
      %v2320 = vld [vmem:[%s2314 + $0x28] sm:$0x3f]
      %v2321 = vld [vmem:[%s2314 + $0x30] sm:$0xff]
      %v2322 = vld [vmem:[%s2314 + $0x38] sm:$0x3f]
      %v2323 = vld [vmem:[%s2314 + $0x40] sm:$0xff]
      %v2324 = vld [vmem:[%s2314 + $0x48] sm:$0x3f]
      %v2325 = vld [vmem:[%s2314 + $0x50] sm:$0xff]
      %v2326 = vld [vmem:[%s2314 + $0x58] sm:$0x3f]
      %v2327 = vld [vmem:[%s2314 + $0x60] sm:$0xff]
      %v2328 = vld [vmem:[%s2314 + $0x68] sm:$0x3f]
      %v2329 = vld [vmem:[%s2314 + $0x70] sm:$0xff]
      %v2330 = vld [vmem:[%s2314 + $0x78] sm:$0x3f]
      %v2331 = vld [vmem:[%s2314 + $0x80] sm:$0xff]
      %v2332 = vld [vmem:[%s2314 + $0x88] sm:$0x3f]
      %v2333 = vld [vmem:[%s2314 + $0x90] sm:$0xff]
      %v2334 = vld [vmem:[%s2314 + $0x98] sm:$0x3f]
      %v2335 = vld [vmem:[%s2314 + $0xa0] sm:$0xff]
      %v2336 = vld [vmem:[%s2314 + $0xa8] sm:$0x3f]
      %v2337 = vld [vmem:[%s2314 + $0xb0] sm:$0xff]
      %v2338 = vld [vmem:[%s2314 + $0xb8] sm:$0x3f]
      %v2339 = vld [vmem:[%s2314 + $0xc0] sm:$0xff]
      %v2340 = vld [vmem:[%s2314 + $0xc8] sm:$0x3f]
      %v2341 = vld [vmem:[%s2314 + $0xd0] sm:$0xff]
      %v2342 = vld [vmem:[%s2314 + $0xd8] sm:$0x3f]
      %v2343 = vperm.slane %v1533, 1
      %v2344 = vmul.f32 %v2315, %v2343
      %v2345 = vmul.f32 %v2316, %v2343
      %v2346 = vmul.f32 %v2317, %v2343
      %v2347 = vmul.f32 %v2318, %v2343
      %v2348 = vmul.f32 %v2319, %v2343
      %v2349 = vmul.f32 %v2320, %v2343
      %v2350 = vmul.f32 %v2321, %v2343
      %v2351 = vmul.f32 %v2322, %v2343
      %v2352 = vmul.f32 %v2323, %v2343
      %v2353 = vmul.f32 %v2324, %v2343
      %v2354 = vmul.f32 %v2325, %v2343
      %v2355 = vmul.f32 %v2326, %v2343
      %v2356 = vmul.f32 %v2327, %v2343
      %v2357 = vmul.f32 %v2328, %v2343
      %v2358 = vmul.f32 %v2329, %v2343
      %v2359 = vmul.f32 %v2330, %v2343
      %v2360 = vmul.f32 %v2331, %v2343
      %v2361 = vmul.f32 %v2332, %v2343
      %v2362 = vmul.f32 %v2333, %v2343
      %v2363 = vmul.f32 %v2334, %v2343
      %v2364 = vmul.f32 %v2335, %v2343
      %v2365 = vmul.f32 %v2336, %v2343
      %v2366 = vmul.f32 %v2337, %v2343
      %v2367 = vmul.f32 %v2338, %v2343
      %v2368 = vmul.f32 %v2339, %v2343
      %v2369 = vmul.f32 %v2340, %v2343
      %v2370 = vmul.f32 %v2341, %v2343
      %v2371 = vmul.f32 %v2342, %v2343
      %v2372 = vadd.f32 %v2286, %v2344
      %v2373 = vadd.f32 %v2287, %v2345
      %v2374 = vadd.f32 %v2288, %v2346
      %v2375 = vadd.f32 %v2289, %v2347
      %v2376 = vadd.f32 %v2290, %v2348
      %v2377 = vadd.f32 %v2291, %v2349
      %v2378 = vadd.f32 %v2292, %v2350
      %v2379 = vadd.f32 %v2293, %v2351
      %v2380 = vadd.f32 %v2294, %v2352
      %v2381 = vadd.f32 %v2295, %v2353
      %v2382 = vadd.f32 %v2296, %v2354
      %v2383 = vadd.f32 %v2297, %v2355
      %v2384 = vadd.f32 %v2298, %v2356
      %v2385 = vadd.f32 %v2299, %v2357
      %v2386 = vadd.f32 %v2300, %v2358
      %v2387 = vadd.f32 %v2301, %v2359
      %v2388 = vadd.f32 %v2302, %v2360
      %v2389 = vadd.f32 %v2303, %v2361
      %v2390 = vadd.f32 %v2304, %v2362
      %v2391 = vadd.f32 %v2305, %v2363
      %v2392 = vadd.f32 %v2306, %v2364
      %v2393 = vadd.f32 %v2307, %v2365
      %v2394 = vadd.f32 %v2308, %v2366
      %v2395 = vadd.f32 %v2309, %v2367
      %v2396 = vadd.f32 %v2310, %v2368
      %v2397 = vadd.f32 %v2311, %v2369
      %v2398 = vadd.f32 %v2312, %v2370
      %v2399 = vadd.f32 %v2313, %v2371
      %s2400 = scalar_lea.vmem [#allocation3], 368
      %v2401 = vld [vmem:[%s2400] sm:$0xff]
      %v2402 = vld [vmem:[%s2400 + $0x8] sm:$0x3f]
      %v2403 = vld [vmem:[%s2400 + $0x10] sm:$0xff]
      %v2404 = vld [vmem:[%s2400 + $0x18] sm:$0x3f]
      %v2405 = vld [vmem:[%s2400 + $0x20] sm:$0xff]
      %v2406 = vld [vmem:[%s2400 + $0x28] sm:$0x3f]
      %v2407 = vld [vmem:[%s2400 + $0x30] sm:$0xff]
      %v2408 = vld [vmem:[%s2400 + $0x38] sm:$0x3f]
      %v2409 = vld [vmem:[%s2400 + $0x40] sm:$0xff]
      %v2410 = vld [vmem:[%s2400 + $0x48] sm:$0x3f]
      %v2411 = vld [vmem:[%s2400 + $0x50] sm:$0xff]
      %v2412 = vld [vmem:[%s2400 + $0x58] sm:$0x3f]
      %v2413 = vld [vmem:[%s2400 + $0x60] sm:$0xff]
      %v2414 = vld [vmem:[%s2400 + $0x68] sm:$0x3f]
      %v2415 = vld [vmem:[%s2400 + $0x70] sm:$0xff]
      %v2416 = vld [vmem:[%s2400 + $0x78] sm:$0x3f]
      %v2417 = vld [vmem:[%s2400 + $0x80] sm:$0xff]
      %v2418 = vld [vmem:[%s2400 + $0x88] sm:$0x3f]
      %v2419 = vld [vmem:[%s2400 + $0x90] sm:$0xff]
      %v2420 = vld [vmem:[%s2400 + $0x98] sm:$0x3f]
      %v2421 = vld [vmem:[%s2400 + $0xa0] sm:$0xff]
      %v2422 = vld [vmem:[%s2400 + $0xa8] sm:$0x3f]
      %v2423 = vld [vmem:[%s2400 + $0xb0] sm:$0xff]
      %v2424 = vld [vmem:[%s2400 + $0xb8] sm:$0x3f]
      %v2425 = vld [vmem:[%s2400 + $0xc0] sm:$0xff]
      %v2426 = vld [vmem:[%s2400 + $0xc8] sm:$0x3f]
      %v2427 = vld [vmem:[%s2400 + $0xd0] sm:$0xff]
      %v2428 = vld [vmem:[%s2400 + $0xd8] sm:$0x3f]
      %v2429 = vperm.slane %v1534, 1
      %v2430 = vmul.f32 %v2401, %v2429
      %v2431 = vmul.f32 %v2402, %v2429
      %v2432 = vmul.f32 %v2403, %v2429
      %v2433 = vmul.f32 %v2404, %v2429
      %v2434 = vmul.f32 %v2405, %v2429
      %v2435 = vmul.f32 %v2406, %v2429
      %v2436 = vmul.f32 %v2407, %v2429
      %v2437 = vmul.f32 %v2408, %v2429
      %v2438 = vmul.f32 %v2409, %v2429
      %v2439 = vmul.f32 %v2410, %v2429
      %v2440 = vmul.f32 %v2411, %v2429
      %v2441 = vmul.f32 %v2412, %v2429
      %v2442 = vmul.f32 %v2413, %v2429
      %v2443 = vmul.f32 %v2414, %v2429
      %v2444 = vmul.f32 %v2415, %v2429
      %v2445 = vmul.f32 %v2416, %v2429
      %v2446 = vmul.f32 %v2417, %v2429
      %v2447 = vmul.f32 %v2418, %v2429
      %v2448 = vmul.f32 %v2419, %v2429
      %v2449 = vmul.f32 %v2420, %v2429
      %v2450 = vmul.f32 %v2421, %v2429
      %v2451 = vmul.f32 %v2422, %v2429
      %v2452 = vmul.f32 %v2423, %v2429
      %v2453 = vmul.f32 %v2424, %v2429
      %v2454 = vmul.f32 %v2425, %v2429
      %v2455 = vmul.f32 %v2426, %v2429
      %v2456 = vmul.f32 %v2427, %v2429
      %v2457 = vmul.f32 %v2428, %v2429
      %v2458 = vadd.f32 %v2372, %v2430
      %v2459 = vadd.f32 %v2373, %v2431
      %v2460 = vadd.f32 %v2374, %v2432
      %v2461 = vadd.f32 %v2375, %v2433
      %v2462 = vadd.f32 %v2376, %v2434
      %v2463 = vadd.f32 %v2377, %v2435
      %v2464 = vadd.f32 %v2378, %v2436
      %v2465 = vadd.f32 %v2379, %v2437
      %v2466 = vadd.f32 %v2380, %v2438
      %v2467 = vadd.f32 %v2381, %v2439
      %v2468 = vadd.f32 %v2382, %v2440
      %v2469 = vadd.f32 %v2383, %v2441
      %v2470 = vadd.f32 %v2384, %v2442
      %v2471 = vadd.f32 %v2385, %v2443
      %v2472 = vadd.f32 %v2386, %v2444
      %v2473 = vadd.f32 %v2387, %v2445
      %v2474 = vadd.f32 %v2388, %v2446
      %v2475 = vadd.f32 %v2389, %v2447
      %v2476 = vadd.f32 %v2390, %v2448
      %v2477 = vadd.f32 %v2391, %v2449
      %v2478 = vadd.f32 %v2392, %v2450
      %v2479 = vadd.f32 %v2393, %v2451
      %v2480 = vadd.f32 %v2394, %v2452
      %v2481 = vadd.f32 %v2395, %v2453
      %v2482 = vadd.f32 %v2396, %v2454
      %v2483 = vadd.f32 %v2397, %v2455
      %v2484 = vadd.f32 %v2398, %v2456
      %v2485 = vadd.f32 %v2399, %v2457
      %s2486 = scalar_lea.vmem [#allocation3], 384
      %v2487 = vld [vmem:[%s2486] sm:$0xff]
      %v2488 = vld [vmem:[%s2486 + $0x8] sm:$0x3f]
      %v2489 = vld [vmem:[%s2486 + $0x10] sm:$0xff]
      %v2490 = vld [vmem:[%s2486 + $0x18] sm:$0x3f]
      %v2491 = vld [vmem:[%s2486 + $0x20] sm:$0xff]
      %v2492 = vld [vmem:[%s2486 + $0x28] sm:$0x3f]
      %v2493 = vld [vmem:[%s2486 + $0x30] sm:$0xff]
      %v2494 = vld [vmem:[%s2486 + $0x38] sm:$0x3f]
      %v2495 = vld [vmem:[%s2486 + $0x40] sm:$0xff]
      %v2496 = vld [vmem:[%s2486 + $0x48] sm:$0x3f]
      %v2497 = vld [vmem:[%s2486 + $0x50] sm:$0xff]
      %v2498 = vld [vmem:[%s2486 + $0x58] sm:$0x3f]
      %v2499 = vld [vmem:[%s2486 + $0x60] sm:$0xff]
      %v2500 = vld [vmem:[%s2486 + $0x68] sm:$0x3f]
      %v2501 = vld [vmem:[%s2486 + $0x70] sm:$0xff]
      %v2502 = vld [vmem:[%s2486 + $0x78] sm:$0x3f]
      %v2503 = vld [vmem:[%s2486 + $0x80] sm:$0xff]
      %v2504 = vld [vmem:[%s2486 + $0x88] sm:$0x3f]
      %v2505 = vld [vmem:[%s2486 + $0x90] sm:$0xff]
      %v2506 = vld [vmem:[%s2486 + $0x98] sm:$0x3f]
      %v2507 = vld [vmem:[%s2486 + $0xa0] sm:$0xff]
      %v2508 = vld [vmem:[%s2486 + $0xa8] sm:$0x3f]
      %v2509 = vld [vmem:[%s2486 + $0xb0] sm:$0xff]
      %v2510 = vld [vmem:[%s2486 + $0xb8] sm:$0x3f]
      %v2511 = vld [vmem:[%s2486 + $0xc0] sm:$0xff]
      %v2512 = vld [vmem:[%s2486 + $0xc8] sm:$0x3f]
      %v2513 = vld [vmem:[%s2486 + $0xd0] sm:$0xff]
      %v2514 = vld [vmem:[%s2486 + $0xd8] sm:$0x3f]
      %v2515 = vperm.slane %v1535, 1
      %v2516 = vmul.f32 %v2487, %v2515
      %v2517 = vmul.f32 %v2488, %v2515
      %v2518 = vmul.f32 %v2489, %v2515
      %v2519 = vmul.f32 %v2490, %v2515
      %v2520 = vmul.f32 %v2491, %v2515
      %v2521 = vmul.f32 %v2492, %v2515
      %v2522 = vmul.f32 %v2493, %v2515
      %v2523 = vmul.f32 %v2494, %v2515
      %v2524 = vmul.f32 %v2495, %v2515
      %v2525 = vmul.f32 %v2496, %v2515
      %v2526 = vmul.f32 %v2497, %v2515
      %v2527 = vmul.f32 %v2498, %v2515
      %v2528 = vmul.f32 %v2499, %v2515
      %v2529 = vmul.f32 %v2500, %v2515
      %v2530 = vmul.f32 %v2501, %v2515
      %v2531 = vmul.f32 %v2502, %v2515
      %v2532 = vmul.f32 %v2503, %v2515
      %v2533 = vmul.f32 %v2504, %v2515
      %v2534 = vmul.f32 %v2505, %v2515
      %v2535 = vmul.f32 %v2506, %v2515
      %v2536 = vmul.f32 %v2507, %v2515
      %v2537 = vmul.f32 %v2508, %v2515
      %v2538 = vmul.f32 %v2509, %v2515
      %v2539 = vmul.f32 %v2510, %v2515
      %v2540 = vmul.f32 %v2511, %v2515
      %v2541 = vmul.f32 %v2512, %v2515
      %v2542 = vmul.f32 %v2513, %v2515
      %v2543 = vmul.f32 %v2514, %v2515
      %v2544 = vadd.f32 %v2458, %v2516
      %v2545 = vadd.f32 %v2459, %v2517
      %v2546 = vadd.f32 %v2460, %v2518
      %v2547 = vadd.f32 %v2461, %v2519
      %v2548 = vadd.f32 %v2462, %v2520
      %v2549 = vadd.f32 %v2463, %v2521
      %v2550 = vadd.f32 %v2464, %v2522
      %v2551 = vadd.f32 %v2465, %v2523
      %v2552 = vadd.f32 %v2466, %v2524
      %v2553 = vadd.f32 %v2467, %v2525
      %v2554 = vadd.f32 %v2468, %v2526
      %v2555 = vadd.f32 %v2469, %v2527
      %v2556 = vadd.f32 %v2470, %v2528
      %v2557 = vadd.f32 %v2471, %v2529
      %v2558 = vadd.f32 %v2472, %v2530
      %v2559 = vadd.f32 %v2473, %v2531
      %v2560 = vadd.f32 %v2474, %v2532
      %v2561 = vadd.f32 %v2475, %v2533
      %v2562 = vadd.f32 %v2476, %v2534
      %v2563 = vadd.f32 %v2477, %v2535
      %v2564 = vadd.f32 %v2478, %v2536
      %v2565 = vadd.f32 %v2479, %v2537
      %v2566 = vadd.f32 %v2480, %v2538
      %v2567 = vadd.f32 %v2481, %v2539
      %v2568 = vadd.f32 %v2482, %v2540
      %v2569 = vadd.f32 %v2483, %v2541
      %v2570 = vadd.f32 %v2484, %v2542
      %v2571 = vadd.f32 %v2485, %v2543
      %s2572 = scalar_lea.vmem [#allocation3], 400
      %v2573 = vld [vmem:[%s2572] sm:$0xff]
      %v2574 = vld [vmem:[%s2572 + $0x8] sm:$0x3f]
      %v2575 = vld [vmem:[%s2572 + $0x10] sm:$0xff]
      %v2576 = vld [vmem:[%s2572 + $0x18] sm:$0x3f]
      %v2577 = vld [vmem:[%s2572 + $0x20] sm:$0xff]
      %v2578 = vld [vmem:[%s2572 + $0x28] sm:$0x3f]
      %v2579 = vld [vmem:[%s2572 + $0x30] sm:$0xff]
      %v2580 = vld [vmem:[%s2572 + $0x38] sm:$0x3f]
      %v2581 = vld [vmem:[%s2572 + $0x40] sm:$0xff]
      %v2582 = vld [vmem:[%s2572 + $0x48] sm:$0x3f]
      %v2583 = vld [vmem:[%s2572 + $0x50] sm:$0xff]
      %v2584 = vld [vmem:[%s2572 + $0x58] sm:$0x3f]
      %v2585 = vld [vmem:[%s2572 + $0x60] sm:$0xff]
      %v2586 = vld [vmem:[%s2572 + $0x68] sm:$0x3f]
      %v2587 = vld [vmem:[%s2572 + $0x70] sm:$0xff]
      %v2588 = vld [vmem:[%s2572 + $0x78] sm:$0x3f]
      %v2589 = vld [vmem:[%s2572 + $0x80] sm:$0xff]
      %v2590 = vld [vmem:[%s2572 + $0x88] sm:$0x3f]
      %v2591 = vld [vmem:[%s2572 + $0x90] sm:$0xff]
      %v2592 = vld [vmem:[%s2572 + $0x98] sm:$0x3f]
      %v2593 = vld [vmem:[%s2572 + $0xa0] sm:$0xff]
      %v2594 = vld [vmem:[%s2572 + $0xa8] sm:$0x3f]
      %v2595 = vld [vmem:[%s2572 + $0xb0] sm:$0xff]
      %v2596 = vld [vmem:[%s2572 + $0xb8] sm:$0x3f]
      %v2597 = vld [vmem:[%s2572 + $0xc0] sm:$0xff]
      %v2598 = vld [vmem:[%s2572 + $0xc8] sm:$0x3f]
      %v2599 = vld [vmem:[%s2572 + $0xd0] sm:$0xff]
      %v2600 = vld [vmem:[%s2572 + $0xd8] sm:$0x3f]
      %v2601 = vperm.slane %v1536, 1
      %v2602 = vmul.f32 %v2573, %v2601
      %v2603 = vmul.f32 %v2574, %v2601
      %v2604 = vmul.f32 %v2575, %v2601
      %v2605 = vmul.f32 %v2576, %v2601
      %v2606 = vmul.f32 %v2577, %v2601
      %v2607 = vmul.f32 %v2578, %v2601
      %v2608 = vmul.f32 %v2579, %v2601
      %v2609 = vmul.f32 %v2580, %v2601
      %v2610 = vmul.f32 %v2581, %v2601
      %v2611 = vmul.f32 %v2582, %v2601
      %v2612 = vmul.f32 %v2583, %v2601
      %v2613 = vmul.f32 %v2584, %v2601
      %v2614 = vmul.f32 %v2585, %v2601
      %v2615 = vmul.f32 %v2586, %v2601
      %v2616 = vmul.f32 %v2587, %v2601
      %v2617 = vmul.f32 %v2588, %v2601
      %v2618 = vmul.f32 %v2589, %v2601
      %v2619 = vmul.f32 %v2590, %v2601
      %v2620 = vmul.f32 %v2591, %v2601
      %v2621 = vmul.f32 %v2592, %v2601
      %v2622 = vmul.f32 %v2593, %v2601
      %v2623 = vmul.f32 %v2594, %v2601
      %v2624 = vmul.f32 %v2595, %v2601
      %v2625 = vmul.f32 %v2596, %v2601
      %v2626 = vmul.f32 %v2597, %v2601
      %v2627 = vmul.f32 %v2598, %v2601
      %v2628 = vmul.f32 %v2599, %v2601
      %v2629 = vmul.f32 %v2600, %v2601
      %v2630 = vadd.f32 %v2544, %v2602
      %v2631 = vadd.f32 %v2545, %v2603
      %v2632 = vadd.f32 %v2546, %v2604
      %v2633 = vadd.f32 %v2547, %v2605
      %v2634 = vadd.f32 %v2548, %v2606
      %v2635 = vadd.f32 %v2549, %v2607
      %v2636 = vadd.f32 %v2550, %v2608
      %v2637 = vadd.f32 %v2551, %v2609
      %v2638 = vadd.f32 %v2552, %v2610
      %v2639 = vadd.f32 %v2553, %v2611
      %v2640 = vadd.f32 %v2554, %v2612
      %v2641 = vadd.f32 %v2555, %v2613
      %v2642 = vadd.f32 %v2556, %v2614
      %v2643 = vadd.f32 %v2557, %v2615
      %v2644 = vadd.f32 %v2558, %v2616
      %v2645 = vadd.f32 %v2559, %v2617
      %v2646 = vadd.f32 %v2560, %v2618
      %v2647 = vadd.f32 %v2561, %v2619
      %v2648 = vadd.f32 %v2562, %v2620
      %v2649 = vadd.f32 %v2563, %v2621
      %v2650 = vadd.f32 %v2564, %v2622
      %v2651 = vadd.f32 %v2565, %v2623
      %v2652 = vadd.f32 %v2566, %v2624
      %v2653 = vadd.f32 %v2567, %v2625
      %v2654 = vadd.f32 %v2568, %v2626
      %v2655 = vadd.f32 %v2569, %v2627
      %v2656 = vadd.f32 %v2570, %v2628
      %v2657 = vadd.f32 %v2571, %v2629
      %s2658 = scalar_lea.vmem [#allocation3], 416
      %v2659 = vld [vmem:[%s2658] sm:$0xff]
      %v2660 = vld [vmem:[%s2658 + $0x8] sm:$0x3f]
      %v2661 = vld [vmem:[%s2658 + $0x10] sm:$0xff]
      %v2662 = vld [vmem:[%s2658 + $0x18] sm:$0x3f]
      %v2663 = vld [vmem:[%s2658 + $0x20] sm:$0xff]
      %v2664 = vld [vmem:[%s2658 + $0x28] sm:$0x3f]
      %v2665 = vld [vmem:[%s2658 + $0x30] sm:$0xff]
      %v2666 = vld [vmem:[%s2658 + $0x38] sm:$0x3f]
      %v2667 = vld [vmem:[%s2658 + $0x40] sm:$0xff]
      %v2668 = vld [vmem:[%s2658 + $0x48] sm:$0x3f]
      %v2669 = vld [vmem:[%s2658 + $0x50] sm:$0xff]
      %v2670 = vld [vmem:[%s2658 + $0x58] sm:$0x3f]
      %v2671 = vld [vmem:[%s2658 + $0x60] sm:$0xff]
      %v2672 = vld [vmem:[%s2658 + $0x68] sm:$0x3f]
      %v2673 = vld [vmem:[%s2658 + $0x70] sm:$0xff]
      %v2674 = vld [vmem:[%s2658 + $0x78] sm:$0x3f]
      %v2675 = vld [vmem:[%s2658 + $0x80] sm:$0xff]
      %v2676 = vld [vmem:[%s2658 + $0x88] sm:$0x3f]
      %v2677 = vld [vmem:[%s2658 + $0x90] sm:$0xff]
      %v2678 = vld [vmem:[%s2658 + $0x98] sm:$0x3f]
      %v2679 = vld [vmem:[%s2658 + $0xa0] sm:$0xff]
      %v2680 = vld [vmem:[%s2658 + $0xa8] sm:$0x3f]
      %v2681 = vld [vmem:[%s2658 + $0xb0] sm:$0xff]
      %v2682 = vld [vmem:[%s2658 + $0xb8] sm:$0x3f]
      %v2683 = vld [vmem:[%s2658 + $0xc0] sm:$0xff]
      %v2684 = vld [vmem:[%s2658 + $0xc8] sm:$0x3f]
      %v2685 = vld [vmem:[%s2658 + $0xd0] sm:$0xff]
      %v2686 = vld [vmem:[%s2658 + $0xd8] sm:$0x3f]
      %v2687 = vperm.slane %v1537, 1
      %v2688 = vmul.f32 %v2659, %v2687
      %v2689 = vmul.f32 %v2660, %v2687
      %v2690 = vmul.f32 %v2661, %v2687
      %v2691 = vmul.f32 %v2662, %v2687
      %v2692 = vmul.f32 %v2663, %v2687
      %v2693 = vmul.f32 %v2664, %v2687
      %v2694 = vmul.f32 %v2665, %v2687
      %v2695 = vmul.f32 %v2666, %v2687
      %v2696 = vmul.f32 %v2667, %v2687
      %v2697 = vmul.f32 %v2668, %v2687
      %v2698 = vmul.f32 %v2669, %v2687
      %v2699 = vmul.f32 %v2670, %v2687
      %v2700 = vmul.f32 %v2671, %v2687
      %v2701 = vmul.f32 %v2672, %v2687
      %v2702 = vmul.f32 %v2673, %v2687
      %v2703 = vmul.f32 %v2674, %v2687
      %v2704 = vmul.f32 %v2675, %v2687
      %v2705 = vmul.f32 %v2676, %v2687
      %v2706 = vmul.f32 %v2677, %v2687
      %v2707 = vmul.f32 %v2678, %v2687
      %v2708 = vmul.f32 %v2679, %v2687
      %v2709 = vmul.f32 %v2680, %v2687
      %v2710 = vmul.f32 %v2681, %v2687
      %v2711 = vmul.f32 %v2682, %v2687
      %v2712 = vmul.f32 %v2683, %v2687
      %v2713 = vmul.f32 %v2684, %v2687
      %v2714 = vmul.f32 %v2685, %v2687
      %v2715 = vmul.f32 %v2686, %v2687
      %v2716 = vadd.f32 %v2630, %v2688
      %v2717 = vadd.f32 %v2631, %v2689
      %v2718 = vadd.f32 %v2632, %v2690
      %v2719 = vadd.f32 %v2633, %v2691
      %v2720 = vadd.f32 %v2634, %v2692
      %v2721 = vadd.f32 %v2635, %v2693
      %v2722 = vadd.f32 %v2636, %v2694
      %v2723 = vadd.f32 %v2637, %v2695
      %v2724 = vadd.f32 %v2638, %v2696
      %v2725 = vadd.f32 %v2639, %v2697
      %v2726 = vadd.f32 %v2640, %v2698
      %v2727 = vadd.f32 %v2641, %v2699
      %v2728 = vadd.f32 %v2642, %v2700
      %v2729 = vadd.f32 %v2643, %v2701
      %v2730 = vadd.f32 %v2644, %v2702
      %v2731 = vadd.f32 %v2645, %v2703
      %v2732 = vadd.f32 %v2646, %v2704
      %v2733 = vadd.f32 %v2647, %v2705
      %v2734 = vadd.f32 %v2648, %v2706
      %v2735 = vadd.f32 %v2649, %v2707
      %v2736 = vadd.f32 %v2650, %v2708
      %v2737 = vadd.f32 %v2651, %v2709
      %v2738 = vadd.f32 %v2652, %v2710
      %v2739 = vadd.f32 %v2653, %v2711
      %v2740 = vadd.f32 %v2654, %v2712
      %v2741 = vadd.f32 %v2655, %v2713
      %v2742 = vadd.f32 %v2656, %v2714
      %v2743 = vadd.f32 %v2657, %v2715
      %v2744 = vld [vmem:[%s976] sm:$0xff]
      %v2745 = vld [vmem:[%s976 + $0x8] sm:$0x3f]
      %v2746 = vld [vmem:[%s976 + $0x10] sm:$0xff]
      %v2747 = vld [vmem:[%s976 + $0x18] sm:$0x3f]
      %v2748 = vld [vmem:[%s976 + $0x20] sm:$0xff]
      %v2749 = vld [vmem:[%s976 + $0x28] sm:$0x3f]
      %v2750 = vld [vmem:[%s976 + $0x30] sm:$0xff]
      %v2751 = vld [vmem:[%s976 + $0x38] sm:$0x3f]
      %v2752 = vld [vmem:[%s976 + $0x40] sm:$0xff]
      %v2753 = vld [vmem:[%s976 + $0x48] sm:$0x3f]
      %v2754 = vld [vmem:[%s976 + $0x50] sm:$0xff]
      %v2755 = vld [vmem:[%s976 + $0x58] sm:$0x3f]
      %v2756 = vld [vmem:[%s976 + $0x60] sm:$0xff]
      %v2757 = vld [vmem:[%s976 + $0x68] sm:$0x3f]
      %v2758 = vld [vmem:[%s976 + $0x70] sm:$0xff]
      %v2759 = vld [vmem:[%s976 + $0x78] sm:$0x3f]
      %v2760 = vld [vmem:[%s976 + $0x80] sm:$0xff]
      %v2761 = vld [vmem:[%s976 + $0x88] sm:$0x3f]
      %v2762 = vld [vmem:[%s976 + $0x90] sm:$0xff]
      %v2763 = vld [vmem:[%s976 + $0x98] sm:$0x3f]
      %v2764 = vld [vmem:[%s976 + $0xa0] sm:$0xff]
      %v2765 = vld [vmem:[%s976 + $0xa8] sm:$0x3f]
      %v2766 = vld [vmem:[%s976 + $0xb0] sm:$0xff]
      %v2767 = vld [vmem:[%s976 + $0xb8] sm:$0x3f]
      %v2768 = vld [vmem:[%s976 + $0xc0] sm:$0xff]
      %v2769 = vld [vmem:[%s976 + $0xc8] sm:$0x3f]
      %v2770 = vld [vmem:[%s976 + $0xd0] sm:$0xff]
      %v2771 = vld [vmem:[%s976 + $0xd8] sm:$0x3f]
      %v2772 = vperm.slane %v1531, 2
      %v2773 = vmul.f32 %v2744, %v2772
      %v2774 = vmul.f32 %v2745, %v2772
      %v2775 = vmul.f32 %v2746, %v2772
      %v2776 = vmul.f32 %v2747, %v2772
      %v2777 = vmul.f32 %v2748, %v2772
      %v2778 = vmul.f32 %v2749, %v2772
      %v2779 = vmul.f32 %v2750, %v2772
      %v2780 = vmul.f32 %v2751, %v2772
      %v2781 = vmul.f32 %v2752, %v2772
      %v2782 = vmul.f32 %v2753, %v2772
      %v2783 = vmul.f32 %v2754, %v2772
      %v2784 = vmul.f32 %v2755, %v2772
      %v2785 = vmul.f32 %v2756, %v2772
      %v2786 = vmul.f32 %v2757, %v2772
      %v2787 = vmul.f32 %v2758, %v2772
      %v2788 = vmul.f32 %v2759, %v2772
      %v2789 = vmul.f32 %v2760, %v2772
      %v2790 = vmul.f32 %v2761, %v2772
      %v2791 = vmul.f32 %v2762, %v2772
      %v2792 = vmul.f32 %v2763, %v2772
      %v2793 = vmul.f32 %v2764, %v2772
      %v2794 = vmul.f32 %v2765, %v2772
      %v2795 = vmul.f32 %v2766, %v2772
      %v2796 = vmul.f32 %v2767, %v2772
      %v2797 = vmul.f32 %v2768, %v2772
      %v2798 = vmul.f32 %v2769, %v2772
      %v2799 = vmul.f32 %v2770, %v2772
      %v2800 = vmul.f32 %v2771, %v2772
      %v2801 = vadd.f32 %v2716, %v2773
      %v2802 = vadd.f32 %v2717, %v2774
      %v2803 = vadd.f32 %v2718, %v2775
      %v2804 = vadd.f32 %v2719, %v2776
      %v2805 = vadd.f32 %v2720, %v2777
      %v2806 = vadd.f32 %v2721, %v2778
      %v2807 = vadd.f32 %v2722, %v2779
      %v2808 = vadd.f32 %v2723, %v2780
      %v2809 = vadd.f32 %v2724, %v2781
      %v2810 = vadd.f32 %v2725, %v2782
      %v2811 = vadd.f32 %v2726, %v2783
      %v2812 = vadd.f32 %v2727, %v2784
      %v2813 = vadd.f32 %v2728, %v2785
      %v2814 = vadd.f32 %v2729, %v2786
      %v2815 = vadd.f32 %v2730, %v2787
      %v2816 = vadd.f32 %v2731, %v2788
      %v2817 = vadd.f32 %v2732, %v2789
      %v2818 = vadd.f32 %v2733, %v2790
      %v2819 = vadd.f32 %v2734, %v2791
      %v2820 = vadd.f32 %v2735, %v2792
      %v2821 = vadd.f32 %v2736, %v2793
      %v2822 = vadd.f32 %v2737, %v2794
      %v2823 = vadd.f32 %v2738, %v2795
      %v2824 = vadd.f32 %v2739, %v2796
      %v2825 = vadd.f32 %v2740, %v2797
      %v2826 = vadd.f32 %v2741, %v2798
      %v2827 = vadd.f32 %v2742, %v2799
      %v2828 = vadd.f32 %v2743, %v2800
      %s2829 = scalar_lea.vmem [#allocation3], 656
      %v2830 = vld [vmem:[%s2829] sm:$0xff]
      %v2831 = vld [vmem:[%s2829 + $0x8] sm:$0x3f]
      %v2832 = vld [vmem:[%s2829 + $0x10] sm:$0xff]
      %v2833 = vld [vmem:[%s2829 + $0x18] sm:$0x3f]
      %v2834 = vld [vmem:[%s2829 + $0x20] sm:$0xff]
      %v2835 = vld [vmem:[%s2829 + $0x28] sm:$0x3f]
      %v2836 = vld [vmem:[%s2829 + $0x30] sm:$0xff]
      %v2837 = vld [vmem:[%s2829 + $0x38] sm:$0x3f]
      %v2838 = vld [vmem:[%s2829 + $0x40] sm:$0xff]
      %v2839 = vld [vmem:[%s2829 + $0x48] sm:$0x3f]
      %v2840 = vld [vmem:[%s2829 + $0x50] sm:$0xff]
      %v2841 = vld [vmem:[%s2829 + $0x58] sm:$0x3f]
      %v2842 = vld [vmem:[%s2829 + $0x60] sm:$0xff]
      %v2843 = vld [vmem:[%s2829 + $0x68] sm:$0x3f]
      %v2844 = vld [vmem:[%s2829 + $0x70] sm:$0xff]
      %v2845 = vld [vmem:[%s2829 + $0x78] sm:$0x3f]
      %v2846 = vld [vmem:[%s2829 + $0x80] sm:$0xff]
      %v2847 = vld [vmem:[%s2829 + $0x88] sm:$0x3f]
      %v2848 = vld [vmem:[%s2829 + $0x90] sm:$0xff]
      %v2849 = vld [vmem:[%s2829 + $0x98] sm:$0x3f]
      %v2850 = vld [vmem:[%s2829 + $0xa0] sm:$0xff]
      %v2851 = vld [vmem:[%s2829 + $0xa8] sm:$0x3f]
      %v2852 = vld [vmem:[%s2829 + $0xb0] sm:$0xff]
      %v2853 = vld [vmem:[%s2829 + $0xb8] sm:$0x3f]
      %v2854 = vld [vmem:[%s2829 + $0xc0] sm:$0xff]
      %v2855 = vld [vmem:[%s2829 + $0xc8] sm:$0x3f]
      %v2856 = vld [vmem:[%s2829 + $0xd0] sm:$0xff]
      %v2857 = vld [vmem:[%s2829 + $0xd8] sm:$0x3f]
      %v2858 = vperm.slane %v1532, 2
      %v2859 = vmul.f32 %v2830, %v2858
      %v2860 = vmul.f32 %v2831, %v2858
      %v2861 = vmul.f32 %v2832, %v2858
      %v2862 = vmul.f32 %v2833, %v2858
      %v2863 = vmul.f32 %v2834, %v2858
      %v2864 = vmul.f32 %v2835, %v2858
      %v2865 = vmul.f32 %v2836, %v2858
      %v2866 = vmul.f32 %v2837, %v2858
      %v2867 = vmul.f32 %v2838, %v2858
      %v2868 = vmul.f32 %v2839, %v2858
      %v2869 = vmul.f32 %v2840, %v2858
      %v2870 = vmul.f32 %v2841, %v2858
      %v2871 = vmul.f32 %v2842, %v2858
      %v2872 = vmul.f32 %v2843, %v2858
      %v2873 = vmul.f32 %v2844, %v2858
      %v2874 = vmul.f32 %v2845, %v2858
      %v2875 = vmul.f32 %v2846, %v2858
      %v2876 = vmul.f32 %v2847, %v2858
      %v2877 = vmul.f32 %v2848, %v2858
      %v2878 = vmul.f32 %v2849, %v2858
      %v2879 = vmul.f32 %v2850, %v2858
      %v2880 = vmul.f32 %v2851, %v2858
      %v2881 = vmul.f32 %v2852, %v2858
      %v2882 = vmul.f32 %v2853, %v2858
      %v2883 = vmul.f32 %v2854, %v2858
      %v2884 = vmul.f32 %v2855, %v2858
      %v2885 = vmul.f32 %v2856, %v2858
      %v2886 = vmul.f32 %v2857, %v2858
      %v2887 = vadd.f32 %v2801, %v2859
      %v2888 = vadd.f32 %v2802, %v2860
      %v2889 = vadd.f32 %v2803, %v2861
      %v2890 = vadd.f32 %v2804, %v2862
      %v2891 = vadd.f32 %v2805, %v2863
      %v2892 = vadd.f32 %v2806, %v2864
      %v2893 = vadd.f32 %v2807, %v2865
      %v2894 = vadd.f32 %v2808, %v2866
      %v2895 = vadd.f32 %v2809, %v2867
      %v2896 = vadd.f32 %v2810, %v2868
      %v2897 = vadd.f32 %v2811, %v2869
      %v2898 = vadd.f32 %v2812, %v2870
      %v2899 = vadd.f32 %v2813, %v2871
      %v2900 = vadd.f32 %v2814, %v2872
      %v2901 = vadd.f32 %v2815, %v2873
      %v2902 = vadd.f32 %v2816, %v2874
      %v2903 = vadd.f32 %v2817, %v2875
      %v2904 = vadd.f32 %v2818, %v2876
      %v2905 = vadd.f32 %v2819, %v2877
      %v2906 = vadd.f32 %v2820, %v2878
      %v2907 = vadd.f32 %v2821, %v2879
      %v2908 = vadd.f32 %v2822, %v2880
      %v2909 = vadd.f32 %v2823, %v2881
      %v2910 = vadd.f32 %v2824, %v2882
      %v2911 = vadd.f32 %v2825, %v2883
      %v2912 = vadd.f32 %v2826, %v2884
      %v2913 = vadd.f32 %v2827, %v2885
      %v2914 = vadd.f32 %v2828, %v2886
      %s2915 = scalar_lea.vmem [#allocation3], 672
      %v2916 = vld [vmem:[%s2915] sm:$0xff]
      %v2917 = vld [vmem:[%s2915 + $0x8] sm:$0x3f]
      %v2918 = vld [vmem:[%s2915 + $0x10] sm:$0xff]
      %v2919 = vld [vmem:[%s2915 + $0x18] sm:$0x3f]
      %v2920 = vld [vmem:[%s2915 + $0x20] sm:$0xff]
      %v2921 = vld [vmem:[%s2915 + $0x28] sm:$0x3f]
      %v2922 = vld [vmem:[%s2915 + $0x30] sm:$0xff]
      %v2923 = vld [vmem:[%s2915 + $0x38] sm:$0x3f]
      %v2924 = vld [vmem:[%s2915 + $0x40] sm:$0xff]
      %v2925 = vld [vmem:[%s2915 + $0x48] sm:$0x3f]
      %v2926 = vld [vmem:[%s2915 + $0x50] sm:$0xff]
      %v2927 = vld [vmem:[%s2915 + $0x58] sm:$0x3f]
      %v2928 = vld [vmem:[%s2915 + $0x60] sm:$0xff]
      %v2929 = vld [vmem:[%s2915 + $0x68] sm:$0x3f]
      %v2930 = vld [vmem:[%s2915 + $0x70] sm:$0xff]
      %v2931 = vld [vmem:[%s2915 + $0x78] sm:$0x3f]
      %v2932 = vld [vmem:[%s2915 + $0x80] sm:$0xff]
      %v2933 = vld [vmem:[%s2915 + $0x88] sm:$0x3f]
      %v2934 = vld [vmem:[%s2915 + $0x90] sm:$0xff]
      %v2935 = vld [vmem:[%s2915 + $0x98] sm:$0x3f]
      %v2936 = vld [vmem:[%s2915 + $0xa0] sm:$0xff]
      %v2937 = vld [vmem:[%s2915 + $0xa8] sm:$0x3f]
      %v2938 = vld [vmem:[%s2915 + $0xb0] sm:$0xff]
      %v2939 = vld [vmem:[%s2915 + $0xb8] sm:$0x3f]
      %v2940 = vld [vmem:[%s2915 + $0xc0] sm:$0xff]
      %v2941 = vld [vmem:[%s2915 + $0xc8] sm:$0x3f]
      %v2942 = vld [vmem:[%s2915 + $0xd0] sm:$0xff]
      %v2943 = vld [vmem:[%s2915 + $0xd8] sm:$0x3f]
      %v2944 = vperm.slane %v1533, 2
      %v2945 = vmul.f32 %v2916, %v2944
      %v2946 = vmul.f32 %v2917, %v2944
      %v2947 = vmul.f32 %v2918, %v2944
      %v2948 = vmul.f32 %v2919, %v2944
      %v2949 = vmul.f32 %v2920, %v2944
      %v2950 = vmul.f32 %v2921, %v2944
      %v2951 = vmul.f32 %v2922, %v2944
      %v2952 = vmul.f32 %v2923, %v2944
      %v2953 = vmul.f32 %v2924, %v2944
      %v2954 = vmul.f32 %v2925, %v2944
      %v2955 = vmul.f32 %v2926, %v2944
      %v2956 = vmul.f32 %v2927, %v2944
      %v2957 = vmul.f32 %v2928, %v2944
      %v2958 = vmul.f32 %v2929, %v2944
      %v2959 = vmul.f32 %v2930, %v2944
      %v2960 = vmul.f32 %v2931, %v2944
      %v2961 = vmul.f32 %v2932, %v2944
      %v2962 = vmul.f32 %v2933, %v2944
      %v2963 = vmul.f32 %v2934, %v2944
      %v2964 = vmul.f32 %v2935, %v2944
      %v2965 = vmul.f32 %v2936, %v2944
      %v2966 = vmul.f32 %v2937, %v2944
      %v2967 = vmul.f32 %v2938, %v2944
      %v2968 = vmul.f32 %v2939, %v2944
      %v2969 = vmul.f32 %v2940, %v2944
      %v2970 = vmul.f32 %v2941, %v2944
      %v2971 = vmul.f32 %v2942, %v2944
      %v2972 = vmul.f32 %v2943, %v2944
      %v2973 = vadd.f32 %v2887, %v2945
      %v2974 = vadd.f32 %v2888, %v2946
      %v2975 = vadd.f32 %v2889, %v2947
      %v2976 = vadd.f32 %v2890, %v2948
      %v2977 = vadd.f32 %v2891, %v2949
      %v2978 = vadd.f32 %v2892, %v2950
      %v2979 = vadd.f32 %v2893, %v2951
      %v2980 = vadd.f32 %v2894, %v2952
      %v2981 = vadd.f32 %v2895, %v2953
      %v2982 = vadd.f32 %v2896, %v2954
      %v2983 = vadd.f32 %v2897, %v2955
      %v2984 = vadd.f32 %v2898, %v2956
      %v2985 = vadd.f32 %v2899, %v2957
      %v2986 = vadd.f32 %v2900, %v2958
      %v2987 = vadd.f32 %v2901, %v2959
      %v2988 = vadd.f32 %v2902, %v2960
      %v2989 = vadd.f32 %v2903, %v2961
      %v2990 = vadd.f32 %v2904, %v2962
      %v2991 = vadd.f32 %v2905, %v2963
      %v2992 = vadd.f32 %v2906, %v2964
      %v2993 = vadd.f32 %v2907, %v2965
      %v2994 = vadd.f32 %v2908, %v2966
      %v2995 = vadd.f32 %v2909, %v2967
      %v2996 = vadd.f32 %v2910, %v2968
      %v2997 = vadd.f32 %v2911, %v2969
      %v2998 = vadd.f32 %v2912, %v2970
      %v2999 = vadd.f32 %v2913, %v2971
      %v3000 = vadd.f32 %v2914, %v2972
      %s3001 = scalar_lea.vmem [#allocation3], 688
      %v3002 = vld [vmem:[%s3001] sm:$0xff]
      %v3003 = vld [vmem:[%s3001 + $0x8] sm:$0x3f]
      %v3004 = vld [vmem:[%s3001 + $0x10] sm:$0xff]
      %v3005 = vld [vmem:[%s3001 + $0x18] sm:$0x3f]
      %v3006 = vld [vmem:[%s3001 + $0x20] sm:$0xff]
      %v3007 = vld [vmem:[%s3001 + $0x28] sm:$0x3f]
      %v3008 = vld [vmem:[%s3001 + $0x30] sm:$0xff]
      %v3009 = vld [vmem:[%s3001 + $0x38] sm:$0x3f]
      %v3010 = vld [vmem:[%s3001 + $0x40] sm:$0xff]
      %v3011 = vld [vmem:[%s3001 + $0x48] sm:$0x3f]
      %v3012 = vld [vmem:[%s3001 + $0x50] sm:$0xff]
      %v3013 = vld [vmem:[%s3001 + $0x58] sm:$0x3f]
      %v3014 = vld [vmem:[%s3001 + $0x60] sm:$0xff]
      %v3015 = vld [vmem:[%s3001 + $0x68] sm:$0x3f]
      %v3016 = vld [vmem:[%s3001 + $0x70] sm:$0xff]
      %v3017 = vld [vmem:[%s3001 + $0x78] sm:$0x3f]
      %v3018 = vld [vmem:[%s3001 + $0x80] sm:$0xff]
      %v3019 = vld [vmem:[%s3001 + $0x88] sm:$0x3f]
      %v3020 = vld [vmem:[%s3001 + $0x90] sm:$0xff]
      %v3021 = vld [vmem:[%s3001 + $0x98] sm:$0x3f]
      %v3022 = vld [vmem:[%s3001 + $0xa0] sm:$0xff]
      %v3023 = vld [vmem:[%s3001 + $0xa8] sm:$0x3f]
      %v3024 = vld [vmem:[%s3001 + $0xb0] sm:$0xff]
      %v3025 = vld [vmem:[%s3001 + $0xb8] sm:$0x3f]
      %v3026 = vld [vmem:[%s3001 + $0xc0] sm:$0xff]
      %v3027 = vld [vmem:[%s3001 + $0xc8] sm:$0x3f]
      %v3028 = vld [vmem:[%s3001 + $0xd0] sm:$0xff]
      %v3029 = vld [vmem:[%s3001 + $0xd8] sm:$0x3f]
      %v3030 = vperm.slane %v1534, 2
      %v3031 = vmul.f32 %v3002, %v3030
      %v3032 = vmul.f32 %v3003, %v3030
      %v3033 = vmul.f32 %v3004, %v3030
      %v3034 = vmul.f32 %v3005, %v3030
      %v3035 = vmul.f32 %v3006, %v3030
      %v3036 = vmul.f32 %v3007, %v3030
      %v3037 = vmul.f32 %v3008, %v3030
      %v3038 = vmul.f32 %v3009, %v3030
      %v3039 = vmul.f32 %v3010, %v3030
      %v3040 = vmul.f32 %v3011, %v3030
      %v3041 = vmul.f32 %v3012, %v3030
      %v3042 = vmul.f32 %v3013, %v3030
      %v3043 = vmul.f32 %v3014, %v3030
      %v3044 = vmul.f32 %v3015, %v3030
      %v3045 = vmul.f32 %v3016, %v3030
      %v3046 = vmul.f32 %v3017, %v3030
      %v3047 = vmul.f32 %v3018, %v3030
      %v3048 = vmul.f32 %v3019, %v3030
      %v3049 = vmul.f32 %v3020, %v3030
      %v3050 = vmul.f32 %v3021, %v3030
      %v3051 = vmul.f32 %v3022, %v3030
      %v3052 = vmul.f32 %v3023, %v3030
      %v3053 = vmul.f32 %v3024, %v3030
      %v3054 = vmul.f32 %v3025, %v3030
      %v3055 = vmul.f32 %v3026, %v3030
      %v3056 = vmul.f32 %v3027, %v3030
      %v3057 = vmul.f32 %v3028, %v3030
      %v3058 = vmul.f32 %v3029, %v3030
      %v3059 = vadd.f32 %v2973, %v3031
      %v3060 = vadd.f32 %v2974, %v3032
      %v3061 = vadd.f32 %v2975, %v3033
      %v3062 = vadd.f32 %v2976, %v3034
      %v3063 = vadd.f32 %v2977, %v3035
      %v3064 = vadd.f32 %v2978, %v3036
      %v3065 = vadd.f32 %v2979, %v3037
      %v3066 = vadd.f32 %v2980, %v3038
      %v3067 = vadd.f32 %v2981, %v3039
      %v3068 = vadd.f32 %v2982, %v3040
      %v3069 = vadd.f32 %v2983, %v3041
      %v3070 = vadd.f32 %v2984, %v3042
      %v3071 = vadd.f32 %v2985, %v3043
      %v3072 = vadd.f32 %v2986, %v3044
      %v3073 = vadd.f32 %v2987, %v3045
      %v3074 = vadd.f32 %v2988, %v3046
      %v3075 = vadd.f32 %v2989, %v3047
      %v3076 = vadd.f32 %v2990, %v3048
      %v3077 = vadd.f32 %v2991, %v3049
      %v3078 = vadd.f32 %v2992, %v3050
      %v3079 = vadd.f32 %v2993, %v3051
      %v3080 = vadd.f32 %v2994, %v3052
      %v3081 = vadd.f32 %v2995, %v3053
      %v3082 = vadd.f32 %v2996, %v3054
      %v3083 = vadd.f32 %v2997, %v3055
      %v3084 = vadd.f32 %v2998, %v3056
      %v3085 = vadd.f32 %v2999, %v3057
      %v3086 = vadd.f32 %v3000, %v3058
      %s3087 = scalar_lea.vmem [#allocation3], 704
      %v3088 = vld [vmem:[%s3087] sm:$0xff]
      %v3089 = vld [vmem:[%s3087 + $0x8] sm:$0x3f]
      %v3090 = vld [vmem:[%s3087 + $0x10] sm:$0xff]
      %v3091 = vld [vmem:[%s3087 + $0x18] sm:$0x3f]
      %v3092 = vld [vmem:[%s3087 + $0x20] sm:$0xff]
      %v3093 = vld [vmem:[%s3087 + $0x28] sm:$0x3f]
      %v3094 = vld [vmem:[%s3087 + $0x30] sm:$0xff]
      %v3095 = vld [vmem:[%s3087 + $0x38] sm:$0x3f]
      %v3096 = vld [vmem:[%s3087 + $0x40] sm:$0xff]
      %v3097 = vld [vmem:[%s3087 + $0x48] sm:$0x3f]
      %v3098 = vld [vmem:[%s3087 + $0x50] sm:$0xff]
      %v3099 = vld [vmem:[%s3087 + $0x58] sm:$0x3f]
      %v3100 = vld [vmem:[%s3087 + $0x60] sm:$0xff]
      %v3101 = vld [vmem:[%s3087 + $0x68] sm:$0x3f]
      %v3102 = vld [vmem:[%s3087 + $0x70] sm:$0xff]
      %v3103 = vld [vmem:[%s3087 + $0x78] sm:$0x3f]
      %v3104 = vld [vmem:[%s3087 + $0x80] sm:$0xff]
      %v3105 = vld [vmem:[%s3087 + $0x88] sm:$0x3f]
      %v3106 = vld [vmem:[%s3087 + $0x90] sm:$0xff]
      %v3107 = vld [vmem:[%s3087 + $0x98] sm:$0x3f]
      %v3108 = vld [vmem:[%s3087 + $0xa0] sm:$0xff]
      %v3109 = vld [vmem:[%s3087 + $0xa8] sm:$0x3f]
      %v3110 = vld [vmem:[%s3087 + $0xb0] sm:$0xff]
      %v3111 = vld [vmem:[%s3087 + $0xb8] sm:$0x3f]
      %v3112 = vld [vmem:[%s3087 + $0xc0] sm:$0xff]
      %v3113 = vld [vmem:[%s3087 + $0xc8] sm:$0x3f]
      %v3114 = vld [vmem:[%s3087 + $0xd0] sm:$0xff]
      %v3115 = vld [vmem:[%s3087 + $0xd8] sm:$0x3f]
      %v3116 = vperm.slane %v1535, 2
      %v3117 = vmul.f32 %v3088, %v3116
      %v3118 = vmul.f32 %v3089, %v3116
      %v3119 = vmul.f32 %v3090, %v3116
      %v3120 = vmul.f32 %v3091, %v3116
      %v3121 = vmul.f32 %v3092, %v3116
      %v3122 = vmul.f32 %v3093, %v3116
      %v3123 = vmul.f32 %v3094, %v3116
      %v3124 = vmul.f32 %v3095, %v3116
      %v3125 = vmul.f32 %v3096, %v3116
      %v3126 = vmul.f32 %v3097, %v3116
      %v3127 = vmul.f32 %v3098, %v3116
      %v3128 = vmul.f32 %v3099, %v3116
      %v3129 = vmul.f32 %v3100, %v3116
      %v3130 = vmul.f32 %v3101, %v3116
      %v3131 = vmul.f32 %v3102, %v3116
      %v3132 = vmul.f32 %v3103, %v3116
      %v3133 = vmul.f32 %v3104, %v3116
      %v3134 = vmul.f32 %v3105, %v3116
      %v3135 = vmul.f32 %v3106, %v3116
      %v3136 = vmul.f32 %v3107, %v3116
      %v3137 = vmul.f32 %v3108, %v3116
      %v3138 = vmul.f32 %v3109, %v3116
      %v3139 = vmul.f32 %v3110, %v3116
      %v3140 = vmul.f32 %v3111, %v3116
      %v3141 = vmul.f32 %v3112, %v3116
      %v3142 = vmul.f32 %v3113, %v3116
      %v3143 = vmul.f32 %v3114, %v3116
      %v3144 = vmul.f32 %v3115, %v3116
      %v3145 = vadd.f32 %v3059, %v3117
      %v3146 = vadd.f32 %v3060, %v3118
      %v3147 = vadd.f32 %v3061, %v3119
      %v3148 = vadd.f32 %v3062, %v3120
      %v3149 = vadd.f32 %v3063, %v3121
      %v3150 = vadd.f32 %v3064, %v3122
      %v3151 = vadd.f32 %v3065, %v3123
      %v3152 = vadd.f32 %v3066, %v3124
      %v3153 = vadd.f32 %v3067, %v3125
      %v3154 = vadd.f32 %v3068, %v3126
      %v3155 = vadd.f32 %v3069, %v3127
      %v3156 = vadd.f32 %v3070, %v3128
      %v3157 = vadd.f32 %v3071, %v3129
      %v3158 = vadd.f32 %v3072, %v3130
      %v3159 = vadd.f32 %v3073, %v3131
      %v3160 = vadd.f32 %v3074, %v3132
      %v3161 = vadd.f32 %v3075, %v3133
      %v3162 = vadd.f32 %v3076, %v3134
      %v3163 = vadd.f32 %v3077, %v3135
      %v3164 = vadd.f32 %v3078, %v3136
      %v3165 = vadd.f32 %v3079, %v3137
      %v3166 = vadd.f32 %v3080, %v3138
      %v3167 = vadd.f32 %v3081, %v3139
      %v3168 = vadd.f32 %v3082, %v3140
      %v3169 = vadd.f32 %v3083, %v3141
      %v3170 = vadd.f32 %v3084, %v3142
      %v3171 = vadd.f32 %v3085, %v3143
      %v3172 = vadd.f32 %v3086, %v3144
      %s3173 = scalar_lea.vmem [#allocation3], 720
      %v3174 = vld [vmem:[%s3173] sm:$0xff]
      %v3175 = vld [vmem:[%s3173 + $0x8] sm:$0x3f]
      %v3176 = vld [vmem:[%s3173 + $0x10] sm:$0xff]
      %v3177 = vld [vmem:[%s3173 + $0x18] sm:$0x3f]
      %v3178 = vld [vmem:[%s3173 + $0x20] sm:$0xff]
      %v3179 = vld [vmem:[%s3173 + $0x28] sm:$0x3f]
      %v3180 = vld [vmem:[%s3173 + $0x30] sm:$0xff]
      %v3181 = vld [vmem:[%s3173 + $0x38] sm:$0x3f]
      %v3182 = vld [vmem:[%s3173 + $0x40] sm:$0xff]
      %v3183 = vld [vmem:[%s3173 + $0x48] sm:$0x3f]
      %v3184 = vld [vmem:[%s3173 + $0x50] sm:$0xff]
      %v3185 = vld [vmem:[%s3173 + $0x58] sm:$0x3f]
      %v3186 = vld [vmem:[%s3173 + $0x60] sm:$0xff]
      %v3187 = vld [vmem:[%s3173 + $0x68] sm:$0x3f]
      %v3188 = vld [vmem:[%s3173 + $0x70] sm:$0xff]
      %v3189 = vld [vmem:[%s3173 + $0x78] sm:$0x3f]
      %v3190 = vld [vmem:[%s3173 + $0x80] sm:$0xff]
      %v3191 = vld [vmem:[%s3173 + $0x88] sm:$0x3f]
      %v3192 = vld [vmem:[%s3173 + $0x90] sm:$0xff]
      %v3193 = vld [vmem:[%s3173 + $0x98] sm:$0x3f]
      %v3194 = vld [vmem:[%s3173 + $0xa0] sm:$0xff]
      %v3195 = vld [vmem:[%s3173 + $0xa8] sm:$0x3f]
      %v3196 = vld [vmem:[%s3173 + $0xb0] sm:$0xff]
      %v3197 = vld [vmem:[%s3173 + $0xb8] sm:$0x3f]
      %v3198 = vld [vmem:[%s3173 + $0xc0] sm:$0xff]
      %v3199 = vld [vmem:[%s3173 + $0xc8] sm:$0x3f]
      %v3200 = vld [vmem:[%s3173 + $0xd0] sm:$0xff]
      %v3201 = vld [vmem:[%s3173 + $0xd8] sm:$0x3f]
      %v3202 = vperm.slane %v1536, 2
      %v3203 = vmul.f32 %v3174, %v3202
      %v3204 = vmul.f32 %v3175, %v3202
      %v3205 = vmul.f32 %v3176, %v3202
      %v3206 = vmul.f32 %v3177, %v3202
      %v3207 = vmul.f32 %v3178, %v3202
      %v3208 = vmul.f32 %v3179, %v3202
      %v3209 = vmul.f32 %v3180, %v3202
      %v3210 = vmul.f32 %v3181, %v3202
      %v3211 = vmul.f32 %v3182, %v3202
      %v3212 = vmul.f32 %v3183, %v3202
      %v3213 = vmul.f32 %v3184, %v3202
      %v3214 = vmul.f32 %v3185, %v3202
      %v3215 = vmul.f32 %v3186, %v3202
      %v3216 = vmul.f32 %v3187, %v3202
      %v3217 = vmul.f32 %v3188, %v3202
      %v3218 = vmul.f32 %v3189, %v3202
      %v3219 = vmul.f32 %v3190, %v3202
      %v3220 = vmul.f32 %v3191, %v3202
      %v3221 = vmul.f32 %v3192, %v3202
      %v3222 = vmul.f32 %v3193, %v3202
      %v3223 = vmul.f32 %v3194, %v3202
      %v3224 = vmul.f32 %v3195, %v3202
      %v3225 = vmul.f32 %v3196, %v3202
      %v3226 = vmul.f32 %v3197, %v3202
      %v3227 = vmul.f32 %v3198, %v3202
      %v3228 = vmul.f32 %v3199, %v3202
      %v3229 = vmul.f32 %v3200, %v3202
      %v3230 = vmul.f32 %v3201, %v3202
      %v3231 = vadd.f32 %v3145, %v3203
      %v3232 = vadd.f32 %v3146, %v3204
      %v3233 = vadd.f32 %v3147, %v3205
      %v3234 = vadd.f32 %v3148, %v3206
      %v3235 = vadd.f32 %v3149, %v3207
      %v3236 = vadd.f32 %v3150, %v3208
      %v3237 = vadd.f32 %v3151, %v3209
      %v3238 = vadd.f32 %v3152, %v3210
      %v3239 = vadd.f32 %v3153, %v3211
      %v3240 = vadd.f32 %v3154, %v3212
      %v3241 = vadd.f32 %v3155, %v3213
      %v3242 = vadd.f32 %v3156, %v3214
      %v3243 = vadd.f32 %v3157, %v3215
      %v3244 = vadd.f32 %v3158, %v3216
      %v3245 = vadd.f32 %v3159, %v3217
      %v3246 = vadd.f32 %v3160, %v3218
      %v3247 = vadd.f32 %v3161, %v3219
      %v3248 = vadd.f32 %v3162, %v3220
      %v3249 = vadd.f32 %v3163, %v3221
      %v3250 = vadd.f32 %v3164, %v3222
      %v3251 = vadd.f32 %v3165, %v3223
      %v3252 = vadd.f32 %v3166, %v3224
      %v3253 = vadd.f32 %v3167, %v3225
      %v3254 = vadd.f32 %v3168, %v3226
      %v3255 = vadd.f32 %v3169, %v3227
      %v3256 = vadd.f32 %v3170, %v3228
      %v3257 = vadd.f32 %v3171, %v3229
      %v3258 = vadd.f32 %v3172, %v3230
      %s3259 = scalar_lea.vmem [#allocation3], 736
      %v3260 = vld [vmem:[%s3259] sm:$0xff]
      %v3261 = vld [vmem:[%s3259 + $0x8] sm:$0x3f]
      %v3262 = vld [vmem:[%s3259 + $0x10] sm:$0xff]
      %v3263 = vld [vmem:[%s3259 + $0x18] sm:$0x3f]
      %v3264 = vld [vmem:[%s3259 + $0x20] sm:$0xff]
      %v3265 = vld [vmem:[%s3259 + $0x28] sm:$0x3f]
      %v3266 = vld [vmem:[%s3259 + $0x30] sm:$0xff]
      %v3267 = vld [vmem:[%s3259 + $0x38] sm:$0x3f]
      %v3268 = vld [vmem:[%s3259 + $0x40] sm:$0xff]
      %v3269 = vld [vmem:[%s3259 + $0x48] sm:$0x3f]
      %v3270 = vld [vmem:[%s3259 + $0x50] sm:$0xff]
      %v3271 = vld [vmem:[%s3259 + $0x58] sm:$0x3f]
      %v3272 = vld [vmem:[%s3259 + $0x60] sm:$0xff]
      %v3273 = vld [vmem:[%s3259 + $0x68] sm:$0x3f]
      %v3274 = vld [vmem:[%s3259 + $0x70] sm:$0xff]
      %v3275 = vld [vmem:[%s3259 + $0x78] sm:$0x3f]
      %v3276 = vld [vmem:[%s3259 + $0x80] sm:$0xff]
      %v3277 = vld [vmem:[%s3259 + $0x88] sm:$0x3f]
      %v3278 = vld [vmem:[%s3259 + $0x90] sm:$0xff]
      %v3279 = vld [vmem:[%s3259 + $0x98] sm:$0x3f]
      %v3280 = vld [vmem:[%s3259 + $0xa0] sm:$0xff]
      %v3281 = vld [vmem:[%s3259 + $0xa8] sm:$0x3f]
      %v3282 = vld [vmem:[%s3259 + $0xb0] sm:$0xff]
      %v3283 = vld [vmem:[%s3259 + $0xb8] sm:$0x3f]
      %v3284 = vld [vmem:[%s3259 + $0xc0] sm:$0xff]
      %v3285 = vld [vmem:[%s3259 + $0xc8] sm:$0x3f]
      %v3286 = vld [vmem:[%s3259 + $0xd0] sm:$0xff]
      %v3287 = vld [vmem:[%s3259 + $0xd8] sm:$0x3f]
      %v3288 = vperm.slane %v1537, 2
      %v3289 = vmul.f32 %v3260, %v3288
      %v3290 = vmul.f32 %v3261, %v3288
      %v3291 = vmul.f32 %v3262, %v3288
      %v3292 = vmul.f32 %v3263, %v3288
      %v3293 = vmul.f32 %v3264, %v3288
      %v3294 = vmul.f32 %v3265, %v3288
      %v3295 = vmul.f32 %v3266, %v3288
      %v3296 = vmul.f32 %v3267, %v3288
      %v3297 = vmul.f32 %v3268, %v3288
      %v3298 = vmul.f32 %v3269, %v3288
      %v3299 = vmul.f32 %v3270, %v3288
      %v3300 = vmul.f32 %v3271, %v3288
      %v3301 = vmul.f32 %v3272, %v3288
      %v3302 = vmul.f32 %v3273, %v3288
      %v3303 = vmul.f32 %v3274, %v3288
      %v3304 = vmul.f32 %v3275, %v3288
      %v3305 = vmul.f32 %v3276, %v3288
      %v3306 = vmul.f32 %v3277, %v3288
      %v3307 = vmul.f32 %v3278, %v3288
      %v3308 = vmul.f32 %v3279, %v3288
      %v3309 = vmul.f32 %v3280, %v3288
      %v3310 = vmul.f32 %v3281, %v3288
      %v3311 = vmul.f32 %v3282, %v3288
      %v3312 = vmul.f32 %v3283, %v3288
      %v3313 = vmul.f32 %v3284, %v3288
      %v3314 = vmul.f32 %v3285, %v3288
      %v3315 = vmul.f32 %v3286, %v3288
      %v3316 = vmul.f32 %v3287, %v3288
      %v3317 = vadd.f32 %v3231, %v3289
      %v3318 = vadd.f32 %v3232, %v3290
      %v3319 = vadd.f32 %v3233, %v3291
      %v3320 = vadd.f32 %v3234, %v3292
      %v3321 = vadd.f32 %v3235, %v3293
      %v3322 = vadd.f32 %v3236, %v3294
      %v3323 = vadd.f32 %v3237, %v3295
      %v3324 = vadd.f32 %v3238, %v3296
      %v3325 = vadd.f32 %v3239, %v3297
      %v3326 = vadd.f32 %v3240, %v3298
      %v3327 = vadd.f32 %v3241, %v3299
      %v3328 = vadd.f32 %v3242, %v3300
      %v3329 = vadd.f32 %v3243, %v3301
      %v3330 = vadd.f32 %v3244, %v3302
      %v3331 = vadd.f32 %v3245, %v3303
      %v3332 = vadd.f32 %v3246, %v3304
      %v3333 = vadd.f32 %v3247, %v3305
      %v3334 = vadd.f32 %v3248, %v3306
      %v3335 = vadd.f32 %v3249, %v3307
      %v3336 = vadd.f32 %v3250, %v3308
      %v3337 = vadd.f32 %v3251, %v3309
      %v3338 = vadd.f32 %v3252, %v3310
      %v3339 = vadd.f32 %v3253, %v3311
      %v3340 = vadd.f32 %v3254, %v3312
      %v3341 = vadd.f32 %v3255, %v3313
      %v3342 = vadd.f32 %v3256, %v3314
      %v3343 = vadd.f32 %v3257, %v3315
      %v3344 = vadd.f32 %v3258, %v3316
      %v3345 = vld [vmem:[%s1084] sm:$0xff]
      %v3346 = vld [vmem:[%s1084 + $0x8] sm:$0x3f]
      %v3347 = vld [vmem:[%s1084 + $0x10] sm:$0xff]
      %v3348 = vld [vmem:[%s1084 + $0x18] sm:$0x3f]
      %v3349 = vld [vmem:[%s1084 + $0x20] sm:$0xff]
      %v3350 = vld [vmem:[%s1084 + $0x28] sm:$0x3f]
      %v3351 = vld [vmem:[%s1084 + $0x30] sm:$0xff]
      %v3352 = vld [vmem:[%s1084 + $0x38] sm:$0x3f]
      %v3353 = vld [vmem:[%s1084 + $0x40] sm:$0xff]
      %v3354 = vld [vmem:[%s1084 + $0x48] sm:$0x3f]
      %v3355 = vld [vmem:[%s1084 + $0x50] sm:$0xff]
      %v3356 = vld [vmem:[%s1084 + $0x58] sm:$0x3f]
      %v3357 = vld [vmem:[%s1084 + $0x60] sm:$0xff]
      %v3358 = vld [vmem:[%s1084 + $0x68] sm:$0x3f]
      %v3359 = vld [vmem:[%s1084 + $0x70] sm:$0xff]
      %v3360 = vld [vmem:[%s1084 + $0x78] sm:$0x3f]
      %v3361 = vld [vmem:[%s1084 + $0x80] sm:$0xff]
      %v3362 = vld [vmem:[%s1084 + $0x88] sm:$0x3f]
      %v3363 = vld [vmem:[%s1084 + $0x90] sm:$0xff]
      %v3364 = vld [vmem:[%s1084 + $0x98] sm:$0x3f]
      %v3365 = vld [vmem:[%s1084 + $0xa0] sm:$0xff]
      %v3366 = vld [vmem:[%s1084 + $0xa8] sm:$0x3f]
      %v3367 = vld [vmem:[%s1084 + $0xb0] sm:$0xff]
      %v3368 = vld [vmem:[%s1084 + $0xb8] sm:$0x3f]
      %v3369 = vld [vmem:[%s1084 + $0xc0] sm:$0xff]
      %v3370 = vld [vmem:[%s1084 + $0xc8] sm:$0x3f]
      %v3371 = vld [vmem:[%s1084 + $0xd0] sm:$0xff]
      %v3372 = vld [vmem:[%s1084 + $0xd8] sm:$0x3f]
      %v3373 = vperm.slane %v1531, 3
      %v3374 = vmul.f32 %v3345, %v3373
      %v3375 = vmul.f32 %v3346, %v3373
      %v3376 = vmul.f32 %v3347, %v3373
      %v3377 = vmul.f32 %v3348, %v3373
      %v3378 = vmul.f32 %v3349, %v3373
      %v3379 = vmul.f32 %v3350, %v3373
      %v3380 = vmul.f32 %v3351, %v3373
      %v3381 = vmul.f32 %v3352, %v3373
      %v3382 = vmul.f32 %v3353, %v3373
      %v3383 = vmul.f32 %v3354, %v3373
      %v3384 = vmul.f32 %v3355, %v3373
      %v3385 = vmul.f32 %v3356, %v3373
      %v3386 = vmul.f32 %v3357, %v3373
      %v3387 = vmul.f32 %v3358, %v3373
      %v3388 = vmul.f32 %v3359, %v3373
      %v3389 = vmul.f32 %v3360, %v3373
      %v3390 = vmul.f32 %v3361, %v3373
      %v3391 = vmul.f32 %v3362, %v3373
      %v3392 = vmul.f32 %v3363, %v3373
      %v3393 = vmul.f32 %v3364, %v3373
      %v3394 = vmul.f32 %v3365, %v3373
      %v3395 = vmul.f32 %v3366, %v3373
      %v3396 = vmul.f32 %v3367, %v3373
      %v3397 = vmul.f32 %v3368, %v3373
      %v3398 = vmul.f32 %v3369, %v3373
      %v3399 = vmul.f32 %v3370, %v3373
      %v3400 = vmul.f32 %v3371, %v3373
      %v3401 = vmul.f32 %v3372, %v3373
      %v3402 = vadd.f32 %v3317, %v3374
      %v3403 = vadd.f32 %v3318, %v3375
      %v3404 = vadd.f32 %v3319, %v3376
      %v3405 = vadd.f32 %v3320, %v3377
      %v3406 = vadd.f32 %v3321, %v3378
      %v3407 = vadd.f32 %v3322, %v3379
      %v3408 = vadd.f32 %v3323, %v3380
      %v3409 = vadd.f32 %v3324, %v3381
      %v3410 = vadd.f32 %v3325, %v3382
      %v3411 = vadd.f32 %v3326, %v3383
      %v3412 = vadd.f32 %v3327, %v3384
      %v3413 = vadd.f32 %v3328, %v3385
      %v3414 = vadd.f32 %v3329, %v3386
      %v3415 = vadd.f32 %v3330, %v3387
      %v3416 = vadd.f32 %v3331, %v3388
      %v3417 = vadd.f32 %v3332, %v3389
      %v3418 = vadd.f32 %v3333, %v3390
      %v3419 = vadd.f32 %v3334, %v3391
      %v3420 = vadd.f32 %v3335, %v3392
      %v3421 = vadd.f32 %v3336, %v3393
      %v3422 = vadd.f32 %v3337, %v3394
      %v3423 = vadd.f32 %v3338, %v3395
      %v3424 = vadd.f32 %v3339, %v3396
      %v3425 = vadd.f32 %v3340, %v3397
      %v3426 = vadd.f32 %v3341, %v3398
      %v3427 = vadd.f32 %v3342, %v3399
      %v3428 = vadd.f32 %v3343, %v3400
      %v3429 = vadd.f32 %v3344, %v3401
      %s3430 = scalar_lea.vmem [#allocation3], 976
      %v3431 = vld [vmem:[%s3430] sm:$0xff]
      %v3432 = vld [vmem:[%s3430 + $0x8] sm:$0x3f]
      %v3433 = vld [vmem:[%s3430 + $0x10] sm:$0xff]
      %v3434 = vld [vmem:[%s3430 + $0x18] sm:$0x3f]
      %v3435 = vld [vmem:[%s3430 + $0x20] sm:$0xff]
      %v3436 = vld [vmem:[%s3430 + $0x28] sm:$0x3f]
      %v3437 = vld [vmem:[%s3430 + $0x30] sm:$0xff]
      %v3438 = vld [vmem:[%s3430 + $0x38] sm:$0x3f]
      %v3439 = vld [vmem:[%s3430 + $0x40] sm:$0xff]
      %v3440 = vld [vmem:[%s3430 + $0x48] sm:$0x3f]
      %v3441 = vld [vmem:[%s3430 + $0x50] sm:$0xff]
      %v3442 = vld [vmem:[%s3430 + $0x58] sm:$0x3f]
      %v3443 = vld [vmem:[%s3430 + $0x60] sm:$0xff]
      %v3444 = vld [vmem:[%s3430 + $0x68] sm:$0x3f]
      %v3445 = vld [vmem:[%s3430 + $0x70] sm:$0xff]
      %v3446 = vld [vmem:[%s3430 + $0x78] sm:$0x3f]
      %v3447 = vld [vmem:[%s3430 + $0x80] sm:$0xff]
      %v3448 = vld [vmem:[%s3430 + $0x88] sm:$0x3f]
      %v3449 = vld [vmem:[%s3430 + $0x90] sm:$0xff]
      %v3450 = vld [vmem:[%s3430 + $0x98] sm:$0x3f]
      %v3451 = vld [vmem:[%s3430 + $0xa0] sm:$0xff]
      %v3452 = vld [vmem:[%s3430 + $0xa8] sm:$0x3f]
      %v3453 = vld [vmem:[%s3430 + $0xb0] sm:$0xff]
      %v3454 = vld [vmem:[%s3430 + $0xb8] sm:$0x3f]
      %v3455 = vld [vmem:[%s3430 + $0xc0] sm:$0xff]
      %v3456 = vld [vmem:[%s3430 + $0xc8] sm:$0x3f]
      %v3457 = vld [vmem:[%s3430 + $0xd0] sm:$0xff]
      %v3458 = vld [vmem:[%s3430 + $0xd8] sm:$0x3f]
      %v3459 = vperm.slane %v1532, 3
      %v3460 = vmul.f32 %v3431, %v3459
      %v3461 = vmul.f32 %v3432, %v3459
      %v3462 = vmul.f32 %v3433, %v3459
      %v3463 = vmul.f32 %v3434, %v3459
      %v3464 = vmul.f32 %v3435, %v3459
      %v3465 = vmul.f32 %v3436, %v3459
      %v3466 = vmul.f32 %v3437, %v3459
      %v3467 = vmul.f32 %v3438, %v3459
      %v3468 = vmul.f32 %v3439, %v3459
      %v3469 = vmul.f32 %v3440, %v3459
      %v3470 = vmul.f32 %v3441, %v3459
      %v3471 = vmul.f32 %v3442, %v3459
      %v3472 = vmul.f32 %v3443, %v3459
      %v3473 = vmul.f32 %v3444, %v3459
      %v3474 = vmul.f32 %v3445, %v3459
      %v3475 = vmul.f32 %v3446, %v3459
      %v3476 = vmul.f32 %v3447, %v3459
      %v3477 = vmul.f32 %v3448, %v3459
      %v3478 = vmul.f32 %v3449, %v3459
      %v3479 = vmul.f32 %v3450, %v3459
      %v3480 = vmul.f32 %v3451, %v3459
      %v3481 = vmul.f32 %v3452, %v3459
      %v3482 = vmul.f32 %v3453, %v3459
      %v3483 = vmul.f32 %v3454, %v3459
      %v3484 = vmul.f32 %v3455, %v3459
      %v3485 = vmul.f32 %v3456, %v3459
      %v3486 = vmul.f32 %v3457, %v3459
      %v3487 = vmul.f32 %v3458, %v3459
      %v3488 = vadd.f32 %v3402, %v3460
      %v3489 = vadd.f32 %v3403, %v3461
      %v3490 = vadd.f32 %v3404, %v3462
      %v3491 = vadd.f32 %v3405, %v3463
      %v3492 = vadd.f32 %v3406, %v3464
      %v3493 = vadd.f32 %v3407, %v3465
      %v3494 = vadd.f32 %v3408, %v3466
      %v3495 = vadd.f32 %v3409, %v3467
      %v3496 = vadd.f32 %v3410, %v3468
      %v3497 = vadd.f32 %v3411, %v3469
      %v3498 = vadd.f32 %v3412, %v3470
      %v3499 = vadd.f32 %v3413, %v3471
      %v3500 = vadd.f32 %v3414, %v3472
      %v3501 = vadd.f32 %v3415, %v3473
      %v3502 = vadd.f32 %v3416, %v3474
      %v3503 = vadd.f32 %v3417, %v3475
      %v3504 = vadd.f32 %v3418, %v3476
      %v3505 = vadd.f32 %v3419, %v3477
      %v3506 = vadd.f32 %v3420, %v3478
      %v3507 = vadd.f32 %v3421, %v3479
      %v3508 = vadd.f32 %v3422, %v3480
      %v3509 = vadd.f32 %v3423, %v3481
      %v3510 = vadd.f32 %v3424, %v3482
      %v3511 = vadd.f32 %v3425, %v3483
      %v3512 = vadd.f32 %v3426, %v3484
      %v3513 = vadd.f32 %v3427, %v3485
      %v3514 = vadd.f32 %v3428, %v3486
      %v3515 = vadd.f32 %v3429, %v3487
      %s3516 = scalar_lea.vmem [#allocation3], 992
      %v3517 = vld [vmem:[%s3516] sm:$0xff]
      %v3518 = vld [vmem:[%s3516 + $0x8] sm:$0x3f]
      %v3519 = vld [vmem:[%s3516 + $0x10] sm:$0xff]
      %v3520 = vld [vmem:[%s3516 + $0x18] sm:$0x3f]
      %v3521 = vld [vmem:[%s3516 + $0x20] sm:$0xff]
      %v3522 = vld [vmem:[%s3516 + $0x28] sm:$0x3f]
      %v3523 = vld [vmem:[%s3516 + $0x30] sm:$0xff]
      %v3524 = vld [vmem:[%s3516 + $0x38] sm:$0x3f]
      %v3525 = vld [vmem:[%s3516 + $0x40] sm:$0xff]
      %v3526 = vld [vmem:[%s3516 + $0x48] sm:$0x3f]
      %v3527 = vld [vmem:[%s3516 + $0x50] sm:$0xff]
      %v3528 = vld [vmem:[%s3516 + $0x58] sm:$0x3f]
      %v3529 = vld [vmem:[%s3516 + $0x60] sm:$0xff]
      %v3530 = vld [vmem:[%s3516 + $0x68] sm:$0x3f]
      %v3531 = vld [vmem:[%s3516 + $0x70] sm:$0xff]
      %v3532 = vld [vmem:[%s3516 + $0x78] sm:$0x3f]
      %v3533 = vld [vmem:[%s3516 + $0x80] sm:$0xff]
      %v3534 = vld [vmem:[%s3516 + $0x88] sm:$0x3f]
      %v3535 = vld [vmem:[%s3516 + $0x90] sm:$0xff]
      %v3536 = vld [vmem:[%s3516 + $0x98] sm:$0x3f]
      %v3537 = vld [vmem:[%s3516 + $0xa0] sm:$0xff]
      %v3538 = vld [vmem:[%s3516 + $0xa8] sm:$0x3f]
      %v3539 = vld [vmem:[%s3516 + $0xb0] sm:$0xff]
      %v3540 = vld [vmem:[%s3516 + $0xb8] sm:$0x3f]
      %v3541 = vld [vmem:[%s3516 + $0xc0] sm:$0xff]
      %v3542 = vld [vmem:[%s3516 + $0xc8] sm:$0x3f]
      %v3543 = vld [vmem:[%s3516 + $0xd0] sm:$0xff]
      %v3544 = vld [vmem:[%s3516 + $0xd8] sm:$0x3f]
      %v3545 = vperm.slane %v1533, 3
      %v3546 = vmul.f32 %v3517, %v3545
      %v3547 = vmul.f32 %v3518, %v3545
      %v3548 = vmul.f32 %v3519, %v3545
      %v3549 = vmul.f32 %v3520, %v3545
      %v3550 = vmul.f32 %v3521, %v3545
      %v3551 = vmul.f32 %v3522, %v3545
      %v3552 = vmul.f32 %v3523, %v3545
      %v3553 = vmul.f32 %v3524, %v3545
      %v3554 = vmul.f32 %v3525, %v3545
      %v3555 = vmul.f32 %v3526, %v3545
      %v3556 = vmul.f32 %v3527, %v3545
      %v3557 = vmul.f32 %v3528, %v3545
      %v3558 = vmul.f32 %v3529, %v3545
      %v3559 = vmul.f32 %v3530, %v3545
      %v3560 = vmul.f32 %v3531, %v3545
      %v3561 = vmul.f32 %v3532, %v3545
      %v3562 = vmul.f32 %v3533, %v3545
      %v3563 = vmul.f32 %v3534, %v3545
      %v3564 = vmul.f32 %v3535, %v3545
      %v3565 = vmul.f32 %v3536, %v3545
      %v3566 = vmul.f32 %v3537, %v3545
      %v3567 = vmul.f32 %v3538, %v3545
      %v3568 = vmul.f32 %v3539, %v3545
      %v3569 = vmul.f32 %v3540, %v3545
      %v3570 = vmul.f32 %v3541, %v3545
      %v3571 = vmul.f32 %v3542, %v3545
      %v3572 = vmul.f32 %v3543, %v3545
      %v3573 = vmul.f32 %v3544, %v3545
      %v3574 = vadd.f32 %v3488, %v3546
      %v3575 = vadd.f32 %v3489, %v3547
      %v3576 = vadd.f32 %v3490, %v3548
      %v3577 = vadd.f32 %v3491, %v3549
      %v3578 = vadd.f32 %v3492, %v3550
      %v3579 = vadd.f32 %v3493, %v3551
      %v3580 = vadd.f32 %v3494, %v3552
      %v3581 = vadd.f32 %v3495, %v3553
      %v3582 = vadd.f32 %v3496, %v3554
      %v3583 = vadd.f32 %v3497, %v3555
      %v3584 = vadd.f32 %v3498, %v3556
      %v3585 = vadd.f32 %v3499, %v3557
      %v3586 = vadd.f32 %v3500, %v3558
      %v3587 = vadd.f32 %v3501, %v3559
      %v3588 = vadd.f32 %v3502, %v3560
      %v3589 = vadd.f32 %v3503, %v3561
      %v3590 = vadd.f32 %v3504, %v3562
      %v3591 = vadd.f32 %v3505, %v3563
      %v3592 = vadd.f32 %v3506, %v3564
      %v3593 = vadd.f32 %v3507, %v3565
      %v3594 = vadd.f32 %v3508, %v3566
      %v3595 = vadd.f32 %v3509, %v3567
      %v3596 = vadd.f32 %v3510, %v3568
      %v3597 = vadd.f32 %v3511, %v3569
      %v3598 = vadd.f32 %v3512, %v3570
      %v3599 = vadd.f32 %v3513, %v3571
      %v3600 = vadd.f32 %v3514, %v3572
      %v3601 = vadd.f32 %v3515, %v3573
      %s3602 = scalar_lea.vmem [#allocation3], 1008
      %v3603 = vld [vmem:[%s3602] sm:$0xff]
      %v3604 = vld [vmem:[%s3602 + $0x8] sm:$0x3f]
      %v3605 = vld [vmem:[%s3602 + $0x10] sm:$0xff]
      %v3606 = vld [vmem:[%s3602 + $0x18] sm:$0x3f]
      %v3607 = vld [vmem:[%s3602 + $0x20] sm:$0xff]
      %v3608 = vld [vmem:[%s3602 + $0x28] sm:$0x3f]
      %v3609 = vld [vmem:[%s3602 + $0x30] sm:$0xff]
      %v3610 = vld [vmem:[%s3602 + $0x38] sm:$0x3f]
      %v3611 = vld [vmem:[%s3602 + $0x40] sm:$0xff]
      %v3612 = vld [vmem:[%s3602 + $0x48] sm:$0x3f]
      %v3613 = vld [vmem:[%s3602 + $0x50] sm:$0xff]
      %v3614 = vld [vmem:[%s3602 + $0x58] sm:$0x3f]
      %v3615 = vld [vmem:[%s3602 + $0x60] sm:$0xff]
      %v3616 = vld [vmem:[%s3602 + $0x68] sm:$0x3f]
      %v3617 = vld [vmem:[%s3602 + $0x70] sm:$0xff]
      %v3618 = vld [vmem:[%s3602 + $0x78] sm:$0x3f]
      %v3619 = vld [vmem:[%s3602 + $0x80] sm:$0xff]
      %v3620 = vld [vmem:[%s3602 + $0x88] sm:$0x3f]
      %v3621 = vld [vmem:[%s3602 + $0x90] sm:$0xff]
      %v3622 = vld [vmem:[%s3602 + $0x98] sm:$0x3f]
      %v3623 = vld [vmem:[%s3602 + $0xa0] sm:$0xff]
      %v3624 = vld [vmem:[%s3602 + $0xa8] sm:$0x3f]
      %v3625 = vld [vmem:[%s3602 + $0xb0] sm:$0xff]
      %v3626 = vld [vmem:[%s3602 + $0xb8] sm:$0x3f]
      %v3627 = vld [vmem:[%s3602 + $0xc0] sm:$0xff]
      %v3628 = vld [vmem:[%s3602 + $0xc8] sm:$0x3f]
      %v3629 = vld [vmem:[%s3602 + $0xd0] sm:$0xff]
      %v3630 = vld [vmem:[%s3602 + $0xd8] sm:$0x3f]
      %v3631 = vperm.slane %v1534, 3
      %v3632 = vmul.f32 %v3603, %v3631
      %v3633 = vmul.f32 %v3604, %v3631
      %v3634 = vmul.f32 %v3605, %v3631
      %v3635 = vmul.f32 %v3606, %v3631
      %v3636 = vmul.f32 %v3607, %v3631
      %v3637 = vmul.f32 %v3608, %v3631
      %v3638 = vmul.f32 %v3609, %v3631
      %v3639 = vmul.f32 %v3610, %v3631
      %v3640 = vmul.f32 %v3611, %v3631
      %v3641 = vmul.f32 %v3612, %v3631
      %v3642 = vmul.f32 %v3613, %v3631
      %v3643 = vmul.f32 %v3614, %v3631
      %v3644 = vmul.f32 %v3615, %v3631
      %v3645 = vmul.f32 %v3616, %v3631
      %v3646 = vmul.f32 %v3617, %v3631
      %v3647 = vmul.f32 %v3618, %v3631
      %v3648 = vmul.f32 %v3619, %v3631
      %v3649 = vmul.f32 %v3620, %v3631
      %v3650 = vmul.f32 %v3621, %v3631
      %v3651 = vmul.f32 %v3622, %v3631
      %v3652 = vmul.f32 %v3623, %v3631
      %v3653 = vmul.f32 %v3624, %v3631
      %v3654 = vmul.f32 %v3625, %v3631
      %v3655 = vmul.f32 %v3626, %v3631
      %v3656 = vmul.f32 %v3627, %v3631
      %v3657 = vmul.f32 %v3628, %v3631
      %v3658 = vmul.f32 %v3629, %v3631
      %v3659 = vmul.f32 %v3630, %v3631
      %v3660 = vadd.f32 %v3574, %v3632
      %v3661 = vadd.f32 %v3575, %v3633
      %v3662 = vadd.f32 %v3576, %v3634
      %v3663 = vadd.f32 %v3577, %v3635
      %v3664 = vadd.f32 %v3578, %v3636
      %v3665 = vadd.f32 %v3579, %v3637
      %v3666 = vadd.f32 %v3580, %v3638
      %v3667 = vadd.f32 %v3581, %v3639
      %v3668 = vadd.f32 %v3582, %v3640
      %v3669 = vadd.f32 %v3583, %v3641
      %v3670 = vadd.f32 %v3584, %v3642
      %v3671 = vadd.f32 %v3585, %v3643
      %v3672 = vadd.f32 %v3586, %v3644
      %v3673 = vadd.f32 %v3587, %v3645
      %v3674 = vadd.f32 %v3588, %v3646
      %v3675 = vadd.f32 %v3589, %v3647
      %v3676 = vadd.f32 %v3590, %v3648
      %v3677 = vadd.f32 %v3591, %v3649
      %v3678 = vadd.f32 %v3592, %v3650
      %v3679 = vadd.f32 %v3593, %v3651
      %v3680 = vadd.f32 %v3594, %v3652
      %v3681 = vadd.f32 %v3595, %v3653
      %v3682 = vadd.f32 %v3596, %v3654
      %v3683 = vadd.f32 %v3597, %v3655
      %v3684 = vadd.f32 %v3598, %v3656
      %v3685 = vadd.f32 %v3599, %v3657
      %v3686 = vadd.f32 %v3600, %v3658
      %v3687 = vadd.f32 %v3601, %v3659
      %s3688 = scalar_lea.vmem [#allocation3], 1024
      %v3689 = vld [vmem:[%s3688] sm:$0xff]
      %v3690 = vld [vmem:[%s3688 + $0x8] sm:$0x3f]
      %v3691 = vld [vmem:[%s3688 + $0x10] sm:$0xff]
      %v3692 = vld [vmem:[%s3688 + $0x18] sm:$0x3f]
      %v3693 = vld [vmem:[%s3688 + $0x20] sm:$0xff]
      %v3694 = vld [vmem:[%s3688 + $0x28] sm:$0x3f]
      %v3695 = vld [vmem:[%s3688 + $0x30] sm:$0xff]
      %v3696 = vld [vmem:[%s3688 + $0x38] sm:$0x3f]
      %v3697 = vld [vmem:[%s3688 + $0x40] sm:$0xff]
      %v3698 = vld [vmem:[%s3688 + $0x48] sm:$0x3f]
      %v3699 = vld [vmem:[%s3688 + $0x50] sm:$0xff]
      %v3700 = vld [vmem:[%s3688 + $0x58] sm:$0x3f]
      %v3701 = vld [vmem:[%s3688 + $0x60] sm:$0xff]
      %v3702 = vld [vmem:[%s3688 + $0x68] sm:$0x3f]
      %v3703 = vld [vmem:[%s3688 + $0x70] sm:$0xff]
      %v3704 = vld [vmem:[%s3688 + $0x78] sm:$0x3f]
      %v3705 = vld [vmem:[%s3688 + $0x80] sm:$0xff]
      %v3706 = vld [vmem:[%s3688 + $0x88] sm:$0x3f]
      %v3707 = vld [vmem:[%s3688 + $0x90] sm:$0xff]
      %v3708 = vld [vmem:[%s3688 + $0x98] sm:$0x3f]
      %v3709 = vld [vmem:[%s3688 + $0xa0] sm:$0xff]
      %v3710 = vld [vmem:[%s3688 + $0xa8] sm:$0x3f]
      %v3711 = vld [vmem:[%s3688 + $0xb0] sm:$0xff]
      %v3712 = vld [vmem:[%s3688 + $0xb8] sm:$0x3f]
      %v3713 = vld [vmem:[%s3688 + $0xc0] sm:$0xff]
      %v3714 = vld [vmem:[%s3688 + $0xc8] sm:$0x3f]
      %v3715 = vld [vmem:[%s3688 + $0xd0] sm:$0xff]
      %v3716 = vld [vmem:[%s3688 + $0xd8] sm:$0x3f]
      %v3717 = vperm.slane %v1535, 3
      %v3718 = vmul.f32 %v3689, %v3717
      %v3719 = vmul.f32 %v3690, %v3717
      %v3720 = vmul.f32 %v3691, %v3717
      %v3721 = vmul.f32 %v3692, %v3717
      %v3722 = vmul.f32 %v3693, %v3717
      %v3723 = vmul.f32 %v3694, %v3717
      %v3724 = vmul.f32 %v3695, %v3717
      %v3725 = vmul.f32 %v3696, %v3717
      %v3726 = vmul.f32 %v3697, %v3717
      %v3727 = vmul.f32 %v3698, %v3717
      %v3728 = vmul.f32 %v3699, %v3717
      %v3729 = vmul.f32 %v3700, %v3717
      %v3730 = vmul.f32 %v3701, %v3717
      %v3731 = vmul.f32 %v3702, %v3717
      %v3732 = vmul.f32 %v3703, %v3717
      %v3733 = vmul.f32 %v3704, %v3717
      %v3734 = vmul.f32 %v3705, %v3717
      %v3735 = vmul.f32 %v3706, %v3717
      %v3736 = vmul.f32 %v3707, %v3717
      %v3737 = vmul.f32 %v3708, %v3717
      %v3738 = vmul.f32 %v3709, %v3717
      %v3739 = vmul.f32 %v3710, %v3717
      %v3740 = vmul.f32 %v3711, %v3717
      %v3741 = vmul.f32 %v3712, %v3717
      %v3742 = vmul.f32 %v3713, %v3717
      %v3743 = vmul.f32 %v3714, %v3717
      %v3744 = vmul.f32 %v3715, %v3717
      %v3745 = vmul.f32 %v3716, %v3717
      %v3746 = vadd.f32 %v3660, %v3718
      %v3747 = vadd.f32 %v3661, %v3719
      %v3748 = vadd.f32 %v3662, %v3720
      %v3749 = vadd.f32 %v3663, %v3721
      %v3750 = vadd.f32 %v3664, %v3722
      %v3751 = vadd.f32 %v3665, %v3723
      %v3752 = vadd.f32 %v3666, %v3724
      %v3753 = vadd.f32 %v3667, %v3725
      %v3754 = vadd.f32 %v3668, %v3726
      %v3755 = vadd.f32 %v3669, %v3727
      %v3756 = vadd.f32 %v3670, %v3728
      %v3757 = vadd.f32 %v3671, %v3729
      %v3758 = vadd.f32 %v3672, %v3730
      %v3759 = vadd.f32 %v3673, %v3731
      %v3760 = vadd.f32 %v3674, %v3732
      %v3761 = vadd.f32 %v3675, %v3733
      %v3762 = vadd.f32 %v3676, %v3734
      %v3763 = vadd.f32 %v3677, %v3735
      %v3764 = vadd.f32 %v3678, %v3736
      %v3765 = vadd.f32 %v3679, %v3737
      %v3766 = vadd.f32 %v3680, %v3738
      %v3767 = vadd.f32 %v3681, %v3739
      %v3768 = vadd.f32 %v3682, %v3740
      %v3769 = vadd.f32 %v3683, %v3741
      %v3770 = vadd.f32 %v3684, %v3742
      %v3771 = vadd.f32 %v3685, %v3743
      %v3772 = vadd.f32 %v3686, %v3744
      %v3773 = vadd.f32 %v3687, %v3745
      %s3774 = scalar_lea.vmem [#allocation3], 1040
      %v3775 = vld [vmem:[%s3774] sm:$0xff]
      %v3776 = vld [vmem:[%s3774 + $0x8] sm:$0x3f]
      %v3777 = vld [vmem:[%s3774 + $0x10] sm:$0xff]
      %v3778 = vld [vmem:[%s3774 + $0x18] sm:$0x3f]
      %v3779 = vld [vmem:[%s3774 + $0x20] sm:$0xff]
      %v3780 = vld [vmem:[%s3774 + $0x28] sm:$0x3f]
      %v3781 = vld [vmem:[%s3774 + $0x30] sm:$0xff]
      %v3782 = vld [vmem:[%s3774 + $0x38] sm:$0x3f]
      %v3783 = vld [vmem:[%s3774 + $0x40] sm:$0xff]
      %v3784 = vld [vmem:[%s3774 + $0x48] sm:$0x3f]
      %v3785 = vld [vmem:[%s3774 + $0x50] sm:$0xff]
      %v3786 = vld [vmem:[%s3774 + $0x58] sm:$0x3f]
      %v3787 = vld [vmem:[%s3774 + $0x60] sm:$0xff]
      %v3788 = vld [vmem:[%s3774 + $0x68] sm:$0x3f]
      %v3789 = vld [vmem:[%s3774 + $0x70] sm:$0xff]
      %v3790 = vld [vmem:[%s3774 + $0x78] sm:$0x3f]
      %v3791 = vld [vmem:[%s3774 + $0x80] sm:$0xff]
      %v3792 = vld [vmem:[%s3774 + $0x88] sm:$0x3f]
      %v3793 = vld [vmem:[%s3774 + $0x90] sm:$0xff]
      %v3794 = vld [vmem:[%s3774 + $0x98] sm:$0x3f]
      %v3795 = vld [vmem:[%s3774 + $0xa0] sm:$0xff]
      %v3796 = vld [vmem:[%s3774 + $0xa8] sm:$0x3f]
      %v3797 = vld [vmem:[%s3774 + $0xb0] sm:$0xff]
      %v3798 = vld [vmem:[%s3774 + $0xb8] sm:$0x3f]
      %v3799 = vld [vmem:[%s3774 + $0xc0] sm:$0xff]
      %v3800 = vld [vmem:[%s3774 + $0xc8] sm:$0x3f]
      %v3801 = vld [vmem:[%s3774 + $0xd0] sm:$0xff]
      %v3802 = vld [vmem:[%s3774 + $0xd8] sm:$0x3f]
      %v3803 = vperm.slane %v1536, 3
      %v3804 = vmul.f32 %v3775, %v3803
      %v3805 = vmul.f32 %v3776, %v3803
      %v3806 = vmul.f32 %v3777, %v3803
      %v3807 = vmul.f32 %v3778, %v3803
      %v3808 = vmul.f32 %v3779, %v3803
      %v3809 = vmul.f32 %v3780, %v3803
      %v3810 = vmul.f32 %v3781, %v3803
      %v3811 = vmul.f32 %v3782, %v3803
      %v3812 = vmul.f32 %v3783, %v3803
      %v3813 = vmul.f32 %v3784, %v3803
      %v3814 = vmul.f32 %v3785, %v3803
      %v3815 = vmul.f32 %v3786, %v3803
      %v3816 = vmul.f32 %v3787, %v3803
      %v3817 = vmul.f32 %v3788, %v3803
      %v3818 = vmul.f32 %v3789, %v3803
      %v3819 = vmul.f32 %v3790, %v3803
      %v3820 = vmul.f32 %v3791, %v3803
      %v3821 = vmul.f32 %v3792, %v3803
      %v3822 = vmul.f32 %v3793, %v3803
      %v3823 = vmul.f32 %v3794, %v3803
      %v3824 = vmul.f32 %v3795, %v3803
      %v3825 = vmul.f32 %v3796, %v3803
      %v3826 = vmul.f32 %v3797, %v3803
      %v3827 = vmul.f32 %v3798, %v3803
      %v3828 = vmul.f32 %v3799, %v3803
      %v3829 = vmul.f32 %v3800, %v3803
      %v3830 = vmul.f32 %v3801, %v3803
      %v3831 = vmul.f32 %v3802, %v3803
      %v3832 = vadd.f32 %v3746, %v3804
      %v3833 = vadd.f32 %v3747, %v3805
      %v3834 = vadd.f32 %v3748, %v3806
      %v3835 = vadd.f32 %v3749, %v3807
      %v3836 = vadd.f32 %v3750, %v3808
      %v3837 = vadd.f32 %v3751, %v3809
      %v3838 = vadd.f32 %v3752, %v3810
      %v3839 = vadd.f32 %v3753, %v3811
      %v3840 = vadd.f32 %v3754, %v3812
      %v3841 = vadd.f32 %v3755, %v3813
      %v3842 = vadd.f32 %v3756, %v3814
      %v3843 = vadd.f32 %v3757, %v3815
      %v3844 = vadd.f32 %v3758, %v3816
      %v3845 = vadd.f32 %v3759, %v3817
      %v3846 = vadd.f32 %v3760, %v3818
      %v3847 = vadd.f32 %v3761, %v3819
      %v3848 = vadd.f32 %v3762, %v3820
      %v3849 = vadd.f32 %v3763, %v3821
      %v3850 = vadd.f32 %v3764, %v3822
      %v3851 = vadd.f32 %v3765, %v3823
      %v3852 = vadd.f32 %v3766, %v3824
      %v3853 = vadd.f32 %v3767, %v3825
      %v3854 = vadd.f32 %v3768, %v3826
      %v3855 = vadd.f32 %v3769, %v3827
      %v3856 = vadd.f32 %v3770, %v3828
      %v3857 = vadd.f32 %v3771, %v3829
      %v3858 = vadd.f32 %v3772, %v3830
      %v3859 = vadd.f32 %v3773, %v3831
      %s3860 = scalar_lea.vmem [#allocation3], 1056
      %v3861 = vld [vmem:[%s3860] sm:$0xff]
      %v3862 = vld [vmem:[%s3860 + $0x8] sm:$0x3f]
      %v3863 = vld [vmem:[%s3860 + $0x10] sm:$0xff]
      %v3864 = vld [vmem:[%s3860 + $0x18] sm:$0x3f]
      %v3865 = vld [vmem:[%s3860 + $0x20] sm:$0xff]
      %v3866 = vld [vmem:[%s3860 + $0x28] sm:$0x3f]
      %v3867 = vld [vmem:[%s3860 + $0x30] sm:$0xff]
      %v3868 = vld [vmem:[%s3860 + $0x38] sm:$0x3f]
      %v3869 = vld [vmem:[%s3860 + $0x40] sm:$0xff]
      %v3870 = vld [vmem:[%s3860 + $0x48] sm:$0x3f]
      %v3871 = vld [vmem:[%s3860 + $0x50] sm:$0xff]
      %v3872 = vld [vmem:[%s3860 + $0x58] sm:$0x3f]
      %v3873 = vld [vmem:[%s3860 + $0x60] sm:$0xff]
      %v3874 = vld [vmem:[%s3860 + $0x68] sm:$0x3f]
      %v3875 = vld [vmem:[%s3860 + $0x70] sm:$0xff]
      %v3876 = vld [vmem:[%s3860 + $0x78] sm:$0x3f]
      %v3877 = vld [vmem:[%s3860 + $0x80] sm:$0xff]
      %v3878 = vld [vmem:[%s3860 + $0x88] sm:$0x3f]
      %v3879 = vld [vmem:[%s3860 + $0x90] sm:$0xff]
      %v3880 = vld [vmem:[%s3860 + $0x98] sm:$0x3f]
      %v3881 = vld [vmem:[%s3860 + $0xa0] sm:$0xff]
      %v3882 = vld [vmem:[%s3860 + $0xa8] sm:$0x3f]
      %v3883 = vld [vmem:[%s3860 + $0xb0] sm:$0xff]
      %v3884 = vld [vmem:[%s3860 + $0xb8] sm:$0x3f]
      %v3885 = vld [vmem:[%s3860 + $0xc0] sm:$0xff]
      %v3886 = vld [vmem:[%s3860 + $0xc8] sm:$0x3f]
      %v3887 = vld [vmem:[%s3860 + $0xd0] sm:$0xff]
      %v3888 = vld [vmem:[%s3860 + $0xd8] sm:$0x3f]
      %v3889 = vperm.slane %v1537, 3
      %v3890 = vmul.f32 %v3861, %v3889
      %v3891 = vmul.f32 %v3862, %v3889
      %v3892 = vmul.f32 %v3863, %v3889
      %v3893 = vmul.f32 %v3864, %v3889
      %v3894 = vmul.f32 %v3865, %v3889
      %v3895 = vmul.f32 %v3866, %v3889
      %v3896 = vmul.f32 %v3867, %v3889
      %v3897 = vmul.f32 %v3868, %v3889
      %v3898 = vmul.f32 %v3869, %v3889
      %v3899 = vmul.f32 %v3870, %v3889
      %v3900 = vmul.f32 %v3871, %v3889
      %v3901 = vmul.f32 %v3872, %v3889
      %v3902 = vmul.f32 %v3873, %v3889
      %v3903 = vmul.f32 %v3874, %v3889
      %v3904 = vmul.f32 %v3875, %v3889
      %v3905 = vmul.f32 %v3876, %v3889
      %v3906 = vmul.f32 %v3877, %v3889
      %v3907 = vmul.f32 %v3878, %v3889
      %v3908 = vmul.f32 %v3879, %v3889
      %v3909 = vmul.f32 %v3880, %v3889
      %v3910 = vmul.f32 %v3881, %v3889
      %v3911 = vmul.f32 %v3882, %v3889
      %v3912 = vmul.f32 %v3883, %v3889
      %v3913 = vmul.f32 %v3884, %v3889
      %v3914 = vmul.f32 %v3885, %v3889
      %v3915 = vmul.f32 %v3886, %v3889
      %v3916 = vmul.f32 %v3887, %v3889
      %v3917 = vmul.f32 %v3888, %v3889
      %v3918 = vadd.f32 %v3832, %v3890
      %v3919 = vadd.f32 %v3833, %v3891
      %v3920 = vadd.f32 %v3834, %v3892
      %v3921 = vadd.f32 %v3835, %v3893
      %v3922 = vadd.f32 %v3836, %v3894
      %v3923 = vadd.f32 %v3837, %v3895
      %v3924 = vadd.f32 %v3838, %v3896
      %v3925 = vadd.f32 %v3839, %v3897
      %v3926 = vadd.f32 %v3840, %v3898
      %v3927 = vadd.f32 %v3841, %v3899
      %v3928 = vadd.f32 %v3842, %v3900
      %v3929 = vadd.f32 %v3843, %v3901
      %v3930 = vadd.f32 %v3844, %v3902
      %v3931 = vadd.f32 %v3845, %v3903
      %v3932 = vadd.f32 %v3846, %v3904
      %v3933 = vadd.f32 %v3847, %v3905
      %v3934 = vadd.f32 %v3848, %v3906
      %v3935 = vadd.f32 %v3849, %v3907
      %v3936 = vadd.f32 %v3850, %v3908
      %v3937 = vadd.f32 %v3851, %v3909
      %v3938 = vadd.f32 %v3852, %v3910
      %v3939 = vadd.f32 %v3853, %v3911
      %v3940 = vadd.f32 %v3854, %v3912
      %v3941 = vadd.f32 %v3855, %v3913
      %v3942 = vadd.f32 %v3856, %v3914
      %v3943 = vadd.f32 %v3857, %v3915
      %v3944 = vadd.f32 %v3858, %v3916
      %v3945 = vadd.f32 %v3859, %v3917
      %v3946 = vld [vmem:[%s1192] sm:$0xff]
      %v3947 = vld [vmem:[%s1192 + $0x8] sm:$0x3f]
      %v3948 = vld [vmem:[%s1192 + $0x10] sm:$0xff]
      %v3949 = vld [vmem:[%s1192 + $0x18] sm:$0x3f]
      %v3950 = vld [vmem:[%s1192 + $0x20] sm:$0xff]
      %v3951 = vld [vmem:[%s1192 + $0x28] sm:$0x3f]
      %v3952 = vld [vmem:[%s1192 + $0x30] sm:$0xff]
      %v3953 = vld [vmem:[%s1192 + $0x38] sm:$0x3f]
      %v3954 = vld [vmem:[%s1192 + $0x40] sm:$0xff]
      %v3955 = vld [vmem:[%s1192 + $0x48] sm:$0x3f]
      %v3956 = vld [vmem:[%s1192 + $0x50] sm:$0xff]
      %v3957 = vld [vmem:[%s1192 + $0x58] sm:$0x3f]
      %v3958 = vld [vmem:[%s1192 + $0x60] sm:$0xff]
      %v3959 = vld [vmem:[%s1192 + $0x68] sm:$0x3f]
      %v3960 = vld [vmem:[%s1192 + $0x70] sm:$0xff]
      %v3961 = vld [vmem:[%s1192 + $0x78] sm:$0x3f]
      %v3962 = vld [vmem:[%s1192 + $0x80] sm:$0xff]
      %v3963 = vld [vmem:[%s1192 + $0x88] sm:$0x3f]
      %v3964 = vld [vmem:[%s1192 + $0x90] sm:$0xff]
      %v3965 = vld [vmem:[%s1192 + $0x98] sm:$0x3f]
      %v3966 = vld [vmem:[%s1192 + $0xa0] sm:$0xff]
      %v3967 = vld [vmem:[%s1192 + $0xa8] sm:$0x3f]
      %v3968 = vld [vmem:[%s1192 + $0xb0] sm:$0xff]
      %v3969 = vld [vmem:[%s1192 + $0xb8] sm:$0x3f]
      %v3970 = vld [vmem:[%s1192 + $0xc0] sm:$0xff]
      %v3971 = vld [vmem:[%s1192 + $0xc8] sm:$0x3f]
      %v3972 = vld [vmem:[%s1192 + $0xd0] sm:$0xff]
      %v3973 = vld [vmem:[%s1192 + $0xd8] sm:$0x3f]
      %v3974 = vperm.slane %v1531, 4
      %v3975 = vmul.f32 %v3946, %v3974
      %v3976 = vmul.f32 %v3947, %v3974
      %v3977 = vmul.f32 %v3948, %v3974
      %v3978 = vmul.f32 %v3949, %v3974
      %v3979 = vmul.f32 %v3950, %v3974
      %v3980 = vmul.f32 %v3951, %v3974
      %v3981 = vmul.f32 %v3952, %v3974
      %v3982 = vmul.f32 %v3953, %v3974
      %v3983 = vmul.f32 %v3954, %v3974
      %v3984 = vmul.f32 %v3955, %v3974
      %v3985 = vmul.f32 %v3956, %v3974
      %v3986 = vmul.f32 %v3957, %v3974
      %v3987 = vmul.f32 %v3958, %v3974
      %v3988 = vmul.f32 %v3959, %v3974
      %v3989 = vmul.f32 %v3960, %v3974
      %v3990 = vmul.f32 %v3961, %v3974
      %v3991 = vmul.f32 %v3962, %v3974
      %v3992 = vmul.f32 %v3963, %v3974
      %v3993 = vmul.f32 %v3964, %v3974
      %v3994 = vmul.f32 %v3965, %v3974
      %v3995 = vmul.f32 %v3966, %v3974
      %v3996 = vmul.f32 %v3967, %v3974
      %v3997 = vmul.f32 %v3968, %v3974
      %v3998 = vmul.f32 %v3969, %v3974
      %v3999 = vmul.f32 %v3970, %v3974
      %v4000 = vmul.f32 %v3971, %v3974
      %v4001 = vmul.f32 %v3972, %v3974
      %v4002 = vmul.f32 %v3973, %v3974
      %v4003 = vadd.f32 %v3918, %v3975
      %v4004 = vadd.f32 %v3919, %v3976
      %v4005 = vadd.f32 %v3920, %v3977
      %v4006 = vadd.f32 %v3921, %v3978
      %v4007 = vadd.f32 %v3922, %v3979
      %v4008 = vadd.f32 %v3923, %v3980
      %v4009 = vadd.f32 %v3924, %v3981
      %v4010 = vadd.f32 %v3925, %v3982
      %v4011 = vadd.f32 %v3926, %v3983
      %v4012 = vadd.f32 %v3927, %v3984
      %v4013 = vadd.f32 %v3928, %v3985
      %v4014 = vadd.f32 %v3929, %v3986
      %v4015 = vadd.f32 %v3930, %v3987
      %v4016 = vadd.f32 %v3931, %v3988
      %v4017 = vadd.f32 %v3932, %v3989
      %v4018 = vadd.f32 %v3933, %v3990
      %v4019 = vadd.f32 %v3934, %v3991
      %v4020 = vadd.f32 %v3935, %v3992
      %v4021 = vadd.f32 %v3936, %v3993
      %v4022 = vadd.f32 %v3937, %v3994
      %v4023 = vadd.f32 %v3938, %v3995
      %v4024 = vadd.f32 %v3939, %v3996
      %v4025 = vadd.f32 %v3940, %v3997
      %v4026 = vadd.f32 %v3941, %v3998
      %v4027 = vadd.f32 %v3942, %v3999
      %v4028 = vadd.f32 %v3943, %v4000
      %v4029 = vadd.f32 %v3944, %v4001
      %v4030 = vadd.f32 %v3945, %v4002
      %s4031 = scalar_lea.vmem [#allocation3], 1296
      %v4032 = vld [vmem:[%s4031] sm:$0xff]
      %v4033 = vld [vmem:[%s4031 + $0x8] sm:$0x3f]
      %v4034 = vld [vmem:[%s4031 + $0x10] sm:$0xff]
      %v4035 = vld [vmem:[%s4031 + $0x18] sm:$0x3f]
      %v4036 = vld [vmem:[%s4031 + $0x20] sm:$0xff]
      %v4037 = vld [vmem:[%s4031 + $0x28] sm:$0x3f]
      %v4038 = vld [vmem:[%s4031 + $0x30] sm:$0xff]
      %v4039 = vld [vmem:[%s4031 + $0x38] sm:$0x3f]
      %v4040 = vld [vmem:[%s4031 + $0x40] sm:$0xff]
      %v4041 = vld [vmem:[%s4031 + $0x48] sm:$0x3f]
      %v4042 = vld [vmem:[%s4031 + $0x50] sm:$0xff]
      %v4043 = vld [vmem:[%s4031 + $0x58] sm:$0x3f]
      %v4044 = vld [vmem:[%s4031 + $0x60] sm:$0xff]
      %v4045 = vld [vmem:[%s4031 + $0x68] sm:$0x3f]
      %v4046 = vld [vmem:[%s4031 + $0x70] sm:$0xff]
      %v4047 = vld [vmem:[%s4031 + $0x78] sm:$0x3f]
      %v4048 = vld [vmem:[%s4031 + $0x80] sm:$0xff]
      %v4049 = vld [vmem:[%s4031 + $0x88] sm:$0x3f]
      %v4050 = vld [vmem:[%s4031 + $0x90] sm:$0xff]
      %v4051 = vld [vmem:[%s4031 + $0x98] sm:$0x3f]
      %v4052 = vld [vmem:[%s4031 + $0xa0] sm:$0xff]
      %v4053 = vld [vmem:[%s4031 + $0xa8] sm:$0x3f]
      %v4054 = vld [vmem:[%s4031 + $0xb0] sm:$0xff]
      %v4055 = vld [vmem:[%s4031 + $0xb8] sm:$0x3f]
      %v4056 = vld [vmem:[%s4031 + $0xc0] sm:$0xff]
      %v4057 = vld [vmem:[%s4031 + $0xc8] sm:$0x3f]
      %v4058 = vld [vmem:[%s4031 + $0xd0] sm:$0xff]
      %v4059 = vld [vmem:[%s4031 + $0xd8] sm:$0x3f]
      %v4060 = vperm.slane %v1532, 4
      %v4061 = vmul.f32 %v4032, %v4060
      %v4062 = vmul.f32 %v4033, %v4060
      %v4063 = vmul.f32 %v4034, %v4060
      %v4064 = vmul.f32 %v4035, %v4060
      %v4065 = vmul.f32 %v4036, %v4060
      %v4066 = vmul.f32 %v4037, %v4060
      %v4067 = vmul.f32 %v4038, %v4060
      %v4068 = vmul.f32 %v4039, %v4060
      %v4069 = vmul.f32 %v4040, %v4060
      %v4070 = vmul.f32 %v4041, %v4060
      %v4071 = vmul.f32 %v4042, %v4060
      %v4072 = vmul.f32 %v4043, %v4060
      %v4073 = vmul.f32 %v4044, %v4060
      %v4074 = vmul.f32 %v4045, %v4060
      %v4075 = vmul.f32 %v4046, %v4060
      %v4076 = vmul.f32 %v4047, %v4060
      %v4077 = vmul.f32 %v4048, %v4060
      %v4078 = vmul.f32 %v4049, %v4060
      %v4079 = vmul.f32 %v4050, %v4060
      %v4080 = vmul.f32 %v4051, %v4060
      %v4081 = vmul.f32 %v4052, %v4060
      %v4082 = vmul.f32 %v4053, %v4060
      %v4083 = vmul.f32 %v4054, %v4060
      %v4084 = vmul.f32 %v4055, %v4060
      %v4085 = vmul.f32 %v4056, %v4060
      %v4086 = vmul.f32 %v4057, %v4060
      %v4087 = vmul.f32 %v4058, %v4060
      %v4088 = vmul.f32 %v4059, %v4060
      %v4089 = vadd.f32 %v4003, %v4061
      %v4090 = vadd.f32 %v4004, %v4062
      %v4091 = vadd.f32 %v4005, %v4063
      %v4092 = vadd.f32 %v4006, %v4064
      %v4093 = vadd.f32 %v4007, %v4065
      %v4094 = vadd.f32 %v4008, %v4066
      %v4095 = vadd.f32 %v4009, %v4067
      %v4096 = vadd.f32 %v4010, %v4068
      %v4097 = vadd.f32 %v4011, %v4069
      %v4098 = vadd.f32 %v4012, %v4070
      %v4099 = vadd.f32 %v4013, %v4071
      %v4100 = vadd.f32 %v4014, %v4072
      %v4101 = vadd.f32 %v4015, %v4073
      %v4102 = vadd.f32 %v4016, %v4074
      %v4103 = vadd.f32 %v4017, %v4075
      %v4104 = vadd.f32 %v4018, %v4076
      %v4105 = vadd.f32 %v4019, %v4077
      %v4106 = vadd.f32 %v4020, %v4078
      %v4107 = vadd.f32 %v4021, %v4079
      %v4108 = vadd.f32 %v4022, %v4080
      %v4109 = vadd.f32 %v4023, %v4081
      %v4110 = vadd.f32 %v4024, %v4082
      %v4111 = vadd.f32 %v4025, %v4083
      %v4112 = vadd.f32 %v4026, %v4084
      %v4113 = vadd.f32 %v4027, %v4085
      %v4114 = vadd.f32 %v4028, %v4086
      %v4115 = vadd.f32 %v4029, %v4087
      %v4116 = vadd.f32 %v4030, %v4088
      %s4117 = scalar_lea.vmem [#allocation3], 1312
      %v4118 = vld [vmem:[%s4117] sm:$0xff]
      %v4119 = vld [vmem:[%s4117 + $0x8] sm:$0x3f]
      %v4120 = vld [vmem:[%s4117 + $0x10] sm:$0xff]
      %v4121 = vld [vmem:[%s4117 + $0x18] sm:$0x3f]
      %v4122 = vld [vmem:[%s4117 + $0x20] sm:$0xff]
      %v4123 = vld [vmem:[%s4117 + $0x28] sm:$0x3f]
      %v4124 = vld [vmem:[%s4117 + $0x30] sm:$0xff]
      %v4125 = vld [vmem:[%s4117 + $0x38] sm:$0x3f]
      %v4126 = vld [vmem:[%s4117 + $0x40] sm:$0xff]
      %v4127 = vld [vmem:[%s4117 + $0x48] sm:$0x3f]
      %v4128 = vld [vmem:[%s4117 + $0x50] sm:$0xff]
      %v4129 = vld [vmem:[%s4117 + $0x58] sm:$0x3f]
      %v4130 = vld [vmem:[%s4117 + $0x60] sm:$0xff]
      %v4131 = vld [vmem:[%s4117 + $0x68] sm:$0x3f]
      %v4132 = vld [vmem:[%s4117 + $0x70] sm:$0xff]
      %v4133 = vld [vmem:[%s4117 + $0x78] sm:$0x3f]
      %v4134 = vld [vmem:[%s4117 + $0x80] sm:$0xff]
      %v4135 = vld [vmem:[%s4117 + $0x88] sm:$0x3f]
      %v4136 = vld [vmem:[%s4117 + $0x90] sm:$0xff]
      %v4137 = vld [vmem:[%s4117 + $0x98] sm:$0x3f]
      %v4138 = vld [vmem:[%s4117 + $0xa0] sm:$0xff]
      %v4139 = vld [vmem:[%s4117 + $0xa8] sm:$0x3f]
      %v4140 = vld [vmem:[%s4117 + $0xb0] sm:$0xff]
      %v4141 = vld [vmem:[%s4117 + $0xb8] sm:$0x3f]
      %v4142 = vld [vmem:[%s4117 + $0xc0] sm:$0xff]
      %v4143 = vld [vmem:[%s4117 + $0xc8] sm:$0x3f]
      %v4144 = vld [vmem:[%s4117 + $0xd0] sm:$0xff]
      %v4145 = vld [vmem:[%s4117 + $0xd8] sm:$0x3f]
      %v4146 = vperm.slane %v1533, 4
      %v4147 = vmul.f32 %v4118, %v4146
      %v4148 = vmul.f32 %v4119, %v4146
      %v4149 = vmul.f32 %v4120, %v4146
      %v4150 = vmul.f32 %v4121, %v4146
      %v4151 = vmul.f32 %v4122, %v4146
      %v4152 = vmul.f32 %v4123, %v4146
      %v4153 = vmul.f32 %v4124, %v4146
      %v4154 = vmul.f32 %v4125, %v4146
      %v4155 = vmul.f32 %v4126, %v4146
      %v4156 = vmul.f32 %v4127, %v4146
      %v4157 = vmul.f32 %v4128, %v4146
      %v4158 = vmul.f32 %v4129, %v4146
      %v4159 = vmul.f32 %v4130, %v4146
      %v4160 = vmul.f32 %v4131, %v4146
      %v4161 = vmul.f32 %v4132, %v4146
      %v4162 = vmul.f32 %v4133, %v4146
      %v4163 = vmul.f32 %v4134, %v4146
      %v4164 = vmul.f32 %v4135, %v4146
      %v4165 = vmul.f32 %v4136, %v4146
      %v4166 = vmul.f32 %v4137, %v4146
      %v4167 = vmul.f32 %v4138, %v4146
      %v4168 = vmul.f32 %v4139, %v4146
      %v4169 = vmul.f32 %v4140, %v4146
      %v4170 = vmul.f32 %v4141, %v4146
      %v4171 = vmul.f32 %v4142, %v4146
      %v4172 = vmul.f32 %v4143, %v4146
      %v4173 = vmul.f32 %v4144, %v4146
      %v4174 = vmul.f32 %v4145, %v4146
      %v4175 = vadd.f32 %v4089, %v4147
      %v4176 = vadd.f32 %v4090, %v4148
      %v4177 = vadd.f32 %v4091, %v4149
      %v4178 = vadd.f32 %v4092, %v4150
      %v4179 = vadd.f32 %v4093, %v4151
      %v4180 = vadd.f32 %v4094, %v4152
      %v4181 = vadd.f32 %v4095, %v4153
      %v4182 = vadd.f32 %v4096, %v4154
      %v4183 = vadd.f32 %v4097, %v4155
      %v4184 = vadd.f32 %v4098, %v4156
      %v4185 = vadd.f32 %v4099, %v4157
      %v4186 = vadd.f32 %v4100, %v4158
      %v4187 = vadd.f32 %v4101, %v4159
      %v4188 = vadd.f32 %v4102, %v4160
      %v4189 = vadd.f32 %v4103, %v4161
      %v4190 = vadd.f32 %v4104, %v4162
      %v4191 = vadd.f32 %v4105, %v4163
      %v4192 = vadd.f32 %v4106, %v4164
      %v4193 = vadd.f32 %v4107, %v4165
      %v4194 = vadd.f32 %v4108, %v4166
      %v4195 = vadd.f32 %v4109, %v4167
      %v4196 = vadd.f32 %v4110, %v4168
      %v4197 = vadd.f32 %v4111, %v4169
      %v4198 = vadd.f32 %v4112, %v4170
      %v4199 = vadd.f32 %v4113, %v4171
      %v4200 = vadd.f32 %v4114, %v4172
      %v4201 = vadd.f32 %v4115, %v4173
      %v4202 = vadd.f32 %v4116, %v4174
      %s4203 = scalar_lea.vmem [#allocation3], 1328
      %v4204 = vld [vmem:[%s4203] sm:$0xff]
      %v4205 = vld [vmem:[%s4203 + $0x8] sm:$0x3f]
      %v4206 = vld [vmem:[%s4203 + $0x10] sm:$0xff]
      %v4207 = vld [vmem:[%s4203 + $0x18] sm:$0x3f]
      %v4208 = vld [vmem:[%s4203 + $0x20] sm:$0xff]
      %v4209 = vld [vmem:[%s4203 + $0x28] sm:$0x3f]
      %v4210 = vld [vmem:[%s4203 + $0x30] sm:$0xff]
      %v4211 = vld [vmem:[%s4203 + $0x38] sm:$0x3f]
      %v4212 = vld [vmem:[%s4203 + $0x40] sm:$0xff]
      %v4213 = vld [vmem:[%s4203 + $0x48] sm:$0x3f]
      %v4214 = vld [vmem:[%s4203 + $0x50] sm:$0xff]
      %v4215 = vld [vmem:[%s4203 + $0x58] sm:$0x3f]
      %v4216 = vld [vmem:[%s4203 + $0x60] sm:$0xff]
      %v4217 = vld [vmem:[%s4203 + $0x68] sm:$0x3f]
      %v4218 = vld [vmem:[%s4203 + $0x70] sm:$0xff]
      %v4219 = vld [vmem:[%s4203 + $0x78] sm:$0x3f]
      %v4220 = vld [vmem:[%s4203 + $0x80] sm:$0xff]
      %v4221 = vld [vmem:[%s4203 + $0x88] sm:$0x3f]
      %v4222 = vld [vmem:[%s4203 + $0x90] sm:$0xff]
      %v4223 = vld [vmem:[%s4203 + $0x98] sm:$0x3f]
      %v4224 = vld [vmem:[%s4203 + $0xa0] sm:$0xff]
      %v4225 = vld [vmem:[%s4203 + $0xa8] sm:$0x3f]
      %v4226 = vld [vmem:[%s4203 + $0xb0] sm:$0xff]
      %v4227 = vld [vmem:[%s4203 + $0xb8] sm:$0x3f]
      %v4228 = vld [vmem:[%s4203 + $0xc0] sm:$0xff]
      %v4229 = vld [vmem:[%s4203 + $0xc8] sm:$0x3f]
      %v4230 = vld [vmem:[%s4203 + $0xd0] sm:$0xff]
      %v4231 = vld [vmem:[%s4203 + $0xd8] sm:$0x3f]
      %v4232 = vperm.slane %v1534, 4
      %v4233 = vmul.f32 %v4204, %v4232
      %v4234 = vmul.f32 %v4205, %v4232
      %v4235 = vmul.f32 %v4206, %v4232
      %v4236 = vmul.f32 %v4207, %v4232
      %v4237 = vmul.f32 %v4208, %v4232
      %v4238 = vmul.f32 %v4209, %v4232
      %v4239 = vmul.f32 %v4210, %v4232
      %v4240 = vmul.f32 %v4211, %v4232
      %v4241 = vmul.f32 %v4212, %v4232
      %v4242 = vmul.f32 %v4213, %v4232
      %v4243 = vmul.f32 %v4214, %v4232
      %v4244 = vmul.f32 %v4215, %v4232
      %v4245 = vmul.f32 %v4216, %v4232
      %v4246 = vmul.f32 %v4217, %v4232
      %v4247 = vmul.f32 %v4218, %v4232
      %v4248 = vmul.f32 %v4219, %v4232
      %v4249 = vmul.f32 %v4220, %v4232
      %v4250 = vmul.f32 %v4221, %v4232
      %v4251 = vmul.f32 %v4222, %v4232
      %v4252 = vmul.f32 %v4223, %v4232
      %v4253 = vmul.f32 %v4224, %v4232
      %v4254 = vmul.f32 %v4225, %v4232
      %v4255 = vmul.f32 %v4226, %v4232
      %v4256 = vmul.f32 %v4227, %v4232
      %v4257 = vmul.f32 %v4228, %v4232
      %v4258 = vmul.f32 %v4229, %v4232
      %v4259 = vmul.f32 %v4230, %v4232
      %v4260 = vmul.f32 %v4231, %v4232
      %v4261 = vadd.f32 %v4175, %v4233
      %v4262 = vadd.f32 %v4176, %v4234
      %v4263 = vadd.f32 %v4177, %v4235
      %v4264 = vadd.f32 %v4178, %v4236
      %v4265 = vadd.f32 %v4179, %v4237
      %v4266 = vadd.f32 %v4180, %v4238
      %v4267 = vadd.f32 %v4181, %v4239
      %v4268 = vadd.f32 %v4182, %v4240
      %v4269 = vadd.f32 %v4183, %v4241
      %v4270 = vadd.f32 %v4184, %v4242
      %v4271 = vadd.f32 %v4185, %v4243
      %v4272 = vadd.f32 %v4186, %v4244
      %v4273 = vadd.f32 %v4187, %v4245
      %v4274 = vadd.f32 %v4188, %v4246
      %v4275 = vadd.f32 %v4189, %v4247
      %v4276 = vadd.f32 %v4190, %v4248
      %v4277 = vadd.f32 %v4191, %v4249
      %v4278 = vadd.f32 %v4192, %v4250
      %v4279 = vadd.f32 %v4193, %v4251
      %v4280 = vadd.f32 %v4194, %v4252
      %v4281 = vadd.f32 %v4195, %v4253
      %v4282 = vadd.f32 %v4196, %v4254
      %v4283 = vadd.f32 %v4197, %v4255
      %v4284 = vadd.f32 %v4198, %v4256
      %v4285 = vadd.f32 %v4199, %v4257
      %v4286 = vadd.f32 %v4200, %v4258
      %v4287 = vadd.f32 %v4201, %v4259
      %v4288 = vadd.f32 %v4202, %v4260
      %s4289 = scalar_lea.vmem [#allocation3], 1344
      %v4290 = vld [vmem:[%s4289] sm:$0xff]
      %v4291 = vld [vmem:[%s4289 + $0x8] sm:$0x3f]
      %v4292 = vld [vmem:[%s4289 + $0x10] sm:$0xff]
      %v4293 = vld [vmem:[%s4289 + $0x18] sm:$0x3f]
      %v4294 = vld [vmem:[%s4289 + $0x20] sm:$0xff]
      %v4295 = vld [vmem:[%s4289 + $0x28] sm:$0x3f]
      %v4296 = vld [vmem:[%s4289 + $0x30] sm:$0xff]
      %v4297 = vld [vmem:[%s4289 + $0x38] sm:$0x3f]
      %v4298 = vld [vmem:[%s4289 + $0x40] sm:$0xff]
      %v4299 = vld [vmem:[%s4289 + $0x48] sm:$0x3f]
      %v4300 = vld [vmem:[%s4289 + $0x50] sm:$0xff]
      %v4301 = vld [vmem:[%s4289 + $0x58] sm:$0x3f]
      %v4302 = vld [vmem:[%s4289 + $0x60] sm:$0xff]
      %v4303 = vld [vmem:[%s4289 + $0x68] sm:$0x3f]
      %v4304 = vld [vmem:[%s4289 + $0x70] sm:$0xff]
      %v4305 = vld [vmem:[%s4289 + $0x78] sm:$0x3f]
      %v4306 = vld [vmem:[%s4289 + $0x80] sm:$0xff]
      %v4307 = vld [vmem:[%s4289 + $0x88] sm:$0x3f]
      %v4308 = vld [vmem:[%s4289 + $0x90] sm:$0xff]
      %v4309 = vld [vmem:[%s4289 + $0x98] sm:$0x3f]
      %v4310 = vld [vmem:[%s4289 + $0xa0] sm:$0xff]
      %v4311 = vld [vmem:[%s4289 + $0xa8] sm:$0x3f]
      %v4312 = vld [vmem:[%s4289 + $0xb0] sm:$0xff]
      %v4313 = vld [vmem:[%s4289 + $0xb8] sm:$0x3f]
      %v4314 = vld [vmem:[%s4289 + $0xc0] sm:$0xff]
      %v4315 = vld [vmem:[%s4289 + $0xc8] sm:$0x3f]
      %v4316 = vld [vmem:[%s4289 + $0xd0] sm:$0xff]
      %v4317 = vld [vmem:[%s4289 + $0xd8] sm:$0x3f]
      %v4318 = vperm.slane %v1535, 4
      %v4319 = vmul.f32 %v4290, %v4318
      %v4320 = vmul.f32 %v4291, %v4318
      %v4321 = vmul.f32 %v4292, %v4318
      %v4322 = vmul.f32 %v4293, %v4318
      %v4323 = vmul.f32 %v4294, %v4318
      %v4324 = vmul.f32 %v4295, %v4318
      %v4325 = vmul.f32 %v4296, %v4318
      %v4326 = vmul.f32 %v4297, %v4318
      %v4327 = vmul.f32 %v4298, %v4318
      %v4328 = vmul.f32 %v4299, %v4318
      %v4329 = vmul.f32 %v4300, %v4318
      %v4330 = vmul.f32 %v4301, %v4318
      %v4331 = vmul.f32 %v4302, %v4318
      %v4332 = vmul.f32 %v4303, %v4318
      %v4333 = vmul.f32 %v4304, %v4318
      %v4334 = vmul.f32 %v4305, %v4318
      %v4335 = vmul.f32 %v4306, %v4318
      %v4336 = vmul.f32 %v4307, %v4318
      %v4337 = vmul.f32 %v4308, %v4318
      %v4338 = vmul.f32 %v4309, %v4318
      %v4339 = vmul.f32 %v4310, %v4318
      %v4340 = vmul.f32 %v4311, %v4318
      %v4341 = vmul.f32 %v4312, %v4318
      %v4342 = vmul.f32 %v4313, %v4318
      %v4343 = vmul.f32 %v4314, %v4318
      %v4344 = vmul.f32 %v4315, %v4318
      %v4345 = vmul.f32 %v4316, %v4318
      %v4346 = vmul.f32 %v4317, %v4318
      %v4347 = vadd.f32 %v4261, %v4319
      %v4348 = vadd.f32 %v4262, %v4320
      %v4349 = vadd.f32 %v4263, %v4321
      %v4350 = vadd.f32 %v4264, %v4322
      %v4351 = vadd.f32 %v4265, %v4323
      %v4352 = vadd.f32 %v4266, %v4324
      %v4353 = vadd.f32 %v4267, %v4325
      %v4354 = vadd.f32 %v4268, %v4326
      %v4355 = vadd.f32 %v4269, %v4327
      %v4356 = vadd.f32 %v4270, %v4328
      %v4357 = vadd.f32 %v4271, %v4329
      %v4358 = vadd.f32 %v4272, %v4330
      %v4359 = vadd.f32 %v4273, %v4331
      %v4360 = vadd.f32 %v4274, %v4332
      %v4361 = vadd.f32 %v4275, %v4333
      %v4362 = vadd.f32 %v4276, %v4334
      %v4363 = vadd.f32 %v4277, %v4335
      %v4364 = vadd.f32 %v4278, %v4336
      %v4365 = vadd.f32 %v4279, %v4337
      %v4366 = vadd.f32 %v4280, %v4338
      %v4367 = vadd.f32 %v4281, %v4339
      %v4368 = vadd.f32 %v4282, %v4340
      %v4369 = vadd.f32 %v4283, %v4341
      %v4370 = vadd.f32 %v4284, %v4342
      %v4371 = vadd.f32 %v4285, %v4343
      %v4372 = vadd.f32 %v4286, %v4344
      %v4373 = vadd.f32 %v4287, %v4345
      %v4374 = vadd.f32 %v4288, %v4346
      %s4375 = scalar_lea.vmem [#allocation3], 1360
      %v4376 = vld [vmem:[%s4375] sm:$0xff]
      %v4377 = vld [vmem:[%s4375 + $0x8] sm:$0x3f]
      %v4378 = vld [vmem:[%s4375 + $0x10] sm:$0xff]
      %v4379 = vld [vmem:[%s4375 + $0x18] sm:$0x3f]
      %v4380 = vld [vmem:[%s4375 + $0x20] sm:$0xff]
      %v4381 = vld [vmem:[%s4375 + $0x28] sm:$0x3f]
      %v4382 = vld [vmem:[%s4375 + $0x30] sm:$0xff]
      %v4383 = vld [vmem:[%s4375 + $0x38] sm:$0x3f]
      %v4384 = vld [vmem:[%s4375 + $0x40] sm:$0xff]
      %v4385 = vld [vmem:[%s4375 + $0x48] sm:$0x3f]
      %v4386 = vld [vmem:[%s4375 + $0x50] sm:$0xff]
      %v4387 = vld [vmem:[%s4375 + $0x58] sm:$0x3f]
      %v4388 = vld [vmem:[%s4375 + $0x60] sm:$0xff]
      %v4389 = vld [vmem:[%s4375 + $0x68] sm:$0x3f]
      %v4390 = vld [vmem:[%s4375 + $0x70] sm:$0xff]
      %v4391 = vld [vmem:[%s4375 + $0x78] sm:$0x3f]
      %v4392 = vld [vmem:[%s4375 + $0x80] sm:$0xff]
      %v4393 = vld [vmem:[%s4375 + $0x88] sm:$0x3f]
      %v4394 = vld [vmem:[%s4375 + $0x90] sm:$0xff]
      %v4395 = vld [vmem:[%s4375 + $0x98] sm:$0x3f]
      %v4396 = vld [vmem:[%s4375 + $0xa0] sm:$0xff]
      %v4397 = vld [vmem:[%s4375 + $0xa8] sm:$0x3f]
      %v4398 = vld [vmem:[%s4375 + $0xb0] sm:$0xff]
      %v4399 = vld [vmem:[%s4375 + $0xb8] sm:$0x3f]
      %v4400 = vld [vmem:[%s4375 + $0xc0] sm:$0xff]
      %v4401 = vld [vmem:[%s4375 + $0xc8] sm:$0x3f]
      %v4402 = vld [vmem:[%s4375 + $0xd0] sm:$0xff]
      %v4403 = vld [vmem:[%s4375 + $0xd8] sm:$0x3f]
      %v4404 = vperm.slane %v1536, 4
      %v4405 = vmul.f32 %v4376, %v4404
      %v4406 = vmul.f32 %v4377, %v4404
      %v4407 = vmul.f32 %v4378, %v4404
      %v4408 = vmul.f32 %v4379, %v4404
      %v4409 = vmul.f32 %v4380, %v4404
      %v4410 = vmul.f32 %v4381, %v4404
      %v4411 = vmul.f32 %v4382, %v4404
      %v4412 = vmul.f32 %v4383, %v4404
      %v4413 = vmul.f32 %v4384, %v4404
      %v4414 = vmul.f32 %v4385, %v4404
      %v4415 = vmul.f32 %v4386, %v4404
      %v4416 = vmul.f32 %v4387, %v4404
      %v4417 = vmul.f32 %v4388, %v4404
      %v4418 = vmul.f32 %v4389, %v4404
      %v4419 = vmul.f32 %v4390, %v4404
      %v4420 = vmul.f32 %v4391, %v4404
      %v4421 = vmul.f32 %v4392, %v4404
      %v4422 = vmul.f32 %v4393, %v4404
      %v4423 = vmul.f32 %v4394, %v4404
      %v4424 = vmul.f32 %v4395, %v4404
      %v4425 = vmul.f32 %v4396, %v4404
      %v4426 = vmul.f32 %v4397, %v4404
      %v4427 = vmul.f32 %v4398, %v4404
      %v4428 = vmul.f32 %v4399, %v4404
      %v4429 = vmul.f32 %v4400, %v4404
      %v4430 = vmul.f32 %v4401, %v4404
      %v4431 = vmul.f32 %v4402, %v4404
      %v4432 = vmul.f32 %v4403, %v4404
      %v4433 = vadd.f32 %v4347, %v4405
      %v4434 = vadd.f32 %v4348, %v4406
      %v4435 = vadd.f32 %v4349, %v4407
      %v4436 = vadd.f32 %v4350, %v4408
      %v4437 = vadd.f32 %v4351, %v4409
      %v4438 = vadd.f32 %v4352, %v4410
      %v4439 = vadd.f32 %v4353, %v4411
      %v4440 = vadd.f32 %v4354, %v4412
      %v4441 = vadd.f32 %v4355, %v4413
      %v4442 = vadd.f32 %v4356, %v4414
      %v4443 = vadd.f32 %v4357, %v4415
      %v4444 = vadd.f32 %v4358, %v4416
      %v4445 = vadd.f32 %v4359, %v4417
      %v4446 = vadd.f32 %v4360, %v4418
      %v4447 = vadd.f32 %v4361, %v4419
      %v4448 = vadd.f32 %v4362, %v4420
      %v4449 = vadd.f32 %v4363, %v4421
      %v4450 = vadd.f32 %v4364, %v4422
      %v4451 = vadd.f32 %v4365, %v4423
      %v4452 = vadd.f32 %v4366, %v4424
      %v4453 = vadd.f32 %v4367, %v4425
      %v4454 = vadd.f32 %v4368, %v4426
      %v4455 = vadd.f32 %v4369, %v4427
      %v4456 = vadd.f32 %v4370, %v4428
      %v4457 = vadd.f32 %v4371, %v4429
      %v4458 = vadd.f32 %v4372, %v4430
      %v4459 = vadd.f32 %v4373, %v4431
      %v4460 = vadd.f32 %v4374, %v4432
      %s4461 = scalar_lea.vmem [#allocation3], 1376
      %v4462 = vld [vmem:[%s4461] sm:$0xff]
      %v4463 = vld [vmem:[%s4461 + $0x8] sm:$0x3f]
      %v4464 = vld [vmem:[%s4461 + $0x10] sm:$0xff]
      %v4465 = vld [vmem:[%s4461 + $0x18] sm:$0x3f]
      %v4466 = vld [vmem:[%s4461 + $0x20] sm:$0xff]
      %v4467 = vld [vmem:[%s4461 + $0x28] sm:$0x3f]
      %v4468 = vld [vmem:[%s4461 + $0x30] sm:$0xff]
      %v4469 = vld [vmem:[%s4461 + $0x38] sm:$0x3f]
      %v4470 = vld [vmem:[%s4461 + $0x40] sm:$0xff]
      %v4471 = vld [vmem:[%s4461 + $0x48] sm:$0x3f]
      %v4472 = vld [vmem:[%s4461 + $0x50] sm:$0xff]
      %v4473 = vld [vmem:[%s4461 + $0x58] sm:$0x3f]
      %v4474 = vld [vmem:[%s4461 + $0x60] sm:$0xff]
      %v4475 = vld [vmem:[%s4461 + $0x68] sm:$0x3f]
      %v4476 = vld [vmem:[%s4461 + $0x70] sm:$0xff]
      %v4477 = vld [vmem:[%s4461 + $0x78] sm:$0x3f]
      %v4478 = vld [vmem:[%s4461 + $0x80] sm:$0xff]
      %v4479 = vld [vmem:[%s4461 + $0x88] sm:$0x3f]
      %v4480 = vld [vmem:[%s4461 + $0x90] sm:$0xff]
      %v4481 = vld [vmem:[%s4461 + $0x98] sm:$0x3f]
      %v4482 = vld [vmem:[%s4461 + $0xa0] sm:$0xff]
      %v4483 = vld [vmem:[%s4461 + $0xa8] sm:$0x3f]
      %v4484 = vld [vmem:[%s4461 + $0xb0] sm:$0xff]
      %v4485 = vld [vmem:[%s4461 + $0xb8] sm:$0x3f]
      %v4486 = vld [vmem:[%s4461 + $0xc0] sm:$0xff]
      %v4487 = vld [vmem:[%s4461 + $0xc8] sm:$0x3f]
      %v4488 = vld [vmem:[%s4461 + $0xd0] sm:$0xff]
      %v4489 = vld [vmem:[%s4461 + $0xd8] sm:$0x3f]
      %v4490 = vperm.slane %v1537, 4
      %v4491 = vmul.f32 %v4462, %v4490
      %v4492 = vmul.f32 %v4463, %v4490
      %v4493 = vmul.f32 %v4464, %v4490
      %v4494 = vmul.f32 %v4465, %v4490
      %v4495 = vmul.f32 %v4466, %v4490
      %v4496 = vmul.f32 %v4467, %v4490
      %v4497 = vmul.f32 %v4468, %v4490
      %v4498 = vmul.f32 %v4469, %v4490
      %v4499 = vmul.f32 %v4470, %v4490
      %v4500 = vmul.f32 %v4471, %v4490
      %v4501 = vmul.f32 %v4472, %v4490
      %v4502 = vmul.f32 %v4473, %v4490
      %v4503 = vmul.f32 %v4474, %v4490
      %v4504 = vmul.f32 %v4475, %v4490
      %v4505 = vmul.f32 %v4476, %v4490
      %v4506 = vmul.f32 %v4477, %v4490
      %v4507 = vmul.f32 %v4478, %v4490
      %v4508 = vmul.f32 %v4479, %v4490
      %v4509 = vmul.f32 %v4480, %v4490
      %v4510 = vmul.f32 %v4481, %v4490
      %v4511 = vmul.f32 %v4482, %v4490
      %v4512 = vmul.f32 %v4483, %v4490
      %v4513 = vmul.f32 %v4484, %v4490
      %v4514 = vmul.f32 %v4485, %v4490
      %v4515 = vmul.f32 %v4486, %v4490
      %v4516 = vmul.f32 %v4487, %v4490
      %v4517 = vmul.f32 %v4488, %v4490
      %v4518 = vmul.f32 %v4489, %v4490
      %v4519 = vadd.f32 %v4433, %v4491
      %v4520 = vadd.f32 %v4434, %v4492
      %v4521 = vadd.f32 %v4435, %v4493
      %v4522 = vadd.f32 %v4436, %v4494
      %v4523 = vadd.f32 %v4437, %v4495
      %v4524 = vadd.f32 %v4438, %v4496
      %v4525 = vadd.f32 %v4439, %v4497
      %v4526 = vadd.f32 %v4440, %v4498
      %v4527 = vadd.f32 %v4441, %v4499
      %v4528 = vadd.f32 %v4442, %v4500
      %v4529 = vadd.f32 %v4443, %v4501
      %v4530 = vadd.f32 %v4444, %v4502
      %v4531 = vadd.f32 %v4445, %v4503
      %v4532 = vadd.f32 %v4446, %v4504
      %v4533 = vadd.f32 %v4447, %v4505
      %v4534 = vadd.f32 %v4448, %v4506
      %v4535 = vadd.f32 %v4449, %v4507
      %v4536 = vadd.f32 %v4450, %v4508
      %v4537 = vadd.f32 %v4451, %v4509
      %v4538 = vadd.f32 %v4452, %v4510
      %v4539 = vadd.f32 %v4453, %v4511
      %v4540 = vadd.f32 %v4454, %v4512
      %v4541 = vadd.f32 %v4455, %v4513
      %v4542 = vadd.f32 %v4456, %v4514
      %v4543 = vadd.f32 %v4457, %v4515
      %v4544 = vadd.f32 %v4458, %v4516
      %v4545 = vadd.f32 %v4459, %v4517
      %v4546 = vadd.f32 %v4460, %v4518
      %v4547 = vld [vmem:[%s1300] sm:$0xff]
      %v4548 = vld [vmem:[%s1300 + $0x8] sm:$0x3f]
      %v4549 = vld [vmem:[%s1300 + $0x10] sm:$0xff]
      %v4550 = vld [vmem:[%s1300 + $0x18] sm:$0x3f]
      %v4551 = vld [vmem:[%s1300 + $0x20] sm:$0xff]
      %v4552 = vld [vmem:[%s1300 + $0x28] sm:$0x3f]
      %v4553 = vld [vmem:[%s1300 + $0x30] sm:$0xff]
      %v4554 = vld [vmem:[%s1300 + $0x38] sm:$0x3f]
      %v4555 = vld [vmem:[%s1300 + $0x40] sm:$0xff]
      %v4556 = vld [vmem:[%s1300 + $0x48] sm:$0x3f]
      %v4557 = vld [vmem:[%s1300 + $0x50] sm:$0xff]
      %v4558 = vld [vmem:[%s1300 + $0x58] sm:$0x3f]
      %v4559 = vld [vmem:[%s1300 + $0x60] sm:$0xff]
      %v4560 = vld [vmem:[%s1300 + $0x68] sm:$0x3f]
      %v4561 = vld [vmem:[%s1300 + $0x70] sm:$0xff]
      %v4562 = vld [vmem:[%s1300 + $0x78] sm:$0x3f]
      %v4563 = vld [vmem:[%s1300 + $0x80] sm:$0xff]
      %v4564 = vld [vmem:[%s1300 + $0x88] sm:$0x3f]
      %v4565 = vld [vmem:[%s1300 + $0x90] sm:$0xff]
      %v4566 = vld [vmem:[%s1300 + $0x98] sm:$0x3f]
      %v4567 = vld [vmem:[%s1300 + $0xa0] sm:$0xff]
      %v4568 = vld [vmem:[%s1300 + $0xa8] sm:$0x3f]
      %v4569 = vld [vmem:[%s1300 + $0xb0] sm:$0xff]
      %v4570 = vld [vmem:[%s1300 + $0xb8] sm:$0x3f]
      %v4571 = vld [vmem:[%s1300 + $0xc0] sm:$0xff]
      %v4572 = vld [vmem:[%s1300 + $0xc8] sm:$0x3f]
      %v4573 = vld [vmem:[%s1300 + $0xd0] sm:$0xff]
      %v4574 = vld [vmem:[%s1300 + $0xd8] sm:$0x3f]
      %v4575 = vperm.slane %v1531, 5
      %v4576 = vmul.f32 %v4547, %v4575
      %v4577 = vmul.f32 %v4548, %v4575
      %v4578 = vmul.f32 %v4549, %v4575
      %v4579 = vmul.f32 %v4550, %v4575
      %v4580 = vmul.f32 %v4551, %v4575
      %v4581 = vmul.f32 %v4552, %v4575
      %v4582 = vmul.f32 %v4553, %v4575
      %v4583 = vmul.f32 %v4554, %v4575
      %v4584 = vmul.f32 %v4555, %v4575
      %v4585 = vmul.f32 %v4556, %v4575
      %v4586 = vmul.f32 %v4557, %v4575
      %v4587 = vmul.f32 %v4558, %v4575
      %v4588 = vmul.f32 %v4559, %v4575
      %v4589 = vmul.f32 %v4560, %v4575
      %v4590 = vmul.f32 %v4561, %v4575
      %v4591 = vmul.f32 %v4562, %v4575
      %v4592 = vmul.f32 %v4563, %v4575
      %v4593 = vmul.f32 %v4564, %v4575
      %v4594 = vmul.f32 %v4565, %v4575
      %v4595 = vmul.f32 %v4566, %v4575
      %v4596 = vmul.f32 %v4567, %v4575
      %v4597 = vmul.f32 %v4568, %v4575
      %v4598 = vmul.f32 %v4569, %v4575
      %v4599 = vmul.f32 %v4570, %v4575
      %v4600 = vmul.f32 %v4571, %v4575
      %v4601 = vmul.f32 %v4572, %v4575
      %v4602 = vmul.f32 %v4573, %v4575
      %v4603 = vmul.f32 %v4574, %v4575
      %v4604 = vadd.f32 %v4519, %v4576
      %v4605 = vadd.f32 %v4520, %v4577
      %v4606 = vadd.f32 %v4521, %v4578
      %v4607 = vadd.f32 %v4522, %v4579
      %v4608 = vadd.f32 %v4523, %v4580
      %v4609 = vadd.f32 %v4524, %v4581
      %v4610 = vadd.f32 %v4525, %v4582
      %v4611 = vadd.f32 %v4526, %v4583
      %v4612 = vadd.f32 %v4527, %v4584
      %v4613 = vadd.f32 %v4528, %v4585
      %v4614 = vadd.f32 %v4529, %v4586
      %v4615 = vadd.f32 %v4530, %v4587
      %v4616 = vadd.f32 %v4531, %v4588
      %v4617 = vadd.f32 %v4532, %v4589
      %v4618 = vadd.f32 %v4533, %v4590
      %v4619 = vadd.f32 %v4534, %v4591
      %v4620 = vadd.f32 %v4535, %v4592
      %v4621 = vadd.f32 %v4536, %v4593
      %v4622 = vadd.f32 %v4537, %v4594
      %v4623 = vadd.f32 %v4538, %v4595
      %v4624 = vadd.f32 %v4539, %v4596
      %v4625 = vadd.f32 %v4540, %v4597
      %v4626 = vadd.f32 %v4541, %v4598
      %v4627 = vadd.f32 %v4542, %v4599
      %v4628 = vadd.f32 %v4543, %v4600
      %v4629 = vadd.f32 %v4544, %v4601
      %v4630 = vadd.f32 %v4545, %v4602
      %v4631 = vadd.f32 %v4546, %v4603
      %s4632 = scalar_lea.vmem [#allocation3], 1616
      %v4633 = vld [vmem:[%s4632] sm:$0xff]
      %v4634 = vld [vmem:[%s4632 + $0x8] sm:$0x3f]
      %v4635 = vld [vmem:[%s4632 + $0x10] sm:$0xff]
      %v4636 = vld [vmem:[%s4632 + $0x18] sm:$0x3f]
      %v4637 = vld [vmem:[%s4632 + $0x20] sm:$0xff]
      %v4638 = vld [vmem:[%s4632 + $0x28] sm:$0x3f]
      %v4639 = vld [vmem:[%s4632 + $0x30] sm:$0xff]
      %v4640 = vld [vmem:[%s4632 + $0x38] sm:$0x3f]
      %v4641 = vld [vmem:[%s4632 + $0x40] sm:$0xff]
      %v4642 = vld [vmem:[%s4632 + $0x48] sm:$0x3f]
      %v4643 = vld [vmem:[%s4632 + $0x50] sm:$0xff]
      %v4644 = vld [vmem:[%s4632 + $0x58] sm:$0x3f]
      %v4645 = vld [vmem:[%s4632 + $0x60] sm:$0xff]
      %v4646 = vld [vmem:[%s4632 + $0x68] sm:$0x3f]
      %v4647 = vld [vmem:[%s4632 + $0x70] sm:$0xff]
      %v4648 = vld [vmem:[%s4632 + $0x78] sm:$0x3f]
      %v4649 = vld [vmem:[%s4632 + $0x80] sm:$0xff]
      %v4650 = vld [vmem:[%s4632 + $0x88] sm:$0x3f]
      %v4651 = vld [vmem:[%s4632 + $0x90] sm:$0xff]
      %v4652 = vld [vmem:[%s4632 + $0x98] sm:$0x3f]
      %v4653 = vld [vmem:[%s4632 + $0xa0] sm:$0xff]
      %v4654 = vld [vmem:[%s4632 + $0xa8] sm:$0x3f]
      %v4655 = vld [vmem:[%s4632 + $0xb0] sm:$0xff]
      %v4656 = vld [vmem:[%s4632 + $0xb8] sm:$0x3f]
      %v4657 = vld [vmem:[%s4632 + $0xc0] sm:$0xff]
      %v4658 = vld [vmem:[%s4632 + $0xc8] sm:$0x3f]
      %v4659 = vld [vmem:[%s4632 + $0xd0] sm:$0xff]
      %v4660 = vld [vmem:[%s4632 + $0xd8] sm:$0x3f]
      %v4661 = vperm.slane %v1532, 5
      %v4662 = vmul.f32 %v4633, %v4661
      %v4663 = vmul.f32 %v4634, %v4661
      %v4664 = vmul.f32 %v4635, %v4661
      %v4665 = vmul.f32 %v4636, %v4661
      %v4666 = vmul.f32 %v4637, %v4661
      %v4667 = vmul.f32 %v4638, %v4661
      %v4668 = vmul.f32 %v4639, %v4661
      %v4669 = vmul.f32 %v4640, %v4661
      %v4670 = vmul.f32 %v4641, %v4661
      %v4671 = vmul.f32 %v4642, %v4661
      %v4672 = vmul.f32 %v4643, %v4661
      %v4673 = vmul.f32 %v4644, %v4661
      %v4674 = vmul.f32 %v4645, %v4661
      %v4675 = vmul.f32 %v4646, %v4661
      %v4676 = vmul.f32 %v4647, %v4661
      %v4677 = vmul.f32 %v4648, %v4661
      %v4678 = vmul.f32 %v4649, %v4661
      %v4679 = vmul.f32 %v4650, %v4661
      %v4680 = vmul.f32 %v4651, %v4661
      %v4681 = vmul.f32 %v4652, %v4661
      %v4682 = vmul.f32 %v4653, %v4661
      %v4683 = vmul.f32 %v4654, %v4661
      %v4684 = vmul.f32 %v4655, %v4661
      %v4685 = vmul.f32 %v4656, %v4661
      %v4686 = vmul.f32 %v4657, %v4661
      %v4687 = vmul.f32 %v4658, %v4661
      %v4688 = vmul.f32 %v4659, %v4661
      %v4689 = vmul.f32 %v4660, %v4661
      %v4690 = vadd.f32 %v4604, %v4662
      %v4691 = vadd.f32 %v4605, %v4663
      %v4692 = vadd.f32 %v4606, %v4664
      %v4693 = vadd.f32 %v4607, %v4665
      %v4694 = vadd.f32 %v4608, %v4666
      %v4695 = vadd.f32 %v4609, %v4667
      %v4696 = vadd.f32 %v4610, %v4668
      %v4697 = vadd.f32 %v4611, %v4669
      %v4698 = vadd.f32 %v4612, %v4670
      %v4699 = vadd.f32 %v4613, %v4671
      %v4700 = vadd.f32 %v4614, %v4672
      %v4701 = vadd.f32 %v4615, %v4673
      %v4702 = vadd.f32 %v4616, %v4674
      %v4703 = vadd.f32 %v4617, %v4675
      %v4704 = vadd.f32 %v4618, %v4676
      %v4705 = vadd.f32 %v4619, %v4677
      %v4706 = vadd.f32 %v4620, %v4678
      %v4707 = vadd.f32 %v4621, %v4679
      %v4708 = vadd.f32 %v4622, %v4680
      %v4709 = vadd.f32 %v4623, %v4681
      %v4710 = vadd.f32 %v4624, %v4682
      %v4711 = vadd.f32 %v4625, %v4683
      %v4712 = vadd.f32 %v4626, %v4684
      %v4713 = vadd.f32 %v4627, %v4685
      %v4714 = vadd.f32 %v4628, %v4686
      %v4715 = vadd.f32 %v4629, %v4687
      %v4716 = vadd.f32 %v4630, %v4688
      %v4717 = vadd.f32 %v4631, %v4689
      %s4718 = scalar_lea.vmem [#allocation3], 1632
      %v4719 = vld [vmem:[%s4718] sm:$0xff]
      %v4720 = vld [vmem:[%s4718 + $0x8] sm:$0x3f]
      %v4721 = vld [vmem:[%s4718 + $0x10] sm:$0xff]
      %v4722 = vld [vmem:[%s4718 + $0x18] sm:$0x3f]
      %v4723 = vld [vmem:[%s4718 + $0x20] sm:$0xff]
      %v4724 = vld [vmem:[%s4718 + $0x28] sm:$0x3f]
      %v4725 = vld [vmem:[%s4718 + $0x30] sm:$0xff]
      %v4726 = vld [vmem:[%s4718 + $0x38] sm:$0x3f]
      %v4727 = vld [vmem:[%s4718 + $0x40] sm:$0xff]
      %v4728 = vld [vmem:[%s4718 + $0x48] sm:$0x3f]
      %v4729 = vld [vmem:[%s4718 + $0x50] sm:$0xff]
      %v4730 = vld [vmem:[%s4718 + $0x58] sm:$0x3f]
      %v4731 = vld [vmem:[%s4718 + $0x60] sm:$0xff]
      %v4732 = vld [vmem:[%s4718 + $0x68] sm:$0x3f]
      %v4733 = vld [vmem:[%s4718 + $0x70] sm:$0xff]
      %v4734 = vld [vmem:[%s4718 + $0x78] sm:$0x3f]
      %v4735 = vld [vmem:[%s4718 + $0x80] sm:$0xff]
      %v4736 = vld [vmem:[%s4718 + $0x88] sm:$0x3f]
      %v4737 = vld [vmem:[%s4718 + $0x90] sm:$0xff]
      %v4738 = vld [vmem:[%s4718 + $0x98] sm:$0x3f]
      %v4739 = vld [vmem:[%s4718 + $0xa0] sm:$0xff]
      %v4740 = vld [vmem:[%s4718 + $0xa8] sm:$0x3f]
      %v4741 = vld [vmem:[%s4718 + $0xb0] sm:$0xff]
      %v4742 = vld [vmem:[%s4718 + $0xb8] sm:$0x3f]
      %v4743 = vld [vmem:[%s4718 + $0xc0] sm:$0xff]
      %v4744 = vld [vmem:[%s4718 + $0xc8] sm:$0x3f]
      %v4745 = vld [vmem:[%s4718 + $0xd0] sm:$0xff]
      %v4746 = vld [vmem:[%s4718 + $0xd8] sm:$0x3f]
      %v4747 = vperm.slane %v1533, 5
      %v4748 = vmul.f32 %v4719, %v4747
      %v4749 = vmul.f32 %v4720, %v4747
      %v4750 = vmul.f32 %v4721, %v4747
      %v4751 = vmul.f32 %v4722, %v4747
      %v4752 = vmul.f32 %v4723, %v4747
      %v4753 = vmul.f32 %v4724, %v4747
      %v4754 = vmul.f32 %v4725, %v4747
      %v4755 = vmul.f32 %v4726, %v4747
      %v4756 = vmul.f32 %v4727, %v4747
      %v4757 = vmul.f32 %v4728, %v4747
      %v4758 = vmul.f32 %v4729, %v4747
      %v4759 = vmul.f32 %v4730, %v4747
      %v4760 = vmul.f32 %v4731, %v4747
      %v4761 = vmul.f32 %v4732, %v4747
      %v4762 = vmul.f32 %v4733, %v4747
      %v4763 = vmul.f32 %v4734, %v4747
      %v4764 = vmul.f32 %v4735, %v4747
      %v4765 = vmul.f32 %v4736, %v4747
      %v4766 = vmul.f32 %v4737, %v4747
      %v4767 = vmul.f32 %v4738, %v4747
      %v4768 = vmul.f32 %v4739, %v4747
      %v4769 = vmul.f32 %v4740, %v4747
      %v4770 = vmul.f32 %v4741, %v4747
      %v4771 = vmul.f32 %v4742, %v4747
      %v4772 = vmul.f32 %v4743, %v4747
      %v4773 = vmul.f32 %v4744, %v4747
      %v4774 = vmul.f32 %v4745, %v4747
      %v4775 = vmul.f32 %v4746, %v4747
      %v4776 = vadd.f32 %v4690, %v4748
      %v4777 = vadd.f32 %v4691, %v4749
      %v4778 = vadd.f32 %v4692, %v4750
      %v4779 = vadd.f32 %v4693, %v4751
      %v4780 = vadd.f32 %v4694, %v4752
      %v4781 = vadd.f32 %v4695, %v4753
      %v4782 = vadd.f32 %v4696, %v4754
      %v4783 = vadd.f32 %v4697, %v4755
      %v4784 = vadd.f32 %v4698, %v4756
      %v4785 = vadd.f32 %v4699, %v4757
      %v4786 = vadd.f32 %v4700, %v4758
      %v4787 = vadd.f32 %v4701, %v4759
      %v4788 = vadd.f32 %v4702, %v4760
      %v4789 = vadd.f32 %v4703, %v4761
      %v4790 = vadd.f32 %v4704, %v4762
      %v4791 = vadd.f32 %v4705, %v4763
      %v4792 = vadd.f32 %v4706, %v4764
      %v4793 = vadd.f32 %v4707, %v4765
      %v4794 = vadd.f32 %v4708, %v4766
      %v4795 = vadd.f32 %v4709, %v4767
      %v4796 = vadd.f32 %v4710, %v4768
      %v4797 = vadd.f32 %v4711, %v4769
      %v4798 = vadd.f32 %v4712, %v4770
      %v4799 = vadd.f32 %v4713, %v4771
      %v4800 = vadd.f32 %v4714, %v4772
      %v4801 = vadd.f32 %v4715, %v4773
      %v4802 = vadd.f32 %v4716, %v4774
      %v4803 = vadd.f32 %v4717, %v4775
      %s4804 = scalar_lea.vmem [#allocation3], 1648
      %v4805 = vld [vmem:[%s4804] sm:$0xff]
      %v4806 = vld [vmem:[%s4804 + $0x8] sm:$0x3f]
      %v4807 = vld [vmem:[%s4804 + $0x10] sm:$0xff]
      %v4808 = vld [vmem:[%s4804 + $0x18] sm:$0x3f]
      %v4809 = vld [vmem:[%s4804 + $0x20] sm:$0xff]
      %v4810 = vld [vmem:[%s4804 + $0x28] sm:$0x3f]
      %v4811 = vld [vmem:[%s4804 + $0x30] sm:$0xff]
      %v4812 = vld [vmem:[%s4804 + $0x38] sm:$0x3f]
      %v4813 = vld [vmem:[%s4804 + $0x40] sm:$0xff]
      %v4814 = vld [vmem:[%s4804 + $0x48] sm:$0x3f]
      %v4815 = vld [vmem:[%s4804 + $0x50] sm:$0xff]
      %v4816 = vld [vmem:[%s4804 + $0x58] sm:$0x3f]
      %v4817 = vld [vmem:[%s4804 + $0x60] sm:$0xff]
      %v4818 = vld [vmem:[%s4804 + $0x68] sm:$0x3f]
      %v4819 = vld [vmem:[%s4804 + $0x70] sm:$0xff]
      %v4820 = vld [vmem:[%s4804 + $0x78] sm:$0x3f]
      %v4821 = vld [vmem:[%s4804 + $0x80] sm:$0xff]
      %v4822 = vld [vmem:[%s4804 + $0x88] sm:$0x3f]
      %v4823 = vld [vmem:[%s4804 + $0x90] sm:$0xff]
      %v4824 = vld [vmem:[%s4804 + $0x98] sm:$0x3f]
      %v4825 = vld [vmem:[%s4804 + $0xa0] sm:$0xff]
      %v4826 = vld [vmem:[%s4804 + $0xa8] sm:$0x3f]
      %v4827 = vld [vmem:[%s4804 + $0xb0] sm:$0xff]
      %v4828 = vld [vmem:[%s4804 + $0xb8] sm:$0x3f]
      %v4829 = vld [vmem:[%s4804 + $0xc0] sm:$0xff]
      %v4830 = vld [vmem:[%s4804 + $0xc8] sm:$0x3f]
      %v4831 = vld [vmem:[%s4804 + $0xd0] sm:$0xff]
      %v4832 = vld [vmem:[%s4804 + $0xd8] sm:$0x3f]
      %v4833 = vperm.slane %v1534, 5
      %v4834 = vmul.f32 %v4805, %v4833
      %v4835 = vmul.f32 %v4806, %v4833
      %v4836 = vmul.f32 %v4807, %v4833
      %v4837 = vmul.f32 %v4808, %v4833
      %v4838 = vmul.f32 %v4809, %v4833
      %v4839 = vmul.f32 %v4810, %v4833
      %v4840 = vmul.f32 %v4811, %v4833
      %v4841 = vmul.f32 %v4812, %v4833
      %v4842 = vmul.f32 %v4813, %v4833
      %v4843 = vmul.f32 %v4814, %v4833
      %v4844 = vmul.f32 %v4815, %v4833
      %v4845 = vmul.f32 %v4816, %v4833
      %v4846 = vmul.f32 %v4817, %v4833
      %v4847 = vmul.f32 %v4818, %v4833
      %v4848 = vmul.f32 %v4819, %v4833
      %v4849 = vmul.f32 %v4820, %v4833
      %v4850 = vmul.f32 %v4821, %v4833
      %v4851 = vmul.f32 %v4822, %v4833
      %v4852 = vmul.f32 %v4823, %v4833
      %v4853 = vmul.f32 %v4824, %v4833
      %v4854 = vmul.f32 %v4825, %v4833
      %v4855 = vmul.f32 %v4826, %v4833
      %v4856 = vmul.f32 %v4827, %v4833
      %v4857 = vmul.f32 %v4828, %v4833
      %v4858 = vmul.f32 %v4829, %v4833
      %v4859 = vmul.f32 %v4830, %v4833
      %v4860 = vmul.f32 %v4831, %v4833
      %v4861 = vmul.f32 %v4832, %v4833
      %v4862 = vadd.f32 %v4776, %v4834
      %v4863 = vadd.f32 %v4777, %v4835
      %v4864 = vadd.f32 %v4778, %v4836
      %v4865 = vadd.f32 %v4779, %v4837
      %v4866 = vadd.f32 %v4780, %v4838
      %v4867 = vadd.f32 %v4781, %v4839
      %v4868 = vadd.f32 %v4782, %v4840
      %v4869 = vadd.f32 %v4783, %v4841
      %v4870 = vadd.f32 %v4784, %v4842
      %v4871 = vadd.f32 %v4785, %v4843
      %v4872 = vadd.f32 %v4786, %v4844
      %v4873 = vadd.f32 %v4787, %v4845
      %v4874 = vadd.f32 %v4788, %v4846
      %v4875 = vadd.f32 %v4789, %v4847
      %v4876 = vadd.f32 %v4790, %v4848
      %v4877 = vadd.f32 %v4791, %v4849
      %v4878 = vadd.f32 %v4792, %v4850
      %v4879 = vadd.f32 %v4793, %v4851
      %v4880 = vadd.f32 %v4794, %v4852
      %v4881 = vadd.f32 %v4795, %v4853
      %v4882 = vadd.f32 %v4796, %v4854
      %v4883 = vadd.f32 %v4797, %v4855
      %v4884 = vadd.f32 %v4798, %v4856
      %v4885 = vadd.f32 %v4799, %v4857
      %v4886 = vadd.f32 %v4800, %v4858
      %v4887 = vadd.f32 %v4801, %v4859
      %v4888 = vadd.f32 %v4802, %v4860
      %v4889 = vadd.f32 %v4803, %v4861
      %s4890 = scalar_lea.vmem [#allocation3], 1664
      %v4891 = vld [vmem:[%s4890] sm:$0xff]
      %v4892 = vld [vmem:[%s4890 + $0x8] sm:$0x3f]
      %v4893 = vld [vmem:[%s4890 + $0x10] sm:$0xff]
      %v4894 = vld [vmem:[%s4890 + $0x18] sm:$0x3f]
      %v4895 = vld [vmem:[%s4890 + $0x20] sm:$0xff]
      %v4896 = vld [vmem:[%s4890 + $0x28] sm:$0x3f]
      %v4897 = vld [vmem:[%s4890 + $0x30] sm:$0xff]
      %v4898 = vld [vmem:[%s4890 + $0x38] sm:$0x3f]
      %v4899 = vld [vmem:[%s4890 + $0x40] sm:$0xff]
      %v4900 = vld [vmem:[%s4890 + $0x48] sm:$0x3f]
      %v4901 = vld [vmem:[%s4890 + $0x50] sm:$0xff]
      %v4902 = vld [vmem:[%s4890 + $0x58] sm:$0x3f]
      %v4903 = vld [vmem:[%s4890 + $0x60] sm:$0xff]
      %v4904 = vld [vmem:[%s4890 + $0x68] sm:$0x3f]
      %v4905 = vld [vmem:[%s4890 + $0x70] sm:$0xff]
      %v4906 = vld [vmem:[%s4890 + $0x78] sm:$0x3f]
      %v4907 = vld [vmem:[%s4890 + $0x80] sm:$0xff]
      %v4908 = vld [vmem:[%s4890 + $0x88] sm:$0x3f]
      %v4909 = vld [vmem:[%s4890 + $0x90] sm:$0xff]
      %v4910 = vld [vmem:[%s4890 + $0x98] sm:$0x3f]
      %v4911 = vld [vmem:[%s4890 + $0xa0] sm:$0xff]
      %v4912 = vld [vmem:[%s4890 + $0xa8] sm:$0x3f]
      %v4913 = vld [vmem:[%s4890 + $0xb0] sm:$0xff]
      %v4914 = vld [vmem:[%s4890 + $0xb8] sm:$0x3f]
      %v4915 = vld [vmem:[%s4890 + $0xc0] sm:$0xff]
      %v4916 = vld [vmem:[%s4890 + $0xc8] sm:$0x3f]
      %v4917 = vld [vmem:[%s4890 + $0xd0] sm:$0xff]
      %v4918 = vld [vmem:[%s4890 + $0xd8] sm:$0x3f]
      %v4919 = vperm.slane %v1535, 5
      %v4920 = vmul.f32 %v4891, %v4919
      %v4921 = vmul.f32 %v4892, %v4919
      %v4922 = vmul.f32 %v4893, %v4919
      %v4923 = vmul.f32 %v4894, %v4919
      %v4924 = vmul.f32 %v4895, %v4919
      %v4925 = vmul.f32 %v4896, %v4919
      %v4926 = vmul.f32 %v4897, %v4919
      %v4927 = vmul.f32 %v4898, %v4919
      %v4928 = vmul.f32 %v4899, %v4919
      %v4929 = vmul.f32 %v4900, %v4919
      %v4930 = vmul.f32 %v4901, %v4919
      %v4931 = vmul.f32 %v4902, %v4919
      %v4932 = vmul.f32 %v4903, %v4919
      %v4933 = vmul.f32 %v4904, %v4919
      %v4934 = vmul.f32 %v4905, %v4919
      %v4935 = vmul.f32 %v4906, %v4919
      %v4936 = vmul.f32 %v4907, %v4919
      %v4937 = vmul.f32 %v4908, %v4919
      %v4938 = vmul.f32 %v4909, %v4919
      %v4939 = vmul.f32 %v4910, %v4919
      %v4940 = vmul.f32 %v4911, %v4919
      %v4941 = vmul.f32 %v4912, %v4919
      %v4942 = vmul.f32 %v4913, %v4919
      %v4943 = vmul.f32 %v4914, %v4919
      %v4944 = vmul.f32 %v4915, %v4919
      %v4945 = vmul.f32 %v4916, %v4919
      %v4946 = vmul.f32 %v4917, %v4919
      %v4947 = vmul.f32 %v4918, %v4919
      %v4948 = vadd.f32 %v4862, %v4920
      %v4949 = vadd.f32 %v4863, %v4921
      %v4950 = vadd.f32 %v4864, %v4922
      %v4951 = vadd.f32 %v4865, %v4923
      %v4952 = vadd.f32 %v4866, %v4924
      %v4953 = vadd.f32 %v4867, %v4925
      %v4954 = vadd.f32 %v4868, %v4926
      %v4955 = vadd.f32 %v4869, %v4927
      %v4956 = vadd.f32 %v4870, %v4928
      %v4957 = vadd.f32 %v4871, %v4929
      %v4958 = vadd.f32 %v4872, %v4930
      %v4959 = vadd.f32 %v4873, %v4931
      %v4960 = vadd.f32 %v4874, %v4932
      %v4961 = vadd.f32 %v4875, %v4933
      %v4962 = vadd.f32 %v4876, %v4934
      %v4963 = vadd.f32 %v4877, %v4935
      %v4964 = vadd.f32 %v4878, %v4936
      %v4965 = vadd.f32 %v4879, %v4937
      %v4966 = vadd.f32 %v4880, %v4938
      %v4967 = vadd.f32 %v4881, %v4939
      %v4968 = vadd.f32 %v4882, %v4940
      %v4969 = vadd.f32 %v4883, %v4941
      %v4970 = vadd.f32 %v4884, %v4942
      %v4971 = vadd.f32 %v4885, %v4943
      %v4972 = vadd.f32 %v4886, %v4944
      %v4973 = vadd.f32 %v4887, %v4945
      %v4974 = vadd.f32 %v4888, %v4946
      %v4975 = vadd.f32 %v4889, %v4947
      %s4976 = scalar_lea.vmem [#allocation3], 1680
      %v4977 = vld [vmem:[%s4976] sm:$0xff]
      %v4978 = vld [vmem:[%s4976 + $0x8] sm:$0x3f]
      %v4979 = vld [vmem:[%s4976 + $0x10] sm:$0xff]
      %v4980 = vld [vmem:[%s4976 + $0x18] sm:$0x3f]
      %v4981 = vld [vmem:[%s4976 + $0x20] sm:$0xff]
      %v4982 = vld [vmem:[%s4976 + $0x28] sm:$0x3f]
      %v4983 = vld [vmem:[%s4976 + $0x30] sm:$0xff]
      %v4984 = vld [vmem:[%s4976 + $0x38] sm:$0x3f]
      %v4985 = vld [vmem:[%s4976 + $0x40] sm:$0xff]
      %v4986 = vld [vmem:[%s4976 + $0x48] sm:$0x3f]
      %v4987 = vld [vmem:[%s4976 + $0x50] sm:$0xff]
      %v4988 = vld [vmem:[%s4976 + $0x58] sm:$0x3f]
      %v4989 = vld [vmem:[%s4976 + $0x60] sm:$0xff]
      %v4990 = vld [vmem:[%s4976 + $0x68] sm:$0x3f]
      %v4991 = vld [vmem:[%s4976 + $0x70] sm:$0xff]
      %v4992 = vld [vmem:[%s4976 + $0x78] sm:$0x3f]
      %v4993 = vld [vmem:[%s4976 + $0x80] sm:$0xff]
      %v4994 = vld [vmem:[%s4976 + $0x88] sm:$0x3f]
      %v4995 = vld [vmem:[%s4976 + $0x90] sm:$0xff]
      %v4996 = vld [vmem:[%s4976 + $0x98] sm:$0x3f]
      %v4997 = vld [vmem:[%s4976 + $0xa0] sm:$0xff]
      %v4998 = vld [vmem:[%s4976 + $0xa8] sm:$0x3f]
      %v4999 = vld [vmem:[%s4976 + $0xb0] sm:$0xff]
      %v5000 = vld [vmem:[%s4976 + $0xb8] sm:$0x3f]
      %v5001 = vld [vmem:[%s4976 + $0xc0] sm:$0xff]
      %v5002 = vld [vmem:[%s4976 + $0xc8] sm:$0x3f]
      %v5003 = vld [vmem:[%s4976 + $0xd0] sm:$0xff]
      %v5004 = vld [vmem:[%s4976 + $0xd8] sm:$0x3f]
      %v5005 = vperm.slane %v1536, 5
      %v5006 = vmul.f32 %v4977, %v5005
      %v5007 = vmul.f32 %v4978, %v5005
      %v5008 = vmul.f32 %v4979, %v5005
      %v5009 = vmul.f32 %v4980, %v5005
      %v5010 = vmul.f32 %v4981, %v5005
      %v5011 = vmul.f32 %v4982, %v5005
      %v5012 = vmul.f32 %v4983, %v5005
      %v5013 = vmul.f32 %v4984, %v5005
      %v5014 = vmul.f32 %v4985, %v5005
      %v5015 = vmul.f32 %v4986, %v5005
      %v5016 = vmul.f32 %v4987, %v5005
      %v5017 = vmul.f32 %v4988, %v5005
      %v5018 = vmul.f32 %v4989, %v5005
      %v5019 = vmul.f32 %v4990, %v5005
      %v5020 = vmul.f32 %v4991, %v5005
      %v5021 = vmul.f32 %v4992, %v5005
      %v5022 = vmul.f32 %v4993, %v5005
      %v5023 = vmul.f32 %v4994, %v5005
      %v5024 = vmul.f32 %v4995, %v5005
      %v5025 = vmul.f32 %v4996, %v5005
      %v5026 = vmul.f32 %v4997, %v5005
      %v5027 = vmul.f32 %v4998, %v5005
      %v5028 = vmul.f32 %v4999, %v5005
      %v5029 = vmul.f32 %v5000, %v5005
      %v5030 = vmul.f32 %v5001, %v5005
      %v5031 = vmul.f32 %v5002, %v5005
      %v5032 = vmul.f32 %v5003, %v5005
      %v5033 = vmul.f32 %v5004, %v5005
      %v5034 = vadd.f32 %v4948, %v5006
      %v5035 = vadd.f32 %v4949, %v5007
      %v5036 = vadd.f32 %v4950, %v5008
      %v5037 = vadd.f32 %v4951, %v5009
      %v5038 = vadd.f32 %v4952, %v5010
      %v5039 = vadd.f32 %v4953, %v5011
      %v5040 = vadd.f32 %v4954, %v5012
      %v5041 = vadd.f32 %v4955, %v5013
      %v5042 = vadd.f32 %v4956, %v5014
      %v5043 = vadd.f32 %v4957, %v5015
      %v5044 = vadd.f32 %v4958, %v5016
      %v5045 = vadd.f32 %v4959, %v5017
      %v5046 = vadd.f32 %v4960, %v5018
      %v5047 = vadd.f32 %v4961, %v5019
      %v5048 = vadd.f32 %v4962, %v5020
      %v5049 = vadd.f32 %v4963, %v5021
      %v5050 = vadd.f32 %v4964, %v5022
      %v5051 = vadd.f32 %v4965, %v5023
      %v5052 = vadd.f32 %v4966, %v5024
      %v5053 = vadd.f32 %v4967, %v5025
      %v5054 = vadd.f32 %v4968, %v5026
      %v5055 = vadd.f32 %v4969, %v5027
      %v5056 = vadd.f32 %v4970, %v5028
      %v5057 = vadd.f32 %v4971, %v5029
      %v5058 = vadd.f32 %v4972, %v5030
      %v5059 = vadd.f32 %v4973, %v5031
      %v5060 = vadd.f32 %v4974, %v5032
      %v5061 = vadd.f32 %v4975, %v5033
      %s5062 = scalar_lea.vmem [#allocation3], 1696
      %v5063 = vld [vmem:[%s5062] sm:$0xff]
      %v5064 = vld [vmem:[%s5062 + $0x8] sm:$0x3f]
      %v5065 = vld [vmem:[%s5062 + $0x10] sm:$0xff]
      %v5066 = vld [vmem:[%s5062 + $0x18] sm:$0x3f]
      %v5067 = vld [vmem:[%s5062 + $0x20] sm:$0xff]
      %v5068 = vld [vmem:[%s5062 + $0x28] sm:$0x3f]
      %v5069 = vld [vmem:[%s5062 + $0x30] sm:$0xff]
      %v5070 = vld [vmem:[%s5062 + $0x38] sm:$0x3f]
      %v5071 = vld [vmem:[%s5062 + $0x40] sm:$0xff]
      %v5072 = vld [vmem:[%s5062 + $0x48] sm:$0x3f]
      %v5073 = vld [vmem:[%s5062 + $0x50] sm:$0xff]
      %v5074 = vld [vmem:[%s5062 + $0x58] sm:$0x3f]
      %v5075 = vld [vmem:[%s5062 + $0x60] sm:$0xff]
      %v5076 = vld [vmem:[%s5062 + $0x68] sm:$0x3f]
      %v5077 = vld [vmem:[%s5062 + $0x70] sm:$0xff]
      %v5078 = vld [vmem:[%s5062 + $0x78] sm:$0x3f]
      %v5079 = vld [vmem:[%s5062 + $0x80] sm:$0xff]
      %v5080 = vld [vmem:[%s5062 + $0x88] sm:$0x3f]
      %v5081 = vld [vmem:[%s5062 + $0x90] sm:$0xff]
      %v5082 = vld [vmem:[%s5062 + $0x98] sm:$0x3f]
      %v5083 = vld [vmem:[%s5062 + $0xa0] sm:$0xff]
      %v5084 = vld [vmem:[%s5062 + $0xa8] sm:$0x3f]
      %v5085 = vld [vmem:[%s5062 + $0xb0] sm:$0xff]
      %v5086 = vld [vmem:[%s5062 + $0xb8] sm:$0x3f]
      %v5087 = vld [vmem:[%s5062 + $0xc0] sm:$0xff]
      %v5088 = vld [vmem:[%s5062 + $0xc8] sm:$0x3f]
      %v5089 = vld [vmem:[%s5062 + $0xd0] sm:$0xff]
      %v5090 = vld [vmem:[%s5062 + $0xd8] sm:$0x3f]
      %v5091 = vperm.slane %v1537, 5
      %v5092 = vmul.f32 %v5063, %v5091
      %v5093 = vmul.f32 %v5064, %v5091
      %v5094 = vmul.f32 %v5065, %v5091
      %v5095 = vmul.f32 %v5066, %v5091
      %v5096 = vmul.f32 %v5067, %v5091
      %v5097 = vmul.f32 %v5068, %v5091
      %v5098 = vmul.f32 %v5069, %v5091
      %v5099 = vmul.f32 %v5070, %v5091
      %v5100 = vmul.f32 %v5071, %v5091
      %v5101 = vmul.f32 %v5072, %v5091
      %v5102 = vmul.f32 %v5073, %v5091
      %v5103 = vmul.f32 %v5074, %v5091
      %v5104 = vmul.f32 %v5075, %v5091
      %v5105 = vmul.f32 %v5076, %v5091
      %v5106 = vmul.f32 %v5077, %v5091
      %v5107 = vmul.f32 %v5078, %v5091
      %v5108 = vmul.f32 %v5079, %v5091
      %v5109 = vmul.f32 %v5080, %v5091
      %v5110 = vmul.f32 %v5081, %v5091
      %v5111 = vmul.f32 %v5082, %v5091
      %v5112 = vmul.f32 %v5083, %v5091
      %v5113 = vmul.f32 %v5084, %v5091
      %v5114 = vmul.f32 %v5085, %v5091
      %v5115 = vmul.f32 %v5086, %v5091
      %v5116 = vmul.f32 %v5087, %v5091
      %v5117 = vmul.f32 %v5088, %v5091
      %v5118 = vmul.f32 %v5089, %v5091
      %v5119 = vmul.f32 %v5090, %v5091
      %v5120 = vadd.f32 %v5034, %v5092
      %v5121 = vadd.f32 %v5035, %v5093
      %v5122 = vadd.f32 %v5036, %v5094
      %v5123 = vadd.f32 %v5037, %v5095
      %v5124 = vadd.f32 %v5038, %v5096
      %v5125 = vadd.f32 %v5039, %v5097
      %v5126 = vadd.f32 %v5040, %v5098
      %v5127 = vadd.f32 %v5041, %v5099
      %v5128 = vadd.f32 %v5042, %v5100
      %v5129 = vadd.f32 %v5043, %v5101
      %v5130 = vadd.f32 %v5044, %v5102
      %v5131 = vadd.f32 %v5045, %v5103
      %v5132 = vadd.f32 %v5046, %v5104
      %v5133 = vadd.f32 %v5047, %v5105
      %v5134 = vadd.f32 %v5048, %v5106
      %v5135 = vadd.f32 %v5049, %v5107
      %v5136 = vadd.f32 %v5050, %v5108
      %v5137 = vadd.f32 %v5051, %v5109
      %v5138 = vadd.f32 %v5052, %v5110
      %v5139 = vadd.f32 %v5053, %v5111
      %v5140 = vadd.f32 %v5054, %v5112
      %v5141 = vadd.f32 %v5055, %v5113
      %v5142 = vadd.f32 %v5056, %v5114
      %v5143 = vadd.f32 %v5057, %v5115
      %v5144 = vadd.f32 %v5058, %v5116
      %v5145 = vadd.f32 %v5059, %v5117
      %v5146 = vadd.f32 %v5060, %v5118
      %v5147 = vadd.f32 %v5061, %v5119
      %v5148 = vld [vmem:[%s1408] sm:$0xff]
      %v5149 = vld [vmem:[%s1408 + $0x8] sm:$0x3f]
      %v5150 = vld [vmem:[%s1408 + $0x10] sm:$0xff]
      %v5151 = vld [vmem:[%s1408 + $0x18] sm:$0x3f]
      %v5152 = vld [vmem:[%s1408 + $0x20] sm:$0xff]
      %v5153 = vld [vmem:[%s1408 + $0x28] sm:$0x3f]
      %v5154 = vld [vmem:[%s1408 + $0x30] sm:$0xff]
      %v5155 = vld [vmem:[%s1408 + $0x38] sm:$0x3f]
      %v5156 = vld [vmem:[%s1408 + $0x40] sm:$0xff]
      %v5157 = vld [vmem:[%s1408 + $0x48] sm:$0x3f]
      %v5158 = vld [vmem:[%s1408 + $0x50] sm:$0xff]
      %v5159 = vld [vmem:[%s1408 + $0x58] sm:$0x3f]
      %v5160 = vld [vmem:[%s1408 + $0x60] sm:$0xff]
      %v5161 = vld [vmem:[%s1408 + $0x68] sm:$0x3f]
      %v5162 = vld [vmem:[%s1408 + $0x70] sm:$0xff]
      %v5163 = vld [vmem:[%s1408 + $0x78] sm:$0x3f]
      %v5164 = vld [vmem:[%s1408 + $0x80] sm:$0xff]
      %v5165 = vld [vmem:[%s1408 + $0x88] sm:$0x3f]
      %v5166 = vld [vmem:[%s1408 + $0x90] sm:$0xff]
      %v5167 = vld [vmem:[%s1408 + $0x98] sm:$0x3f]
      %v5168 = vld [vmem:[%s1408 + $0xa0] sm:$0xff]
      %v5169 = vld [vmem:[%s1408 + $0xa8] sm:$0x3f]
      %v5170 = vld [vmem:[%s1408 + $0xb0] sm:$0xff]
      %v5171 = vld [vmem:[%s1408 + $0xb8] sm:$0x3f]
      %v5172 = vld [vmem:[%s1408 + $0xc0] sm:$0xff]
      %v5173 = vld [vmem:[%s1408 + $0xc8] sm:$0x3f]
      %v5174 = vld [vmem:[%s1408 + $0xd0] sm:$0xff]
      %v5175 = vld [vmem:[%s1408 + $0xd8] sm:$0x3f]
      %v5176 = vperm.slane %v1531, 6
      %v5177 = vmul.f32 %v5148, %v5176
      %v5178 = vmul.f32 %v5149, %v5176
      %v5179 = vmul.f32 %v5150, %v5176
      %v5180 = vmul.f32 %v5151, %v5176
      %v5181 = vmul.f32 %v5152, %v5176
      %v5182 = vmul.f32 %v5153, %v5176
      %v5183 = vmul.f32 %v5154, %v5176
      %v5184 = vmul.f32 %v5155, %v5176
      %v5185 = vmul.f32 %v5156, %v5176
      %v5186 = vmul.f32 %v5157, %v5176
      %v5187 = vmul.f32 %v5158, %v5176
      %v5188 = vmul.f32 %v5159, %v5176
      %v5189 = vmul.f32 %v5160, %v5176
      %v5190 = vmul.f32 %v5161, %v5176
      %v5191 = vmul.f32 %v5162, %v5176
      %v5192 = vmul.f32 %v5163, %v5176
      %v5193 = vmul.f32 %v5164, %v5176
      %v5194 = vmul.f32 %v5165, %v5176
      %v5195 = vmul.f32 %v5166, %v5176
      %v5196 = vmul.f32 %v5167, %v5176
      %v5197 = vmul.f32 %v5168, %v5176
      %v5198 = vmul.f32 %v5169, %v5176
      %v5199 = vmul.f32 %v5170, %v5176
      %v5200 = vmul.f32 %v5171, %v5176
      %v5201 = vmul.f32 %v5172, %v5176
      %v5202 = vmul.f32 %v5173, %v5176
      %v5203 = vmul.f32 %v5174, %v5176
      %v5204 = vmul.f32 %v5175, %v5176
      %v5205 = vadd.f32 %v5120, %v5177
      %v5206 = vadd.f32 %v5121, %v5178
      %v5207 = vadd.f32 %v5122, %v5179
      %v5208 = vadd.f32 %v5123, %v5180
      %v5209 = vadd.f32 %v5124, %v5181
      %v5210 = vadd.f32 %v5125, %v5182
      %v5211 = vadd.f32 %v5126, %v5183
      %v5212 = vadd.f32 %v5127, %v5184
      %v5213 = vadd.f32 %v5128, %v5185
      %v5214 = vadd.f32 %v5129, %v5186
      %v5215 = vadd.f32 %v5130, %v5187
      %v5216 = vadd.f32 %v5131, %v5188
      %v5217 = vadd.f32 %v5132, %v5189
      %v5218 = vadd.f32 %v5133, %v5190
      %v5219 = vadd.f32 %v5134, %v5191
      %v5220 = vadd.f32 %v5135, %v5192
      %v5221 = vadd.f32 %v5136, %v5193
      %v5222 = vadd.f32 %v5137, %v5194
      %v5223 = vadd.f32 %v5138, %v5195
      %v5224 = vadd.f32 %v5139, %v5196
      %v5225 = vadd.f32 %v5140, %v5197
      %v5226 = vadd.f32 %v5141, %v5198
      %v5227 = vadd.f32 %v5142, %v5199
      %v5228 = vadd.f32 %v5143, %v5200
      %v5229 = vadd.f32 %v5144, %v5201
      %v5230 = vadd.f32 %v5145, %v5202
      %v5231 = vadd.f32 %v5146, %v5203
      %v5232 = vadd.f32 %v5147, %v5204
      %s5233 = scalar_lea.vmem [#allocation3], 1936
      %v5234 = vld [vmem:[%s5233] sm:$0xff]
      %v5235 = vld [vmem:[%s5233 + $0x8] sm:$0x3f]
      %v5236 = vld [vmem:[%s5233 + $0x10] sm:$0xff]
      %v5237 = vld [vmem:[%s5233 + $0x18] sm:$0x3f]
      %v5238 = vld [vmem:[%s5233 + $0x20] sm:$0xff]
      %v5239 = vld [vmem:[%s5233 + $0x28] sm:$0x3f]
      %v5240 = vld [vmem:[%s5233 + $0x30] sm:$0xff]
      %v5241 = vld [vmem:[%s5233 + $0x38] sm:$0x3f]
      %v5242 = vld [vmem:[%s5233 + $0x40] sm:$0xff]
      %v5243 = vld [vmem:[%s5233 + $0x48] sm:$0x3f]
      %v5244 = vld [vmem:[%s5233 + $0x50] sm:$0xff]
      %v5245 = vld [vmem:[%s5233 + $0x58] sm:$0x3f]
      %v5246 = vld [vmem:[%s5233 + $0x60] sm:$0xff]
      %v5247 = vld [vmem:[%s5233 + $0x68] sm:$0x3f]
      %v5248 = vld [vmem:[%s5233 + $0x70] sm:$0xff]
      %v5249 = vld [vmem:[%s5233 + $0x78] sm:$0x3f]
      %v5250 = vld [vmem:[%s5233 + $0x80] sm:$0xff]
      %v5251 = vld [vmem:[%s5233 + $0x88] sm:$0x3f]
      %v5252 = vld [vmem:[%s5233 + $0x90] sm:$0xff]
      %v5253 = vld [vmem:[%s5233 + $0x98] sm:$0x3f]
      %v5254 = vld [vmem:[%s5233 + $0xa0] sm:$0xff]
      %v5255 = vld [vmem:[%s5233 + $0xa8] sm:$0x3f]
      %v5256 = vld [vmem:[%s5233 + $0xb0] sm:$0xff]
      %v5257 = vld [vmem:[%s5233 + $0xb8] sm:$0x3f]
      %v5258 = vld [vmem:[%s5233 + $0xc0] sm:$0xff]
      %v5259 = vld [vmem:[%s5233 + $0xc8] sm:$0x3f]
      %v5260 = vld [vmem:[%s5233 + $0xd0] sm:$0xff]
      %v5261 = vld [vmem:[%s5233 + $0xd8] sm:$0x3f]
      %v5262 = vperm.slane %v1532, 6
      %v5263 = vmul.f32 %v5234, %v5262
      %v5264 = vmul.f32 %v5235, %v5262
      %v5265 = vmul.f32 %v5236, %v5262
      %v5266 = vmul.f32 %v5237, %v5262
      %v5267 = vmul.f32 %v5238, %v5262
      %v5268 = vmul.f32 %v5239, %v5262
      %v5269 = vmul.f32 %v5240, %v5262
      %v5270 = vmul.f32 %v5241, %v5262
      %v5271 = vmul.f32 %v5242, %v5262
      %v5272 = vmul.f32 %v5243, %v5262
      %v5273 = vmul.f32 %v5244, %v5262
      %v5274 = vmul.f32 %v5245, %v5262
      %v5275 = vmul.f32 %v5246, %v5262
      %v5276 = vmul.f32 %v5247, %v5262
      %v5277 = vmul.f32 %v5248, %v5262
      %v5278 = vmul.f32 %v5249, %v5262
      %v5279 = vmul.f32 %v5250, %v5262
      %v5280 = vmul.f32 %v5251, %v5262
      %v5281 = vmul.f32 %v5252, %v5262
      %v5282 = vmul.f32 %v5253, %v5262
      %v5283 = vmul.f32 %v5254, %v5262
      %v5284 = vmul.f32 %v5255, %v5262
      %v5285 = vmul.f32 %v5256, %v5262
      %v5286 = vmul.f32 %v5257, %v5262
      %v5287 = vmul.f32 %v5258, %v5262
      %v5288 = vmul.f32 %v5259, %v5262
      %v5289 = vmul.f32 %v5260, %v5262
      %v5290 = vmul.f32 %v5261, %v5262
      %v5291 = vadd.f32 %v5205, %v5263
      %v5292 = vadd.f32 %v5206, %v5264
      %v5293 = vadd.f32 %v5207, %v5265
      %v5294 = vadd.f32 %v5208, %v5266
      %v5295 = vadd.f32 %v5209, %v5267
      %v5296 = vadd.f32 %v5210, %v5268
      %v5297 = vadd.f32 %v5211, %v5269
      %v5298 = vadd.f32 %v5212, %v5270
      %v5299 = vadd.f32 %v5213, %v5271
      %v5300 = vadd.f32 %v5214, %v5272
      %v5301 = vadd.f32 %v5215, %v5273
      %v5302 = vadd.f32 %v5216, %v5274
      %v5303 = vadd.f32 %v5217, %v5275
      %v5304 = vadd.f32 %v5218, %v5276
      %v5305 = vadd.f32 %v5219, %v5277
      %v5306 = vadd.f32 %v5220, %v5278
      %v5307 = vadd.f32 %v5221, %v5279
      %v5308 = vadd.f32 %v5222, %v5280
      %v5309 = vadd.f32 %v5223, %v5281
      %v5310 = vadd.f32 %v5224, %v5282
      %v5311 = vadd.f32 %v5225, %v5283
      %v5312 = vadd.f32 %v5226, %v5284
      %v5313 = vadd.f32 %v5227, %v5285
      %v5314 = vadd.f32 %v5228, %v5286
      %v5315 = vadd.f32 %v5229, %v5287
      %v5316 = vadd.f32 %v5230, %v5288
      %v5317 = vadd.f32 %v5231, %v5289
      %v5318 = vadd.f32 %v5232, %v5290
      %s5319 = scalar_lea.vmem [#allocation3], 1952
      %v5320 = vld [vmem:[%s5319] sm:$0xff]
      %v5321 = vld [vmem:[%s5319 + $0x8] sm:$0x3f]
      %v5322 = vld [vmem:[%s5319 + $0x10] sm:$0xff]
      %v5323 = vld [vmem:[%s5319 + $0x18] sm:$0x3f]
      %v5324 = vld [vmem:[%s5319 + $0x20] sm:$0xff]
      %v5325 = vld [vmem:[%s5319 + $0x28] sm:$0x3f]
      %v5326 = vld [vmem:[%s5319 + $0x30] sm:$0xff]
      %v5327 = vld [vmem:[%s5319 + $0x38] sm:$0x3f]
      %v5328 = vld [vmem:[%s5319 + $0x40] sm:$0xff]
      %v5329 = vld [vmem:[%s5319 + $0x48] sm:$0x3f]
      %v5330 = vld [vmem:[%s5319 + $0x50] sm:$0xff]
      %v5331 = vld [vmem:[%s5319 + $0x58] sm:$0x3f]
      %v5332 = vld [vmem:[%s5319 + $0x60] sm:$0xff]
      %v5333 = vld [vmem:[%s5319 + $0x68] sm:$0x3f]
      %v5334 = vld [vmem:[%s5319 + $0x70] sm:$0xff]
      %v5335 = vld [vmem:[%s5319 + $0x78] sm:$0x3f]
      %v5336 = vld [vmem:[%s5319 + $0x80] sm:$0xff]
      %v5337 = vld [vmem:[%s5319 + $0x88] sm:$0x3f]
      %v5338 = vld [vmem:[%s5319 + $0x90] sm:$0xff]
      %v5339 = vld [vmem:[%s5319 + $0x98] sm:$0x3f]
      %v5340 = vld [vmem:[%s5319 + $0xa0] sm:$0xff]
      %v5341 = vld [vmem:[%s5319 + $0xa8] sm:$0x3f]
      %v5342 = vld [vmem:[%s5319 + $0xb0] sm:$0xff]
      %v5343 = vld [vmem:[%s5319 + $0xb8] sm:$0x3f]
      %v5344 = vld [vmem:[%s5319 + $0xc0] sm:$0xff]
      %v5345 = vld [vmem:[%s5319 + $0xc8] sm:$0x3f]
      %v5346 = vld [vmem:[%s5319 + $0xd0] sm:$0xff]
      %v5347 = vld [vmem:[%s5319 + $0xd8] sm:$0x3f]
      %v5348 = vperm.slane %v1533, 6
      %v5349 = vmul.f32 %v5320, %v5348
      %v5350 = vmul.f32 %v5321, %v5348
      %v5351 = vmul.f32 %v5322, %v5348
      %v5352 = vmul.f32 %v5323, %v5348
      %v5353 = vmul.f32 %v5324, %v5348
      %v5354 = vmul.f32 %v5325, %v5348
      %v5355 = vmul.f32 %v5326, %v5348
      %v5356 = vmul.f32 %v5327, %v5348
      %v5357 = vmul.f32 %v5328, %v5348
      %v5358 = vmul.f32 %v5329, %v5348
      %v5359 = vmul.f32 %v5330, %v5348
      %v5360 = vmul.f32 %v5331, %v5348
      %v5361 = vmul.f32 %v5332, %v5348
      %v5362 = vmul.f32 %v5333, %v5348
      %v5363 = vmul.f32 %v5334, %v5348
      %v5364 = vmul.f32 %v5335, %v5348
      %v5365 = vmul.f32 %v5336, %v5348
      %v5366 = vmul.f32 %v5337, %v5348
      %v5367 = vmul.f32 %v5338, %v5348
      %v5368 = vmul.f32 %v5339, %v5348
      %v5369 = vmul.f32 %v5340, %v5348
      %v5370 = vmul.f32 %v5341, %v5348
      %v5371 = vmul.f32 %v5342, %v5348
      %v5372 = vmul.f32 %v5343, %v5348
      %v5373 = vmul.f32 %v5344, %v5348
      %v5374 = vmul.f32 %v5345, %v5348
      %v5375 = vmul.f32 %v5346, %v5348
      %v5376 = vmul.f32 %v5347, %v5348
      %v5377 = vadd.f32 %v5291, %v5349
      %v5378 = vadd.f32 %v5292, %v5350
      %v5379 = vadd.f32 %v5293, %v5351
      %v5380 = vadd.f32 %v5294, %v5352
      %v5381 = vadd.f32 %v5295, %v5353
      %v5382 = vadd.f32 %v5296, %v5354
      %v5383 = vadd.f32 %v5297, %v5355
      %v5384 = vadd.f32 %v5298, %v5356
      %v5385 = vadd.f32 %v5299, %v5357
      %v5386 = vadd.f32 %v5300, %v5358
      %v5387 = vadd.f32 %v5301, %v5359
      %v5388 = vadd.f32 %v5302, %v5360
      %v5389 = vadd.f32 %v5303, %v5361
      %v5390 = vadd.f32 %v5304, %v5362
      %v5391 = vadd.f32 %v5305, %v5363
      %v5392 = vadd.f32 %v5306, %v5364
      %v5393 = vadd.f32 %v5307, %v5365
      %v5394 = vadd.f32 %v5308, %v5366
      %v5395 = vadd.f32 %v5309, %v5367
      %v5396 = vadd.f32 %v5310, %v5368
      %v5397 = vadd.f32 %v5311, %v5369
      %v5398 = vadd.f32 %v5312, %v5370
      %v5399 = vadd.f32 %v5313, %v5371
      %v5400 = vadd.f32 %v5314, %v5372
      %v5401 = vadd.f32 %v5315, %v5373
      %v5402 = vadd.f32 %v5316, %v5374
      %v5403 = vadd.f32 %v5317, %v5375
      %v5404 = vadd.f32 %v5318, %v5376
      %s5405 = scalar_lea.vmem [#allocation3], 1968
      %v5406 = vld [vmem:[%s5405] sm:$0xff]
      %v5407 = vld [vmem:[%s5405 + $0x8] sm:$0x3f]
      %v5408 = vld [vmem:[%s5405 + $0x10] sm:$0xff]
      %v5409 = vld [vmem:[%s5405 + $0x18] sm:$0x3f]
      %v5410 = vld [vmem:[%s5405 + $0x20] sm:$0xff]
      %v5411 = vld [vmem:[%s5405 + $0x28] sm:$0x3f]
      %v5412 = vld [vmem:[%s5405 + $0x30] sm:$0xff]
      %v5413 = vld [vmem:[%s5405 + $0x38] sm:$0x3f]
      %v5414 = vld [vmem:[%s5405 + $0x40] sm:$0xff]
      %v5415 = vld [vmem:[%s5405 + $0x48] sm:$0x3f]
      %v5416 = vld [vmem:[%s5405 + $0x50] sm:$0xff]
      %v5417 = vld [vmem:[%s5405 + $0x58] sm:$0x3f]
      %v5418 = vld [vmem:[%s5405 + $0x60] sm:$0xff]
      %v5419 = vld [vmem:[%s5405 + $0x68] sm:$0x3f]
      %v5420 = vld [vmem:[%s5405 + $0x70] sm:$0xff]
      %v5421 = vld [vmem:[%s5405 + $0x78] sm:$0x3f]
      %v5422 = vld [vmem:[%s5405 + $0x80] sm:$0xff]
      %v5423 = vld [vmem:[%s5405 + $0x88] sm:$0x3f]
      %v5424 = vld [vmem:[%s5405 + $0x90] sm:$0xff]
      %v5425 = vld [vmem:[%s5405 + $0x98] sm:$0x3f]
      %v5426 = vld [vmem:[%s5405 + $0xa0] sm:$0xff]
      %v5427 = vld [vmem:[%s5405 + $0xa8] sm:$0x3f]
      %v5428 = vld [vmem:[%s5405 + $0xb0] sm:$0xff]
      %v5429 = vld [vmem:[%s5405 + $0xb8] sm:$0x3f]
      %v5430 = vld [vmem:[%s5405 + $0xc0] sm:$0xff]
      %v5431 = vld [vmem:[%s5405 + $0xc8] sm:$0x3f]
      %v5432 = vld [vmem:[%s5405 + $0xd0] sm:$0xff]
      %v5433 = vld [vmem:[%s5405 + $0xd8] sm:$0x3f]
      %v5434 = vperm.slane %v1534, 6
      %v5435 = vmul.f32 %v5406, %v5434
      %v5436 = vmul.f32 %v5407, %v5434
      %v5437 = vmul.f32 %v5408, %v5434
      %v5438 = vmul.f32 %v5409, %v5434
      %v5439 = vmul.f32 %v5410, %v5434
      %v5440 = vmul.f32 %v5411, %v5434
      %v5441 = vmul.f32 %v5412, %v5434
      %v5442 = vmul.f32 %v5413, %v5434
      %v5443 = vmul.f32 %v5414, %v5434
      %v5444 = vmul.f32 %v5415, %v5434
      %v5445 = vmul.f32 %v5416, %v5434
      %v5446 = vmul.f32 %v5417, %v5434
      %v5447 = vmul.f32 %v5418, %v5434
      %v5448 = vmul.f32 %v5419, %v5434
      %v5449 = vmul.f32 %v5420, %v5434
      %v5450 = vmul.f32 %v5421, %v5434
      %v5451 = vmul.f32 %v5422, %v5434
      %v5452 = vmul.f32 %v5423, %v5434
      %v5453 = vmul.f32 %v5424, %v5434
      %v5454 = vmul.f32 %v5425, %v5434
      %v5455 = vmul.f32 %v5426, %v5434
      %v5456 = vmul.f32 %v5427, %v5434
      %v5457 = vmul.f32 %v5428, %v5434
      %v5458 = vmul.f32 %v5429, %v5434
      %v5459 = vmul.f32 %v5430, %v5434
      %v5460 = vmul.f32 %v5431, %v5434
      %v5461 = vmul.f32 %v5432, %v5434
      %v5462 = vmul.f32 %v5433, %v5434
      %v5463 = vadd.f32 %v5377, %v5435
      %v5464 = vadd.f32 %v5378, %v5436
      %v5465 = vadd.f32 %v5379, %v5437
      %v5466 = vadd.f32 %v5380, %v5438
      %v5467 = vadd.f32 %v5381, %v5439
      %v5468 = vadd.f32 %v5382, %v5440
      %v5469 = vadd.f32 %v5383, %v5441
      %v5470 = vadd.f32 %v5384, %v5442
      %v5471 = vadd.f32 %v5385, %v5443
      %v5472 = vadd.f32 %v5386, %v5444
      %v5473 = vadd.f32 %v5387, %v5445
      %v5474 = vadd.f32 %v5388, %v5446
      %v5475 = vadd.f32 %v5389, %v5447
      %v5476 = vadd.f32 %v5390, %v5448
      %v5477 = vadd.f32 %v5391, %v5449
      %v5478 = vadd.f32 %v5392, %v5450
      %v5479 = vadd.f32 %v5393, %v5451
      %v5480 = vadd.f32 %v5394, %v5452
      %v5481 = vadd.f32 %v5395, %v5453
      %v5482 = vadd.f32 %v5396, %v5454
      %v5483 = vadd.f32 %v5397, %v5455
      %v5484 = vadd.f32 %v5398, %v5456
      %v5485 = vadd.f32 %v5399, %v5457
      %v5486 = vadd.f32 %v5400, %v5458
      %v5487 = vadd.f32 %v5401, %v5459
      %v5488 = vadd.f32 %v5402, %v5460
      %v5489 = vadd.f32 %v5403, %v5461
      %v5490 = vadd.f32 %v5404, %v5462
      %s5491 = scalar_lea.vmem [#allocation3], 1984
      %v5492 = vld [vmem:[%s5491] sm:$0xff]
      %v5493 = vld [vmem:[%s5491 + $0x8] sm:$0x3f]
      %v5494 = vld [vmem:[%s5491 + $0x10] sm:$0xff]
      %v5495 = vld [vmem:[%s5491 + $0x18] sm:$0x3f]
      %v5496 = vld [vmem:[%s5491 + $0x20] sm:$0xff]
      %v5497 = vld [vmem:[%s5491 + $0x28] sm:$0x3f]
      %v5498 = vld [vmem:[%s5491 + $0x30] sm:$0xff]
      %v5499 = vld [vmem:[%s5491 + $0x38] sm:$0x3f]
      %v5500 = vld [vmem:[%s5491 + $0x40] sm:$0xff]
      %v5501 = vld [vmem:[%s5491 + $0x48] sm:$0x3f]
      %v5502 = vld [vmem:[%s5491 + $0x50] sm:$0xff]
      %v5503 = vld [vmem:[%s5491 + $0x58] sm:$0x3f]
      %v5504 = vld [vmem:[%s5491 + $0x60] sm:$0xff]
      %v5505 = vld [vmem:[%s5491 + $0x68] sm:$0x3f]
      %v5506 = vld [vmem:[%s5491 + $0x70] sm:$0xff]
      %v5507 = vld [vmem:[%s5491 + $0x78] sm:$0x3f]
      %v5508 = vld [vmem:[%s5491 + $0x80] sm:$0xff]
      %v5509 = vld [vmem:[%s5491 + $0x88] sm:$0x3f]
      %v5510 = vld [vmem:[%s5491 + $0x90] sm:$0xff]
      %v5511 = vld [vmem:[%s5491 + $0x98] sm:$0x3f]
      %v5512 = vld [vmem:[%s5491 + $0xa0] sm:$0xff]
      %v5513 = vld [vmem:[%s5491 + $0xa8] sm:$0x3f]
      %v5514 = vld [vmem:[%s5491 + $0xb0] sm:$0xff]
      %v5515 = vld [vmem:[%s5491 + $0xb8] sm:$0x3f]
      %v5516 = vld [vmem:[%s5491 + $0xc0] sm:$0xff]
      %v5517 = vld [vmem:[%s5491 + $0xc8] sm:$0x3f]
      %v5518 = vld [vmem:[%s5491 + $0xd0] sm:$0xff]
      %v5519 = vld [vmem:[%s5491 + $0xd8] sm:$0x3f]
      %v5520 = vperm.slane %v1535, 6
      %v5521 = vmul.f32 %v5492, %v5520
      %v5522 = vmul.f32 %v5493, %v5520
      %v5523 = vmul.f32 %v5494, %v5520
      %v5524 = vmul.f32 %v5495, %v5520
      %v5525 = vmul.f32 %v5496, %v5520
      %v5526 = vmul.f32 %v5497, %v5520
      %v5527 = vmul.f32 %v5498, %v5520
      %v5528 = vmul.f32 %v5499, %v5520
      %v5529 = vmul.f32 %v5500, %v5520
      %v5530 = vmul.f32 %v5501, %v5520
      %v5531 = vmul.f32 %v5502, %v5520
      %v5532 = vmul.f32 %v5503, %v5520
      %v5533 = vmul.f32 %v5504, %v5520
      %v5534 = vmul.f32 %v5505, %v5520
      %v5535 = vmul.f32 %v5506, %v5520
      %v5536 = vmul.f32 %v5507, %v5520
      %v5537 = vmul.f32 %v5508, %v5520
      %v5538 = vmul.f32 %v5509, %v5520
      %v5539 = vmul.f32 %v5510, %v5520
      %v5540 = vmul.f32 %v5511, %v5520
      %v5541 = vmul.f32 %v5512, %v5520
      %v5542 = vmul.f32 %v5513, %v5520
      %v5543 = vmul.f32 %v5514, %v5520
      %v5544 = vmul.f32 %v5515, %v5520
      %v5545 = vmul.f32 %v5516, %v5520
      %v5546 = vmul.f32 %v5517, %v5520
      %v5547 = vmul.f32 %v5518, %v5520
      %v5548 = vmul.f32 %v5519, %v5520
      %v5549 = vadd.f32 %v5463, %v5521
      %v5550 = vadd.f32 %v5464, %v5522
      %v5551 = vadd.f32 %v5465, %v5523
      %v5552 = vadd.f32 %v5466, %v5524
      %v5553 = vadd.f32 %v5467, %v5525
      %v5554 = vadd.f32 %v5468, %v5526
      %v5555 = vadd.f32 %v5469, %v5527
      %v5556 = vadd.f32 %v5470, %v5528
      %v5557 = vadd.f32 %v5471, %v5529
      %v5558 = vadd.f32 %v5472, %v5530
      %v5559 = vadd.f32 %v5473, %v5531
      %v5560 = vadd.f32 %v5474, %v5532
      %v5561 = vadd.f32 %v5475, %v5533
      %v5562 = vadd.f32 %v5476, %v5534
      %v5563 = vadd.f32 %v5477, %v5535
      %v5564 = vadd.f32 %v5478, %v5536
      %v5565 = vadd.f32 %v5479, %v5537
      %v5566 = vadd.f32 %v5480, %v5538
      %v5567 = vadd.f32 %v5481, %v5539
      %v5568 = vadd.f32 %v5482, %v5540
      %v5569 = vadd.f32 %v5483, %v5541
      %v5570 = vadd.f32 %v5484, %v5542
      %v5571 = vadd.f32 %v5485, %v5543
      %v5572 = vadd.f32 %v5486, %v5544
      %v5573 = vadd.f32 %v5487, %v5545
      %v5574 = vadd.f32 %v5488, %v5546
      %v5575 = vadd.f32 %v5489, %v5547
      %v5576 = vadd.f32 %v5490, %v5548
      %s5577 = scalar_lea.vmem [#allocation3], 2000
      %v5578 = vld [vmem:[%s5577] sm:$0xff]
      %v5579 = vld [vmem:[%s5577 + $0x8] sm:$0x3f]
      %v5580 = vld [vmem:[%s5577 + $0x10] sm:$0xff]
      %v5581 = vld [vmem:[%s5577 + $0x18] sm:$0x3f]
      %v5582 = vld [vmem:[%s5577 + $0x20] sm:$0xff]
      %v5583 = vld [vmem:[%s5577 + $0x28] sm:$0x3f]
      %v5584 = vld [vmem:[%s5577 + $0x30] sm:$0xff]
      %v5585 = vld [vmem:[%s5577 + $0x38] sm:$0x3f]
      %v5586 = vld [vmem:[%s5577 + $0x40] sm:$0xff]
      %v5587 = vld [vmem:[%s5577 + $0x48] sm:$0x3f]
      %v5588 = vld [vmem:[%s5577 + $0x50] sm:$0xff]
      %v5589 = vld [vmem:[%s5577 + $0x58] sm:$0x3f]
      %v5590 = vld [vmem:[%s5577 + $0x60] sm:$0xff]
      %v5591 = vld [vmem:[%s5577 + $0x68] sm:$0x3f]
      %v5592 = vld [vmem:[%s5577 + $0x70] sm:$0xff]
      %v5593 = vld [vmem:[%s5577 + $0x78] sm:$0x3f]
      %v5594 = vld [vmem:[%s5577 + $0x80] sm:$0xff]
      %v5595 = vld [vmem:[%s5577 + $0x88] sm:$0x3f]
      %v5596 = vld [vmem:[%s5577 + $0x90] sm:$0xff]
      %v5597 = vld [vmem:[%s5577 + $0x98] sm:$0x3f]
      %v5598 = vld [vmem:[%s5577 + $0xa0] sm:$0xff]
      %v5599 = vld [vmem:[%s5577 + $0xa8] sm:$0x3f]
      %v5600 = vld [vmem:[%s5577 + $0xb0] sm:$0xff]
      %v5601 = vld [vmem:[%s5577 + $0xb8] sm:$0x3f]
      %v5602 = vld [vmem:[%s5577 + $0xc0] sm:$0xff]
      %v5603 = vld [vmem:[%s5577 + $0xc8] sm:$0x3f]
      %v5604 = vld [vmem:[%s5577 + $0xd0] sm:$0xff]
      %v5605 = vld [vmem:[%s5577 + $0xd8] sm:$0x3f]
      %v5606 = vperm.slane %v1536, 6
      %v5607 = vmul.f32 %v5578, %v5606
      %v5608 = vmul.f32 %v5579, %v5606
      %v5609 = vmul.f32 %v5580, %v5606
      %v5610 = vmul.f32 %v5581, %v5606
      %v5611 = vmul.f32 %v5582, %v5606
      %v5612 = vmul.f32 %v5583, %v5606
      %v5613 = vmul.f32 %v5584, %v5606
      %v5614 = vmul.f32 %v5585, %v5606
      %v5615 = vmul.f32 %v5586, %v5606
      %v5616 = vmul.f32 %v5587, %v5606
      %v5617 = vmul.f32 %v5588, %v5606
      %v5618 = vmul.f32 %v5589, %v5606
      %v5619 = vmul.f32 %v5590, %v5606
      %v5620 = vmul.f32 %v5591, %v5606
      %v5621 = vmul.f32 %v5592, %v5606
      %v5622 = vmul.f32 %v5593, %v5606
      %v5623 = vmul.f32 %v5594, %v5606
      %v5624 = vmul.f32 %v5595, %v5606
      %v5625 = vmul.f32 %v5596, %v5606
      %v5626 = vmul.f32 %v5597, %v5606
      %v5627 = vmul.f32 %v5598, %v5606
      %v5628 = vmul.f32 %v5599, %v5606
      %v5629 = vmul.f32 %v5600, %v5606
      %v5630 = vmul.f32 %v5601, %v5606
      %v5631 = vmul.f32 %v5602, %v5606
      %v5632 = vmul.f32 %v5603, %v5606
      %v5633 = vmul.f32 %v5604, %v5606
      %v5634 = vmul.f32 %v5605, %v5606
      %v5635 = vadd.f32 %v5549, %v5607
      %v5636 = vadd.f32 %v5550, %v5608
      %v5637 = vadd.f32 %v5551, %v5609
      %v5638 = vadd.f32 %v5552, %v5610
      %v5639 = vadd.f32 %v5553, %v5611
      %v5640 = vadd.f32 %v5554, %v5612
      %v5641 = vadd.f32 %v5555, %v5613
      %v5642 = vadd.f32 %v5556, %v5614
      %v5643 = vadd.f32 %v5557, %v5615
      %v5644 = vadd.f32 %v5558, %v5616
      %v5645 = vadd.f32 %v5559, %v5617
      %v5646 = vadd.f32 %v5560, %v5618
      %v5647 = vadd.f32 %v5561, %v5619
      %v5648 = vadd.f32 %v5562, %v5620
      %v5649 = vadd.f32 %v5563, %v5621
      %v5650 = vadd.f32 %v5564, %v5622
      %v5651 = vadd.f32 %v5565, %v5623
      %v5652 = vadd.f32 %v5566, %v5624
      %v5653 = vadd.f32 %v5567, %v5625
      %v5654 = vadd.f32 %v5568, %v5626
      %v5655 = vadd.f32 %v5569, %v5627
      %v5656 = vadd.f32 %v5570, %v5628
      %v5657 = vadd.f32 %v5571, %v5629
      %v5658 = vadd.f32 %v5572, %v5630
      %v5659 = vadd.f32 %v5573, %v5631
      %v5660 = vadd.f32 %v5574, %v5632
      %v5661 = vadd.f32 %v5575, %v5633
      %v5662 = vadd.f32 %v5576, %v5634
      %s5663 = scalar_lea.vmem [#allocation3], 2016
      %v5664 = vld [vmem:[%s5663] sm:$0xff]
      %v5665 = vld [vmem:[%s5663 + $0x8] sm:$0x3f]
      %v5666 = vld [vmem:[%s5663 + $0x10] sm:$0xff]
      %v5667 = vld [vmem:[%s5663 + $0x18] sm:$0x3f]
      %v5668 = vld [vmem:[%s5663 + $0x20] sm:$0xff]
      %v5669 = vld [vmem:[%s5663 + $0x28] sm:$0x3f]
      %v5670 = vld [vmem:[%s5663 + $0x30] sm:$0xff]
      %v5671 = vld [vmem:[%s5663 + $0x38] sm:$0x3f]
      %v5672 = vld [vmem:[%s5663 + $0x40] sm:$0xff]
      %v5673 = vld [vmem:[%s5663 + $0x48] sm:$0x3f]
      %v5674 = vld [vmem:[%s5663 + $0x50] sm:$0xff]
      %v5675 = vld [vmem:[%s5663 + $0x58] sm:$0x3f]
      %v5676 = vld [vmem:[%s5663 + $0x60] sm:$0xff]
      %v5677 = vld [vmem:[%s5663 + $0x68] sm:$0x3f]
      %v5678 = vld [vmem:[%s5663 + $0x70] sm:$0xff]
      %v5679 = vld [vmem:[%s5663 + $0x78] sm:$0x3f]
      %v5680 = vld [vmem:[%s5663 + $0x80] sm:$0xff]
      %v5681 = vld [vmem:[%s5663 + $0x88] sm:$0x3f]
      %v5682 = vld [vmem:[%s5663 + $0x90] sm:$0xff]
      %v5683 = vld [vmem:[%s5663 + $0x98] sm:$0x3f]
      %v5684 = vld [vmem:[%s5663 + $0xa0] sm:$0xff]
      %v5685 = vld [vmem:[%s5663 + $0xa8] sm:$0x3f]
      %v5686 = vld [vmem:[%s5663 + $0xb0] sm:$0xff]
      %v5687 = vld [vmem:[%s5663 + $0xb8] sm:$0x3f]
      %v5688 = vld [vmem:[%s5663 + $0xc0] sm:$0xff]
      %v5689 = vld [vmem:[%s5663 + $0xc8] sm:$0x3f]
      %v5690 = vld [vmem:[%s5663 + $0xd0] sm:$0xff]
      %v5691 = vld [vmem:[%s5663 + $0xd8] sm:$0x3f]
      %v5692 = vperm.slane %v1537, 6
      %v5693 = vmul.f32 %v5664, %v5692
      %v5694 = vmul.f32 %v5665, %v5692
      %v5695 = vmul.f32 %v5666, %v5692
      %v5696 = vmul.f32 %v5667, %v5692
      %v5697 = vmul.f32 %v5668, %v5692
      %v5698 = vmul.f32 %v5669, %v5692
      %v5699 = vmul.f32 %v5670, %v5692
      %v5700 = vmul.f32 %v5671, %v5692
      %v5701 = vmul.f32 %v5672, %v5692
      %v5702 = vmul.f32 %v5673, %v5692
      %v5703 = vmul.f32 %v5674, %v5692
      %v5704 = vmul.f32 %v5675, %v5692
      %v5705 = vmul.f32 %v5676, %v5692
      %v5706 = vmul.f32 %v5677, %v5692
      %v5707 = vmul.f32 %v5678, %v5692
      %v5708 = vmul.f32 %v5679, %v5692
      %v5709 = vmul.f32 %v5680, %v5692
      %v5710 = vmul.f32 %v5681, %v5692
      %v5711 = vmul.f32 %v5682, %v5692
      %v5712 = vmul.f32 %v5683, %v5692
      %v5713 = vmul.f32 %v5684, %v5692
      %v5714 = vmul.f32 %v5685, %v5692
      %v5715 = vmul.f32 %v5686, %v5692
      %v5716 = vmul.f32 %v5687, %v5692
      %v5717 = vmul.f32 %v5688, %v5692
      %v5718 = vmul.f32 %v5689, %v5692
      %v5719 = vmul.f32 %v5690, %v5692
      %v5720 = vmul.f32 %v5691, %v5692
      %v5721 = vadd.f32 %v5635, %v5693
      %v5722 = vadd.f32 %v5636, %v5694
      %v5723 = vadd.f32 %v5637, %v5695
      %v5724 = vadd.f32 %v5638, %v5696
      %v5725 = vadd.f32 %v5639, %v5697
      %v5726 = vadd.f32 %v5640, %v5698
      %v5727 = vadd.f32 %v5641, %v5699
      %v5728 = vadd.f32 %v5642, %v5700
      %v5729 = vadd.f32 %v5643, %v5701
      %v5730 = vadd.f32 %v5644, %v5702
      %v5731 = vadd.f32 %v5645, %v5703
      %v5732 = vadd.f32 %v5646, %v5704
      %v5733 = vadd.f32 %v5647, %v5705
      %v5734 = vadd.f32 %v5648, %v5706
      %v5735 = vadd.f32 %v5649, %v5707
      %v5736 = vadd.f32 %v5650, %v5708
      %v5737 = vadd.f32 %v5651, %v5709
      %v5738 = vadd.f32 %v5652, %v5710
      %v5739 = vadd.f32 %v5653, %v5711
      %v5740 = vadd.f32 %v5654, %v5712
      %v5741 = vadd.f32 %v5655, %v5713
      %v5742 = vadd.f32 %v5656, %v5714
      %v5743 = vadd.f32 %v5657, %v5715
      %v5744 = vadd.f32 %v5658, %v5716
      %v5745 = vadd.f32 %v5659, %v5717
      %v5746 = vadd.f32 %v5660, %v5718
      %v5747 = vadd.f32 %v5661, %v5719
      %v5748 = vadd.f32 %v5662, %v5720
      %5749 = vst [vmem:[%s232 + $0x1] sm:$0xff] %v5721
      %5750 = vst [vmem:[%s232 + $0x9] sm:$0x3f] %v5722
      %5751 = vst [vmem:[%s232 + $0xf] sm:$0xff] %v5723
      %5752 = vst [vmem:[%s232 + $0x17] sm:$0x3f] %v5724
      %5753 = vst [vmem:[%s232 + $0x1d] sm:$0xff] %v5725
      %5754 = vst [vmem:[%s232 + $0x25] sm:$0x3f] %v5726
      %5755 = vst [vmem:[%s232 + $0x2b] sm:$0xff] %v5727
      %5756 = vst [vmem:[%s232 + $0x33] sm:$0x3f] %v5728
      %5757 = vst [vmem:[%s232 + $0x39] sm:$0xff] %v5729
      %5758 = vst [vmem:[%s232 + $0x41] sm:$0x3f] %v5730
      %5759 = vst [vmem:[%s232 + $0x47] sm:$0xff] %v5731
      %5760 = vst [vmem:[%s232 + $0x4f] sm:$0x3f] %v5732
      %5761 = vst [vmem:[%s232 + $0x55] sm:$0xff] %v5733
      %5762 = vst [vmem:[%s232 + $0x5d] sm:$0x3f] %v5734
      %5763 = vst [vmem:[%s232 + $0x63] sm:$0xff] %v5735
      %5764 = vst [vmem:[%s232 + $0x6b] sm:$0x3f] %v5736
      %5765 = vst [vmem:[%s232 + $0x71] sm:$0xff] %v5737
      %5766 = vst [vmem:[%s232 + $0x79] sm:$0x3f] %v5738
      %5767 = vst [vmem:[%s232 + $0x7f] sm:$0xff] %v5739
      %5768 = vst [vmem:[%s232 + $0x87] sm:$0x3f] %v5740
      %5769 = vst [vmem:[%s232 + $0x8d] sm:$0xff] %v5741
      %5770 = vst [vmem:[%s232 + $0x95] sm:$0x3f] %v5742
      %5771 = vst [vmem:[%s232 + $0x9b] sm:$0xff] %v5743
      %5772 = vst [vmem:[%s232 + $0xa3] sm:$0x3f] %v5744
      %5773 = vst [vmem:[%s232 + $0xa9] sm:$0xff] %v5745
      %5774 = vst [vmem:[%s232 + $0xb1] sm:$0x3f] %v5746
      %5775 = vst [vmem:[%s232 + $0xb7] sm:$0xff] %v5747
      %5776 = vst [vmem:[%s232 + $0xbf] sm:$0x3f] %v5748
      %p5777 = scmp.lt.s32.totalorder %s18, 1
      %s5778 = scalar_select %p5777, %s18, 1
      %p5779 = scmp.lt.s32.totalorder %s19, 0
      %s5780 = scalar_select %p5779, %s19, 0
      %s5781 = smul.addr %s5778, 25
      %s5782 = sadd.s32 %s5780, %s5781
      %s5783 = smul.addr %s5782, 8
      %s5784 = scalar_lea.vmem %s3, %s5783
      // Predicated region
      $region495: #{tpu_custom_call.1} parent=31 // pred_check
        %p5785 = pneg %p126
      $region496: #{tpu_custom_call.1} parent=31 // pred_check_branch
        %5787 = sbr.rel (%p5785) target = $region498
      $region497: #{tpu_custom_call.1} parent=31 // pred_region
        _
      $region498: #{tpu_custom_call.1} parent=31 // pred_fallthru
        _
    $region32: #{tpu_custom_call.1} parent=5 // pred_fallthru
      _
    %p5788 = scmp.le.s32.totalorder 2, %s9
    // Predicated region
    $region499: #{tpu_custom_call.1} parent=5 // pred_check
      %p5789 = pneg %p5788
    $region500: #{tpu_custom_call.1} parent=5 // pred_check_branch
      %5791 = sbr.rel (%p5789) target = $region502
    $region501: #{tpu_custom_call.1} parent=5 // pred_region
      %s5792 = ssub.s32 %s9, 2
      // Predicated region
      $region503: #{tpu_custom_call.1} parent=501 // pred_check
        %p5793 = pneg %p132
      $region504: #{tpu_custom_call.1} parent=501 // pred_check_branch
        %5795 = sbr.rel (%p5793) target = $region506
      $region505: #{tpu_custom_call.1} parent=501 // pred_region
        %p5796 = scmp.lt.s32.totalorder %s20, 1
        %s5797 = scalar_select %p5796, %s20, 1
        %p5798 = scmp.lt.s32.totalorder %s21, 0
        %s5799 = scalar_select %p5798, %s21, 0
        %s5800 = smul.addr %s5797, 25
        %s5801 = sadd.s32 %s5799, %s5800
        %s5802 = smul.addr %s5801, 8
        %s5803 = scalar_lea.vmem %s3, %s5802
      $region506: #{tpu_custom_call.1} parent=501 // pred_fallthru
        _
    $region502: #{tpu_custom_call.1} parent=5 // pred_fallthru
      _
  $region6: #{tpu_custom_call.1} parent=0 // loop_footer
    %s13 = sadd.s32 1, %s9
  $region7: #{tpu_custom_call.1} parent=0 // loop_footer_branch
    %8 = sbr.rel target = $region3
  $region8: #{tpu_custom_call.1} parent=0 // loop_exit
    _
  %5804 = vsyncmov [#allocation4]
  %s5805 = vpop.sfrf %5804
  %p5806 = scmp.eq.s32.totalorder %s5805, 0
  %p5807 = pneg %p5806
  %5809 = shalt.err (%p5807)
  %5810 = vsyncmov [#allocation5]
  %s5811 = vpop.sfrf %5810
  %p5812 = scmp.eq.s32.totalorder %s5811, 0
  %p5813 = pneg %p5812
  %5815 = shalt.err (%p5813)

</llo_original>
